<compile_context>
chip_gen: v6e
topology: v6e:2x2x1
jax: 0.10.0
libtpu: 0.0.40
codegen_flags: <defaults>
</compile_context>

<pallas_src>
import jax
import jax.numpy as jnp
from jax import lax
from jax.experimental import pallas as pl
from jax.experimental.pallas import tpu as pltpu

HID = 128      # LSTM hidden size
CONV_C = 64    # conv output channels
K = 5          # conv kernel size
EPS = 1e-5


def _vmem():
    return pl.BlockSpec(memory_space=pltpu.MemorySpace.VMEM)


# ------------------------------ fused kernel ----------------------------------
def _fused_kernel(xe_ref, xo_ref, cw_ref, bnb_ref,
                  wih0_ref, whh0_ref, b0_ref,
                  wih1_ref, whh1_ref, b1_ref,
                  w1_ref, b1c_ref, w2_ref, b2c_ref,
                  o_ref,
                  seq0_sc, seq1_sc, seq2_sc, gx_sc):
    T, B, _ = seq0_sc.shape          # (pooled seq len, padded batch, CONV_C)

    # --- Conv1d(1->64, k=5, pad=2) + BN(folded into weight) + ReLU + MaxPool(2)
    # xe_ref / xo_ref: (Tpad, B, 1) zero-haloed even / odd input samples,
    # time-major, batch on sublanes (shaped host-side: no in-kernel relayout).
    # conv out 2j   uses x[2j-2..2j+2] = xe[j], xo[j], xe[j+1], xo[j+1], xe[j+2]
    # conv out 2j+1 uses x[2j-1..2j+3] = xo[j], xe[j+1], xo[j+1], xe[j+2], xo[j+2]
    def tap_e(off):
        return xe_ref[pl.ds(off, T), :, :]                   # (T, B, 1)

    def tap_o(off):
        return xo_ref[pl.ds(off, T), :, :]                   # (T, B, 1)

    w = cw_ref[...]                                          # (K, 1, C), BN-scaled

    def wk(k):
        return w[k:k + 1]                                    # (1, 1, C)

    z_even = (tap_e(0) * wk(0) + tap_o(0) * wk(1) + tap_e(1) * wk(2)
              + tap_o(1) * wk(3) + tap_e(2) * wk(4))
    z_odd = (tap_o(0) * wk(0) + tap_e(1) * wk(1) + tap_o(1) * wk(2)
             + tap_e(2) * wk(3) + tap_o(2) * wk(4))
    shift = bnb_ref[...]                                     # conv bias + BN shift
    a_even = jnp.maximum(z_even + shift, 0.0)                # BN + ReLU
    a_odd = jnp.maximum(z_odd + shift, 0.0)
    seq0_sc[...] = jnp.maximum(a_even, a_odd)                # MaxPool1d(2) -> (T,B,C)

    # --- fused bidirectional LSTM layer ---------------------------------------
    def bilstm(in_ref, out_ref, wih_ref, whh_ref, b_ref):
        D = in_ref.shape[2]
        x_flat = in_ref[...].reshape(T * B, D).astype(jnp.bfloat16)
        # single merged input projection for both directions, off the serial
        # recurrence path: (T*B, D) @ (D, 8H); stored bf16 to halve VMEM.
        gx = (jnp.dot(x_flat, wih_ref[...],
                      preferred_element_type=jnp.float32) + b_ref[...])
        gx_sc[...] = gx.reshape(T, B, 8 * HID).astype(jnp.bfloat16)

        whh = whh_ref[...]                                   # (2H, 8H) bf16 block-diag

        def sig(x):                                          # 1 EUP op per gate
            return 0.5 * jnp.tanh(0.5 * x) + 0.5

        def cell(gates, c_prev):                             # PyTorch order i,f,g,o
            i_g = sig(gates[:, 0 * HID:1 * HID])
            f_g = sig(gates[:, 1 * HID:2 * HID])
            g_g = jnp.tanh(gates[:, 2 * HID:3 * HID])
            o_g = sig(gates[:, 3 * HID:4 * HID])
            c_new = f_g * c_prev + i_g * g_g
            h_new = o_g * jnp.tanh(c_new)
            return h_new, c_new

        h_f = jnp.zeros((B, HID), jnp.float32)
        c_f = jnp.zeros((B, HID), jnp.float32)
        h_b = jnp.zeros((B, HID), jnp.float32)
        c_b = jnp.zeros((B, HID), jnp.float32)
        # fully unrolled recurrence (T small & static); ONE K=256 recurrent
        # matmul per timestep covers both directions.
        for t in range(T):
            tb = T - 1 - t
            h_cat = jnp.concatenate([h_f, h_b], axis=-1).astype(jnp.bfloat16)
            gh = jnp.dot(h_cat, whh, preferred_element_type=jnp.float32)  # (B, 8H)
            gates_f = gx_sc[t, :, 0:4 * HID].astype(jnp.float32) + gh[:, 0:4 * HID]
            gates_b = (gx_sc[tb, :, 4 * HID:8 * HID].astype(jnp.float32)
                       + gh[:, 4 * HID:8 * HID])
            h_f, c_f = cell(gates_f, c_f)
            h_b, c_b = cell(gates_b, c_b)
            out_ref[t, :, 0:HID] = h_f                       # forward half
            out_ref[tb, :, HID:2 * HID] = h_b                # backward half

    bilstm(seq0_sc, seq1_sc, wih0_ref, whh0_ref, b0_ref)
    bilstm(seq1_sc, seq2_sc, wih1_ref, whh1_ref, b1_ref)

    # --- classifier on the last timestep (== lstm_out[:, -1, :]) --------------
    feat = seq2_sc[T - 1]                                    # (B, 2H)
    h = jnp.dot(feat.astype(jnp.bfloat16), w1_ref[...],
                preferred_element_type=jnp.float32) + b1c_ref[...]
    h = jnp.maximum(h, 0.0)                                  # ReLU (Dropout = id)
    o_ref[...] = jnp.dot(h.astype(jnp.bfloat16), w2_ref[...],
                         preferred_element_type=jnp.float32) + b2c_ref[...]


# ------------------------------ forward wrapper --------------------------------
def original_net_forward(x, p):
    # x: (B, 1, L) float32, NCW like the PyTorch module.
    B, _, L = x.shape
    Lh = L // 2                                  # sequence length after MaxPool1d(2)
    Bp = max(8, -(-B // 8) * 8)                  # pad batch to full sublanes
    nc = p['w2'].shape[1]
    ncp = max(128, -(-nc // 128) * 128)          # lane-dense classifier output

    xs = jnp.pad(x[:, 0, :], ((0, Bp - B), (0, 0)))          # (Bp, L)
    # even/odd de-interleave + 1-sample halo, shaped (rows, Bp, 1) on the host
    # so the in-kernel conv taps are plain contiguous slices (no relayout).
    xe = jnp.pad(xs[:, 0::2].T, ((1, 1), (0, 0)))[:, :, None]   # (ceil(L/2)+2, Bp, 1)
    xo = jnp.pad(xs[:, 1::2].T, ((1, 1), (0, 0)))[:, :, None]   # (L//2+2,   Bp, 1)

    w2p = jnp.pad(p['w2'], ((0, 0), (0, ncp - nc)))          # pad classes -> 128 lanes
    b2p = jnp.pad(p['b2'], ((0, 0), (0, ncp - nc)))

    out = pl.pallas_call(
        _fused_kernel,
        out_shape=jax.ShapeDtypeStruct((Bp, ncp), jnp.float32),
        in_specs=[_vmem()] * 14,
        out_specs=_vmem(),
        scratch_shapes=[
            pltpu.VMEM((Lh, Bp, CONV_C), jnp.float32),       # conv out / lstm0 in
            pltpu.VMEM((Lh, Bp, 2 * HID), jnp.float32),      # lstm layer-0 output
            pltpu.VMEM((Lh, Bp, 2 * HID), jnp.float32),      # lstm layer-1 output
            pltpu.VMEM((Lh, Bp, 8 * HID), jnp.bfloat16),     # merged hoisted x@W_ih
        ],
        compiler_params=pltpu.CompilerParams(
            vmem_limit_bytes=64 * 1024 * 1024),
    )(xe, xo, p['conv_w'], p['bn_shift'],
      *p['l0'], *p['l1'],
      p['w1'], p['b1'], w2p, b2p)
    return out[:B, :nc]


# --------------------------- deterministic parameters ---------------------------
def init_params(key, num_classes):
    keys = jax.random.split(key, 16)

    def u(k, shape, scale=0.1):
        return jax.random.uniform(k, shape, jnp.float32, -scale, scale)

    p = {}
    conv_w = u(keys[0], (K, CONV_C))             # == torch conv weight (64,1,5).T
    conv_b = u(keys[1], (CONV_C,))
    gamma = 1.0 + u(keys[2], (CONV_C,))
    beta = u(keys[3], (CONV_C,))
    run_mean = u(keys[4], (CONV_C,))
    run_var = 1.0 + jnp.abs(u(keys[5], (CONV_C,)))
    scale = gamma * lax.rsqrt(run_var + EPS)
    # BN scale folded into conv weight; conv bias + BN shift folded into shift.
    p['conv_w'] = (conv_w * scale[None, :]).reshape(K, 1, CONV_C)
    p['bn_shift'] = (beta - run_mean * scale + conv_b * scale).reshape(1, 1, CONV_C)

    def bilstm_params(kf, kb, d_in):
        kf1, kf2, kf3, kf4 = jax.random.split(kf, 4)
        kb1, kb2, kb3, kb4 = jax.random.split(kb, 4)
        wih_f = u(kf1, (d_in, 4 * HID))          # torch weight_ih_f.T
        whh_f = u(kf2, (HID, 4 * HID))           # torch weight_hh_f.T
        b_f = u(kf3, (4 * HID,)) + u(kf4, (4 * HID,))        # b_ih + b_hh
        wih_b = u(kb1, (d_in, 4 * HID))
        whh_b = u(kb2, (HID, 4 * HID))
        b_b = u(kb3, (4 * HID,)) + u(kb4, (4 * HID,))
        # merged input projection (D, 8H), merged bias (1, 8H) f32,
        # block-diagonal recurrent weight (2H, 8H) bf16.
        wih_cat = jnp.concatenate([wih_f, wih_b], axis=1).astype(jnp.bfloat16)
        b_cat = jnp.concatenate([b_f, b_b]).reshape(1, 8 * HID)
        whh_blk = jnp.zeros((2 * HID, 8 * HID), jnp.float32)
        whh_blk = whh_blk.at[:HID, :4 * HID].set(whh_f)
        whh_blk = whh_blk.at[HID:, 4 * HID:].set(whh_b)
        return (wih_cat, whh_blk.astype(jnp.bfloat16), b_cat)

    p['l0'] = bilstm_params(keys[6], keys[7], CONV_C)
    p['l1'] = bilstm_params(keys[8], keys[9], 2 * HID)

    p['w1'] = u(keys[10], (2 * HID, HID)).astype(jnp.bfloat16)
    p['b1'] = u(keys[11], (HID,)).reshape(1, -1)
    p['w2'] = u(keys[12], (HID, num_classes)).astype(jnp.bfloat16)
    p['b2'] = u(keys[13], (num_classes,)).reshape(1, -1)
    return p


if __name__ == "__main__":
    key = jax.random.PRNGKey(0)
    kx, kp = jax.random.split(key)
    num_classes = 5
    input_size = 16
    batch = 2

    x = jax.random.normal(kx, (batch, 1, input_size), jnp.float32)
    params = init_params(kp, num_classes)

    fwd = jax.jit(original_net_forward)
    logits = fwd(x, params)
    jax.block_until_ready(logits)

    assert logits.shape == (batch, num_classes)
    assert bool(jnp.all(jnp.isfinite(logits)))
    print("KERNEL_OK")
</pallas_src>

<mosaic_0001>
module attributes {stable_mosaic.version = 11 : i64} {
  func.func @_fused_kernel(%arg0: memref<10x8x1xf32, #tpu.memory_space<vmem>>, %arg1: memref<10x8x1xf32, #tpu.memory_space<vmem>>, %arg2: memref<5x1x64xf32, #tpu.memory_space<vmem>>, %arg3: memref<1x1x64xf32, #tpu.memory_space<vmem>>, %arg4: memref<64x1024xbf16, #tpu.memory_space<vmem>>, %arg5: memref<256x1024xbf16, #tpu.memory_space<vmem>>, %arg6: memref<1x1024xf32, #tpu.memory_space<vmem>>, %arg7: memref<256x1024xbf16, #tpu.memory_space<vmem>>, %arg8: memref<256x1024xbf16, #tpu.memory_space<vmem>>, %arg9: memref<1x1024xf32, #tpu.memory_space<vmem>>, %arg10: memref<256x128xbf16, #tpu.memory_space<vmem>>, %arg11: memref<1x128xf32, #tpu.memory_space<vmem>>, %arg12: memref<128x128xbf16, #tpu.memory_space<vmem>>, %arg13: memref<1x128xf32, #tpu.memory_space<vmem>>, %arg14: memref<8x128xf32, #tpu.memory_space<vmem>>, %arg15: memref<8x8x64xf32, #tpu.memory_space<vmem>>, %arg16: memref<8x8x256xf32, #tpu.memory_space<vmem>>, %arg17: memref<8x8x256xf32, #tpu.memory_space<vmem>>, %arg18: memref<8x8x1024xbf16, #tpu.memory_space<vmem>>) attributes {dimension_semantics = [], scalar_prefetch = 0 : i64, scratch_operands = 4 : i64, tpu.core_type = #tpu.core_type<tc>} {
    %c0 = arith.constant 0 : index
    %c0_0 = arith.constant 0 : index
    %c0_1 = arith.constant 0 : index
    %0 = vector.load %arg2[%c0, %c0_0, %c0_1] : memref<5x1x64xf32, #tpu.memory_space<vmem>>, vector<5x1x64xf32>
    %c0_2 = arith.constant 0 : index
    %c0_3 = arith.constant 0 : index
    %c0_4 = arith.constant 0 : index
    %1 = vector.load %arg0[%c0_2, %c0_3, %c0_4] : memref<10x8x1xf32, #tpu.memory_space<vmem>>, vector<8x8x1xf32>
    %2 = vector.extract_strided_slice %0 {offsets = [0, 0, 0], sizes = [1, 1, 64], strides = [1, 1, 1]} : vector<5x1x64xf32> to vector<1x1x64xf32>
    %3 = vector.broadcast %1 : vector<8x8x1xf32> to vector<8x8x64xf32>
    %4 = vector.broadcast %2 : vector<1x1x64xf32> to vector<8x8x64xf32>
    %5 = arith.mulf %3, %4 : vector<8x8x64xf32>
    %c0_5 = arith.constant 0 : index
    %c0_6 = arith.constant 0 : index
    %c0_7 = arith.constant 0 : index
    %6 = vector.load %arg1[%c0_5, %c0_6, %c0_7] : memref<10x8x1xf32, #tpu.memory_space<vmem>>, vector<8x8x1xf32>
    %7 = vector.extract_strided_slice %0 {offsets = [1, 0, 0], sizes = [1, 1, 64], strides = [1, 1, 1]} : vector<5x1x64xf32> to vector<1x1x64xf32>
    %8 = vector.broadcast %6 : vector<8x8x1xf32> to vector<8x8x64xf32>
    %9 = vector.broadcast %7 : vector<1x1x64xf32> to vector<8x8x64xf32>
    %10 = arith.mulf %8, %9 : vector<8x8x64xf32>
    %11 = arith.addf %5, %10 : vector<8x8x64xf32>
    %c1 = arith.constant 1 : index
    %c0_8 = arith.constant 0 : index
    %c0_9 = arith.constant 0 : index
    %12 = vector.load %arg0[%c1, %c0_8, %c0_9] : memref<10x8x1xf32, #tpu.memory_space<vmem>>, vector<8x8x1xf32>
    %13 = vector.extract_strided_slice %0 {offsets = [2, 0, 0], sizes = [1, 1, 64], strides = [1, 1, 1]} : vector<5x1x64xf32> to vector<1x1x64xf32>
    %14 = vector.broadcast %12 : vector<8x8x1xf32> to vector<8x8x64xf32>
    %15 = vector.broadcast %13 : vector<1x1x64xf32> to vector<8x8x64xf32>
    %16 = arith.mulf %14, %15 : vector<8x8x64xf32>
    %17 = arith.addf %11, %16 : vector<8x8x64xf32>
    %c1_10 = arith.constant 1 : index
    %c0_11 = arith.constant 0 : index
    %c0_12 = arith.constant 0 : index
    %18 = vector.load %arg1[%c1_10, %c0_11, %c0_12] : memref<10x8x1xf32, #tpu.memory_space<vmem>>, vector<8x8x1xf32>
    %19 = vector.extract_strided_slice %0 {offsets = [3, 0, 0], sizes = [1, 1, 64], strides = [1, 1, 1]} : vector<5x1x64xf32> to vector<1x1x64xf32>
    %20 = vector.broadcast %18 : vector<8x8x1xf32> to vector<8x8x64xf32>
    %21 = vector.broadcast %19 : vector<1x1x64xf32> to vector<8x8x64xf32>
    %22 = arith.mulf %20, %21 : vector<8x8x64xf32>
    %23 = arith.addf %17, %22 : vector<8x8x64xf32>
    %c2 = arith.constant 2 : index
    %c0_13 = arith.constant 0 : index
    %c0_14 = arith.constant 0 : index
    %24 = vector.load %arg0[%c2, %c0_13, %c0_14] : memref<10x8x1xf32, #tpu.memory_space<vmem>>, vector<8x8x1xf32>
    %25 = vector.extract_strided_slice %0 {offsets = [4, 0, 0], sizes = [1, 1, 64], strides = [1, 1, 1]} : vector<5x1x64xf32> to vector<1x1x64xf32>
    %26 = vector.broadcast %24 : vector<8x8x1xf32> to vector<8x8x64xf32>
    %27 = vector.broadcast %25 : vector<1x1x64xf32> to vector<8x8x64xf32>
    %28 = arith.mulf %26, %27 : vector<8x8x64xf32>
    %29 = arith.addf %23, %28 : vector<8x8x64xf32>
    %c0_15 = arith.constant 0 : index
    %c0_16 = arith.constant 0 : index
    %c0_17 = arith.constant 0 : index
    %30 = vector.load %arg1[%c0_15, %c0_16, %c0_17] : memref<10x8x1xf32, #tpu.memory_space<vmem>>, vector<8x8x1xf32>
    %31 = vector.extract_strided_slice %0 {offsets = [0, 0, 0], sizes = [1, 1, 64], strides = [1, 1, 1]} : vector<5x1x64xf32> to vector<1x1x64xf32>
    %32 = vector.broadcast %30 : vector<8x8x1xf32> to vector<8x8x64xf32>
    %33 = vector.broadcast %31 : vector<1x1x64xf32> to vector<8x8x64xf32>
    %34 = arith.mulf %32, %33 : vector<8x8x64xf32>
    %c1_18 = arith.constant 1 : index
    %c0_19 = arith.constant 0 : index
    %c0_20 = arith.constant 0 : index
    %35 = vector.load %arg0[%c1_18, %c0_19, %c0_20] : memref<10x8x1xf32, #tpu.memory_space<vmem>>, vector<8x8x1xf32>
    %36 = vector.extract_strided_slice %0 {offsets = [1, 0, 0], sizes = [1, 1, 64], strides = [1, 1, 1]} : vector<5x1x64xf32> to vector<1x1x64xf32>
    %37 = vector.broadcast %35 : vector<8x8x1xf32> to vector<8x8x64xf32>
    %38 = vector.broadcast %36 : vector<1x1x64xf32> to vector<8x8x64xf32>
    %39 = arith.mulf %37, %38 : vector<8x8x64xf32>
    %40 = arith.addf %34, %39 : vector<8x8x64xf32>
    %c1_21 = arith.constant 1 : index
    %c0_22 = arith.constant 0 : index
    %c0_23 = arith.constant 0 : index
    %41 = vector.load %arg1[%c1_21, %c0_22, %c0_23] : memref<10x8x1xf32, #tpu.memory_space<vmem>>, vector<8x8x1xf32>
    %42 = vector.extract_strided_slice %0 {offsets = [2, 0, 0], sizes = [1, 1, 64], strides = [1, 1, 1]} : vector<5x1x64xf32> to vector<1x1x64xf32>
    %43 = vector.broadcast %41 : vector<8x8x1xf32> to vector<8x8x64xf32>
    %44 = vector.broadcast %42 : vector<1x1x64xf32> to vector<8x8x64xf32>
    %45 = arith.mulf %43, %44 : vector<8x8x64xf32>
    %46 = arith.addf %40, %45 : vector<8x8x64xf32>
    %c2_24 = arith.constant 2 : index
    %c0_25 = arith.constant 0 : index
    %c0_26 = arith.constant 0 : index
    %47 = vector.load %arg0[%c2_24, %c0_25, %c0_26] : memref<10x8x1xf32, #tpu.memory_space<vmem>>, vector<8x8x1xf32>
    %48 = vector.extract_strided_slice %0 {offsets = [3, 0, 0], sizes = [1, 1, 64], strides = [1, 1, 1]} : vector<5x1x64xf32> to vector<1x1x64xf32>
    %49 = vector.broadcast %47 : vector<8x8x1xf32> to vector<8x8x64xf32>
    %50 = vector.broadcast %48 : vector<1x1x64xf32> to vector<8x8x64xf32>
    %51 = arith.mulf %49, %50 : vector<8x8x64xf32>
    %52 = arith.addf %46, %51 : vector<8x8x64xf32>
    %c2_27 = arith.constant 2 : index
    %c0_28 = arith.constant 0 : index
    %c0_29 = arith.constant 0 : index
    %53 = vector.load %arg1[%c2_27, %c0_28, %c0_29] : memref<10x8x1xf32, #tpu.memory_space<vmem>>, vector<8x8x1xf32>
    %54 = vector.extract_strided_slice %0 {offsets = [4, 0, 0], sizes = [1, 1, 64], strides = [1, 1, 1]} : vector<5x1x64xf32> to vector<1x1x64xf32>
    %55 = vector.broadcast %53 : vector<8x8x1xf32> to vector<8x8x64xf32>
    %56 = vector.broadcast %54 : vector<1x1x64xf32> to vector<8x8x64xf32>
    %57 = arith.mulf %55, %56 : vector<8x8x64xf32>
    %58 = arith.addf %52, %57 : vector<8x8x64xf32>
    %c0_30 = arith.constant 0 : index
    %c0_31 = arith.constant 0 : index
    %c0_32 = arith.constant 0 : index
    %59 = vector.load %arg3[%c0_30, %c0_31, %c0_32] : memref<1x1x64xf32, #tpu.memory_space<vmem>>, vector<1x1x64xf32>
    %60 = vector.broadcast %59 : vector<1x1x64xf32> to vector<8x8x64xf32>
    %61 = arith.addf %29, %60 : vector<8x8x64xf32>
    %cst = arith.constant 0.000000e+00 : f32
    %62 = vector.broadcast %cst : f32 to vector<8x8x64xf32>
    %63 = arith.maximumf %61, %62 : vector<8x8x64xf32>
    %64 = vector.broadcast %59 : vector<1x1x64xf32> to vector<8x8x64xf32>
    %65 = arith.addf %58, %64 : vector<8x8x64xf32>
    %cst_33 = arith.constant 0.000000e+00 : f32
    %66 = vector.broadcast %cst_33 : f32 to vector<8x8x64xf32>
    %67 = arith.maximumf %65, %66 : vector<8x8x64xf32>
    %68 = arith.maximumf %63, %67 : vector<8x8x64xf32>
    %c0_34 = arith.constant 0 : index
    %c0_35 = arith.constant 0 : index
    %c0_36 = arith.constant 0 : index
    %69 = vector.load %arg15[%c0_34, %c0_35, %c0_36] : memref<8x8x64xf32, #tpu.memory_space<vmem>>, vector<8x8x64xf32>
    tpu.vector_store %arg15[%c0_34, %c0_35, %c0_36], %68 {strides = array<i32>} : memref<8x8x64xf32, #tpu.memory_space<vmem>>, vector<8x8x64xf32>,
    %c0_37 = arith.constant 0 : index
    %c0_38 = arith.constant 0 : index
    %c0_39 = arith.constant 0 : index
    %70 = vector.load %arg15[%c0_37, %c0_38, %c0_39] : memref<8x8x64xf32, #tpu.memory_space<vmem>>, vector<8x8x64xf32>
    %71 = vector.shape_cast %70 : vector<8x8x64xf32> to vector<64x64xf32>
    %72 = arith.truncf %71 : vector<64x64xf32> to vector<64x64xbf16>
    %c0_40 = arith.constant 0 : index
    %c0_41 = arith.constant 0 : index
    %73 = vector.load %arg4[%c0_40, %c0_41] : memref<64x1024xbf16, #tpu.memory_space<vmem>>, vector<64x1024xbf16>
    %cst_42 = arith.constant dense<0.000000e+00> : vector<64x1024xf32>
    %74 = tpu.matmul %72, %73, %cst_42 {dimension_numbers = #tpu.dot_dimension_numbers<[1], [0], [0], [1], [0, 0, 1, 1], [], []>} : vector<64x64xbf16>, vector<64x1024xbf16>, vector<64x1024xf32> -> vector<64x1024xf32>
    %c0_43 = arith.constant 0 : index
    %c0_44 = arith.constant 0 : index
    %75 = vector.load %arg6[%c0_43, %c0_44] : memref<1x1024xf32, #tpu.memory_space<vmem>>, vector<1x1024xf32>
    %76 = vector.broadcast %75 : vector<1x1024xf32> to vector<64x1024xf32>
    %77 = arith.addf %74, %76 : vector<64x1024xf32>
    %78 = vector.shape_cast %77 : vector<64x1024xf32> to vector<8x8x1024xf32>
    %79 = arith.truncf %78 : vector<8x8x1024xf32> to vector<8x8x1024xbf16>
    %c0_45 = arith.constant 0 : index
    %c0_46 = arith.constant 0 : index
    %c0_47 = arith.constant 0 : index
    %80 = vector.load %arg18[%c0_45, %c0_46, %c0_47] : memref<8x8x1024xbf16, #tpu.memory_space<vmem>>, vector<8x8x1024xbf16>
    tpu.vector_store %arg18[%c0_45, %c0_46, %c0_47], %79 {strides = array<i32>} : memref<8x8x1024xbf16, #tpu.memory_space<vmem>>, vector<8x8x1024xbf16>,
    %c0_48 = arith.constant 0 : index
    %c0_49 = arith.constant 0 : index
    %81 = vector.load %arg5[%c0_48, %c0_49] : memref<256x1024xbf16, #tpu.memory_space<vmem>>, vector<256x1024xbf16>
    %cst_50 = arith.constant 0.000000e+00 : f32
    %82 = vector.broadcast %cst_50 : f32 to vector<8x128xf32>
    %cst_51 = arith.constant 0.000000e+00 : f32
    %83 = vector.broadcast %cst_51 : f32 to vector<8x128xf32>
    %cst_52 = arith.constant 0.000000e+00 : f32
    %84 = vector.broadcast %cst_52 : f32 to vector<8x128xf32>
    %cst_53 = arith.constant 0.000000e+00 : f32
    %85 = vector.broadcast %cst_53 : f32 to vector<8x128xf32>
    %86 = tpu.concatenate %82, %84 in 1 : vector<8x128xf32>, vector<8x128xf32> -> vector<8x256xf32>
    %87 = arith.truncf %86 : vector<8x256xf32> to vector<8x256xbf16>
    %cst_54 = arith.constant dense<0.000000e+00> : vector<8x1024xf32>
    %88 = tpu.matmul %87, %81, %cst_54 {dimension_numbers = #tpu.dot_dimension_numbers<[1], [0], [0], [1], [0, 0, 1, 1], [], []>} : vector<8x256xbf16>, vector<256x1024xbf16>, vector<8x1024xf32> -> vector<8x1024xf32>
    %c0_55 = arith.constant 0 : index
    %c0_56 = arith.constant 0 : index
    %c0_57 = arith.constant 0 : index
    %89 = vector.load %arg18[%c0_55, %c0_56, %c0_57] : memref<8x8x1024xbf16, #tpu.memory_space<vmem>>, vector<1x8x512xbf16>
    %90 = vector.shape_cast %89 : vector<1x8x512xbf16> to vector<8x512xbf16>
    %91 = arith.extf %90 : vector<8x512xbf16> to vector<8x512xf32>
    %92 = vector.extract_strided_slice %88 {offsets = [0, 0], sizes = [8, 512], strides = [1, 1]} : vector<8x1024xf32> to vector<8x512xf32>
    %93 = arith.addf %91, %92 : vector<8x512xf32>
    %c7 = arith.constant 7 : index
    %c0_58 = arith.constant 0 : index
    %c512 = arith.constant 512 : index
    %94 = vector.load %arg18[%c7, %c0_58, %c512] : memref<8x8x1024xbf16, #tpu.memory_space<vmem>>, vector<1x8x512xbf16>
    %95 = vector.shape_cast %94 : vector<1x8x512xbf16> to vector<8x512xbf16>
    %96 = arith.extf %95 : vector<8x512xbf16> to vector<8x512xf32>
    %97 = vector.extract_strided_slice %88 {offsets = [0, 512], sizes = [8, 512], strides = [1, 1]} : vector<8x1024xf32> to vector<8x512xf32>
    %98 = arith.addf %96, %97 : vector<8x512xf32>
    %99 = vector.extract_strided_slice %93 {offsets = [0, 0], sizes = [8, 128], strides = [1, 1]} : vector<8x512xf32> to vector<8x128xf32>
    %cst_59 = arith.constant 5.000000e-01 : f32
    %100 = vector.broadcast %cst_59 : f32 to vector<8x128xf32>
    %101 = arith.mulf %100, %99 : vector<8x128xf32>
    %102 = math.tanh %101 : vector<8x128xf32>
    %cst_60 = arith.constant 5.000000e-01 : f32
    %103 = vector.broadcast %cst_60 : f32 to vector<8x128xf32>
    %104 = arith.mulf %103, %102 : vector<8x128xf32>
    %cst_61 = arith.constant 5.000000e-01 : f32
    %105 = vector.broadcast %cst_61 : f32 to vector<8x128xf32>
    %106 = arith.addf %104, %105 : vector<8x128xf32>
    %107 = vector.extract_strided_slice %93 {offsets = [0, 128], sizes = [8, 128], strides = [1, 1]} : vector<8x512xf32> to vector<8x128xf32>
    %cst_62 = arith.constant 5.000000e-01 : f32
    %108 = vector.broadcast %cst_62 : f32 to vector<8x128xf32>
    %109 = arith.mulf %108, %107 : vector<8x128xf32>
    %110 = math.tanh %109 : vector<8x128xf32>
    %cst_63 = arith.constant 5.000000e-01 : f32
    %111 = vector.broadcast %cst_63 : f32 to vector<8x128xf32>
    %112 = arith.mulf %111, %110 : vector<8x128xf32>
    %cst_64 = arith.constant 5.000000e-01 : f32
    %113 = vector.broadcast %cst_64 : f32 to vector<8x128xf32>
    %114 = arith.addf %112, %113 : vector<8x128xf32>
    %115 = vector.extract_strided_slice %93 {offsets = [0, 256], sizes = [8, 128], strides = [1, 1]} : vector<8x512xf32> to vector<8x128xf32>
    %116 = math.tanh %115 : vector<8x128xf32>
    %117 = vector.extract_strided_slice %93 {offsets = [0, 384], sizes = [8, 128], strides = [1, 1]} : vector<8x512xf32> to vector<8x128xf32>
    %cst_65 = arith.constant 5.000000e-01 : f32
    %118 = vector.broadcast %cst_65 : f32 to vector<8x128xf32>
    %119 = arith.mulf %118, %117 : vector<8x128xf32>
    %120 = math.tanh %119 : vector<8x128xf32>
    %cst_66 = arith.constant 5.000000e-01 : f32
    %121 = vector.broadcast %cst_66 : f32 to vector<8x128xf32>
    %122 = arith.mulf %121, %120 : vector<8x128xf32>
    %cst_67 = arith.constant 5.000000e-01 : f32
    %123 = vector.broadcast %cst_67 : f32 to vector<8x128xf32>
    %124 = arith.addf %122, %123 : vector<8x128xf32>
    %125 = arith.mulf %114, %83 : vector<8x128xf32>
    %126 = arith.mulf %106, %116 : vector<8x128xf32>
    %127 = arith.addf %125, %126 : vector<8x128xf32>
    %128 = math.tanh %127 : vector<8x128xf32>
    %129 = arith.mulf %124, %128 : vector<8x128xf32>
    %130 = vector.extract_strided_slice %98 {offsets = [0, 0], sizes = [8, 128], strides = [1, 1]} : vector<8x512xf32> to vector<8x128xf32>
    %cst_68 = arith.constant 5.000000e-01 : f32
    %131 = vector.broadcast %cst_68 : f32 to vector<8x128xf32>
    %132 = arith.mulf %131, %130 : vector<8x128xf32>
    %133 = math.tanh %132 : vector<8x128xf32>
    %cst_69 = arith.constant 5.000000e-01 : f32
    %134 = vector.broadcast %cst_69 : f32 to vector<8x128xf32>
    %135 = arith.mulf %134, %133 : vector<8x128xf32>
    %cst_70 = arith.constant 5.000000e-01 : f32
    %136 = vector.broadcast %cst_70 : f32 to vector<8x128xf32>
    %137 = arith.addf %135, %136 : vector<8x128xf32>
    %138 = vector.extract_strided_slice %98 {offsets = [0, 128], sizes = [8, 128], strides = [1, 1]} : vector<8x512xf32> to vector<8x128xf32>
    %cst_71 = arith.constant 5.000000e-01 : f32
    %139 = vector.broadcast %cst_71 : f32 to vector<8x128xf32>
    %140 = arith.mulf %139, %138 : vector<8x128xf32>
    %141 = math.tanh %140 : vector<8x128xf32>
    %cst_72 = arith.constant 5.000000e-01 : f32
    %142 = vector.broadcast %cst_72 : f32 to vector<8x128xf32>
    %143 = arith.mulf %142, %141 : vector<8x128xf32>
    %cst_73 = arith.constant 5.000000e-01 : f32
    %144 = vector.broadcast %cst_73 : f32 to vector<8x128xf32>
    %145 = arith.addf %143, %144 : vector<8x128xf32>
    %146 = vector.extract_strided_slice %98 {offsets = [0, 256], sizes = [8, 128], strides = [1, 1]} : vector<8x512xf32> to vector<8x128xf32>
    %147 = math.tanh %146 : vector<8x128xf32>
    %148 = vector.extract_strided_slice %98 {offsets = [0, 384], sizes = [8, 128], strides = [1, 1]} : vector<8x512xf32> to vector<8x128xf32>
    %cst_74 = arith.constant 5.000000e-01 : f32
    %149 = vector.broadcast %cst_74 : f32 to vector<8x128xf32>
    %150 = arith.mulf %149, %148 : vector<8x128xf32>
    %151 = math.tanh %150 : vector<8x128xf32>
    %cst_75 = arith.constant 5.000000e-01 : f32
    %152 = vector.broadcast %cst_75 : f32 to vector<8x128xf32>
    %153 = arith.mulf %152, %151 : vector<8x128xf32>
    %cst_76 = arith.constant 5.000000e-01 : f32
    %154 = vector.broadcast %cst_76 : f32 to vector<8x128xf32>
    %155 = arith.addf %153, %154 : vector<8x128xf32>
    %156 = arith.mulf %145, %85 : vector<8x128xf32>
    %157 = arith.mulf %137, %147 : vector<8x128xf32>
    %158 = arith.addf %156, %157 : vector<8x128xf32>
    %159 = math.tanh %158 : vector<8x128xf32>
    %160 = arith.mulf %155, %159 : vector<8x128xf32>
    %c0_77 = arith.constant 0 : index
    %c0_78 = arith.constant 0 : index
    %c0_79 = arith.constant 0 : index
    %161 = vector.load %arg16[%c0_77, %c0_78, %c0_79] : memref<8x8x256xf32, #tpu.memory_space<vmem>>, vector<1x8x128xf32>
    %162 = vector.shape_cast %161 : vector<1x8x128xf32> to vector<8x128xf32>
    %163 = vector.shape_cast %129 : vector<8x128xf32> to vector<1x8x128xf32>
    tpu.vector_store %arg16[%c0_77, %c0_78, %c0_79], %163 {strides = array<i32>} : memref<8x8x256xf32, #tpu.memory_space<vmem>>, vector<1x8x128xf32>,
    %c7_80 = arith.constant 7 : index
    %c0_81 = arith.constant 0 : index
    %c128 = arith.constant 128 : index
    %164 = vector.load %arg16[%c7_80, %c0_81, %c128] : memref<8x8x256xf32, #tpu.memory_space<vmem>>, vector<1x8x128xf32>
    %165 = vector.shape_cast %164 : vector<1x8x128xf32> to vector<8x128xf32>
    %166 = vector.shape_cast %160 : vector<8x128xf32> to vector<1x8x128xf32>
    tpu.vector_store %arg16[%c7_80, %c0_81, %c128], %166 {strides = array<i32>} : memref<8x8x256xf32, #tpu.memory_space<vmem>>, vector<1x8x128xf32>,
    %167 = tpu.concatenate %129, %160 in 1 : vector<8x128xf32>, vector<8x128xf32> -> vector<8x256xf32>
    %168 = arith.truncf %167 : vector<8x256xf32> to vector<8x256xbf16>
    %cst_82 = arith.constant dense<0.000000e+00> : vector<8x1024xf32>
    %169 = tpu.matmul %168, %81, %cst_82 {dimension_numbers = #tpu.dot_dimension_numbers<[1], [0], [0], [1], [0, 0, 1, 1], [], []>} : vector<8x256xbf16>, vector<256x1024xbf16>, vector<8x1024xf32> -> vector<8x1024xf32>
    %c1_83 = arith.constant 1 : index
    %c0_84 = arith.constant 0 : index
    %c0_85 = arith.constant 0 : index
    %170 = vector.load %arg18[%c1_83, %c0_84, %c0_85] : memref<8x8x1024xbf16, #tpu.memory_space<vmem>>, vector<1x8x512xbf16>
    %171 = vector.shape_cast %170 : vector<1x8x512xbf16> to vector<8x512xbf16>
    %172 = arith.extf %171 : vector<8x512xbf16> to vector<8x512xf32>
    %173 = vector.extract_strided_slice %169 {offsets = [0, 0], sizes = [8, 512], strides = [1, 1]} : vector<8x1024xf32> to vector<8x512xf32>
    %174 = arith.addf %172, %173 : vector<8x512xf32>
    %c6 = arith.constant 6 : index
    %c0_86 = arith.constant 0 : index
    %c512_87 = arith.constant 512 : index
    %175 = vector.load %arg18[%c6, %c0_86, %c512_87] : memref<8x8x1024xbf16, #tpu.memory_space<vmem>>, vector<1x8x512xbf16>
    %176 = vector.shape_cast %175 : vector<1x8x512xbf16> to vector<8x512xbf16>
    %177 = arith.extf %176 : vector<8x512xbf16> to vector<8x512xf32>
    %178 = vector.extract_strided_slice %169 {offsets = [0, 512], sizes = [8, 512], strides = [1, 1]} : vector<8x1024xf32> to vector<8x512xf32>
    %179 = arith.addf %177, %178 : vector<8x512xf32>
    %180 = vector.extract_strided_slice %174 {offsets = [0, 0], sizes = [8, 128], strides = [1, 1]} : vector<8x512xf32> to vector<8x128xf32>
    %cst_88 = arith.constant 5.000000e-01 : f32
    %181 = vector.broadcast %cst_88 : f32 to vector<8x128xf32>
    %182 = arith.mulf %181, %180 : vector<8x128xf32>
    %183 = math.tanh %182 : vector<8x128xf32>
    %cst_89 = arith.constant 5.000000e-01 : f32
    %184 = vector.broadcast %cst_89 : f32 to vector<8x128xf32>
    %185 = arith.mulf %184, %183 : vector<8x128xf32>
    %cst_90 = arith.constant 5.000000e-01 : f32
    %186 = vector.broadcast %cst_90 : f32 to vector<8x128xf32>
    %187 = arith.addf %185, %186 : vector<8x128xf32>
    %188 = vector.extract_strided_slice %174 {offsets = [0, 128], sizes = [8, 128], strides = [1, 1]} : vector<8x512xf32> to vector<8x128xf32>
    %cst_91 = arith.constant 5.000000e-01 : f32
    %189 = vector.broadcast %cst_91 : f32 to vector<8x128xf32>
    %190 = arith.mulf %189, %188 : vector<8x128xf32>
    %191 = math.tanh %190 : vector<8x128xf32>
    %cst_92 = arith.constant 5.000000e-01 : f32
    %192 = vector.broadcast %cst_92 : f32 to vector<8x128xf32>
    %193 = arith.mulf %192, %191 : vector<8x128xf32>
    %cst_93 = arith.constant 5.000000e-01 : f32
    %194 = vector.broadcast %cst_93 : f32 to vector<8x128xf32>
    %195 = arith.addf %193, %194 : vector<8x128xf32>
    %196 = vector.extract_strided_slice %174 {offsets = [0, 256], sizes = [8, 128], strides = [1, 1]} : vector<8x512xf32> to vector<8x128xf32>
    %197 = math.tanh %196 : vector<8x128xf32>
    %198 = vector.extract_strided_slice %174 {offsets = [0, 384], sizes = [8, 128], strides = [1, 1]} : vector<8x512xf32> to vector<8x128xf32>
    %cst_94 = arith.constant 5.000000e-01 : f32
    %199 = vector.broadcast %cst_94 : f32 to vector<8x128xf32>
    %200 = arith.mulf %199, %198 : vector<8x128xf32>
    %201 = math.tanh %200 : vector<8x128xf32>
    %cst_95 = arith.constant 5.000000e-01 : f32
    %202 = vector.broadcast %cst_95 : f32 to vector<8x128xf32>
    %203 = arith.mulf %202, %201 : vector<8x128xf32>
    %cst_96 = arith.constant 5.000000e-01 : f32
    %204 = vector.broadcast %cst_96 : f32 to vector<8x128xf32>
    %205 = arith.addf %203, %204 : vector<8x128xf32>
    %206 = arith.mulf %195, %127 : vector<8x128xf32>
    %207 = arith.mulf %187, %197 : vector<8x128xf32>
    %208 = arith.addf %206, %207 : vector<8x128xf32>
    %209 = math.tanh %208 : vector<8x128xf32>
    %210 = arith.mulf %205, %209 : vector<8x128xf32>
    %211 = vector.extract_strided_slice %179 {offsets = [0, 0], sizes = [8, 128], strides = [1, 1]} : vector<8x512xf32> to vector<8x128xf32>
    %cst_97 = arith.constant 5.000000e-01 : f32
    %212 = vector.broadcast %cst_97 : f32 to vector<8x128xf32>
    %213 = arith.mulf %212, %211 : vector<8x128xf32>
    %214 = math.tanh %213 : vector<8x128xf32>
    %cst_98 = arith.constant 5.000000e-01 : f32
    %215 = vector.broadcast %cst_98 : f32 to vector<8x128xf32>
    %216 = arith.mulf %215, %214 : vector<8x128xf32>
    %cst_99 = arith.constant 5.000000e-01 : f32
    %217 = vector.broadcast %cst_99 : f32 to vector<8x128xf32>
    %218 = arith.addf %216, %217 : vector<8x128xf32>
    %219 = vector.extract_strided_slice %179 {offsets = [0, 128], sizes = [8, 128], strides = [1, 1]} : vector<8x512xf32> to vector<8x128xf32>
    %cst_100 = arith.constant 5.000000e-01 : f32
    %220 = vector.broadcast %cst_100 : f32 to vector<8x128xf32>
    %221 = arith.mulf %220, %219 : vector<8x128xf32>
    %222 = math.tanh %221 : vector<8x128xf32>
    %cst_101 = arith.constant 5.000000e-01 : f32
    %223 = vector.broadcast %cst_101 : f32 to vector<8x128xf32>
    %224 = arith.mulf %223, %222 : vector<8x128xf32>
    %cst_102 = arith.constant 5.000000e-01 : f32
    %225 = vector.broadcast %cst_102 : f32 to vector<8x128xf32>
    %226 = arith.addf %224, %225 : vector<8x128xf32>
    %227 = vector.extract_strided_slice %179 {offsets = [0, 256], sizes = [8, 128], strides = [1, 1]} : vector<8x512xf32> to vector<8x128xf32>
    %228 = math.tanh %227 : vector<8x128xf32>
    %229 = vector.extract_strided_slice %179 {offsets = [0, 384], sizes = [8, 128], strides = [1, 1]} : vector<8x512xf32> to vector<8x128xf32>
    %cst_103 = arith.constant 5.000000e-01 : f32
    %230 = vector.broadcast %cst_103 : f32 to vector<8x128xf32>
    %231 = arith.mulf %230, %229 : vector<8x128xf32>
    %232 = math.tanh %231 : vector<8x128xf32>
    %cst_104 = arith.constant 5.000000e-01 : f32
    %233 = vector.broadcast %cst_104 : f32 to vector<8x128xf32>
    %234 = arith.mulf %233, %232 : vector<8x128xf32>
    %cst_105 = arith.constant 5.000000e-01 : f32
    %235 = vector.broadcast %cst_105 : f32 to vector<8x128xf32>
    %236 = arith.addf %234, %235 : vector<8x128xf32>
    %237 = arith.mulf %226, %158 : vector<8x128xf32>
    %238 = arith.mulf %218, %228 : vector<8x128xf32>
    %239 = arith.addf %237, %238 : vector<8x128xf32>
    %240 = math.tanh %239 : vector<8x128xf32>
    %241 = arith.mulf %236, %240 : vector<8x128xf32>
    %c1_106 = arith.constant 1 : index
    %c0_107 = arith.constant 0 : index
    %c0_108 = arith.constant 0 : index
    %242 = vector.load %arg16[%c1_106, %c0_107, %c0_108] : memref<8x8x256xf32, #tpu.memory_space<vmem>>, vector<1x8x128xf32>
    %243 = vector.shape_cast %242 : vector<1x8x128xf32> to vector<8x128xf32>
    %244 = vector.shape_cast %210 : vector<8x128xf32> to vector<1x8x128xf32>
    tpu.vector_store %arg16[%c1_106, %c0_107, %c0_108], %244 {strides = array<i32>} : memref<8x8x256xf32, #tpu.memory_space<vmem>>, vector<1x8x128xf32>,
    %c6_109 = arith.constant 6 : index
    %c0_110 = arith.constant 0 : index
    %c128_111 = arith.constant 128 : index
    %245 = vector.load %arg16[%c6_109, %c0_110, %c128_111] : memref<8x8x256xf32, #tpu.memory_space<vmem>>, vector<1x8x128xf32>
    %246 = vector.shape_cast %245 : vector<1x8x128xf32> to vector<8x128xf32>
    %247 = vector.shape_cast %241 : vector<8x128xf32> to vector<1x8x128xf32>
    tpu.vector_store %arg16[%c6_109, %c0_110, %c128_111], %247 {strides = array<i32>} : memref<8x8x256xf32, #tpu.memory_space<vmem>>, vector<1x8x128xf32>,
    %248 = tpu.concatenate %210, %241 in 1 : vector<8x128xf32>, vector<8x128xf32> -> vector<8x256xf32>
    %249 = arith.truncf %248 : vector<8x256xf32> to vector<8x256xbf16>
    %cst_112 = arith.constant dense<0.000000e+00> : vector<8x1024xf32>
    %250 = tpu.matmul %249, %81, %cst_112 {dimension_numbers = #tpu.dot_dimension_numbers<[1], [0], [0], [1], [0, 0, 1, 1], [], []>} : vector<8x256xbf16>, vector<256x1024xbf16>, vector<8x1024xf32> -> vector<8x1024xf32>
    %c2_113 = arith.constant 2 : index
    %c0_114 = arith.constant 0 : index
    %c0_115 = arith.constant 0 : index
    %251 = vector.load %arg18[%c2_113, %c0_114, %c0_115] : memref<8x8x1024xbf16, #tpu.memory_space<vmem>>, vector<1x8x512xbf16>
    %252 = vector.shape_cast %251 : vector<1x8x512xbf16> to vector<8x512xbf16>
    %253 = arith.extf %252 : vector<8x512xbf16> to vector<8x512xf32>
    %254 = vector.extract_strided_slice %250 {offsets = [0, 0], sizes = [8, 512], strides = [1, 1]} : vector<8x1024xf32> to vector<8x512xf32>
    %255 = arith.addf %253, %254 : vector<8x512xf32>
    %c5 = arith.constant 5 : index
    %c0_116 = arith.constant 0 : index
    %c512_117 = arith.constant 512 : index
    %256 = vector.load %arg18[%c5, %c0_116, %c512_117] : memref<8x8x1024xbf16, #tpu.memory_space<vmem>>, vector<1x8x512xbf16>
    %257 = vector.shape_cast %256 : vector<1x8x512xbf16> to vector<8x512xbf16>
    %258 = arith.extf %257 : vector<8x512xbf16> to vector<8x512xf32>
    %259 = vector.extract_strided_slice %250 {offsets = [0, 512], sizes = [8, 512], strides = [1, 1]} : vector<8x1024xf32> to vector<8x512xf32>
    %260 = arith.addf %258, %259 : vector<8x512xf32>
    %261 = vector.extract_strided_slice %255 {offsets = [0, 0], sizes = [8, 128], strides = [1, 1]} : vector<8x512xf32> to vector<8x128xf32>
    %cst_118 = arith.constant 5.000000e-01 : f32
    %262 = vector.broadcast %cst_118 : f32 to vector<8x128xf32>
    %263 = arith.mulf %262, %261 : vector<8x128xf32>
    %264 = math.tanh %263 : vector<8x128xf32>
    %cst_119 = arith.constant 5.000000e-01 : f32
    %265 = vector.broadcast %cst_119 : f32 to vector<8x128xf32>
    %266 = arith.mulf %265, %264 : vector<8x128xf32>
    %cst_120 = arith.constant 5.000000e-01 : f32
    %267 = vector.broadcast %cst_120 : f32 to vector<8x128xf32>
    %268 = arith.addf %266, %267 : vector<8x128xf32>
    %269 = vector.extract_strided_slice %255 {offsets = [0, 128], sizes = [8, 128], strides = [1, 1]} : vector<8x512xf32> to vector<8x128xf32>
    %cst_121 = arith.constant 5.000000e-01 : f32
    %270 = vector.broadcast %cst_121 : f32 to vector<8x128xf32>
    %271 = arith.mulf %270, %269 : vector<8x128xf32>
    %272 = math.tanh %271 : vector<8x128xf32>
    %cst_122 = arith.constant 5.000000e-01 : f32
    %273 = vector.broadcast %cst_122 : f32 to vector<8x128xf32>
    %274 = arith.mulf %273, %272 : vector<8x128xf32>
    %cst_123 = arith.constant 5.000000e-01 : f32
    %275 = vector.broadcast %cst_123 : f32 to vector<8x128xf32>
    %276 = arith.addf %274, %275 : vector<8x128xf32>
    %277 = vector.extract_strided_slice %255 {offsets = [0, 256], sizes = [8, 128], strides = [1, 1]} : vector<8x512xf32> to vector<8x128xf32>
    %278 = math.tanh %277 : vector<8x128xf32>
    %279 = vector.extract_strided_slice %255 {offsets = [0, 384], sizes = [8, 128], strides = [1, 1]} : vector<8x512xf32> to vector<8x128xf32>
    %cst_124 = arith.constant 5.000000e-01 : f32
    %280 = vector.broadcast %cst_124 : f32 to vector<8x128xf32>
    %281 = arith.mulf %280, %279 : vector<8x128xf32>
    %282 = math.tanh %281 : vector<8x128xf32>
    %cst_125 = arith.constant 5.000000e-01 : f32
    %283 = vector.broadcast %cst_125 : f32 to vector<8x128xf32>
    %284 = arith.mulf %283, %282 : vector<8x128xf32>
    %cst_126 = arith.constant 5.000000e-01 : f32
    %285 = vector.broadcast %cst_126 : f32 to vector<8x128xf32>
    %286 = arith.addf %284, %285 : vector<8x128xf32>
    %287 = arith.mulf %276, %208 : vector<8x128xf32>
    %288 = arith.mulf %268, %278 : vector<8x128xf32>
    %289 = arith.addf %287, %288 : vector<8x128xf32>
    %290 = math.tanh %289 : vector<8x128xf32>
    %291 = arith.mulf %286, %290 : vector<8x128xf32>
    %292 = vector.extract_strided_slice %260 {offsets = [0, 0], sizes = [8, 128], strides = [1, 1]} : vector<8x512xf32> to vector<8x128xf32>
    %cst_127 = arith.constant 5.000000e-01 : f32
    %293 = vector.broadcast %cst_127 : f32 to vector<8x128xf32>
    %294 = arith.mulf %293, %292 : vector<8x128xf32>
    %295 = math.tanh %294 : vector<8x128xf32>
    %cst_128 = arith.constant 5.000000e-01 : f32
    %296 = vector.broadcast %cst_128 : f32 to vector<8x128xf32>
    %297 = arith.mulf %296, %295 : vector<8x128xf32>
    %cst_129 = arith.constant 5.000000e-01 : f32
    %298 = vector.broadcast %cst_129 : f32 to vector<8x128xf32>
    %299 = arith.addf %297, %298 : vector<8x128xf32>
    %300 = vector.extract_strided_slice %260 {offsets = [0, 128], sizes = [8, 128], strides = [1, 1]} : vector<8x512xf32> to vector<8x128xf32>
    %cst_130 = arith.constant 5.000000e-01 : f32
    %301 = vector.broadcast %cst_130 : f32 to vector<8x128xf32>
    %302 = arith.mulf %301, %300 : vector<8x128xf32>
    %303 = math.tanh %302 : vector<8x128xf32>
    %cst_131 = arith.constant 5.000000e-01 : f32
    %304 = vector.broadcast %cst_131 : f32 to vector<8x128xf32>
    %305 = arith.mulf %304, %303 : vector<8x128xf32>
    %cst_132 = arith.constant 5.000000e-01 : f32
    %306 = vector.broadcast %cst_132 : f32 to vector<8x128xf32>
    %307 = arith.addf %305, %306 : vector<8x128xf32>
    %308 = vector.extract_strided_slice %260 {offsets = [0, 256], sizes = [8, 128], strides = [1, 1]} : vector<8x512xf32> to vector<8x128xf32>
    %309 = math.tanh %308 : vector<8x128xf32>
    %310 = vector.extract_strided_slice %260 {offsets = [0, 384], sizes = [8, 128], strides = [1, 1]} : vector<8x512xf32> to vector<8x128xf32>
    %cst_133 = arith.constant 5.000000e-01 : f32
    %311 = vector.broadcast %cst_133 : f32 to vector<8x128xf32>
    %312 = arith.mulf %311, %310 : vector<8x128xf32>
    %313 = math.tanh %312 : vector<8x128xf32>
    %cst_134 = arith.constant 5.000000e-01 : f32
    %314 = vector.broadcast %cst_134 : f32 to vector<8x128xf32>
    %315 = arith.mulf %314, %313 : vector<8x128xf32>
    %cst_135 = arith.constant 5.000000e-01 : f32
    %316 = vector.broadcast %cst_135 : f32 to vector<8x128xf32>
    %317 = arith.addf %315, %316 : vector<8x128xf32>
    %318 = arith.mulf %307, %239 : vector<8x128xf32>
    %319 = arith.mulf %299, %309 : vector<8x128xf32>
    %320 = arith.addf %318, %319 : vector<8x128xf32>
    %321 = math.tanh %320 : vector<8x128xf32>
    %322 = arith.mulf %317, %321 : vector<8x128xf32>
    %c2_136 = arith.constant 2 : index
    %c0_137 = arith.constant 0 : index
    %c0_138 = arith.constant 0 : index
    %323 = vector.load %arg16[%c2_136, %c0_137, %c0_138] : memref<8x8x256xf32, #tpu.memory_space<vmem>>, vector<1x8x128xf32>
    %324 = vector.shape_cast %323 : vector<1x8x128xf32> to vector<8x128xf32>
    %325 = vector.shape_cast %291 : vector<8x128xf32> to vector<1x8x128xf32>
    tpu.vector_store %arg16[%c2_136, %c0_137, %c0_138], %325 {strides = array<i32>} : memref<8x8x256xf32, #tpu.memory_space<vmem>>, vector<1x8x128xf32>,
    %c5_139 = arith.constant 5 : index
    %c0_140 = arith.constant 0 : index
    %c128_141 = arith.constant 128 : index
    %326 = vector.load %arg16[%c5_139, %c0_140, %c128_141] : memref<8x8x256xf32, #tpu.memory_space<vmem>>, vector<1x8x128xf32>
    %327 = vector.shape_cast %326 : vector<1x8x128xf32> to vector<8x128xf32>
    %328 = vector.shape_cast %322 : vector<8x128xf32> to vector<1x8x128xf32>
    tpu.vector_store %arg16[%c5_139, %c0_140, %c128_141], %328 {strides = array<i32>} : memref<8x8x256xf32, #tpu.memory_space<vmem>>, vector<1x8x128xf32>,
    %329 = tpu.concatenate %291, %322 in 1 : vector<8x128xf32>, vector<8x128xf32> -> vector<8x256xf32>
    %330 = arith.truncf %329 : vector<8x256xf32> to vector<8x256xbf16>
    %cst_142 = arith.constant dense<0.000000e+00> : vector<8x1024xf32>
    %331 = tpu.matmul %330, %81, %cst_142 {dimension_numbers = #tpu.dot_dimension_numbers<[1], [0], [0], [1], [0, 0, 1, 1], [], []>} : vector<8x256xbf16>, vector<256x1024xbf16>, vector<8x1024xf32> -> vector<8x1024xf32>
    %c3 = arith.constant 3 : index
    %c0_143 = arith.constant 0 : index
    %c0_144 = arith.constant 0 : index
    %332 = vector.load %arg18[%c3, %c0_143, %c0_144] : memref<8x8x1024xbf16, #tpu.memory_space<vmem>>, vector<1x8x512xbf16>
    %333 = vector.shape_cast %332 : vector<1x8x512xbf16> to vector<8x512xbf16>
    %334 = arith.extf %333 : vector<8x512xbf16> to vector<8x512xf32>
    %335 = vector.extract_strided_slice %331 {offsets = [0, 0], sizes = [8, 512], strides = [1, 1]} : vector<8x1024xf32> to vector<8x512xf32>
    %336 = arith.addf %334, %335 : vector<8x512xf32>
    %c4 = arith.constant 4 : index
    %c0_145 = arith.constant 0 : index
    %c512_146 = arith.constant 512 : index
    %337 = vector.load %arg18[%c4, %c0_145, %c512_146] : memref<8x8x1024xbf16, #tpu.memory_space<vmem>>, vector<1x8x512xbf16>
    %338 = vector.shape_cast %337 : vector<1x8x512xbf16> to vector<8x512xbf16>
    %339 = arith.extf %338 : vector<8x512xbf16> to vector<8x512xf32>
    %340 = vector.extract_strided_slice %331 {offsets = [0, 512], sizes = [8, 512], strides = [1, 1]} : vector<8x1024xf32> to vector<8x512xf32>
    %341 = arith.addf %339, %340 : vector<8x512xf32>
    %342 = vector.extract_strided_slice %336 {offsets = [0, 0], sizes = [8, 128], strides = [1, 1]} : vector<8x512xf32> to vector<8x128xf32>
    %cst_147 = arith.constant 5.000000e-01 : f32
    %343 = vector.broadcast %cst_147 : f32 to vector<8x128xf32>
    %344 = arith.mulf %343, %342 : vector<8x128xf32>
    %345 = math.tanh %344 : vector<8x128xf32>
    %cst_148 = arith.constant 5.000000e-01 : f32
    %346 = vector.broadcast %cst_148 : f32 to vector<8x128xf32>
    %347 = arith.mulf %346, %345 : vector<8x128xf32>
    %cst_149 = arith.constant 5.000000e-01 : f32
    %348 = vector.broadcast %cst_149 : f32 to vector<8x128xf32>
    %349 = arith.addf %347, %348 : vector<8x128xf32>
    %350 = vector.extract_strided_slice %336 {offsets = [0, 128], sizes = [8, 128], strides = [1, 1]} : vector<8x512xf32> to vector<8x128xf32>
    %cst_150 = arith.constant 5.000000e-01 : f32
    %351 = vector.broadcast %cst_150 : f32 to vector<8x128xf32>
    %352 = arith.mulf %351, %350 : vector<8x128xf32>
    %353 = math.tanh %352 : vector<8x128xf32>
    %cst_151 = arith.constant 5.000000e-01 : f32
    %354 = vector.broadcast %cst_151 : f32 to vector<8x128xf32>
    %355 = arith.mulf %354, %353 : vector<8x128xf32>
    %cst_152 = arith.constant 5.000000e-01 : f32
    %356 = vector.broadcast %cst_152 : f32 to vector<8x128xf32>
    %357 = arith.addf %355, %356 : vector<8x128xf32>
    %358 = vector.extract_strided_slice %336 {offsets = [0, 256], sizes = [8, 128], strides = [1, 1]} : vector<8x512xf32> to vector<8x128xf32>
    %359 = math.tanh %358 : vector<8x128xf32>
    %360 = vector.extract_strided_slice %336 {offsets = [0, 384], sizes = [8, 128], strides = [1, 1]} : vector<8x512xf32> to vector<8x128xf32>
    %cst_153 = arith.constant 5.000000e-01 : f32
    %361 = vector.broadcast %cst_153 : f32 to vector<8x128xf32>
    %362 = arith.mulf %361, %360 : vector<8x128xf32>
    %363 = math.tanh %362 : vector<8x128xf32>
    %cst_154 = arith.constant 5.000000e-01 : f32
    %364 = vector.broadcast %cst_154 : f32 to vector<8x128xf32>
    %365 = arith.mulf %364, %363 : vector<8x128xf32>
    %cst_155 = arith.constant 5.000000e-01 : f32
    %366 = vector.broadcast %cst_155 : f32 to vector<8x128xf32>
    %367 = arith.addf %365, %366 : vector<8x128xf32>
    %368 = arith.mulf %357, %289 : vector<8x128xf32>
    %369 = arith.mulf %349, %359 : vector<8x128xf32>
    %370 = arith.addf %368, %369 : vector<8x128xf32>
    %371 = math.tanh %370 : vector<8x128xf32>
    %372 = arith.mulf %367, %371 : vector<8x128xf32>
    %373 = vector.extract_strided_slice %341 {offsets = [0, 0], sizes = [8, 128], strides = [1, 1]} : vector<8x512xf32> to vector<8x128xf32>
    %cst_156 = arith.constant 5.000000e-01 : f32
    %374 = vector.broadcast %cst_156 : f32 to vector<8x128xf32>
    %375 = arith.mulf %374, %373 : vector<8x128xf32>
    %376 = math.tanh %375 : vector<8x128xf32>
    %cst_157 = arith.constant 5.000000e-01 : f32
    %377 = vector.broadcast %cst_157 : f32 to vector<8x128xf32>
    %378 = arith.mulf %377, %376 : vector<8x128xf32>
    %cst_158 = arith.constant 5.000000e-01 : f32
    %379 = vector.broadcast %cst_158 : f32 to vector<8x128xf32>
    %380 = arith.addf %378, %379 : vector<8x128xf32>
    %381 = vector.extract_strided_slice %341 {offsets = [0, 128], sizes = [8, 128], strides = [1, 1]} : vector<8x512xf32> to vector<8x128xf32>
    %cst_159 = arith.constant 5.000000e-01 : f32
    %382 = vector.broadcast %cst_159 : f32 to vector<8x128xf32>
    %383 = arith.mulf %382, %381 : vector<8x128xf32>
    %384 = math.tanh %383 : vector<8x128xf32>
    %cst_160 = arith.constant 5.000000e-01 : f32
    %385 = vector.broadcast %cst_160 : f32 to vector<8x128xf32>
    %386 = arith.mulf %385, %384 : vector<8x128xf32>
    %cst_161 = arith.constant 5.000000e-01 : f32
    %387 = vector.broadcast %cst_161 : f32 to vector<8x128xf32>
    %388 = arith.addf %386, %387 : vector<8x128xf32>
    %389 = vector.extract_strided_slice %341 {offsets = [0, 256], sizes = [8, 128], strides = [1, 1]} : vector<8x512xf32> to vector<8x128xf32>
    %390 = math.tanh %389 : vector<8x128xf32>
    %391 = vector.extract_strided_slice %341 {offsets = [0, 384], sizes = [8, 128], strides = [1, 1]} : vector<8x512xf32> to vector<8x128xf32>
    %cst_162 = arith.constant 5.000000e-01 : f32
    %392 = vector.broadcast %cst_162 : f32 to vector<8x128xf32>
    %393 = arith.mulf %392, %391 : vector<8x128xf32>
    %394 = math.tanh %393 : vector<8x128xf32>
    %cst_163 = arith.constant 5.000000e-01 : f32
    %395 = vector.broadcast %cst_163 : f32 to vector<8x128xf32>
    %396 = arith.mulf %395, %394 : vector<8x128xf32>
    %cst_164 = arith.constant 5.000000e-01 : f32
    %397 = vector.broadcast %cst_164 : f32 to vector<8x128xf32>
    %398 = arith.addf %396, %397 : vector<8x128xf32>
    %399 = arith.mulf %388, %320 : vector<8x128xf32>
    %400 = arith.mulf %380, %390 : vector<8x128xf32>
    %401 = arith.addf %399, %400 : vector<8x128xf32>
    %402 = math.tanh %401 : vector<8x128xf32>
    %403 = arith.mulf %398, %402 : vector<8x128xf32>
    %c3_165 = arith.constant 3 : index
    %c0_166 = arith.constant 0 : index
    %c0_167 = arith.constant 0 : index
    %404 = vector.load %arg16[%c3_165, %c0_166, %c0_167] : memref<8x8x256xf32, #tpu.memory_space<vmem>>, vector<1x8x128xf32>
    %405 = vector.shape_cast %404 : vector<1x8x128xf32> to vector<8x128xf32>
    %406 = vector.shape_cast %372 : vector<8x128xf32> to vector<1x8x128xf32>
    tpu.vector_store %arg16[%c3_165, %c0_166, %c0_167], %406 {strides = array<i32>} : memref<8x8x256xf32, #tpu.memory_space<vmem>>, vector<1x8x128xf32>,
    %c4_168 = arith.constant 4 : index
    %c0_169 = arith.constant 0 : index
    %c128_170 = arith.constant 128 : index
    %407 = vector.load %arg16[%c4_168, %c0_169, %c128_170] : memref<8x8x256xf32, #tpu.memory_space<vmem>>, vector<1x8x128xf32>
    %408 = vector.shape_cast %407 : vector<1x8x128xf32> to vector<8x128xf32>
    %409 = vector.shape_cast %403 : vector<8x128xf32> to vector<1x8x128xf32>
    tpu.vector_store %arg16[%c4_168, %c0_169, %c128_170], %409 {strides = array<i32>} : memref<8x8x256xf32, #tpu.memory_space<vmem>>, vector<1x8x128xf32>,
    %410 = tpu.concatenate %372, %403 in 1 : vector<8x128xf32>, vector<8x128xf32> -> vector<8x256xf32>
    %411 = arith.truncf %410 : vector<8x256xf32> to vector<8x256xbf16>
    %cst_171 = arith.constant dense<0.000000e+00> : vector<8x1024xf32>
    %412 = tpu.matmul %411, %81, %cst_171 {dimension_numbers = #tpu.dot_dimension_numbers<[1], [0], [0], [1], [0, 0, 1, 1], [], []>} : vector<8x256xbf16>, vector<256x1024xbf16>, vector<8x1024xf32> -> vector<8x1024xf32>
    %c4_172 = arith.constant 4 : index
    %c0_173 = arith.constant 0 : index
    %c0_174 = arith.constant 0 : index
    %413 = vector.load %arg18[%c4_172, %c0_173, %c0_174] : memref<8x8x1024xbf16, #tpu.memory_space<vmem>>, vector<1x8x512xbf16>
    %414 = vector.shape_cast %413 : vector<1x8x512xbf16> to vector<8x512xbf16>
    %415 = arith.extf %414 : vector<8x512xbf16> to vector<8x512xf32>
    %416 = vector.extract_strided_slice %412 {offsets = [0, 0], sizes = [8, 512], strides = [1, 1]} : vector<8x1024xf32> to vector<8x512xf32>
    %417 = arith.addf %415, %416 : vector<8x512xf32>
    %c3_175 = arith.constant 3 : index
    %c0_176 = arith.constant 0 : index
    %c512_177 = arith.constant 512 : index
    %418 = vector.load %arg18[%c3_175, %c0_176, %c512_177] : memref<8x8x1024xbf16, #tpu.memory_space<vmem>>, vector<1x8x512xbf16>
    %419 = vector.shape_cast %418 : vector<1x8x512xbf16> to vector<8x512xbf16>
    %420 = arith.extf %419 : vector<8x512xbf16> to vector<8x512xf32>
    %421 = vector.extract_strided_slice %412 {offsets = [0, 512], sizes = [8, 512], strides = [1, 1]} : vector<8x1024xf32> to vector<8x512xf32>
    %422 = arith.addf %420, %421 : vector<8x512xf32>
    %423 = vector.extract_strided_slice %417 {offsets = [0, 0], sizes = [8, 128], strides = [1, 1]} : vector<8x512xf32> to vector<8x128xf32>
    %cst_178 = arith.constant 5.000000e-01 : f32
    %424 = vector.broadcast %cst_178 : f32 to vector<8x128xf32>
    %425 = arith.mulf %424, %423 : vector<8x128xf32>
    %426 = math.tanh %425 : vector<8x128xf32>
    %cst_179 = arith.constant 5.000000e-01 : f32
    %427 = vector.broadcast %cst_179 : f32 to vector<8x128xf32>
    %428 = arith.mulf %427, %426 : vector<8x128xf32>
    %cst_180 = arith.constant 5.000000e-01 : f32
    %429 = vector.broadcast %cst_180 : f32 to vector<8x128xf32>
    %430 = arith.addf %428, %429 : vector<8x128xf32>
    %431 = vector.extract_strided_slice %417 {offsets = [0, 128], sizes = [8, 128], strides = [1, 1]} : vector<8x512xf32> to vector<8x128xf32>
    %cst_181 = arith.constant 5.000000e-01 : f32
    %432 = vector.broadcast %cst_181 : f32 to vector<8x128xf32>
    %433 = arith.mulf %432, %431 : vector<8x128xf32>
    %434 = math.tanh %433 : vector<8x128xf32>
    %cst_182 = arith.constant 5.000000e-01 : f32
    %435 = vector.broadcast %cst_182 : f32 to vector<8x128xf32>
    %436 = arith.mulf %435, %434 : vector<8x128xf32>
    %cst_183 = arith.constant 5.000000e-01 : f32
    %437 = vector.broadcast %cst_183 : f32 to vector<8x128xf32>
    %438 = arith.addf %436, %437 : vector<8x128xf32>
    %439 = vector.extract_strided_slice %417 {offsets = [0, 256], sizes = [8, 128], strides = [1, 1]} : vector<8x512xf32> to vector<8x128xf32>
    %440 = math.tanh %439 : vector<8x128xf32>
    %441 = vector.extract_strided_slice %417 {offsets = [0, 384], sizes = [8, 128], strides = [1, 1]} : vector<8x512xf32> to vector<8x128xf32>
    %cst_184 = arith.constant 5.000000e-01 : f32
    %442 = vector.broadcast %cst_184 : f32 to vector<8x128xf32>
    %443 = arith.mulf %442, %441 : vector<8x128xf32>
    %444 = math.tanh %443 : vector<8x128xf32>
    %cst_185 = arith.constant 5.000000e-01 : f32
    %445 = vector.broadcast %cst_185 : f32 to vector<8x128xf32>
    %446 = arith.mulf %445, %444 : vector<8x128xf32>
    %cst_186 = arith.constant 5.000000e-01 : f32
    %447 = vector.broadcast %cst_186 : f32 to vector<8x128xf32>
    %448 = arith.addf %446, %447 : vector<8x128xf32>
    %449 = arith.mulf %438, %370 : vector<8x128xf32>
    %450 = arith.mulf %430, %440 : vector<8x128xf32>
    %451 = arith.addf %449, %450 : vector<8x128xf32>
    %452 = math.tanh %451 : vector<8x128xf32>
    %453 = arith.mulf %448, %452 : vector<8x128xf32>
    %454 = vector.extract_strided_slice %422 {offsets = [0, 0], sizes = [8, 128], strides = [1, 1]} : vector<8x512xf32> to vector<8x128xf32>
    %cst_187 = arith.constant 5.000000e-01 : f32
    %455 = vector.broadcast %cst_187 : f32 to vector<8x128xf32>
    %456 = arith.mulf %455, %454 : vector<8x128xf32>
    %457 = math.tanh %456 : vector<8x128xf32>
    %cst_188 = arith.constant 5.000000e-01 : f32
    %458 = vector.broadcast %cst_188 : f32 to vector<8x128xf32>
    %459 = arith.mulf %458, %457 : vector<8x128xf32>
    %cst_189 = arith.constant 5.000000e-01 : f32
    %460 = vector.broadcast %cst_189 : f32 to vector<8x128xf32>
    %461 = arith.addf %459, %460 : vector<8x128xf32>
    %462 = vector.extract_strided_slice %422 {offsets = [0, 128], sizes = [8, 128], strides = [1, 1]} : vector<8x512xf32> to vector<8x128xf32>
    %cst_190 = arith.constant 5.000000e-01 : f32
    %463 = vector.broadcast %cst_190 : f32 to vector<8x128xf32>
    %464 = arith.mulf %463, %462 : vector<8x128xf32>
    %465 = math.tanh %464 : vector<8x128xf32>
    %cst_191 = arith.constant 5.000000e-01 : f32
    %466 = vector.broadcast %cst_191 : f32 to vector<8x128xf32>
    %467 = arith.mulf %466, %465 : vector<8x128xf32>
    %cst_192 = arith.constant 5.000000e-01 : f32
    %468 = vector.broadcast %cst_192 : f32 to vector<8x128xf32>
    %469 = arith.addf %467, %468 : vector<8x128xf32>
    %470 = vector.extract_strided_slice %422 {offsets = [0, 256], sizes = [8, 128], strides = [1, 1]} : vector<8x512xf32> to vector<8x128xf32>
    %471 = math.tanh %470 : vector<8x128xf32>
    %472 = vector.extract_strided_slice %422 {offsets = [0, 384], sizes = [8, 128], strides = [1, 1]} : vector<8x512xf32> to vector<8x128xf32>
    %cst_193 = arith.constant 5.000000e-01 : f32
    %473 = vector.broadcast %cst_193 : f32 to vector<8x128xf32>
    %474 = arith.mulf %473, %472 : vector<8x128xf32>
    %475 = math.tanh %474 : vector<8x128xf32>
    %cst_194 = arith.constant 5.000000e-01 : f32
    %476 = vector.broadcast %cst_194 : f32 to vector<8x128xf32>
    %477 = arith.mulf %476, %475 : vector<8x128xf32>
    %cst_195 = arith.constant 5.000000e-01 : f32
    %478 = vector.broadcast %cst_195 : f32 to vector<8x128xf32>
    %479 = arith.addf %477, %478 : vector<8x128xf32>
    %480 = arith.mulf %469, %401 : vector<8x128xf32>
    %481 = arith.mulf %461, %471 : vector<8x128xf32>
    %482 = arith.addf %480, %481 : vector<8x128xf32>
    %483 = math.tanh %482 : vector<8x128xf32>
    %484 = arith.mulf %479, %483 : vector<8x128xf32>
    %c4_196 = arith.constant 4 : index
    %c0_197 = arith.constant 0 : index
    %c0_198 = arith.constant 0 : index
    %485 = vector.load %arg16[%c4_196, %c0_197, %c0_198] : memref<8x8x256xf32, #tpu.memory_space<vmem>>, vector<1x8x128xf32>
    %486 = vector.shape_cast %485 : vector<1x8x128xf32> to vector<8x128xf32>
    %487 = vector.shape_cast %453 : vector<8x128xf32> to vector<1x8x128xf32>
    tpu.vector_store %arg16[%c4_196, %c0_197, %c0_198], %487 {strides = array<i32>} : memref<8x8x256xf32, #tpu.memory_space<vmem>>, vector<1x8x128xf32>,
    %c3_199 = arith.constant 3 : index
    %c0_200 = arith.constant 0 : index
    %c128_201 = arith.constant 128 : index
    %488 = vector.load %arg16[%c3_199, %c0_200, %c128_201] : memref<8x8x256xf32, #tpu.memory_space<vmem>>, vector<1x8x128xf32>
    %489 = vector.shape_cast %488 : vector<1x8x128xf32> to vector<8x128xf32>
    %490 = vector.shape_cast %484 : vector<8x128xf32> to vector<1x8x128xf32>
    tpu.vector_store %arg16[%c3_199, %c0_200, %c128_201], %490 {strides = array<i32>} : memref<8x8x256xf32, #tpu.memory_space<vmem>>, vector<1x8x128xf32>,
    %491 = tpu.concatenate %453, %484 in 1 : vector<8x128xf32>, vector<8x128xf32> -> vector<8x256xf32>
    %492 = arith.truncf %491 : vector<8x256xf32> to vector<8x256xbf16>
    %cst_202 = arith.constant dense<0.000000e+00> : vector<8x1024xf32>
    %493 = tpu.matmul %492, %81, %cst_202 {dimension_numbers = #tpu.dot_dimension_numbers<[1], [0], [0], [1], [0, 0, 1, 1], [], []>} : vector<8x256xbf16>, vector<256x1024xbf16>, vector<8x1024xf32> -> vector<8x1024xf32>
    %c5_203 = arith.constant 5 : index
    %c0_204 = arith.constant 0 : index
    %c0_205 = arith.constant 0 : index
    %494 = vector.load %arg18[%c5_203, %c0_204, %c0_205] : memref<8x8x1024xbf16, #tpu.memory_space<vmem>>, vector<1x8x512xbf16>
    %495 = vector.shape_cast %494 : vector<1x8x512xbf16> to vector<8x512xbf16>
    %496 = arith.extf %495 : vector<8x512xbf16> to vector<8x512xf32>
    %497 = vector.extract_strided_slice %493 {offsets = [0, 0], sizes = [8, 512], strides = [1, 1]} : vector<8x1024xf32> to vector<8x512xf32>
    %498 = arith.addf %496, %497 : vector<8x512xf32>
    %c2_206 = arith.constant 2 : index
    %c0_207 = arith.constant 0 : index
    %c512_208 = arith.constant 512 : index
    %499 = vector.load %arg18[%c2_206, %c0_207, %c512_208] : memref<8x8x1024xbf16, #tpu.memory_space<vmem>>, vector<1x8x512xbf16>
    %500 = vector.shape_cast %499 : vector<1x8x512xbf16> to vector<8x512xbf16>
    %501 = arith.extf %500 : vector<8x512xbf16> to vector<8x512xf32>
    %502 = vector.extract_strided_slice %493 {offsets = [0, 512], sizes = [8, 512], strides = [1, 1]} : vector<8x1024xf32> to vector<8x512xf32>
    %503 = arith.addf %501, %502 : vector<8x512xf32>
    %504 = vector.extract_strided_slice %498 {offsets = [0, 0], sizes = [8, 128], strides = [1, 1]} : vector<8x512xf32> to vector<8x128xf32>
    %cst_209 = arith.constant 5.000000e-01 : f32
    %505 = vector.broadcast %cst_209 : f32 to vector<8x128xf32>
    %506 = arith.mulf %505, %504 : vector<8x128xf32>
    %507 = math.tanh %506 : vector<8x128xf32>
    %cst_210 = arith.constant 5.000000e-01 : f32
    %508 = vector.broadcast %cst_210 : f32 to vector<8x128xf32>
    %509 = arith.mulf %508, %507 : vector<8x128xf32>
    %cst_211 = arith.constant 5.000000e-01 : f32
    %510 = vector.broadcast %cst_211 : f32 to vector<8x128xf32>
    %511 = arith.addf %509, %510 : vector<8x128xf32>
    %512 = vector.extract_strided_slice %498 {offsets = [0, 128], sizes = [8, 128], strides = [1, 1]} : vector<8x512xf32> to vector<8x128xf32>
    %cst_212 = arith.constant 5.000000e-01 : f32
    %513 = vector.broadcast %cst_212 : f32 to vector<8x128xf32>
    %514 = arith.mulf %513, %512 : vector<8x128xf32>
    %515 = math.tanh %514 : vector<8x128xf32>
    %cst_213 = arith.constant 5.000000e-01 : f32
    %516 = vector.broadcast %cst_213 : f32 to vector<8x128xf32>
    %517 = arith.mulf %516, %515 : vector<8x128xf32>
    %cst_214 = arith.constant 5.000000e-01 : f32
    %518 = vector.broadcast %cst_214 : f32 to vector<8x128xf32>
    %519 = arith.addf %517, %518 : vector<8x128xf32>
    %520 = vector.extract_strided_slice %498 {offsets = [0, 256], sizes = [8, 128], strides = [1, 1]} : vector<8x512xf32> to vector<8x128xf32>
    %521 = math.tanh %520 : vector<8x128xf32>
    %522 = vector.extract_strided_slice %498 {offsets = [0, 384], sizes = [8, 128], strides = [1, 1]} : vector<8x512xf32> to vector<8x128xf32>
    %cst_215 = arith.constant 5.000000e-01 : f32
    %523 = vector.broadcast %cst_215 : f32 to vector<8x128xf32>
    %524 = arith.mulf %523, %522 : vector<8x128xf32>
    %525 = math.tanh %524 : vector<8x128xf32>
    %cst_216 = arith.constant 5.000000e-01 : f32
    %526 = vector.broadcast %cst_216 : f32 to vector<8x128xf32>
    %527 = arith.mulf %526, %525 : vector<8x128xf32>
    %cst_217 = arith.constant 5.000000e-01 : f32
    %528 = vector.broadcast %cst_217 : f32 to vector<8x128xf32>
    %529 = arith.addf %527, %528 : vector<8x128xf32>
    %530 = arith.mulf %519, %451 : vector<8x128xf32>
    %531 = arith.mulf %511, %521 : vector<8x128xf32>
    %532 = arith.addf %530, %531 : vector<8x128xf32>
    %533 = math.tanh %532 : vector<8x128xf32>
    %534 = arith.mulf %529, %533 : vector<8x128xf32>
    %535 = vector.extract_strided_slice %503 {offsets = [0, 0], sizes = [8, 128], strides = [1, 1]} : vector<8x512xf32> to vector<8x128xf32>
    %cst_218 = arith.constant 5.000000e-01 : f32
    %536 = vector.broadcast %cst_218 : f32 to vector<8x128xf32>
    %537 = arith.mulf %536, %535 : vector<8x128xf32>
    %538 = math.tanh %537 : vector<8x128xf32>
    %cst_219 = arith.constant 5.000000e-01 : f32
    %539 = vector.broadcast %cst_219 : f32 to vector<8x128xf32>
    %540 = arith.mulf %539, %538 : vector<8x128xf32>
    %cst_220 = arith.constant 5.000000e-01 : f32
    %541 = vector.broadcast %cst_220 : f32 to vector<8x128xf32>
    %542 = arith.addf %540, %541 : vector<8x128xf32>
    %543 = vector.extract_strided_slice %503 {offsets = [0, 128], sizes = [8, 128], strides = [1, 1]} : vector<8x512xf32> to vector<8x128xf32>
    %cst_221 = arith.constant 5.000000e-01 : f32
    %544 = vector.broadcast %cst_221 : f32 to vector<8x128xf32>
    %545 = arith.mulf %544, %543 : vector<8x128xf32>
    %546 = math.tanh %545 : vector<8x128xf32>
    %cst_222 = arith.constant 5.000000e-01 : f32
    %547 = vector.broadcast %cst_222 : f32 to vector<8x128xf32>
    %548 = arith.mulf %547, %546 : vector<8x128xf32>
    %cst_223 = arith.constant 5.000000e-01 : f32
    %549 = vector.broadcast %cst_223 : f32 to vector<8x128xf32>
    %550 = arith.addf %548, %549 : vector<8x128xf32>
    %551 = vector.extract_strided_slice %503 {offsets = [0, 256], sizes = [8, 128], strides = [1, 1]} : vector<8x512xf32> to vector<8x128xf32>
    %552 = math.tanh %551 : vector<8x128xf32>
    %553 = vector.extract_strided_slice %503 {offsets = [0, 384], sizes = [8, 128], strides = [1, 1]} : vector<8x512xf32> to vector<8x128xf32>
    %cst_224 = arith.constant 5.000000e-01 : f32
    %554 = vector.broadcast %cst_224 : f32 to vector<8x128xf32>
    %555 = arith.mulf %554, %553 : vector<8x128xf32>
    %556 = math.tanh %555 : vector<8x128xf32>
    %cst_225 = arith.constant 5.000000e-01 : f32
    %557 = vector.broadcast %cst_225 : f32 to vector<8x128xf32>
    %558 = arith.mulf %557, %556 : vector<8x128xf32>
    %cst_226 = arith.constant 5.000000e-01 : f32
    %559 = vector.broadcast %cst_226 : f32 to vector<8x128xf32>
    %560 = arith.addf %558, %559 : vector<8x128xf32>
    %561 = arith.mulf %550, %482 : vector<8x128xf32>
    %562 = arith.mulf %542, %552 : vector<8x128xf32>
    %563 = arith.addf %561, %562 : vector<8x128xf32>
    %564 = math.tanh %563 : vector<8x128xf32>
    %565 = arith.mulf %560, %564 : vector<8x128xf32>
    %c5_227 = arith.constant 5 : index
    %c0_228 = arith.constant 0 : index
    %c0_229 = arith.constant 0 : index
    %566 = vector.load %arg16[%c5_227, %c0_228, %c0_229] : memref<8x8x256xf32, #tpu.memory_space<vmem>>, vector<1x8x128xf32>
    %567 = vector.shape_cast %566 : vector<1x8x128xf32> to vector<8x128xf32>
    %568 = vector.shape_cast %534 : vector<8x128xf32> to vector<1x8x128xf32>
    tpu.vector_store %arg16[%c5_227, %c0_228, %c0_229], %568 {strides = array<i32>} : memref<8x8x256xf32, #tpu.memory_space<vmem>>, vector<1x8x128xf32>,
    %c2_230 = arith.constant 2 : index
    %c0_231 = arith.constant 0 : index
    %c128_232 = arith.constant 128 : index
    %569 = vector.load %arg16[%c2_230, %c0_231, %c128_232] : memref<8x8x256xf32, #tpu.memory_space<vmem>>, vector<1x8x128xf32>
    %570 = vector.shape_cast %569 : vector<1x8x128xf32> to vector<8x128xf32>
    %571 = vector.shape_cast %565 : vector<8x128xf32> to vector<1x8x128xf32>
    tpu.vector_store %arg16[%c2_230, %c0_231, %c128_232], %571 {strides = array<i32>} : memref<8x8x256xf32, #tpu.memory_space<vmem>>, vector<1x8x128xf32>,
    %572 = tpu.concatenate %534, %565 in 1 : vector<8x128xf32>, vector<8x128xf32> -> vector<8x256xf32>
    %573 = arith.truncf %572 : vector<8x256xf32> to vector<8x256xbf16>
    %cst_233 = arith.constant dense<0.000000e+00> : vector<8x1024xf32>
    %574 = tpu.matmul %573, %81, %cst_233 {dimension_numbers = #tpu.dot_dimension_numbers<[1], [0], [0], [1], [0, 0, 1, 1], [], []>} : vector<8x256xbf16>, vector<256x1024xbf16>, vector<8x1024xf32> -> vector<8x1024xf32>
    %c6_234 = arith.constant 6 : index
    %c0_235 = arith.constant 0 : index
    %c0_236 = arith.constant 0 : index
    %575 = vector.load %arg18[%c6_234, %c0_235, %c0_236] : memref<8x8x1024xbf16, #tpu.memory_space<vmem>>, vector<1x8x512xbf16>
    %576 = vector.shape_cast %575 : vector<1x8x512xbf16> to vector<8x512xbf16>
    %577 = arith.extf %576 : vector<8x512xbf16> to vector<8x512xf32>
    %578 = vector.extract_strided_slice %574 {offsets = [0, 0], sizes = [8, 512], strides = [1, 1]} : vector<8x1024xf32> to vector<8x512xf32>
    %579 = arith.addf %577, %578 : vector<8x512xf32>
    %c1_237 = arith.constant 1 : index
    %c0_238 = arith.constant 0 : index
    %c512_239 = arith.constant 512 : index
    %580 = vector.load %arg18[%c1_237, %c0_238, %c512_239] : memref<8x8x1024xbf16, #tpu.memory_space<vmem>>, vector<1x8x512xbf16>
    %581 = vector.shape_cast %580 : vector<1x8x512xbf16> to vector<8x512xbf16>
    %582 = arith.extf %581 : vector<8x512xbf16> to vector<8x512xf32>
    %583 = vector.extract_strided_slice %574 {offsets = [0, 512], sizes = [8, 512], strides = [1, 1]} : vector<8x1024xf32> to vector<8x512xf32>
    %584 = arith.addf %582, %583 : vector<8x512xf32>
    %585 = vector.extract_strided_slice %579 {offsets = [0, 0], sizes = [8, 128], strides = [1, 1]} : vector<8x512xf32> to vector<8x128xf32>
    %cst_240 = arith.constant 5.000000e-01 : f32
    %586 = vector.broadcast %cst_240 : f32 to vector<8x128xf32>
    %587 = arith.mulf %586, %585 : vector<8x128xf32>
    %588 = math.tanh %587 : vector<8x128xf32>
    %cst_241 = arith.constant 5.000000e-01 : f32
    %589 = vector.broadcast %cst_241 : f32 to vector<8x128xf32>
    %590 = arith.mulf %589, %588 : vector<8x128xf32>
    %cst_242 = arith.constant 5.000000e-01 : f32
    %591 = vector.broadcast %cst_242 : f32 to vector<8x128xf32>
    %592 = arith.addf %590, %591 : vector<8x128xf32>
    %593 = vector.extract_strided_slice %579 {offsets = [0, 128], sizes = [8, 128], strides = [1, 1]} : vector<8x512xf32> to vector<8x128xf32>
    %cst_243 = arith.constant 5.000000e-01 : f32
    %594 = vector.broadcast %cst_243 : f32 to vector<8x128xf32>
    %595 = arith.mulf %594, %593 : vector<8x128xf32>
    %596 = math.tanh %595 : vector<8x128xf32>
    %cst_244 = arith.constant 5.000000e-01 : f32
    %597 = vector.broadcast %cst_244 : f32 to vector<8x128xf32>
    %598 = arith.mulf %597, %596 : vector<8x128xf32>
    %cst_245 = arith.constant 5.000000e-01 : f32
    %599 = vector.broadcast %cst_245 : f32 to vector<8x128xf32>
    %600 = arith.addf %598, %599 : vector<8x128xf32>
    %601 = vector.extract_strided_slice %579 {offsets = [0, 256], sizes = [8, 128], strides = [1, 1]} : vector<8x512xf32> to vector<8x128xf32>
    %602 = math.tanh %601 : vector<8x128xf32>
    %603 = vector.extract_strided_slice %579 {offsets = [0, 384], sizes = [8, 128], strides = [1, 1]} : vector<8x512xf32> to vector<8x128xf32>
    %cst_246 = arith.constant 5.000000e-01 : f32
    %604 = vector.broadcast %cst_246 : f32 to vector<8x128xf32>
    %605 = arith.mulf %604, %603 : vector<8x128xf32>
    %606 = math.tanh %605 : vector<8x128xf32>
    %cst_247 = arith.constant 5.000000e-01 : f32
    %607 = vector.broadcast %cst_247 : f32 to vector<8x128xf32>
    %608 = arith.mulf %607, %606 : vector<8x128xf32>
    %cst_248 = arith.constant 5.000000e-01 : f32
    %609 = vector.broadcast %cst_248 : f32 to vector<8x128xf32>
    %610 = arith.addf %608, %609 : vector<8x128xf32>
    %611 = arith.mulf %600, %532 : vector<8x128xf32>
    %612 = arith.mulf %592, %602 : vector<8x128xf32>
    %613 = arith.addf %611, %612 : vector<8x128xf32>
    %614 = math.tanh %613 : vector<8x128xf32>
    %615 = arith.mulf %610, %614 : vector<8x128xf32>
    %616 = vector.extract_strided_slice %584 {offsets = [0, 0], sizes = [8, 128], strides = [1, 1]} : vector<8x512xf32> to vector<8x128xf32>
    %cst_249 = arith.constant 5.000000e-01 : f32
    %617 = vector.broadcast %cst_249 : f32 to vector<8x128xf32>
    %618 = arith.mulf %617, %616 : vector<8x128xf32>
    %619 = math.tanh %618 : vector<8x128xf32>
    %cst_250 = arith.constant 5.000000e-01 : f32
    %620 = vector.broadcast %cst_250 : f32 to vector<8x128xf32>
    %621 = arith.mulf %620, %619 : vector<8x128xf32>
    %cst_251 = arith.constant 5.000000e-01 : f32
    %622 = vector.broadcast %cst_251 : f32 to vector<8x128xf32>
    %623 = arith.addf %621, %622 : vector<8x128xf32>
    %624 = vector.extract_strided_slice %584 {offsets = [0, 128], sizes = [8, 128], strides = [1, 1]} : vector<8x512xf32> to vector<8x128xf32>
    %cst_252 = arith.constant 5.000000e-01 : f32
    %625 = vector.broadcast %cst_252 : f32 to vector<8x128xf32>
    %626 = arith.mulf %625, %624 : vector<8x128xf32>
    %627 = math.tanh %626 : vector<8x128xf32>
    %cst_253 = arith.constant 5.000000e-01 : f32
    %628 = vector.broadcast %cst_253 : f32 to vector<8x128xf32>
    %629 = arith.mulf %628, %627 : vector<8x128xf32>
    %cst_254 = arith.constant 5.000000e-01 : f32
    %630 = vector.broadcast %cst_254 : f32 to vector<8x128xf32>
    %631 = arith.addf %629, %630 : vector<8x128xf32>
    %632 = vector.extract_strided_slice %584 {offsets = [0, 256], sizes = [8, 128], strides = [1, 1]} : vector<8x512xf32> to vector<8x128xf32>
    %633 = math.tanh %632 : vector<8x128xf32>
    %634 = vector.extract_strided_slice %584 {offsets = [0, 384], sizes = [8, 128], strides = [1, 1]} : vector<8x512xf32> to vector<8x128xf32>
    %cst_255 = arith.constant 5.000000e-01 : f32
    %635 = vector.broadcast %cst_255 : f32 to vector<8x128xf32>
    %636 = arith.mulf %635, %634 : vector<8x128xf32>
    %637 = math.tanh %636 : vector<8x128xf32>
    %cst_256 = arith.constant 5.000000e-01 : f32
    %638 = vector.broadcast %cst_256 : f32 to vector<8x128xf32>
    %639 = arith.mulf %638, %637 : vector<8x128xf32>
    %cst_257 = arith.constant 5.000000e-01 : f32
    %640 = vector.broadcast %cst_257 : f32 to vector<8x128xf32>
    %641 = arith.addf %639, %640 : vector<8x128xf32>
    %642 = arith.mulf %631, %563 : vector<8x128xf32>
    %643 = arith.mulf %623, %633 : vector<8x128xf32>
    %644 = arith.addf %642, %643 : vector<8x128xf32>
    %645 = math.tanh %644 : vector<8x128xf32>
    %646 = arith.mulf %641, %645 : vector<8x128xf32>
    %c6_258 = arith.constant 6 : index
    %c0_259 = arith.constant 0 : index
    %c0_260 = arith.constant 0 : index
    %647 = vector.load %arg16[%c6_258, %c0_259, %c0_260] : memref<8x8x256xf32, #tpu.memory_space<vmem>>, vector<1x8x128xf32>
    %648 = vector.shape_cast %647 : vector<1x8x128xf32> to vector<8x128xf32>
    %649 = vector.shape_cast %615 : vector<8x128xf32> to vector<1x8x128xf32>
    tpu.vector_store %arg16[%c6_258, %c0_259, %c0_260], %649 {strides = array<i32>} : memref<8x8x256xf32, #tpu.memory_space<vmem>>, vector<1x8x128xf32>,
    %c1_261 = arith.constant 1 : index
    %c0_262 = arith.constant 0 : index
    %c128_263 = arith.constant 128 : index
    %650 = vector.load %arg16[%c1_261, %c0_262, %c128_263] : memref<8x8x256xf32, #tpu.memory_space<vmem>>, vector<1x8x128xf32>
    %651 = vector.shape_cast %650 : vector<1x8x128xf32> to vector<8x128xf32>
    %652 = vector.shape_cast %646 : vector<8x128xf32> to vector<1x8x128xf32>
    tpu.vector_store %arg16[%c1_261, %c0_262, %c128_263], %652 {strides = array<i32>} : memref<8x8x256xf32, #tpu.memory_space<vmem>>, vector<1x8x128xf32>,
    %653 = tpu.concatenate %615, %646 in 1 : vector<8x128xf32>, vector<8x128xf32> -> vector<8x256xf32>
    %654 = arith.truncf %653 : vector<8x256xf32> to vector<8x256xbf16>
    %cst_264 = arith.constant dense<0.000000e+00> : vector<8x1024xf32>
    %655 = tpu.matmul %654, %81, %cst_264 {dimension_numbers = #tpu.dot_dimension_numbers<[1], [0], [0], [1], [0, 0, 1, 1], [], []>} : vector<8x256xbf16>, vector<256x1024xbf16>, vector<8x1024xf32> -> vector<8x1024xf32>
    %c7_265 = arith.constant 7 : index
    %c0_266 = arith.constant 0 : index
    %c0_267 = arith.constant 0 : index
    %656 = vector.load %arg18[%c7_265, %c0_266, %c0_267] : memref<8x8x1024xbf16, #tpu.memory_space<vmem>>, vector<1x8x512xbf16>
    %657 = vector.shape_cast %656 : vector<1x8x512xbf16> to vector<8x512xbf16>
    %658 = arith.extf %657 : vector<8x512xbf16> to vector<8x512xf32>
    %659 = vector.extract_strided_slice %655 {offsets = [0, 0], sizes = [8, 512], strides = [1, 1]} : vector<8x1024xf32> to vector<8x512xf32>
    %660 = arith.addf %658, %659 : vector<8x512xf32>
    %c0_268 = arith.constant 0 : index
    %c0_269 = arith.constant 0 : index
    %c512_270 = arith.constant 512 : index
    %661 = vector.load %arg18[%c0_268, %c0_269, %c512_270] : memref<8x8x1024xbf16, #tpu.memory_space<vmem>>, vector<1x8x512xbf16>
    %662 = vector.shape_cast %661 : vector<1x8x512xbf16> to vector<8x512xbf16>
    %663 = arith.extf %662 : vector<8x512xbf16> to vector<8x512xf32>
    %664 = vector.extract_strided_slice %655 {offsets = [0, 512], sizes = [8, 512], strides = [1, 1]} : vector<8x1024xf32> to vector<8x512xf32>
    %665 = arith.addf %663, %664 : vector<8x512xf32>
    %666 = vector.extract_strided_slice %660 {offsets = [0, 0], sizes = [8, 128], strides = [1, 1]} : vector<8x512xf32> to vector<8x128xf32>
    %cst_271 = arith.constant 5.000000e-01 : f32
    %667 = vector.broadcast %cst_271 : f32 to vector<8x128xf32>
    %668 = arith.mulf %667, %666 : vector<8x128xf32>
    %669 = math.tanh %668 : vector<8x128xf32>
    %cst_272 = arith.constant 5.000000e-01 : f32
    %670 = vector.broadcast %cst_272 : f32 to vector<8x128xf32>
    %671 = arith.mulf %670, %669 : vector<8x128xf32>
    %cst_273 = arith.constant 5.000000e-01 : f32
    %672 = vector.broadcast %cst_273 : f32 to vector<8x128xf32>
    %673 = arith.addf %671, %672 : vector<8x128xf32>
    %674 = vector.extract_strided_slice %660 {offsets = [0, 128], sizes = [8, 128], strides = [1, 1]} : vector<8x512xf32> to vector<8x128xf32>
    %cst_274 = arith.constant 5.000000e-01 : f32
    %675 = vector.broadcast %cst_274 : f32 to vector<8x128xf32>
    %676 = arith.mulf %675, %674 : vector<8x128xf32>
    %677 = math.tanh %676 : vector<8x128xf32>
    %cst_275 = arith.constant 5.000000e-01 : f32
    %678 = vector.broadcast %cst_275 : f32 to vector<8x128xf32>
    %679 = arith.mulf %678, %677 : vector<8x128xf32>
    %cst_276 = arith.constant 5.000000e-01 : f32
    %680 = vector.broadcast %cst_276 : f32 to vector<8x128xf32>
    %681 = arith.addf %679, %680 : vector<8x128xf32>
    %682 = vector.extract_strided_slice %660 {offsets = [0, 256], sizes = [8, 128], strides = [1, 1]} : vector<8x512xf32> to vector<8x128xf32>
    %683 = math.tanh %682 : vector<8x128xf32>
    %684 = vector.extract_strided_slice %660 {offsets = [0, 384], sizes = [8, 128], strides = [1, 1]} : vector<8x512xf32> to vector<8x128xf32>
    %cst_277 = arith.constant 5.000000e-01 : f32
    %685 = vector.broadcast %cst_277 : f32 to vector<8x128xf32>
    %686 = arith.mulf %685, %684 : vector<8x128xf32>
    %687 = math.tanh %686 : vector<8x128xf32>
    %cst_278 = arith.constant 5.000000e-01 : f32
    %688 = vector.broadcast %cst_278 : f32 to vector<8x128xf32>
    %689 = arith.mulf %688, %687 : vector<8x128xf32>
    %cst_279 = arith.constant 5.000000e-01 : f32
    %690 = vector.broadcast %cst_279 : f32 to vector<8x128xf32>
    %691 = arith.addf %689, %690 : vector<8x128xf32>
    %692 = arith.mulf %681, %613 : vector<8x128xf32>
    %693 = arith.mulf %673, %683 : vector<8x128xf32>
    %694 = arith.addf %692, %693 : vector<8x128xf32>
    %695 = math.tanh %694 : vector<8x128xf32>
    %696 = arith.mulf %691, %695 : vector<8x128xf32>
    %697 = vector.extract_strided_slice %665 {offsets = [0, 0], sizes = [8, 128], strides = [1, 1]} : vector<8x512xf32> to vector<8x128xf32>
    %cst_280 = arith.constant 5.000000e-01 : f32
    %698 = vector.broadcast %cst_280 : f32 to vector<8x128xf32>
    %699 = arith.mulf %698, %697 : vector<8x128xf32>
    %700 = math.tanh %699 : vector<8x128xf32>
    %cst_281 = arith.constant 5.000000e-01 : f32
    %701 = vector.broadcast %cst_281 : f32 to vector<8x128xf32>
    %702 = arith.mulf %701, %700 : vector<8x128xf32>
    %cst_282 = arith.constant 5.000000e-01 : f32
    %703 = vector.broadcast %cst_282 : f32 to vector<8x128xf32>
    %704 = arith.addf %702, %703 : vector<8x128xf32>
    %705 = vector.extract_strided_slice %665 {offsets = [0, 128], sizes = [8, 128], strides = [1, 1]} : vector<8x512xf32> to vector<8x128xf32>
    %cst_283 = arith.constant 5.000000e-01 : f32
    %706 = vector.broadcast %cst_283 : f32 to vector<8x128xf32>
    %707 = arith.mulf %706, %705 : vector<8x128xf32>
    %708 = math.tanh %707 : vector<8x128xf32>
    %cst_284 = arith.constant 5.000000e-01 : f32
    %709 = vector.broadcast %cst_284 : f32 to vector<8x128xf32>
    %710 = arith.mulf %709, %708 : vector<8x128xf32>
    %cst_285 = arith.constant 5.000000e-01 : f32
    %711 = vector.broadcast %cst_285 : f32 to vector<8x128xf32>
    %712 = arith.addf %710, %711 : vector<8x128xf32>
    %713 = vector.extract_strided_slice %665 {offsets = [0, 256], sizes = [8, 128], strides = [1, 1]} : vector<8x512xf32> to vector<8x128xf32>
    %714 = math.tanh %713 : vector<8x128xf32>
    %715 = vector.extract_strided_slice %665 {offsets = [0, 384], sizes = [8, 128], strides = [1, 1]} : vector<8x512xf32> to vector<8x128xf32>
    %cst_286 = arith.constant 5.000000e-01 : f32
    %716 = vector.broadcast %cst_286 : f32 to vector<8x128xf32>
    %717 = arith.mulf %716, %715 : vector<8x128xf32>
    %718 = math.tanh %717 : vector<8x128xf32>
    %cst_287 = arith.constant 5.000000e-01 : f32
    %719 = vector.broadcast %cst_287 : f32 to vector<8x128xf32>
    %720 = arith.mulf %719, %718 : vector<8x128xf32>
    %cst_288 = arith.constant 5.000000e-01 : f32
    %721 = vector.broadcast %cst_288 : f32 to vector<8x128xf32>
    %722 = arith.addf %720, %721 : vector<8x128xf32>
    %723 = arith.mulf %712, %644 : vector<8x128xf32>
    %724 = arith.mulf %704, %714 : vector<8x128xf32>
    %725 = arith.addf %723, %724 : vector<8x128xf32>
    %726 = math.tanh %725 : vector<8x128xf32>
    %727 = arith.mulf %722, %726 : vector<8x128xf32>
    %c7_289 = arith.constant 7 : index
    %c0_290 = arith.constant 0 : index
    %c0_291 = arith.constant 0 : index
    %728 = vector.load %arg16[%c7_289, %c0_290, %c0_291] : memref<8x8x256xf32, #tpu.memory_space<vmem>>, vector<1x8x128xf32>
    %729 = vector.shape_cast %728 : vector<1x8x128xf32> to vector<8x128xf32>
    %730 = vector.shape_cast %696 : vector<8x128xf32> to vector<1x8x128xf32>
    tpu.vector_store %arg16[%c7_289, %c0_290, %c0_291], %730 {strides = array<i32>} : memref<8x8x256xf32, #tpu.memory_space<vmem>>, vector<1x8x128xf32>,
    %c0_292 = arith.constant 0 : index
    %c0_293 = arith.constant 0 : index
    %c128_294 = arith.constant 128 : index
    %731 = vector.load %arg16[%c0_292, %c0_293, %c128_294] : memref<8x8x256xf32, #tpu.memory_space<vmem>>, vector<1x8x128xf32>
    %732 = vector.shape_cast %731 : vector<1x8x128xf32> to vector<8x128xf32>
    %733 = vector.shape_cast %727 : vector<8x128xf32> to vector<1x8x128xf32>
    tpu.vector_store %arg16[%c0_292, %c0_293, %c128_294], %733 {strides = array<i32>} : memref<8x8x256xf32, #tpu.memory_space<vmem>>, vector<1x8x128xf32>,
    %c0_295 = arith.constant 0 : index
    %c0_296 = arith.constant 0 : index
    %c0_297 = arith.constant 0 : index
    %734 = vector.load %arg16[%c0_295, %c0_296, %c0_297] : memref<8x8x256xf32, #tpu.memory_space<vmem>>, vector<8x8x256xf32>
    %735 = vector.shape_cast %734 : vector<8x8x256xf32> to vector<64x256xf32>
    %736 = arith.truncf %735 : vector<64x256xf32> to vector<64x256xbf16>
    %c0_298 = arith.constant 0 : index
    %c0_299 = arith.constant 0 : index
    %737 = vector.load %arg7[%c0_298, %c0_299] : memref<256x1024xbf16, #tpu.memory_space<vmem>>, vector<256x1024xbf16>
    %cst_300 = arith.constant dense<0.000000e+00> : vector<64x1024xf32>
    %738 = tpu.matmul %736, %737, %cst_300 {dimension_numbers = #tpu.dot_dimension_numbers<[1], [0], [0], [1], [0, 0, 1, 1], [], []>} : vector<64x256xbf16>, vector<256x1024xbf16>, vector<64x1024xf32> -> vector<64x1024xf32>
    %c0_301 = arith.constant 0 : index
    %c0_302 = arith.constant 0 : index
    %739 = vector.load %arg9[%c0_301, %c0_302] : memref<1x1024xf32, #tpu.memory_space<vmem>>, vector<1x1024xf32>
    %740 = vector.broadcast %739 : vector<1x1024xf32> to vector<64x1024xf32>
    %741 = arith.addf %738, %740 : vector<64x1024xf32>
    %742 = vector.shape_cast %741 : vector<64x1024xf32> to vector<8x8x1024xf32>
    %743 = arith.truncf %742 : vector<8x8x1024xf32> to vector<8x8x1024xbf16>
    %c0_303 = arith.constant 0 : index
    %c0_304 = arith.constant 0 : index
    %c0_305 = arith.constant 0 : index
    %744 = vector.load %arg18[%c0_303, %c0_304, %c0_305] : memref<8x8x1024xbf16, #tpu.memory_space<vmem>>, vector<8x8x1024xbf16>
    tpu.vector_store %arg18[%c0_303, %c0_304, %c0_305], %743 {strides = array<i32>} : memref<8x8x1024xbf16, #tpu.memory_space<vmem>>, vector<8x8x1024xbf16>,
    %c0_306 = arith.constant 0 : index
    %c0_307 = arith.constant 0 : index
    %745 = vector.load %arg8[%c0_306, %c0_307] : memref<256x1024xbf16, #tpu.memory_space<vmem>>, vector<256x1024xbf16>
    %cst_308 = arith.constant 0.000000e+00 : f32
    %746 = vector.broadcast %cst_308 : f32 to vector<8x128xf32>
    %cst_309 = arith.constant 0.000000e+00 : f32
    %747 = vector.broadcast %cst_309 : f32 to vector<8x128xf32>
    %cst_310 = arith.constant 0.000000e+00 : f32
    %748 = vector.broadcast %cst_310 : f32 to vector<8x128xf32>
    %cst_311 = arith.constant 0.000000e+00 : f32
    %749 = vector.broadcast %cst_311 : f32 to vector<8x128xf32>
    %750 = tpu.concatenate %746, %748 in 1 : vector<8x128xf32>, vector<8x128xf32> -> vector<8x256xf32>
    %751 = arith.truncf %750 : vector<8x256xf32> to vector<8x256xbf16>
    %cst_312 = arith.constant dense<0.000000e+00> : vector<8x1024xf32>
    %752 = tpu.matmul %751, %745, %cst_312 {dimension_numbers = #tpu.dot_dimension_numbers<[1], [0], [0], [1], [0, 0, 1, 1], [], []>} : vector<8x256xbf16>, vector<256x1024xbf16>, vector<8x1024xf32> -> vector<8x1024xf32>
    %c0_313 = arith.constant 0 : index
    %c0_314 = arith.constant 0 : index
    %c0_315 = arith.constant 0 : index
    %753 = vector.load %arg18[%c0_313, %c0_314, %c0_315] : memref<8x8x1024xbf16, #tpu.memory_space<vmem>>, vector<1x8x512xbf16>
    %754 = vector.shape_cast %753 : vector<1x8x512xbf16> to vector<8x512xbf16>
    %755 = arith.extf %754 : vector<8x512xbf16> to vector<8x512xf32>
    %756 = vector.extract_strided_slice %752 {offsets = [0, 0], sizes = [8, 512], strides = [1, 1]} : vector<8x1024xf32> to vector<8x512xf32>
    %757 = arith.addf %755, %756 : vector<8x512xf32>
    %c7_316 = arith.constant 7 : index
    %c0_317 = arith.constant 0 : index
    %c512_318 = arith.constant 512 : index
    %758 = vector.load %arg18[%c7_316, %c0_317, %c512_318] : memref<8x8x1024xbf16, #tpu.memory_space<vmem>>, vector<1x8x512xbf16>
    %759 = vector.shape_cast %758 : vector<1x8x512xbf16> to vector<8x512xbf16>
    %760 = arith.extf %759 : vector<8x512xbf16> to vector<8x512xf32>
    %761 = vector.extract_strided_slice %752 {offsets = [0, 512], sizes = [8, 512], strides = [1, 1]} : vector<8x1024xf32> to vector<8x512xf32>
    %762 = arith.addf %760, %761 : vector<8x512xf32>
    %763 = vector.extract_strided_slice %757 {offsets = [0, 0], sizes = [8, 128], strides = [1, 1]} : vector<8x512xf32> to vector<8x128xf32>
    %cst_319 = arith.constant 5.000000e-01 : f32
    %764 = vector.broadcast %cst_319 : f32 to vector<8x128xf32>
    %765 = arith.mulf %764, %763 : vector<8x128xf32>
    %766 = math.tanh %765 : vector<8x128xf32>
    %cst_320 = arith.constant 5.000000e-01 : f32
    %767 = vector.broadcast %cst_320 : f32 to vector<8x128xf32>
    %768 = arith.mulf %767, %766 : vector<8x128xf32>
    %cst_321 = arith.constant 5.000000e-01 : f32
    %769 = vector.broadcast %cst_321 : f32 to vector<8x128xf32>
    %770 = arith.addf %768, %769 : vector<8x128xf32>
    %771 = vector.extract_strided_slice %757 {offsets = [0, 128], sizes = [8, 128], strides = [1, 1]} : vector<8x512xf32> to vector<8x128xf32>
    %cst_322 = arith.constant 5.000000e-01 : f32
    %772 = vector.broadcast %cst_322 : f32 to vector<8x128xf32>
    %773 = arith.mulf %772, %771 : vector<8x128xf32>
    %774 = math.tanh %773 : vector<8x128xf32>
    %cst_323 = arith.constant 5.000000e-01 : f32
    %775 = vector.broadcast %cst_323 : f32 to vector<8x128xf32>
    %776 = arith.mulf %775, %774 : vector<8x128xf32>
    %cst_324 = arith.constant 5.000000e-01 : f32
    %777 = vector.broadcast %cst_324 : f32 to vector<8x128xf32>
    %778 = arith.addf %776, %777 : vector<8x128xf32>
    %779 = vector.extract_strided_slice %757 {offsets = [0, 256], sizes = [8, 128], strides = [1, 1]} : vector<8x512xf32> to vector<8x128xf32>
    %780 = math.tanh %779 : vector<8x128xf32>
    %781 = vector.extract_strided_slice %757 {offsets = [0, 384], sizes = [8, 128], strides = [1, 1]} : vector<8x512xf32> to vector<8x128xf32>
    %cst_325 = arith.constant 5.000000e-01 : f32
    %782 = vector.broadcast %cst_325 : f32 to vector<8x128xf32>
    %783 = arith.mulf %782, %781 : vector<8x128xf32>
    %784 = math.tanh %783 : vector<8x128xf32>
    %cst_326 = arith.constant 5.000000e-01 : f32
    %785 = vector.broadcast %cst_326 : f32 to vector<8x128xf32>
    %786 = arith.mulf %785, %784 : vector<8x128xf32>
    %cst_327 = arith.constant 5.000000e-01 : f32
    %787 = vector.broadcast %cst_327 : f32 to vector<8x128xf32>
    %788 = arith.addf %786, %787 : vector<8x128xf32>
    %789 = arith.mulf %778, %747 : vector<8x128xf32>
    %790 = arith.mulf %770, %780 : vector<8x128xf32>
    %791 = arith.addf %789, %790 : vector<8x128xf32>
    %792 = math.tanh %791 : vector<8x128xf32>
    %793 = arith.mulf %788, %792 : vector<8x128xf32>
    %794 = vector.extract_strided_slice %762 {offsets = [0, 0], sizes = [8, 128], strides = [1, 1]} : vector<8x512xf32> to vector<8x128xf32>
    %cst_328 = arith.constant 5.000000e-01 : f32
    %795 = vector.broadcast %cst_328 : f32 to vector<8x128xf32>
    %796 = arith.mulf %795, %794 : vector<8x128xf32>
    %797 = math.tanh %796 : vector<8x128xf32>
    %cst_329 = arith.constant 5.000000e-01 : f32
    %798 = vector.broadcast %cst_329 : f32 to vector<8x128xf32>
    %799 = arith.mulf %798, %797 : vector<8x128xf32>
    %cst_330 = arith.constant 5.000000e-01 : f32
    %800 = vector.broadcast %cst_330 : f32 to vector<8x128xf32>
    %801 = arith.addf %799, %800 : vector<8x128xf32>
    %802 = vector.extract_strided_slice %762 {offsets = [0, 128], sizes = [8, 128], strides = [1, 1]} : vector<8x512xf32> to vector<8x128xf32>
    %cst_331 = arith.constant 5.000000e-01 : f32
    %803 = vector.broadcast %cst_331 : f32 to vector<8x128xf32>
    %804 = arith.mulf %803, %802 : vector<8x128xf32>
    %805 = math.tanh %804 : vector<8x128xf32>
    %cst_332 = arith.constant 5.000000e-01 : f32
    %806 = vector.broadcast %cst_332 : f32 to vector<8x128xf32>
    %807 = arith.mulf %806, %805 : vector<8x128xf32>
    %cst_333 = arith.constant 5.000000e-01 : f32
    %808 = vector.broadcast %cst_333 : f32 to vector<8x128xf32>
    %809 = arith.addf %807, %808 : vector<8x128xf32>
    %810 = vector.extract_strided_slice %762 {offsets = [0, 256], sizes = [8, 128], strides = [1, 1]} : vector<8x512xf32> to vector<8x128xf32>
    %811 = math.tanh %810 : vector<8x128xf32>
    %812 = vector.extract_strided_slice %762 {offsets = [0, 384], sizes = [8, 128], strides = [1, 1]} : vector<8x512xf32> to vector<8x128xf32>
    %cst_334 = arith.constant 5.000000e-01 : f32
    %813 = vector.broadcast %cst_334 : f32 to vector<8x128xf32>
    %814 = arith.mulf %813, %812 : vector<8x128xf32>
    %815 = math.tanh %814 : vector<8x128xf32>
    %cst_335 = arith.constant 5.000000e-01 : f32
    %816 = vector.broadcast %cst_335 : f32 to vector<8x128xf32>
    %817 = arith.mulf %816, %815 : vector<8x128xf32>
    %cst_336 = arith.constant 5.000000e-01 : f32
    %818 = vector.broadcast %cst_336 : f32 to vector<8x128xf32>
    %819 = arith.addf %817, %818 : vector<8x128xf32>
    %820 = arith.mulf %809, %749 : vector<8x128xf32>
    %821 = arith.mulf %801, %811 : vector<8x128xf32>
    %822 = arith.addf %820, %821 : vector<8x128xf32>
    %823 = math.tanh %822 : vector<8x128xf32>
    %824 = arith.mulf %819, %823 : vector<8x128xf32>
    %c0_337 = arith.constant 0 : index
    %c0_338 = arith.constant 0 : index
    %c0_339 = arith.constant 0 : index
    %825 = vector.load %arg17[%c0_337, %c0_338, %c0_339] : memref<8x8x256xf32, #tpu.memory_space<vmem>>, vector<1x8x128xf32>
    %826 = vector.shape_cast %825 : vector<1x8x128xf32> to vector<8x128xf32>
    %827 = vector.shape_cast %793 : vector<8x128xf32> to vector<1x8x128xf32>
    tpu.vector_store %arg17[%c0_337, %c0_338, %c0_339], %827 {strides = array<i32>} : memref<8x8x256xf32, #tpu.memory_space<vmem>>, vector<1x8x128xf32>,
    %c7_340 = arith.constant 7 : index
    %c0_341 = arith.constant 0 : index
    %c128_342 = arith.constant 128 : index
    %828 = vector.load %arg17[%c7_340, %c0_341, %c128_342] : memref<8x8x256xf32, #tpu.memory_space<vmem>>, vector<1x8x128xf32>
    %829 = vector.shape_cast %828 : vector<1x8x128xf32> to vector<8x128xf32>
    %830 = vector.shape_cast %824 : vector<8x128xf32> to vector<1x8x128xf32>
    tpu.vector_store %arg17[%c7_340, %c0_341, %c128_342], %830 {strides = array<i32>} : memref<8x8x256xf32, #tpu.memory_space<vmem>>, vector<1x8x128xf32>,
    %831 = tpu.concatenate %793, %824 in 1 : vector<8x128xf32>, vector<8x128xf32> -> vector<8x256xf32>
    %832 = arith.truncf %831 : vector<8x256xf32> to vector<8x256xbf16>
    %cst_343 = arith.constant dense<0.000000e+00> : vector<8x1024xf32>
    %833 = tpu.matmul %832, %745, %cst_343 {dimension_numbers = #tpu.dot_dimension_numbers<[1], [0], [0], [1], [0, 0, 1, 1], [], []>} : vector<8x256xbf16>, vector<256x1024xbf16>, vector<8x1024xf32> -> vector<8x1024xf32>
    %c1_344 = arith.constant 1 : index
    %c0_345 = arith.constant 0 : index
    %c0_346 = arith.constant 0 : index
    %834 = vector.load %arg18[%c1_344, %c0_345, %c0_346] : memref<8x8x1024xbf16, #tpu.memory_space<vmem>>, vector<1x8x512xbf16>
    %835 = vector.shape_cast %834 : vector<1x8x512xbf16> to vector<8x512xbf16>
    %836 = arith.extf %835 : vector<8x512xbf16> to vector<8x512xf32>
    %837 = vector.extract_strided_slice %833 {offsets = [0, 0], sizes = [8, 512], strides = [1, 1]} : vector<8x1024xf32> to vector<8x512xf32>
    %838 = arith.addf %836, %837 : vector<8x512xf32>
    %c6_347 = arith.constant 6 : index
    %c0_348 = arith.constant 0 : index
    %c512_349 = arith.constant 512 : index
    %839 = vector.load %arg18[%c6_347, %c0_348, %c512_349] : memref<8x8x1024xbf16, #tpu.memory_space<vmem>>, vector<1x8x512xbf16>
    %840 = vector.shape_cast %839 : vector<1x8x512xbf16> to vector<8x512xbf16>
    %841 = arith.extf %840 : vector<8x512xbf16> to vector<8x512xf32>
    %842 = vector.extract_strided_slice %833 {offsets = [0, 512], sizes = [8, 512], strides = [1, 1]} : vector<8x1024xf32> to vector<8x512xf32>
    %843 = arith.addf %841, %842 : vector<8x512xf32>
    %844 = vector.extract_strided_slice %838 {offsets = [0, 0], sizes = [8, 128], strides = [1, 1]} : vector<8x512xf32> to vector<8x128xf32>
    %cst_350 = arith.constant 5.000000e-01 : f32
    %845 = vector.broadcast %cst_350 : f32 to vector<8x128xf32>
    %846 = arith.mulf %845, %844 : vector<8x128xf32>
    %847 = math.tanh %846 : vector<8x128xf32>
    %cst_351 = arith.constant 5.000000e-01 : f32
    %848 = vector.broadcast %cst_351 : f32 to vector<8x128xf32>
    %849 = arith.mulf %848, %847 : vector<8x128xf32>
    %cst_352 = arith.constant 5.000000e-01 : f32
    %850 = vector.broadcast %cst_352 : f32 to vector<8x128xf32>
    %851 = arith.addf %849, %850 : vector<8x128xf32>
    %852 = vector.extract_strided_slice %838 {offsets = [0, 128], sizes = [8, 128], strides = [1, 1]} : vector<8x512xf32> to vector<8x128xf32>
    %cst_353 = arith.constant 5.000000e-01 : f32
    %853 = vector.broadcast %cst_353 : f32 to vector<8x128xf32>
    %854 = arith.mulf %853, %852 : vector<8x128xf32>
    %855 = math.tanh %854 : vector<8x128xf32>
    %cst_354 = arith.constant 5.000000e-01 : f32
    %856 = vector.broadcast %cst_354 : f32 to vector<8x128xf32>
    %857 = arith.mulf %856, %855 : vector<8x128xf32>
    %cst_355 = arith.constant 5.000000e-01 : f32
    %858 = vector.broadcast %cst_355 : f32 to vector<8x128xf32>
    %859 = arith.addf %857, %858 : vector<8x128xf32>
    %860 = vector.extract_strided_slice %838 {offsets = [0, 256], sizes = [8, 128], strides = [1, 1]} : vector<8x512xf32> to vector<8x128xf32>
    %861 = math.tanh %860 : vector<8x128xf32>
    %862 = vector.extract_strided_slice %838 {offsets = [0, 384], sizes = [8, 128], strides = [1, 1]} : vector<8x512xf32> to vector<8x128xf32>
    %cst_356 = arith.constant 5.000000e-01 : f32
    %863 = vector.broadcast %cst_356 : f32 to vector<8x128xf32>
    %864 = arith.mulf %863, %862 : vector<8x128xf32>
    %865 = math.tanh %864 : vector<8x128xf32>
    %cst_357 = arith.constant 5.000000e-01 : f32
    %866 = vector.broadcast %cst_357 : f32 to vector<8x128xf32>
    %867 = arith.mulf %866, %865 : vector<8x128xf32>
    %cst_358 = arith.constant 5.000000e-01 : f32
    %868 = vector.broadcast %cst_358 : f32 to vector<8x128xf32>
    %869 = arith.addf %867, %868 : vector<8x128xf32>
    %870 = arith.mulf %859, %791 : vector<8x128xf32>
    %871 = arith.mulf %851, %861 : vector<8x128xf32>
    %872 = arith.addf %870, %871 : vector<8x128xf32>
    %873 = math.tanh %872 : vector<8x128xf32>
    %874 = arith.mulf %869, %873 : vector<8x128xf32>
    %875 = vector.extract_strided_slice %843 {offsets = [0, 0], sizes = [8, 128], strides = [1, 1]} : vector<8x512xf32> to vector<8x128xf32>
    %cst_359 = arith.constant 5.000000e-01 : f32
    %876 = vector.broadcast %cst_359 : f32 to vector<8x128xf32>
    %877 = arith.mulf %876, %875 : vector<8x128xf32>
    %878 = math.tanh %877 : vector<8x128xf32>
    %cst_360 = arith.constant 5.000000e-01 : f32
    %879 = vector.broadcast %cst_360 : f32 to vector<8x128xf32>
    %880 = arith.mulf %879, %878 : vector<8x128xf32>
    %cst_361 = arith.constant 5.000000e-01 : f32
    %881 = vector.broadcast %cst_361 : f32 to vector<8x128xf32>
    %882 = arith.addf %880, %881 : vector<8x128xf32>
    %883 = vector.extract_strided_slice %843 {offsets = [0, 128], sizes = [8, 128], strides = [1, 1]} : vector<8x512xf32> to vector<8x128xf32>
    %cst_362 = arith.constant 5.000000e-01 : f32
    %884 = vector.broadcast %cst_362 : f32 to vector<8x128xf32>
    %885 = arith.mulf %884, %883 : vector<8x128xf32>
    %886 = math.tanh %885 : vector<8x128xf32>
    %cst_363 = arith.constant 5.000000e-01 : f32
    %887 = vector.broadcast %cst_363 : f32 to vector<8x128xf32>
    %888 = arith.mulf %887, %886 : vector<8x128xf32>
    %cst_364 = arith.constant 5.000000e-01 : f32
    %889 = vector.broadcast %cst_364 : f32 to vector<8x128xf32>
    %890 = arith.addf %888, %889 : vector<8x128xf32>
    %891 = vector.extract_strided_slice %843 {offsets = [0, 256], sizes = [8, 128], strides = [1, 1]} : vector<8x512xf32> to vector<8x128xf32>
    %892 = math.tanh %891 : vector<8x128xf32>
    %893 = vector.extract_strided_slice %843 {offsets = [0, 384], sizes = [8, 128], strides = [1, 1]} : vector<8x512xf32> to vector<8x128xf32>
    %cst_365 = arith.constant 5.000000e-01 : f32
    %894 = vector.broadcast %cst_365 : f32 to vector<8x128xf32>
    %895 = arith.mulf %894, %893 : vector<8x128xf32>
    %896 = math.tanh %895 : vector<8x128xf32>
    %cst_366 = arith.constant 5.000000e-01 : f32
    %897 = vector.broadcast %cst_366 : f32 to vector<8x128xf32>
    %898 = arith.mulf %897, %896 : vector<8x128xf32>
    %cst_367 = arith.constant 5.000000e-01 : f32
    %899 = vector.broadcast %cst_367 : f32 to vector<8x128xf32>
    %900 = arith.addf %898, %899 : vector<8x128xf32>
    %901 = arith.mulf %890, %822 : vector<8x128xf32>
    %902 = arith.mulf %882, %892 : vector<8x128xf32>
    %903 = arith.addf %901, %902 : vector<8x128xf32>
    %904 = math.tanh %903 : vector<8x128xf32>
    %905 = arith.mulf %900, %904 : vector<8x128xf32>
    %c1_368 = arith.constant 1 : index
    %c0_369 = arith.constant 0 : index
    %c0_370 = arith.constant 0 : index
    %906 = vector.load %arg17[%c1_368, %c0_369, %c0_370] : memref<8x8x256xf32, #tpu.memory_space<vmem>>, vector<1x8x128xf32>
    %907 = vector.shape_cast %906 : vector<1x8x128xf32> to vector<8x128xf32>
    %908 = vector.shape_cast %874 : vector<8x128xf32> to vector<1x8x128xf32>
    tpu.vector_store %arg17[%c1_368, %c0_369, %c0_370], %908 {strides = array<i32>} : memref<8x8x256xf32, #tpu.memory_space<vmem>>, vector<1x8x128xf32>,
    %c6_371 = arith.constant 6 : index
    %c0_372 = arith.constant 0 : index
    %c128_373 = arith.constant 128 : index
    %909 = vector.load %arg17[%c6_371, %c0_372, %c128_373] : memref<8x8x256xf32, #tpu.memory_space<vmem>>, vector<1x8x128xf32>
    %910 = vector.shape_cast %909 : vector<1x8x128xf32> to vector<8x128xf32>
    %911 = vector.shape_cast %905 : vector<8x128xf32> to vector<1x8x128xf32>
    tpu.vector_store %arg17[%c6_371, %c0_372, %c128_373], %911 {strides = array<i32>} : memref<8x8x256xf32, #tpu.memory_space<vmem>>, vector<1x8x128xf32>,
    %912 = tpu.concatenate %874, %905 in 1 : vector<8x128xf32>, vector<8x128xf32> -> vector<8x256xf32>
    %913 = arith.truncf %912 : vector<8x256xf32> to vector<8x256xbf16>
    %cst_374 = arith.constant dense<0.000000e+00> : vector<8x1024xf32>
    %914 = tpu.matmul %913, %745, %cst_374 {dimension_numbers = #tpu.dot_dimension_numbers<[1], [0], [0], [1], [0, 0, 1, 1], [], []>} : vector<8x256xbf16>, vector<256x1024xbf16>, vector<8x1024xf32> -> vector<8x1024xf32>
    %c2_375 = arith.constant 2 : index
    %c0_376 = arith.constant 0 : index
    %c0_377 = arith.constant 0 : index
    %915 = vector.load %arg18[%c2_375, %c0_376, %c0_377] : memref<8x8x1024xbf16, #tpu.memory_space<vmem>>, vector<1x8x512xbf16>
    %916 = vector.shape_cast %915 : vector<1x8x512xbf16> to vector<8x512xbf16>
    %917 = arith.extf %916 : vector<8x512xbf16> to vector<8x512xf32>
    %918 = vector.extract_strided_slice %914 {offsets = [0, 0], sizes = [8, 512], strides = [1, 1]} : vector<8x1024xf32> to vector<8x512xf32>
    %919 = arith.addf %917, %918 : vector<8x512xf32>
    %c5_378 = arith.constant 5 : index
    %c0_379 = arith.constant 0 : index
    %c512_380 = arith.constant 512 : index
    %920 = vector.load %arg18[%c5_378, %c0_379, %c512_380] : memref<8x8x1024xbf16, #tpu.memory_space<vmem>>, vector<1x8x512xbf16>
    %921 = vector.shape_cast %920 : vector<1x8x512xbf16> to vector<8x512xbf16>
    %922 = arith.extf %921 : vector<8x512xbf16> to vector<8x512xf32>
    %923 = vector.extract_strided_slice %914 {offsets = [0, 512], sizes = [8, 512], strides = [1, 1]} : vector<8x1024xf32> to vector<8x512xf32>
    %924 = arith.addf %922, %923 : vector<8x512xf32>
    %925 = vector.extract_strided_slice %919 {offsets = [0, 0], sizes = [8, 128], strides = [1, 1]} : vector<8x512xf32> to vector<8x128xf32>
    %cst_381 = arith.constant 5.000000e-01 : f32
    %926 = vector.broadcast %cst_381 : f32 to vector<8x128xf32>
    %927 = arith.mulf %926, %925 : vector<8x128xf32>
    %928 = math.tanh %927 : vector<8x128xf32>
    %cst_382 = arith.constant 5.000000e-01 : f32
    %929 = vector.broadcast %cst_382 : f32 to vector<8x128xf32>
    %930 = arith.mulf %929, %928 : vector<8x128xf32>
    %cst_383 = arith.constant 5.000000e-01 : f32
    %931 = vector.broadcast %cst_383 : f32 to vector<8x128xf32>
    %932 = arith.addf %930, %931 : vector<8x128xf32>
    %933 = vector.extract_strided_slice %919 {offsets = [0, 128], sizes = [8, 128], strides = [1, 1]} : vector<8x512xf32> to vector<8x128xf32>
    %cst_384 = arith.constant 5.000000e-01 : f32
    %934 = vector.broadcast %cst_384 : f32 to vector<8x128xf32>
    %935 = arith.mulf %934, %933 : vector<8x128xf32>
    %936 = math.tanh %935 : vector<8x128xf32>
    %cst_385 = arith.constant 5.000000e-01 : f32
    %937 = vector.broadcast %cst_385 : f32 to vector<8x128xf32>
    %938 = arith.mulf %937, %936 : vector<8x128xf32>
    %cst_386 = arith.constant 5.000000e-01 : f32
    %939 = vector.broadcast %cst_386 : f32 to vector<8x128xf32>
    %940 = arith.addf %938, %939 : vector<8x128xf32>
    %941 = vector.extract_strided_slice %919 {offsets = [0, 256], sizes = [8, 128], strides = [1, 1]} : vector<8x512xf32> to vector<8x128xf32>
    %942 = math.tanh %941 : vector<8x128xf32>
    %943 = vector.extract_strided_slice %919 {offsets = [0, 384], sizes = [8, 128], strides = [1, 1]} : vector<8x512xf32> to vector<8x128xf32>
    %cst_387 = arith.constant 5.000000e-01 : f32
    %944 = vector.broadcast %cst_387 : f32 to vector<8x128xf32>
    %945 = arith.mulf %944, %943 : vector<8x128xf32>
    %946 = math.tanh %945 : vector<8x128xf32>
    %cst_388 = arith.constant 5.000000e-01 : f32
    %947 = vector.broadcast %cst_388 : f32 to vector<8x128xf32>
    %948 = arith.mulf %947, %946 : vector<8x128xf32>
    %cst_389 = arith.constant 5.000000e-01 : f32
    %949 = vector.broadcast %cst_389 : f32 to vector<8x128xf32>
    %950 = arith.addf %948, %949 : vector<8x128xf32>
    %951 = arith.mulf %940, %872 : vector<8x128xf32>
    %952 = arith.mulf %932, %942 : vector<8x128xf32>
    %953 = arith.addf %951, %952 : vector<8x128xf32>
    %954 = math.tanh %953 : vector<8x128xf32>
    %955 = arith.mulf %950, %954 : vector<8x128xf32>
    %956 = vector.extract_strided_slice %924 {offsets = [0, 0], sizes = [8, 128], strides = [1, 1]} : vector<8x512xf32> to vector<8x128xf32>
    %cst_390 = arith.constant 5.000000e-01 : f32
    %957 = vector.broadcast %cst_390 : f32 to vector<8x128xf32>
    %958 = arith.mulf %957, %956 : vector<8x128xf32>
    %959 = math.tanh %958 : vector<8x128xf32>
    %cst_391 = arith.constant 5.000000e-01 : f32
    %960 = vector.broadcast %cst_391 : f32 to vector<8x128xf32>
    %961 = arith.mulf %960, %959 : vector<8x128xf32>
    %cst_392 = arith.constant 5.000000e-01 : f32
    %962 = vector.broadcast %cst_392 : f32 to vector<8x128xf32>
    %963 = arith.addf %961, %962 : vector<8x128xf32>
    %964 = vector.extract_strided_slice %924 {offsets = [0, 128], sizes = [8, 128], strides = [1, 1]} : vector<8x512xf32> to vector<8x128xf32>
    %cst_393 = arith.constant 5.000000e-01 : f32
    %965 = vector.broadcast %cst_393 : f32 to vector<8x128xf32>
    %966 = arith.mulf %965, %964 : vector<8x128xf32>
    %967 = math.tanh %966 : vector<8x128xf32>
    %cst_394 = arith.constant 5.000000e-01 : f32
    %968 = vector.broadcast %cst_394 : f32 to vector<8x128xf32>
    %969 = arith.mulf %968, %967 : vector<8x128xf32>
    %cst_395 = arith.constant 5.000000e-01 : f32
    %970 = vector.broadcast %cst_395 : f32 to vector<8x128xf32>
    %971 = arith.addf %969, %970 : vector<8x128xf32>
    %972 = vector.extract_strided_slice %924 {offsets = [0, 256], sizes = [8, 128], strides = [1, 1]} : vector<8x512xf32> to vector<8x128xf32>
    %973 = math.tanh %972 : vector<8x128xf32>
    %974 = vector.extract_strided_slice %924 {offsets = [0, 384], sizes = [8, 128], strides = [1, 1]} : vector<8x512xf32> to vector<8x128xf32>
    %cst_396 = arith.constant 5.000000e-01 : f32
    %975 = vector.broadcast %cst_396 : f32 to vector<8x128xf32>
    %976 = arith.mulf %975, %974 : vector<8x128xf32>
    %977 = math.tanh %976 : vector<8x128xf32>
    %cst_397 = arith.constant 5.000000e-01 : f32
    %978 = vector.broadcast %cst_397 : f32 to vector<8x128xf32>
    %979 = arith.mulf %978, %977 : vector<8x128xf32>
    %cst_398 = arith.constant 5.000000e-01 : f32
    %980 = vector.broadcast %cst_398 : f32 to vector<8x128xf32>
    %981 = arith.addf %979, %980 : vector<8x128xf32>
    %982 = arith.mulf %971, %903 : vector<8x128xf32>
    %983 = arith.mulf %963, %973 : vector<8x128xf32>
    %984 = arith.addf %982, %983 : vector<8x128xf32>
    %985 = math.tanh %984 : vector<8x128xf32>
    %986 = arith.mulf %981, %985 : vector<8x128xf32>
    %c2_399 = arith.constant 2 : index
    %c0_400 = arith.constant 0 : index
    %c0_401 = arith.constant 0 : index
    %987 = vector.load %arg17[%c2_399, %c0_400, %c0_401] : memref<8x8x256xf32, #tpu.memory_space<vmem>>, vector<1x8x128xf32>
    %988 = vector.shape_cast %987 : vector<1x8x128xf32> to vector<8x128xf32>
    %989 = vector.shape_cast %955 : vector<8x128xf32> to vector<1x8x128xf32>
    tpu.vector_store %arg17[%c2_399, %c0_400, %c0_401], %989 {strides = array<i32>} : memref<8x8x256xf32, #tpu.memory_space<vmem>>, vector<1x8x128xf32>,
    %c5_402 = arith.constant 5 : index
    %c0_403 = arith.constant 0 : index
    %c128_404 = arith.constant 128 : index
    %990 = vector.load %arg17[%c5_402, %c0_403, %c128_404] : memref<8x8x256xf32, #tpu.memory_space<vmem>>, vector<1x8x128xf32>
    %991 = vector.shape_cast %990 : vector<1x8x128xf32> to vector<8x128xf32>
    %992 = vector.shape_cast %986 : vector<8x128xf32> to vector<1x8x128xf32>
    tpu.vector_store %arg17[%c5_402, %c0_403, %c128_404], %992 {strides = array<i32>} : memref<8x8x256xf32, #tpu.memory_space<vmem>>, vector<1x8x128xf32>,
    %993 = tpu.concatenate %955, %986 in 1 : vector<8x128xf32>, vector<8x128xf32> -> vector<8x256xf32>
    %994 = arith.truncf %993 : vector<8x256xf32> to vector<8x256xbf16>
    %cst_405 = arith.constant dense<0.000000e+00> : vector<8x1024xf32>
    %995 = tpu.matmul %994, %745, %cst_405 {dimension_numbers = #tpu.dot_dimension_numbers<[1], [0], [0], [1], [0, 0, 1, 1], [], []>} : vector<8x256xbf16>, vector<256x1024xbf16>, vector<8x1024xf32> -> vector<8x1024xf32>
    %c3_406 = arith.constant 3 : index
    %c0_407 = arith.constant 0 : index
    %c0_408 = arith.constant 0 : index
    %996 = vector.load %arg18[%c3_406, %c0_407, %c0_408] : memref<8x8x1024xbf16, #tpu.memory_space<vmem>>, vector<1x8x512xbf16>
    %997 = vector.shape_cast %996 : vector<1x8x512xbf16> to vector<8x512xbf16>
    %998 = arith.extf %997 : vector<8x512xbf16> to vector<8x512xf32>
    %999 = vector.extract_strided_slice %995 {offsets = [0, 0], sizes = [8, 512], strides = [1, 1]} : vector<8x1024xf32> to vector<8x512xf32>
    %1000 = arith.addf %998, %999 : vector<8x512xf32>
    %c4_409 = arith.constant 4 : index
    %c0_410 = arith.constant 0 : index
    %c512_411 = arith.constant 512 : index
    %1001 = vector.load %arg18[%c4_409, %c0_410, %c512_411] : memref<8x8x1024xbf16, #tpu.memory_space<vmem>>, vector<1x8x512xbf16>
    %1002 = vector.shape_cast %1001 : vector<1x8x512xbf16> to vector<8x512xbf16>
    %1003 = arith.extf %1002 : vector<8x512xbf16> to vector<8x512xf32>
    %1004 = vector.extract_strided_slice %995 {offsets = [0, 512], sizes = [8, 512], strides = [1, 1]} : vector<8x1024xf32> to vector<8x512xf32>
    %1005 = arith.addf %1003, %1004 : vector<8x512xf32>
    %1006 = vector.extract_strided_slice %1000 {offsets = [0, 0], sizes = [8, 128], strides = [1, 1]} : vector<8x512xf32> to vector<8x128xf32>
    %cst_412 = arith.constant 5.000000e-01 : f32
    %1007 = vector.broadcast %cst_412 : f32 to vector<8x128xf32>
    %1008 = arith.mulf %1007, %1006 : vector<8x128xf32>
    %1009 = math.tanh %1008 : vector<8x128xf32>
    %cst_413 = arith.constant 5.000000e-01 : f32
    %1010 = vector.broadcast %cst_413 : f32 to vector<8x128xf32>
    %1011 = arith.mulf %1010, %1009 : vector<8x128xf32>
    %cst_414 = arith.constant 5.000000e-01 : f32
    %1012 = vector.broadcast %cst_414 : f32 to vector<8x128xf32>
    %1013 = arith.addf %1011, %1012 : vector<8x128xf32>
    %1014 = vector.extract_strided_slice %1000 {offsets = [0, 128], sizes = [8, 128], strides = [1, 1]} : vector<8x512xf32> to vector<8x128xf32>
    %cst_415 = arith.constant 5.000000e-01 : f32
    %1015 = vector.broadcast %cst_415 : f32 to vector<8x128xf32>
    %1016 = arith.mulf %1015, %1014 : vector<8x128xf32>
    %1017 = math.tanh %1016 : vector<8x128xf32>
    %cst_416 = arith.constant 5.000000e-01 : f32
    %1018 = vector.broadcast %cst_416 : f32 to vector<8x128xf32>
    %1019 = arith.mulf %1018, %1017 : vector<8x128xf32>
    %cst_417 = arith.constant 5.000000e-01 : f32
    %1020 = vector.broadcast %cst_417 : f32 to vector<8x128xf32>
    %1021 = arith.addf %1019, %1020 : vector<8x128xf32>
    %1022 = vector.extract_strided_slice %1000 {offsets = [0, 256], sizes = [8, 128], strides = [1, 1]} : vector<8x512xf32> to vector<8x128xf32>
    %1023 = math.tanh %1022 : vector<8x128xf32>
    %1024 = vector.extract_strided_slice %1000 {offsets = [0, 384], sizes = [8, 128], strides = [1, 1]} : vector<8x512xf32> to vector<8x128xf32>
    %cst_418 = arith.constant 5.000000e-01 : f32
    %1025 = vector.broadcast %cst_418 : f32 to vector<8x128xf32>
    %1026 = arith.mulf %1025, %1024 : vector<8x128xf32>
    %1027 = math.tanh %1026 : vector<8x128xf32>
    %cst_419 = arith.constant 5.000000e-01 : f32
    %1028 = vector.broadcast %cst_419 : f32 to vector<8x128xf32>
    %1029 = arith.mulf %1028, %1027 : vector<8x128xf32>
    %cst_420 = arith.constant 5.000000e-01 : f32
    %1030 = vector.broadcast %cst_420 : f32 to vector<8x128xf32>
    %1031 = arith.addf %1029, %1030 : vector<8x128xf32>
    %1032 = arith.mulf %1021, %953 : vector<8x128xf32>
    %1033 = arith.mulf %1013, %1023 : vector<8x128xf32>
    %1034 = arith.addf %1032, %1033 : vector<8x128xf32>
    %1035 = math.tanh %1034 : vector<8x128xf32>
    %1036 = arith.mulf %1031, %1035 : vector<8x128xf32>
    %1037 = vector.extract_strided_slice %1005 {offsets = [0, 0], sizes = [8, 128], strides = [1, 1]} : vector<8x512xf32> to vector<8x128xf32>
    %cst_421 = arith.constant 5.000000e-01 : f32
    %1038 = vector.broadcast %cst_421 : f32 to vector<8x128xf32>
    %1039 = arith.mulf %1038, %1037 : vector<8x128xf32>
    %1040 = math.tanh %1039 : vector<8x128xf32>
    %cst_422 = arith.constant 5.000000e-01 : f32
    %1041 = vector.broadcast %cst_422 : f32 to vector<8x128xf32>
    %1042 = arith.mulf %1041, %1040 : vector<8x128xf32>
    %cst_423 = arith.constant 5.000000e-01 : f32
    %1043 = vector.broadcast %cst_423 : f32 to vector<8x128xf32>
    %1044 = arith.addf %1042, %1043 : vector<8x128xf32>
    %1045 = vector.extract_strided_slice %1005 {offsets = [0, 128], sizes = [8, 128], strides = [1, 1]} : vector<8x512xf32> to vector<8x128xf32>
    %cst_424 = arith.constant 5.000000e-01 : f32
    %1046 = vector.broadcast %cst_424 : f32 to vector<8x128xf32>
    %1047 = arith.mulf %1046, %1045 : vector<8x128xf32>
    %1048 = math.tanh %1047 : vector<8x128xf32>
    %cst_425 = arith.constant 5.000000e-01 : f32
    %1049 = vector.broadcast %cst_425 : f32 to vector<8x128xf32>
    %1050 = arith.mulf %1049, %1048 : vector<8x128xf32>
    %cst_426 = arith.constant 5.000000e-01 : f32
    %1051 = vector.broadcast %cst_426 : f32 to vector<8x128xf32>
    %1052 = arith.addf %1050, %1051 : vector<8x128xf32>
    %1053 = vector.extract_strided_slice %1005 {offsets = [0, 256], sizes = [8, 128], strides = [1, 1]} : vector<8x512xf32> to vector<8x128xf32>
    %1054 = math.tanh %1053 : vector<8x128xf32>
    %1055 = vector.extract_strided_slice %1005 {offsets = [0, 384], sizes = [8, 128], strides = [1, 1]} : vector<8x512xf32> to vector<8x128xf32>
    %cst_427 = arith.constant 5.000000e-01 : f32
    %1056 = vector.broadcast %cst_427 : f32 to vector<8x128xf32>
    %1057 = arith.mulf %1056, %1055 : vector<8x128xf32>
    %1058 = math.tanh %1057 : vector<8x128xf32>
    %cst_428 = arith.constant 5.000000e-01 : f32
    %1059 = vector.broadcast %cst_428 : f32 to vector<8x128xf32>
    %1060 = arith.mulf %1059, %1058 : vector<8x128xf32>
    %cst_429 = arith.constant 5.000000e-01 : f32
    %1061 = vector.broadcast %cst_429 : f32 to vector<8x128xf32>
    %1062 = arith.addf %1060, %1061 : vector<8x128xf32>
    %1063 = arith.mulf %1052, %984 : vector<8x128xf32>
    %1064 = arith.mulf %1044, %1054 : vector<8x128xf32>
    %1065 = arith.addf %1063, %1064 : vector<8x128xf32>
    %1066 = math.tanh %1065 : vector<8x128xf32>
    %1067 = arith.mulf %1062, %1066 : vector<8x128xf32>
    %c3_430 = arith.constant 3 : index
    %c0_431 = arith.constant 0 : index
    %c0_432 = arith.constant 0 : index
    %1068 = vector.load %arg17[%c3_430, %c0_431, %c0_432] : memref<8x8x256xf32, #tpu.memory_space<vmem>>, vector<1x8x128xf32>
    %1069 = vector.shape_cast %1068 : vector<1x8x128xf32> to vector<8x128xf32>
    %1070 = vector.shape_cast %1036 : vector<8x128xf32> to vector<1x8x128xf32>
    tpu.vector_store %arg17[%c3_430, %c0_431, %c0_432], %1070 {strides = array<i32>} : memref<8x8x256xf32, #tpu.memory_space<vmem>>, vector<1x8x128xf32>,
    %c4_433 = arith.constant 4 : index
    %c0_434 = arith.constant 0 : index
    %c128_435 = arith.constant 128 : index
    %1071 = vector.load %arg17[%c4_433, %c0_434, %c128_435] : memref<8x8x256xf32, #tpu.memory_space<vmem>>, vector<1x8x128xf32>
    %1072 = vector.shape_cast %1071 : vector<1x8x128xf32> to vector<8x128xf32>
    %1073 = vector.shape_cast %1067 : vector<8x128xf32> to vector<1x8x128xf32>
    tpu.vector_store %arg17[%c4_433, %c0_434, %c128_435], %1073 {strides = array<i32>} : memref<8x8x256xf32, #tpu.memory_space<vmem>>, vector<1x8x128xf32>,
    %1074 = tpu.concatenate %1036, %1067 in 1 : vector<8x128xf32>, vector<8x128xf32> -> vector<8x256xf32>
    %1075 = arith.truncf %1074 : vector<8x256xf32> to vector<8x256xbf16>
    %cst_436 = arith.constant dense<0.000000e+00> : vector<8x1024xf32>
    %1076 = tpu.matmul %1075, %745, %cst_436 {dimension_numbers = #tpu.dot_dimension_numbers<[1], [0], [0], [1], [0, 0, 1, 1], [], []>} : vector<8x256xbf16>, vector<256x1024xbf16>, vector<8x1024xf32> -> vector<8x1024xf32>
    %c4_437 = arith.constant 4 : index
    %c0_438 = arith.constant 0 : index
    %c0_439 = arith.constant 0 : index
    %1077 = vector.load %arg18[%c4_437, %c0_438, %c0_439] : memref<8x8x1024xbf16, #tpu.memory_space<vmem>>, vector<1x8x512xbf16>
    %1078 = vector.shape_cast %1077 : vector<1x8x512xbf16> to vector<8x512xbf16>
    %1079 = arith.extf %1078 : vector<8x512xbf16> to vector<8x512xf32>
    %1080 = vector.extract_strided_slice %1076 {offsets = [0, 0], sizes = [8, 512], strides = [1, 1]} : vector<8x1024xf32> to vector<8x512xf32>
    %1081 = arith.addf %1079, %1080 : vector<8x512xf32>
    %c3_440 = arith.constant 3 : index
    %c0_441 = arith.constant 0 : index
    %c512_442 = arith.constant 512 : index
    %1082 = vector.load %arg18[%c3_440, %c0_441, %c512_442] : memref<8x8x1024xbf16, #tpu.memory_space<vmem>>, vector<1x8x512xbf16>
    %1083 = vector.shape_cast %1082 : vector<1x8x512xbf16> to vector<8x512xbf16>
    %1084 = arith.extf %1083 : vector<8x512xbf16> to vector<8x512xf32>
    %1085 = vector.extract_strided_slice %1076 {offsets = [0, 512], sizes = [8, 512], strides = [1, 1]} : vector<8x1024xf32> to vector<8x512xf32>
    %1086 = arith.addf %1084, %1085 : vector<8x512xf32>
    %1087 = vector.extract_strided_slice %1081 {offsets = [0, 0], sizes = [8, 128], strides = [1, 1]} : vector<8x512xf32> to vector<8x128xf32>
    %cst_443 = arith.constant 5.000000e-01 : f32
    %1088 = vector.broadcast %cst_443 : f32 to vector<8x128xf32>
    %1089 = arith.mulf %1088, %1087 : vector<8x128xf32>
    %1090 = math.tanh %1089 : vector<8x128xf32>
    %cst_444 = arith.constant 5.000000e-01 : f32
    %1091 = vector.broadcast %cst_444 : f32 to vector<8x128xf32>
    %1092 = arith.mulf %1091, %1090 : vector<8x128xf32>
    %cst_445 = arith.constant 5.000000e-01 : f32
    %1093 = vector.broadcast %cst_445 : f32 to vector<8x128xf32>
    %1094 = arith.addf %1092, %1093 : vector<8x128xf32>
    %1095 = vector.extract_strided_slice %1081 {offsets = [0, 128], sizes = [8, 128], strides = [1, 1]} : vector<8x512xf32> to vector<8x128xf32>
    %cst_446 = arith.constant 5.000000e-01 : f32
    %1096 = vector.broadcast %cst_446 : f32 to vector<8x128xf32>
    %1097 = arith.mulf %1096, %1095 : vector<8x128xf32>
    %1098 = math.tanh %1097 : vector<8x128xf32>
    %cst_447 = arith.constant 5.000000e-01 : f32
    %1099 = vector.broadcast %cst_447 : f32 to vector<8x128xf32>
    %1100 = arith.mulf %1099, %1098 : vector<8x128xf32>
    %cst_448 = arith.constant 5.000000e-01 : f32
    %1101 = vector.broadcast %cst_448 : f32 to vector<8x128xf32>
    %1102 = arith.addf %1100, %1101 : vector<8x128xf32>
    %1103 = vector.extract_strided_slice %1081 {offsets = [0, 256], sizes = [8, 128], strides = [1, 1]} : vector<8x512xf32> to vector<8x128xf32>
    %1104 = math.tanh %1103 : vector<8x128xf32>
    %1105 = vector.extract_strided_slice %1081 {offsets = [0, 384], sizes = [8, 128], strides = [1, 1]} : vector<8x512xf32> to vector<8x128xf32>
    %cst_449 = arith.constant 5.000000e-01 : f32
    %1106 = vector.broadcast %cst_449 : f32 to vector<8x128xf32>
    %1107 = arith.mulf %1106, %1105 : vector<8x128xf32>
    %1108 = math.tanh %1107 : vector<8x128xf32>
    %cst_450 = arith.constant 5.000000e-01 : f32
    %1109 = vector.broadcast %cst_450 : f32 to vector<8x128xf32>
    %1110 = arith.mulf %1109, %1108 : vector<8x128xf32>
    %cst_451 = arith.constant 5.000000e-01 : f32
    %1111 = vector.broadcast %cst_451 : f32 to vector<8x128xf32>
    %1112 = arith.addf %1110, %1111 : vector<8x128xf32>
    %1113 = arith.mulf %1102, %1034 : vector<8x128xf32>
    %1114 = arith.mulf %1094, %1104 : vector<8x128xf32>
    %1115 = arith.addf %1113, %1114 : vector<8x128xf32>
    %1116 = math.tanh %1115 : vector<8x128xf32>
    %1117 = arith.mulf %1112, %1116 : vector<8x128xf32>
    %1118 = vector.extract_strided_slice %1086 {offsets = [0, 0], sizes = [8, 128], strides = [1, 1]} : vector<8x512xf32> to vector<8x128xf32>
    %cst_452 = arith.constant 5.000000e-01 : f32
    %1119 = vector.broadcast %cst_452 : f32 to vector<8x128xf32>
    %1120 = arith.mulf %1119, %1118 : vector<8x128xf32>
    %1121 = math.tanh %1120 : vector<8x128xf32>
    %cst_453 = arith.constant 5.000000e-01 : f32
    %1122 = vector.broadcast %cst_453 : f32 to vector<8x128xf32>
    %1123 = arith.mulf %1122, %1121 : vector<8x128xf32>
    %cst_454 = arith.constant 5.000000e-01 : f32
    %1124 = vector.broadcast %cst_454 : f32 to vector<8x128xf32>
    %1125 = arith.addf %1123, %1124 : vector<8x128xf32>
    %1126 = vector.extract_strided_slice %1086 {offsets = [0, 128], sizes = [8, 128], strides = [1, 1]} : vector<8x512xf32> to vector<8x128xf32>
    %cst_455 = arith.constant 5.000000e-01 : f32
    %1127 = vector.broadcast %cst_455 : f32 to vector<8x128xf32>
    %1128 = arith.mulf %1127, %1126 : vector<8x128xf32>
    %1129 = math.tanh %1128 : vector<8x128xf32>
    %cst_456 = arith.constant 5.000000e-01 : f32
    %1130 = vector.broadcast %cst_456 : f32 to vector<8x128xf32>
    %1131 = arith.mulf %1130, %1129 : vector<8x128xf32>
    %cst_457 = arith.constant 5.000000e-01 : f32
    %1132 = vector.broadcast %cst_457 : f32 to vector<8x128xf32>
    %1133 = arith.addf %1131, %1132 : vector<8x128xf32>
    %1134 = vector.extract_strided_slice %1086 {offsets = [0, 256], sizes = [8, 128], strides = [1, 1]} : vector<8x512xf32> to vector<8x128xf32>
    %1135 = math.tanh %1134 : vector<8x128xf32>
    %1136 = vector.extract_strided_slice %1086 {offsets = [0, 384], sizes = [8, 128], strides = [1, 1]} : vector<8x512xf32> to vector<8x128xf32>
    %cst_458 = arith.constant 5.000000e-01 : f32
    %1137 = vector.broadcast %cst_458 : f32 to vector<8x128xf32>
    %1138 = arith.mulf %1137, %1136 : vector<8x128xf32>
    %1139 = math.tanh %1138 : vector<8x128xf32>
    %cst_459 = arith.constant 5.000000e-01 : f32
    %1140 = vector.broadcast %cst_459 : f32 to vector<8x128xf32>
    %1141 = arith.mulf %1140, %1139 : vector<8x128xf32>
    %cst_460 = arith.constant 5.000000e-01 : f32
    %1142 = vector.broadcast %cst_460 : f32 to vector<8x128xf32>
    %1143 = arith.addf %1141, %1142 : vector<8x128xf32>
    %1144 = arith.mulf %1133, %1065 : vector<8x128xf32>
    %1145 = arith.mulf %1125, %1135 : vector<8x128xf32>
    %1146 = arith.addf %1144, %1145 : vector<8x128xf32>
    %1147 = math.tanh %1146 : vector<8x128xf32>
    %1148 = arith.mulf %1143, %1147 : vector<8x128xf32>
    %c4_461 = arith.constant 4 : index
    %c0_462 = arith.constant 0 : index
    %c0_463 = arith.constant 0 : index
    %1149 = vector.load %arg17[%c4_461, %c0_462, %c0_463] : memref<8x8x256xf32, #tpu.memory_space<vmem>>, vector<1x8x128xf32>
    %1150 = vector.shape_cast %1149 : vector<1x8x128xf32> to vector<8x128xf32>
    %1151 = vector.shape_cast %1117 : vector<8x128xf32> to vector<1x8x128xf32>
    tpu.vector_store %arg17[%c4_461, %c0_462, %c0_463], %1151 {strides = array<i32>} : memref<8x8x256xf32, #tpu.memory_space<vmem>>, vector<1x8x128xf32>,
    %c3_464 = arith.constant 3 : index
    %c0_465 = arith.constant 0 : index
    %c128_466 = arith.constant 128 : index
    %1152 = vector.load %arg17[%c3_464, %c0_465, %c128_466] : memref<8x8x256xf32, #tpu.memory_space<vmem>>, vector<1x8x128xf32>
    %1153 = vector.shape_cast %1152 : vector<1x8x128xf32> to vector<8x128xf32>
    %1154 = vector.shape_cast %1148 : vector<8x128xf32> to vector<1x8x128xf32>
    tpu.vector_store %arg17[%c3_464, %c0_465, %c128_466], %1154 {strides = array<i32>} : memref<8x8x256xf32, #tpu.memory_space<vmem>>, vector<1x8x128xf32>,
    %1155 = tpu.concatenate %1117, %1148 in 1 : vector<8x128xf32>, vector<8x128xf32> -> vector<8x256xf32>
    %1156 = arith.truncf %1155 : vector<8x256xf32> to vector<8x256xbf16>
    %cst_467 = arith.constant dense<0.000000e+00> : vector<8x1024xf32>
    %1157 = tpu.matmul %1156, %745, %cst_467 {dimension_numbers = #tpu.dot_dimension_numbers<[1], [0], [0], [1], [0, 0, 1, 1], [], []>} : vector<8x256xbf16>, vector<256x1024xbf16>, vector<8x1024xf32> -> vector<8x1024xf32>
    %c5_468 = arith.constant 5 : index
    %c0_469 = arith.constant 0 : index
    %c0_470 = arith.constant 0 : index
    %1158 = vector.load %arg18[%c5_468, %c0_469, %c0_470] : memref<8x8x1024xbf16, #tpu.memory_space<vmem>>, vector<1x8x512xbf16>
    %1159 = vector.shape_cast %1158 : vector<1x8x512xbf16> to vector<8x512xbf16>
    %1160 = arith.extf %1159 : vector<8x512xbf16> to vector<8x512xf32>
    %1161 = vector.extract_strided_slice %1157 {offsets = [0, 0], sizes = [8, 512], strides = [1, 1]} : vector<8x1024xf32> to vector<8x512xf32>
    %1162 = arith.addf %1160, %1161 : vector<8x512xf32>
    %c2_471 = arith.constant 2 : index
    %c0_472 = arith.constant 0 : index
    %c512_473 = arith.constant 512 : index
    %1163 = vector.load %arg18[%c2_471, %c0_472, %c512_473] : memref<8x8x1024xbf16, #tpu.memory_space<vmem>>, vector<1x8x512xbf16>
    %1164 = vector.shape_cast %1163 : vector<1x8x512xbf16> to vector<8x512xbf16>
    %1165 = arith.extf %1164 : vector<8x512xbf16> to vector<8x512xf32>
    %1166 = vector.extract_strided_slice %1157 {offsets = [0, 512], sizes = [8, 512], strides = [1, 1]} : vector<8x1024xf32> to vector<8x512xf32>
    %1167 = arith.addf %1165, %1166 : vector<8x512xf32>
    %1168 = vector.extract_strided_slice %1162 {offsets = [0, 0], sizes = [8, 128], strides = [1, 1]} : vector<8x512xf32> to vector<8x128xf32>
    %cst_474 = arith.constant 5.000000e-01 : f32
    %1169 = vector.broadcast %cst_474 : f32 to vector<8x128xf32>
    %1170 = arith.mulf %1169, %1168 : vector<8x128xf32>
    %1171 = math.tanh %1170 : vector<8x128xf32>
    %cst_475 = arith.constant 5.000000e-01 : f32
    %1172 = vector.broadcast %cst_475 : f32 to vector<8x128xf32>
    %1173 = arith.mulf %1172, %1171 : vector<8x128xf32>
    %cst_476 = arith.constant 5.000000e-01 : f32
    %1174 = vector.broadcast %cst_476 : f32 to vector<8x128xf32>
    %1175 = arith.addf %1173, %1174 : vector<8x128xf32>
    %1176 = vector.extract_strided_slice %1162 {offsets = [0, 128], sizes = [8, 128], strides = [1, 1]} : vector<8x512xf32> to vector<8x128xf32>
    %cst_477 = arith.constant 5.000000e-01 : f32
    %1177 = vector.broadcast %cst_477 : f32 to vector<8x128xf32>
    %1178 = arith.mulf %1177, %1176 : vector<8x128xf32>
    %1179 = math.tanh %1178 : vector<8x128xf32>
    %cst_478 = arith.constant 5.000000e-01 : f32
    %1180 = vector.broadcast %cst_478 : f32 to vector<8x128xf32>
    %1181 = arith.mulf %1180, %1179 : vector<8x128xf32>
    %cst_479 = arith.constant 5.000000e-01 : f32
    %1182 = vector.broadcast %cst_479 : f32 to vector<8x128xf32>
    %1183 = arith.addf %1181, %1182 : vector<8x128xf32>
    %1184 = vector.extract_strided_slice %1162 {offsets = [0, 256], sizes = [8, 128], strides = [1, 1]} : vector<8x512xf32> to vector<8x128xf32>
    %1185 = math.tanh %1184 : vector<8x128xf32>
    %1186 = vector.extract_strided_slice %1162 {offsets = [0, 384], sizes = [8, 128], strides = [1, 1]} : vector<8x512xf32> to vector<8x128xf32>
    %cst_480 = arith.constant 5.000000e-01 : f32
    %1187 = vector.broadcast %cst_480 : f32 to vector<8x128xf32>
    %1188 = arith.mulf %1187, %1186 : vector<8x128xf32>
    %1189 = math.tanh %1188 : vector<8x128xf32>
    %cst_481 = arith.constant 5.000000e-01 : f32
    %1190 = vector.broadcast %cst_481 : f32 to vector<8x128xf32>
    %1191 = arith.mulf %1190, %1189 : vector<8x128xf32>
    %cst_482 = arith.constant 5.000000e-01 : f32
    %1192 = vector.broadcast %cst_482 : f32 to vector<8x128xf32>
    %1193 = arith.addf %1191, %1192 : vector<8x128xf32>
    %1194 = arith.mulf %1183, %1115 : vector<8x128xf32>
    %1195 = arith.mulf %1175, %1185 : vector<8x128xf32>
    %1196 = arith.addf %1194, %1195 : vector<8x128xf32>
    %1197 = math.tanh %1196 : vector<8x128xf32>
    %1198 = arith.mulf %1193, %1197 : vector<8x128xf32>
    %1199 = vector.extract_strided_slice %1167 {offsets = [0, 0], sizes = [8, 128], strides = [1, 1]} : vector<8x512xf32> to vector<8x128xf32>
    %cst_483 = arith.constant 5.000000e-01 : f32
    %1200 = vector.broadcast %cst_483 : f32 to vector<8x128xf32>
    %1201 = arith.mulf %1200, %1199 : vector<8x128xf32>
    %1202 = math.tanh %1201 : vector<8x128xf32>
    %cst_484 = arith.constant 5.000000e-01 : f32
    %1203 = vector.broadcast %cst_484 : f32 to vector<8x128xf32>
    %1204 = arith.mulf %1203, %1202 : vector<8x128xf32>
    %cst_485 = arith.constant 5.000000e-01 : f32
    %1205 = vector.broadcast %cst_485 : f32 to vector<8x128xf32>
    %1206 = arith.addf %1204, %1205 : vector<8x128xf32>
    %1207 = vector.extract_strided_slice %1167 {offsets = [0, 128], sizes = [8, 128], strides = [1, 1]} : vector<8x512xf32> to vector<8x128xf32>
    %cst_486 = arith.constant 5.000000e-01 : f32
    %1208 = vector.broadcast %cst_486 : f32 to vector<8x128xf32>
    %1209 = arith.mulf %1208, %1207 : vector<8x128xf32>
    %1210 = math.tanh %1209 : vector<8x128xf32>
    %cst_487 = arith.constant 5.000000e-01 : f32
    %1211 = vector.broadcast %cst_487 : f32 to vector<8x128xf32>
    %1212 = arith.mulf %1211, %1210 : vector<8x128xf32>
    %cst_488 = arith.constant 5.000000e-01 : f32
    %1213 = vector.broadcast %cst_488 : f32 to vector<8x128xf32>
    %1214 = arith.addf %1212, %1213 : vector<8x128xf32>
    %1215 = vector.extract_strided_slice %1167 {offsets = [0, 256], sizes = [8, 128], strides = [1, 1]} : vector<8x512xf32> to vector<8x128xf32>
    %1216 = math.tanh %1215 : vector<8x128xf32>
    %1217 = vector.extract_strided_slice %1167 {offsets = [0, 384], sizes = [8, 128], strides = [1, 1]} : vector<8x512xf32> to vector<8x128xf32>
    %cst_489 = arith.constant 5.000000e-01 : f32
    %1218 = vector.broadcast %cst_489 : f32 to vector<8x128xf32>
    %1219 = arith.mulf %1218, %1217 : vector<8x128xf32>
    %1220 = math.tanh %1219 : vector<8x128xf32>
    %cst_490 = arith.constant 5.000000e-01 : f32
    %1221 = vector.broadcast %cst_490 : f32 to vector<8x128xf32>
    %1222 = arith.mulf %1221, %1220 : vector<8x128xf32>
    %cst_491 = arith.constant 5.000000e-01 : f32
    %1223 = vector.broadcast %cst_491 : f32 to vector<8x128xf32>
    %1224 = arith.addf %1222, %1223 : vector<8x128xf32>
    %1225 = arith.mulf %1214, %1146 : vector<8x128xf32>
    %1226 = arith.mulf %1206, %1216 : vector<8x128xf32>
    %1227 = arith.addf %1225, %1226 : vector<8x128xf32>
    %1228 = math.tanh %1227 : vector<8x128xf32>
    %1229 = arith.mulf %1224, %1228 : vector<8x128xf32>
    %c5_492 = arith.constant 5 : index
    %c0_493 = arith.constant 0 : index
    %c0_494 = arith.constant 0 : index
    %1230 = vector.load %arg17[%c5_492, %c0_493, %c0_494] : memref<8x8x256xf32, #tpu.memory_space<vmem>>, vector<1x8x128xf32>
    %1231 = vector.shape_cast %1230 : vector<1x8x128xf32> to vector<8x128xf32>
    %1232 = vector.shape_cast %1198 : vector<8x128xf32> to vector<1x8x128xf32>
    tpu.vector_store %arg17[%c5_492, %c0_493, %c0_494], %1232 {strides = array<i32>} : memref<8x8x256xf32, #tpu.memory_space<vmem>>, vector<1x8x128xf32>,
    %c2_495 = arith.constant 2 : index
    %c0_496 = arith.constant 0 : index
    %c128_497 = arith.constant 128 : index
    %1233 = vector.load %arg17[%c2_495, %c0_496, %c128_497] : memref<8x8x256xf32, #tpu.memory_space<vmem>>, vector<1x8x128xf32>
    %1234 = vector.shape_cast %1233 : vector<1x8x128xf32> to vector<8x128xf32>
    %1235 = vector.shape_cast %1229 : vector<8x128xf32> to vector<1x8x128xf32>
    tpu.vector_store %arg17[%c2_495, %c0_496, %c128_497], %1235 {strides = array<i32>} : memref<8x8x256xf32, #tpu.memory_space<vmem>>, vector<1x8x128xf32>,
    %1236 = tpu.concatenate %1198, %1229 in 1 : vector<8x128xf32>, vector<8x128xf32> -> vector<8x256xf32>
    %1237 = arith.truncf %1236 : vector<8x256xf32> to vector<8x256xbf16>
    %cst_498 = arith.constant dense<0.000000e+00> : vector<8x1024xf32>
    %1238 = tpu.matmul %1237, %745, %cst_498 {dimension_numbers = #tpu.dot_dimension_numbers<[1], [0], [0], [1], [0, 0, 1, 1], [], []>} : vector<8x256xbf16>, vector<256x1024xbf16>, vector<8x1024xf32> -> vector<8x1024xf32>
    %c6_499 = arith.constant 6 : index
    %c0_500 = arith.constant 0 : index
    %c0_501 = arith.constant 0 : index
    %1239 = vector.load %arg18[%c6_499, %c0_500, %c0_501] : memref<8x8x1024xbf16, #tpu.memory_space<vmem>>, vector<1x8x512xbf16>
    %1240 = vector.shape_cast %1239 : vector<1x8x512xbf16> to vector<8x512xbf16>
    %1241 = arith.extf %1240 : vector<8x512xbf16> to vector<8x512xf32>
    %1242 = vector.extract_strided_slice %1238 {offsets = [0, 0], sizes = [8, 512], strides = [1, 1]} : vector<8x1024xf32> to vector<8x512xf32>
    %1243 = arith.addf %1241, %1242 : vector<8x512xf32>
    %c1_502 = arith.constant 1 : index
    %c0_503 = arith.constant 0 : index
    %c512_504 = arith.constant 512 : index
    %1244 = vector.load %arg18[%c1_502, %c0_503, %c512_504] : memref<8x8x1024xbf16, #tpu.memory_space<vmem>>, vector<1x8x512xbf16>
    %1245 = vector.shape_cast %1244 : vector<1x8x512xbf16> to vector<8x512xbf16>
    %1246 = arith.extf %1245 : vector<8x512xbf16> to vector<8x512xf32>
    %1247 = vector.extract_strided_slice %1238 {offsets = [0, 512], sizes = [8, 512], strides = [1, 1]} : vector<8x1024xf32> to vector<8x512xf32>
    %1248 = arith.addf %1246, %1247 : vector<8x512xf32>
    %1249 = vector.extract_strided_slice %1243 {offsets = [0, 0], sizes = [8, 128], strides = [1, 1]} : vector<8x512xf32> to vector<8x128xf32>
    %cst_505 = arith.constant 5.000000e-01 : f32
    %1250 = vector.broadcast %cst_505 : f32 to vector<8x128xf32>
    %1251 = arith.mulf %1250, %1249 : vector<8x128xf32>
    %1252 = math.tanh %1251 : vector<8x128xf32>
    %cst_506 = arith.constant 5.000000e-01 : f32
    %1253 = vector.broadcast %cst_506 : f32 to vector<8x128xf32>
    %1254 = arith.mulf %1253, %1252 : vector<8x128xf32>
    %cst_507 = arith.constant 5.000000e-01 : f32
    %1255 = vector.broadcast %cst_507 : f32 to vector<8x128xf32>
    %1256 = arith.addf %1254, %1255 : vector<8x128xf32>
    %1257 = vector.extract_strided_slice %1243 {offsets = [0, 128], sizes = [8, 128], strides = [1, 1]} : vector<8x512xf32> to vector<8x128xf32>
    %cst_508 = arith.constant 5.000000e-01 : f32
    %1258 = vector.broadcast %cst_508 : f32 to vector<8x128xf32>
    %1259 = arith.mulf %1258, %1257 : vector<8x128xf32>
    %1260 = math.tanh %1259 : vector<8x128xf32>
    %cst_509 = arith.constant 5.000000e-01 : f32
    %1261 = vector.broadcast %cst_509 : f32 to vector<8x128xf32>
    %1262 = arith.mulf %1261, %1260 : vector<8x128xf32>
    %cst_510 = arith.constant 5.000000e-01 : f32
    %1263 = vector.broadcast %cst_510 : f32 to vector<8x128xf32>
    %1264 = arith.addf %1262, %1263 : vector<8x128xf32>
    %1265 = vector.extract_strided_slice %1243 {offsets = [0, 256], sizes = [8, 128], strides = [1, 1]} : vector<8x512xf32> to vector<8x128xf32>
    %1266 = math.tanh %1265 : vector<8x128xf32>
    %1267 = vector.extract_strided_slice %1243 {offsets = [0, 384], sizes = [8, 128], strides = [1, 1]} : vector<8x512xf32> to vector<8x128xf32>
    %cst_511 = arith.constant 5.000000e-01 : f32
    %1268 = vector.broadcast %cst_511 : f32 to vector<8x128xf32>
    %1269 = arith.mulf %1268, %1267 : vector<8x128xf32>
    %1270 = math.tanh %1269 : vector<8x128xf32>
    %cst_512 = arith.constant 5.000000e-01 : f32
    %1271 = vector.broadcast %cst_512 : f32 to vector<8x128xf32>
    %1272 = arith.mulf %1271, %1270 : vector<8x128xf32>
    %cst_513 = arith.constant 5.000000e-01 : f32
    %1273 = vector.broadcast %cst_513 : f32 to vector<8x128xf32>
    %1274 = arith.addf %1272, %1273 : vector<8x128xf32>
    %1275 = arith.mulf %1264, %1196 : vector<8x128xf32>
    %1276 = arith.mulf %1256, %1266 : vector<8x128xf32>
    %1277 = arith.addf %1275, %1276 : vector<8x128xf32>
    %1278 = math.tanh %1277 : vector<8x128xf32>
    %1279 = arith.mulf %1274, %1278 : vector<8x128xf32>
    %1280 = vector.extract_strided_slice %1248 {offsets = [0, 0], sizes = [8, 128], strides = [1, 1]} : vector<8x512xf32> to vector<8x128xf32>
    %cst_514 = arith.constant 5.000000e-01 : f32
    %1281 = vector.broadcast %cst_514 : f32 to vector<8x128xf32>
    %1282 = arith.mulf %1281, %1280 : vector<8x128xf32>
    %1283 = math.tanh %1282 : vector<8x128xf32>
    %cst_515 = arith.constant 5.000000e-01 : f32
    %1284 = vector.broadcast %cst_515 : f32 to vector<8x128xf32>
    %1285 = arith.mulf %1284, %1283 : vector<8x128xf32>
    %cst_516 = arith.constant 5.000000e-01 : f32
    %1286 = vector.broadcast %cst_516 : f32 to vector<8x128xf32>
    %1287 = arith.addf %1285, %1286 : vector<8x128xf32>
    %1288 = vector.extract_strided_slice %1248 {offsets = [0, 128], sizes = [8, 128], strides = [1, 1]} : vector<8x512xf32> to vector<8x128xf32>
    %cst_517 = arith.constant 5.000000e-01 : f32
    %1289 = vector.broadcast %cst_517 : f32 to vector<8x128xf32>
    %1290 = arith.mulf %1289, %1288 : vector<8x128xf32>
    %1291 = math.tanh %1290 : vector<8x128xf32>
    %cst_518 = arith.constant 5.000000e-01 : f32
    %1292 = vector.broadcast %cst_518 : f32 to vector<8x128xf32>
    %1293 = arith.mulf %1292, %1291 : vector<8x128xf32>
    %cst_519 = arith.constant 5.000000e-01 : f32
    %1294 = vector.broadcast %cst_519 : f32 to vector<8x128xf32>
    %1295 = arith.addf %1293, %1294 : vector<8x128xf32>
    %1296 = vector.extract_strided_slice %1248 {offsets = [0, 256], sizes = [8, 128], strides = [1, 1]} : vector<8x512xf32> to vector<8x128xf32>
    %1297 = math.tanh %1296 : vector<8x128xf32>
    %1298 = vector.extract_strided_slice %1248 {offsets = [0, 384], sizes = [8, 128], strides = [1, 1]} : vector<8x512xf32> to vector<8x128xf32>
    %cst_520 = arith.constant 5.000000e-01 : f32
    %1299 = vector.broadcast %cst_520 : f32 to vector<8x128xf32>
    %1300 = arith.mulf %1299, %1298 : vector<8x128xf32>
    %1301 = math.tanh %1300 : vector<8x128xf32>
    %cst_521 = arith.constant 5.000000e-01 : f32
    %1302 = vector.broadcast %cst_521 : f32 to vector<8x128xf32>
    %1303 = arith.mulf %1302, %1301 : vector<8x128xf32>
    %cst_522 = arith.constant 5.000000e-01 : f32
    %1304 = vector.broadcast %cst_522 : f32 to vector<8x128xf32>
    %1305 = arith.addf %1303, %1304 : vector<8x128xf32>
    %1306 = arith.mulf %1295, %1227 : vector<8x128xf32>
    %1307 = arith.mulf %1287, %1297 : vector<8x128xf32>
    %1308 = arith.addf %1306, %1307 : vector<8x128xf32>
    %1309 = math.tanh %1308 : vector<8x128xf32>
    %1310 = arith.mulf %1305, %1309 : vector<8x128xf32>
    %c6_523 = arith.constant 6 : index
    %c0_524 = arith.constant 0 : index
    %c0_525 = arith.constant 0 : index
    %1311 = vector.load %arg17[%c6_523, %c0_524, %c0_525] : memref<8x8x256xf32, #tpu.memory_space<vmem>>, vector<1x8x128xf32>
    %1312 = vector.shape_cast %1311 : vector<1x8x128xf32> to vector<8x128xf32>
    %1313 = vector.shape_cast %1279 : vector<8x128xf32> to vector<1x8x128xf32>
    tpu.vector_store %arg17[%c6_523, %c0_524, %c0_525], %1313 {strides = array<i32>} : memref<8x8x256xf32, #tpu.memory_space<vmem>>, vector<1x8x128xf32>,
    %c1_526 = arith.constant 1 : index
    %c0_527 = arith.constant 0 : index
    %c128_528 = arith.constant 128 : index
    %1314 = vector.load %arg17[%c1_526, %c0_527, %c128_528] : memref<8x8x256xf32, #tpu.memory_space<vmem>>, vector<1x8x128xf32>
    %1315 = vector.shape_cast %1314 : vector<1x8x128xf32> to vector<8x128xf32>
    %1316 = vector.shape_cast %1310 : vector<8x128xf32> to vector<1x8x128xf32>
    tpu.vector_store %arg17[%c1_526, %c0_527, %c128_528], %1316 {strides = array<i32>} : memref<8x8x256xf32, #tpu.memory_space<vmem>>, vector<1x8x128xf32>,
    %1317 = tpu.concatenate %1279, %1310 in 1 : vector<8x128xf32>, vector<8x128xf32> -> vector<8x256xf32>
    %1318 = arith.truncf %1317 : vector<8x256xf32> to vector<8x256xbf16>
    %cst_529 = arith.constant dense<0.000000e+00> : vector<8x1024xf32>
    %1319 = tpu.matmul %1318, %745, %cst_529 {dimension_numbers = #tpu.dot_dimension_numbers<[1], [0], [0], [1], [0, 0, 1, 1], [], []>} : vector<8x256xbf16>, vector<256x1024xbf16>, vector<8x1024xf32> -> vector<8x1024xf32>
    %c7_530 = arith.constant 7 : index
    %c0_531 = arith.constant 0 : index
    %c0_532 = arith.constant 0 : index
    %1320 = vector.load %arg18[%c7_530, %c0_531, %c0_532] : memref<8x8x1024xbf16, #tpu.memory_space<vmem>>, vector<1x8x512xbf16>
    %1321 = vector.shape_cast %1320 : vector<1x8x512xbf16> to vector<8x512xbf16>
    %1322 = arith.extf %1321 : vector<8x512xbf16> to vector<8x512xf32>
    %1323 = vector.extract_strided_slice %1319 {offsets = [0, 0], sizes = [8, 512], strides = [1, 1]} : vector<8x1024xf32> to vector<8x512xf32>
    %1324 = arith.addf %1322, %1323 : vector<8x512xf32>
    %c0_533 = arith.constant 0 : index
    %c0_534 = arith.constant 0 : index
    %c512_535 = arith.constant 512 : index
    %1325 = vector.load %arg18[%c0_533, %c0_534, %c512_535] : memref<8x8x1024xbf16, #tpu.memory_space<vmem>>, vector<1x8x512xbf16>
    %1326 = vector.shape_cast %1325 : vector<1x8x512xbf16> to vector<8x512xbf16>
    %1327 = arith.extf %1326 : vector<8x512xbf16> to vector<8x512xf32>
    %1328 = vector.extract_strided_slice %1319 {offsets = [0, 512], sizes = [8, 512], strides = [1, 1]} : vector<8x1024xf32> to vector<8x512xf32>
    %1329 = arith.addf %1327, %1328 : vector<8x512xf32>
    %1330 = vector.extract_strided_slice %1324 {offsets = [0, 0], sizes = [8, 128], strides = [1, 1]} : vector<8x512xf32> to vector<8x128xf32>
    %cst_536 = arith.constant 5.000000e-01 : f32
    %1331 = vector.broadcast %cst_536 : f32 to vector<8x128xf32>
    %1332 = arith.mulf %1331, %1330 : vector<8x128xf32>
    %1333 = math.tanh %1332 : vector<8x128xf32>
    %cst_537 = arith.constant 5.000000e-01 : f32
    %1334 = vector.broadcast %cst_537 : f32 to vector<8x128xf32>
    %1335 = arith.mulf %1334, %1333 : vector<8x128xf32>
    %cst_538 = arith.constant 5.000000e-01 : f32
    %1336 = vector.broadcast %cst_538 : f32 to vector<8x128xf32>
    %1337 = arith.addf %1335, %1336 : vector<8x128xf32>
    %1338 = vector.extract_strided_slice %1324 {offsets = [0, 128], sizes = [8, 128], strides = [1, 1]} : vector<8x512xf32> to vector<8x128xf32>
    %cst_539 = arith.constant 5.000000e-01 : f32
    %1339 = vector.broadcast %cst_539 : f32 to vector<8x128xf32>
    %1340 = arith.mulf %1339, %1338 : vector<8x128xf32>
    %1341 = math.tanh %1340 : vector<8x128xf32>
    %cst_540 = arith.constant 5.000000e-01 : f32
    %1342 = vector.broadcast %cst_540 : f32 to vector<8x128xf32>
    %1343 = arith.mulf %1342, %1341 : vector<8x128xf32>
    %cst_541 = arith.constant 5.000000e-01 : f32
    %1344 = vector.broadcast %cst_541 : f32 to vector<8x128xf32>
    %1345 = arith.addf %1343, %1344 : vector<8x128xf32>
    %1346 = vector.extract_strided_slice %1324 {offsets = [0, 256], sizes = [8, 128], strides = [1, 1]} : vector<8x512xf32> to vector<8x128xf32>
    %1347 = math.tanh %1346 : vector<8x128xf32>
    %1348 = vector.extract_strided_slice %1324 {offsets = [0, 384], sizes = [8, 128], strides = [1, 1]} : vector<8x512xf32> to vector<8x128xf32>
    %cst_542 = arith.constant 5.000000e-01 : f32
    %1349 = vector.broadcast %cst_542 : f32 to vector<8x128xf32>
    %1350 = arith.mulf %1349, %1348 : vector<8x128xf32>
    %1351 = math.tanh %1350 : vector<8x128xf32>
    %cst_543 = arith.constant 5.000000e-01 : f32
    %1352 = vector.broadcast %cst_543 : f32 to vector<8x128xf32>
    %1353 = arith.mulf %1352, %1351 : vector<8x128xf32>
    %cst_544 = arith.constant 5.000000e-01 : f32
    %1354 = vector.broadcast %cst_544 : f32 to vector<8x128xf32>
    %1355 = arith.addf %1353, %1354 : vector<8x128xf32>
    %1356 = arith.mulf %1345, %1277 : vector<8x128xf32>
    %1357 = arith.mulf %1337, %1347 : vector<8x128xf32>
    %1358 = arith.addf %1356, %1357 : vector<8x128xf32>
    %1359 = math.tanh %1358 : vector<8x128xf32>
    %1360 = arith.mulf %1355, %1359 : vector<8x128xf32>
    %1361 = vector.extract_strided_slice %1329 {offsets = [0, 0], sizes = [8, 128], strides = [1, 1]} : vector<8x512xf32> to vector<8x128xf32>
    %cst_545 = arith.constant 5.000000e-01 : f32
    %1362 = vector.broadcast %cst_545 : f32 to vector<8x128xf32>
    %1363 = arith.mulf %1362, %1361 : vector<8x128xf32>
    %1364 = math.tanh %1363 : vector<8x128xf32>
    %cst_546 = arith.constant 5.000000e-01 : f32
    %1365 = vector.broadcast %cst_546 : f32 to vector<8x128xf32>
    %1366 = arith.mulf %1365, %1364 : vector<8x128xf32>
    %cst_547 = arith.constant 5.000000e-01 : f32
    %1367 = vector.broadcast %cst_547 : f32 to vector<8x128xf32>
    %1368 = arith.addf %1366, %1367 : vector<8x128xf32>
    %1369 = vector.extract_strided_slice %1329 {offsets = [0, 128], sizes = [8, 128], strides = [1, 1]} : vector<8x512xf32> to vector<8x128xf32>
    %cst_548 = arith.constant 5.000000e-01 : f32
    %1370 = vector.broadcast %cst_548 : f32 to vector<8x128xf32>
    %1371 = arith.mulf %1370, %1369 : vector<8x128xf32>
    %1372 = math.tanh %1371 : vector<8x128xf32>
    %cst_549 = arith.constant 5.000000e-01 : f32
    %1373 = vector.broadcast %cst_549 : f32 to vector<8x128xf32>
    %1374 = arith.mulf %1373, %1372 : vector<8x128xf32>
    %cst_550 = arith.constant 5.000000e-01 : f32
    %1375 = vector.broadcast %cst_550 : f32 to vector<8x128xf32>
    %1376 = arith.addf %1374, %1375 : vector<8x128xf32>
    %1377 = vector.extract_strided_slice %1329 {offsets = [0, 256], sizes = [8, 128], strides = [1, 1]} : vector<8x512xf32> to vector<8x128xf32>
    %1378 = math.tanh %1377 : vector<8x128xf32>
    %1379 = vector.extract_strided_slice %1329 {offsets = [0, 384], sizes = [8, 128], strides = [1, 1]} : vector<8x512xf32> to vector<8x128xf32>
    %cst_551 = arith.constant 5.000000e-01 : f32
    %1380 = vector.broadcast %cst_551 : f32 to vector<8x128xf32>
    %1381 = arith.mulf %1380, %1379 : vector<8x128xf32>
    %1382 = math.tanh %1381 : vector<8x128xf32>
    %cst_552 = arith.constant 5.000000e-01 : f32
    %1383 = vector.broadcast %cst_552 : f32 to vector<8x128xf32>
    %1384 = arith.mulf %1383, %1382 : vector<8x128xf32>
    %cst_553 = arith.constant 5.000000e-01 : f32
    %1385 = vector.broadcast %cst_553 : f32 to vector<8x128xf32>
    %1386 = arith.addf %1384, %1385 : vector<8x128xf32>
    %1387 = arith.mulf %1376, %1308 : vector<8x128xf32>
    %1388 = arith.mulf %1368, %1378 : vector<8x128xf32>
    %1389 = arith.addf %1387, %1388 : vector<8x128xf32>
    %1390 = math.tanh %1389 : vector<8x128xf32>
    %1391 = arith.mulf %1386, %1390 : vector<8x128xf32>
    %c7_554 = arith.constant 7 : index
    %c0_555 = arith.constant 0 : index
    %c0_556 = arith.constant 0 : index
    %1392 = vector.load %arg17[%c7_554, %c0_555, %c0_556] : memref<8x8x256xf32, #tpu.memory_space<vmem>>, vector<1x8x128xf32>
    %1393 = vector.shape_cast %1392 : vector<1x8x128xf32> to vector<8x128xf32>
    %1394 = vector.shape_cast %1360 : vector<8x128xf32> to vector<1x8x128xf32>
    tpu.vector_store %arg17[%c7_554, %c0_555, %c0_556], %1394 {strides = array<i32>} : memref<8x8x256xf32, #tpu.memory_space<vmem>>, vector<1x8x128xf32>,
    %c0_557 = arith.constant 0 : index
    %c0_558 = arith.constant 0 : index
    %c128_559 = arith.constant 128 : index
    %1395 = vector.load %arg17[%c0_557, %c0_558, %c128_559] : memref<8x8x256xf32, #tpu.memory_space<vmem>>, vector<1x8x128xf32>
    %1396 = vector.shape_cast %1395 : vector<1x8x128xf32> to vector<8x128xf32>
    %1397 = vector.shape_cast %1391 : vector<8x128xf32> to vector<1x8x128xf32>
    tpu.vector_store %arg17[%c0_557, %c0_558, %c128_559], %1397 {strides = array<i32>} : memref<8x8x256xf32, #tpu.memory_space<vmem>>, vector<1x8x128xf32>,
    %c7_560 = arith.constant 7 : index
    %c0_561 = arith.constant 0 : index
    %c0_562 = arith.constant 0 : index
    %1398 = vector.load %arg17[%c7_560, %c0_561, %c0_562] : memref<8x8x256xf32, #tpu.memory_space<vmem>>, vector<1x8x256xf32>
    %1399 = vector.shape_cast %1398 : vector<1x8x256xf32> to vector<8x256xf32>
    %1400 = arith.truncf %1399 : vector<8x256xf32> to vector<8x256xbf16>
    %c0_563 = arith.constant 0 : index
    %c0_564 = arith.constant 0 : index
    %1401 = vector.load %arg10[%c0_563, %c0_564] : memref<256x128xbf16, #tpu.memory_space<vmem>>, vector<256x128xbf16>
    %cst_565 = arith.constant dense<0.000000e+00> : vector<8x128xf32>
    %1402 = tpu.matmul %1400, %1401, %cst_565 {dimension_numbers = #tpu.dot_dimension_numbers<[1], [0], [0], [1], [0, 0, 1, 1], [], []>} : vector<8x256xbf16>, vector<256x128xbf16>, vector<8x128xf32> -> vector<8x128xf32>
    %c0_566 = arith.constant 0 : index
    %c0_567 = arith.constant 0 : index
    %1403 = vector.load %arg11[%c0_566, %c0_567] : memref<1x128xf32, #tpu.memory_space<vmem>>, vector<1x128xf32>
    %1404 = vector.broadcast %1403 : vector<1x128xf32> to vector<8x128xf32>
    %1405 = arith.addf %1402, %1404 : vector<8x128xf32>
    %cst_568 = arith.constant 0.000000e+00 : f32
    %1406 = vector.broadcast %cst_568 : f32 to vector<8x128xf32>
    %1407 = arith.maximumf %1405, %1406 : vector<8x128xf32>
    %1408 = arith.truncf %1407 : vector<8x128xf32> to vector<8x128xbf16>
    %c0_569 = arith.constant 0 : index
    %c0_570 = arith.constant 0 : index
    %1409 = vector.load %arg12[%c0_569, %c0_570] : memref<128x128xbf16, #tpu.memory_space<vmem>>, vector<128x128xbf16>
    %cst_571 = arith.constant dense<0.000000e+00> : vector<8x128xf32>
    %1410 = tpu.matmul %1408, %1409, %cst_571 {dimension_numbers = #tpu.dot_dimension_numbers<[1], [0], [0], [1], [0, 0, 1, 1], [], []>} : vector<8x128xbf16>, vector<128x128xbf16>, vector<8x128xf32> -> vector<8x128xf32>
    %c0_572 = arith.constant 0 : index
    %c0_573 = arith.constant 0 : index
    %1411 = vector.load %arg13[%c0_572, %c0_573] : memref<1x128xf32, #tpu.memory_space<vmem>>, vector<1x128xf32>
    %1412 = vector.broadcast %1411 : vector<1x128xf32> to vector<8x128xf32>
    %1413 = arith.addf %1410, %1412 : vector<8x128xf32>
    %c0_574 = arith.constant 0 : index
    %c0_575 = arith.constant 0 : index
    %1414 = vector.load %arg14[%c0_574, %c0_575] : memref<8x128xf32, #tpu.memory_space<vmem>>, vector<8x128xf32>
    tpu.vector_store %arg14[%c0_574, %c0_575], %1413 {strides = array<i32>} : memref<8x128xf32, #tpu.memory_space<vmem>>, vector<8x128xf32>,
    return
  }
}

</mosaic_0001>

<llo_original>
// kernel: original_net_forward.1
$region0: #{original_net_forward.1}
  #allocation0 [shape = 'u32[]', space=smem, size = 0x4, offset = 0x4, fixed_abs, tag = 'smem constant byte address 0x4 - core index']
  #allocation1 [shape = 'u32[144,128]{1,0:T(1,128)}', space=vmem, size = 0x12000, scoped, tag = 'internal scratch']
  #allocation2 [shape = 'f32[8,8,64]{2,1,0:T(8,128)}', space=vmem, size = 0x8000, scoped, tag = 'scratch operand']
  #allocation3 [shape = 'f32[8,8,256]{2,1,0:T(8,128)}', space=vmem, size = 0x10000, scoped, tag = 'scratch operand']
  #allocation4 [shape = 'f32[8,8,256]{2,1,0:T(8,128)}', space=vmem, size = 0x10000, scoped, tag = 'scratch operand']
  #allocation5 [shape = 'bf16[8,8,1024]{2,1,0:T(8,128)(2,1)}', space=vmem, size = 0x20000, scoped, tag = 'scratch operand']
  %s0 = inlined_call_operand.vmem [shape: f32[10,8,1], index: 0, kind: input, shape index: {}]
  %s1 = inlined_call_operand.vmem [shape: f32[10,8,1], index: 1, kind: input, shape index: {}]
  %s2 = inlined_call_operand.vmem [shape: f32[5,1,64], index: 2, kind: input, shape index: {}]
  %s3 = inlined_call_operand.vmem [shape: f32[1,1,64], index: 3, kind: input, shape index: {}]
  %s4 = inlined_call_operand.vmem [shape: bf16[64,1024], index: 4, kind: input, shape index: {}]
  %s5 = inlined_call_operand.hbm [shape: bf16[256,1024], index: 5, kind: input, shape index: {}]
  %s6 = inlined_call_operand.vmem [shape: f32[1,1024], index: 6, kind: input, shape index: {}]
  %s7 = inlined_call_operand.hbm [shape: bf16[256,1024], index: 7, kind: input, shape index: {}]
  %s8 = inlined_call_operand.hbm [shape: bf16[256,1024], index: 8, kind: input, shape index: {}]
  %s9 = inlined_call_operand.vmem [shape: f32[1,1024], index: 9, kind: input, shape index: {}]
  %s10 = inlined_call_operand.vmem [shape: bf16[256,128], index: 10, kind: input, shape index: {}]
  %s11 = inlined_call_operand.vmem [shape: f32[1,128], index: 11, kind: input, shape index: {}]
  %s12 = inlined_call_operand.vmem [shape: bf16[128,128], index: 12, kind: input, shape index: {}]
  %s13 = inlined_call_operand.vmem [shape: f32[1,128], index: 13, kind: input, shape index: {}]
  %s14 = inlined_call_operand.vmem [shape: f32[8,128], index: 14, kind: output, shape index: {}]
  %s15 = sld [smem:[#allocation0]]
  $region78: #{original_net_forward.1} parent=0
    _
  %s17 = ssub.s32 1, %s15
  %s18 = scalar_select 0, %s17, %s15
  $region1: #{original_net_forward.1} parent=0
    #allocation6 [shape = 'u8[524288]{0}', space=vmem, size = 0x80000, scoped, tag = 'input window, operand 5, single buffered']
    #allocation7 [shape = 's32[1]{0}', space=sflag, size = 0x4, scoped, tag = 'scoped memory for original_net_forward.1']
    #allocation8 [shape = 'u8[524288]{0}', space=vmem, size = 0x80000, scoped, tag = 'input window, operand 7, single buffered']
    #allocation9 [shape = 's32[1]{0}', space=sflag, size = 0x4, scoped, tag = 'scoped memory for original_net_forward.1']
    #allocation10 [shape = 'u8[524288]{0}', space=vmem, size = 0x80000, scoped, tag = 'input window, operand 8, single buffered']
    %19 = vsyncpa [#allocation7], 0
    %20 = vsyncpa [#allocation9], 0
    // Predicated region
    $region2: #{original_net_forward.1} parent=1 // pred_check
      _
    $region3: #{original_net_forward.1} parent=1 // pred_check_branch
      %22 = sbr.rel (0) target = $region5
    $region4: #{original_net_forward.1} parent=1 // pred_region
      _
    $region5: #{original_net_forward.1} parent=1 // pred_fallthru
      _
    // Predicated region
    $region6: #{original_net_forward.1} parent=1 // pred_check
      _
    $region7: #{original_net_forward.1} parent=1 // pred_check_branch
      %24 = sbr.rel (0) target = $region9
    $region8: #{original_net_forward.1} parent=1 // pred_region
      _
    $region9: #{original_net_forward.1} parent=1 // pred_fallthru
      _
    // Predicated region
    $region10: #{original_net_forward.1} parent=1 // pred_check
      _
    $region11: #{original_net_forward.1} parent=1 // pred_check_branch
      %26 = sbr.rel (0) target = $region13
    $region12: #{original_net_forward.1} parent=1 // pred_region
      _
    $region13: #{original_net_forward.1} parent=1 // pred_fallthru
      _
    // Predicated region
    $region14: #{original_net_forward.1} parent=1 // pred_check
      _
    $region15: #{original_net_forward.1} parent=1 // pred_check_branch
      %28 = sbr.rel (0) target = $region17
    $region16: #{original_net_forward.1} parent=1 // pred_region
      _
    $region17: #{original_net_forward.1} parent=1 // pred_fallthru
      _
    // Predicated region
    $region18: #{original_net_forward.1} parent=1 // pred_check
      _
    $region19: #{original_net_forward.1} parent=1 // pred_check_branch
      %30 = sbr.rel (0) target = $region21
    $region20: #{original_net_forward.1} parent=1 // pred_region
      _
    $region21: #{original_net_forward.1} parent=1 // pred_fallthru
      _
    // Predicated region
    $region22: #{original_net_forward.1} parent=1 // pred_check
      _
    $region23: #{original_net_forward.1} parent=1 // pred_check_branch
      %32 = sbr.rel (0) target = $region25
    $region24: #{original_net_forward.1} parent=1 // pred_region
      %s34 = ssub.s32 16384, 16384
      %35 = vsyncadd [#allocation7], %s34
      %s36 = sshll.u32 [#allocation6], 4
      %s37 = int_to_ptr.vmem [resolvable:$true] %s36
      %42 = dma.hbm_to_vmem [thread:$0]  %s5, 16384, %s37, [#allocation7], 512, 512, 32
    $region25: #{original_net_forward.1} parent=1 // pred_fallthru
      _
    // Predicated region
    $region26: #{original_net_forward.1} parent=1 // pred_check
      _
    $region27: #{original_net_forward.1} parent=1 // pred_check_branch
      %44 = sbr.rel (0) target = $region29
    $region28: #{original_net_forward.1} parent=1 // pred_region
      _
    $region29: #{original_net_forward.1} parent=1 // pred_fallthru
      _
    // Predicated region
    $region30: #{original_net_forward.1} parent=1 // pred_check
      _
    $region31: #{original_net_forward.1} parent=1 // pred_check_branch
      %46 = sbr.rel (0) target = $region33
    $region32: #{original_net_forward.1} parent=1 // pred_region
      %s48 = ssub.s32 16384, 16384
      %49 = vsyncadd [#allocation9], %s48
      %s50 = sshll.u32 [#allocation8], 4
      %s51 = int_to_ptr.vmem [resolvable:$true] %s50
      %56 = dma.hbm_to_vmem [thread:$0]  %s7, 16384, %s51, [#allocation9], 512, 512, 32
    $region33: #{original_net_forward.1} parent=1 // pred_fallthru
      _
    // Predicated region
    $region34: #{original_net_forward.1} parent=1 // pred_check
      _
    $region35: #{original_net_forward.1} parent=1 // pred_check_branch
      %58 = sbr.rel (0) target = $region37
    $region36: #{original_net_forward.1} parent=1 // pred_region
      %s60 = ssub.s32 16384, 16384
      %61 = vsyncadd [#allocation9], %s60
      %s62 = sshll.u32 [#allocation10], 4
      %s63 = int_to_ptr.vmem [resolvable:$true] %s62
      %68 = dma.hbm_to_vmem [thread:$0]  %s8, 16384, %s63, [#allocation9], 512, 512, 32
    $region37: #{original_net_forward.1} parent=1 // pred_fallthru
      _
    // Predicated region
    $region38: #{original_net_forward.1} parent=1 // pred_check
      _
    $region39: #{original_net_forward.1} parent=1 // pred_check_branch
      %70 = sbr.rel (0) target = $region41
    $region40: #{original_net_forward.1} parent=1 // pred_region
      _
    $region41: #{original_net_forward.1} parent=1 // pred_fallthru
      _
    // Predicated region
    $region42: #{original_net_forward.1} parent=1 // pred_check
      _
    $region43: #{original_net_forward.1} parent=1 // pred_check_branch
      %72 = sbr.rel (0) target = $region45
    $region44: #{original_net_forward.1} parent=1 // pred_region
      _
    $region45: #{original_net_forward.1} parent=1 // pred_fallthru
      _
    // Predicated region
    $region46: #{original_net_forward.1} parent=1 // pred_check
      _
    $region47: #{original_net_forward.1} parent=1 // pred_check_branch
      %74 = sbr.rel (0) target = $region49
    $region48: #{original_net_forward.1} parent=1 // pred_region
      _
    $region49: #{original_net_forward.1} parent=1 // pred_fallthru
      _
    // Predicated region
    $region50: #{original_net_forward.1} parent=1 // pred_check
      _
    $region51: #{original_net_forward.1} parent=1 // pred_check_branch
      %76 = sbr.rel (0) target = $region53
    $region52: #{original_net_forward.1} parent=1 // pred_region
      _
    $region53: #{original_net_forward.1} parent=1 // pred_fallthru
      _
    // Predicated region
    $region54: #{original_net_forward.1} parent=1 // pred_check
      _
    $region55: #{original_net_forward.1} parent=1 // pred_check_branch
      %78 = sbr.rel (0) target = $region57
    $region56: #{original_net_forward.1} parent=1 // pred_region
      _
    $region57: #{original_net_forward.1} parent=1 // pred_fallthru
      _
    // Predicated region
    $region58: #{original_net_forward.1} parent=1 // pred_check
      _
    $region59: #{original_net_forward.1} parent=1 // pred_check_branch
      %80 = sbr.rel (0) target = $region61
    $region60: #{original_net_forward.1} parent=1 // pred_region
      %81 = dma.done [#allocation7], 16384
    $region61: #{original_net_forward.1} parent=1 // pred_fallthru
      _
    // Predicated region
    $region62: #{original_net_forward.1} parent=1 // pred_check
      _
    $region63: #{original_net_forward.1} parent=1 // pred_check_branch
      %83 = sbr.rel (0) target = $region65
    $region64: #{original_net_forward.1} parent=1 // pred_region
      %84 = dma.done [#allocation9], 16384
    $region65: #{original_net_forward.1} parent=1 // pred_fallthru
      _
    // Predicated region
    $region66: #{original_net_forward.1} parent=1 // pred_check
      _
    $region67: #{original_net_forward.1} parent=1 // pred_check_branch
      %86 = sbr.rel (0) target = $region69
    $region68: #{original_net_forward.1} parent=1 // pred_region
      %87 = dma.done [#allocation9], 16384
    $region69: #{original_net_forward.1} parent=1 // pred_fallthru
      _
    %v89 = vld [vmem:[%s2] sm:$0x1]
    %v90 = vld [vmem:[%s2 + $0x1] sm:$0x1]
    %v91 = vld [vmem:[%s2 + $0x2] sm:$0x1]
    %v92 = vld [vmem:[%s2 + $0x3] sm:$0x1]
    %v93 = vld [vmem:[%s2 + $0x4] sm:$0x1]
    %v94 = vld [vmem:[%s0] sm:$0xff]
    %v95 = vld [vmem:[%s0 + $0x8] sm:$0xff]
    %v96 = vld [vmem:[%s0 + $0x10] sm:$0xff]
    %v97 = vld [vmem:[%s0 + $0x18] sm:$0xff]
    %v98 = vld [vmem:[%s0 + $0x20] sm:$0xff]
    %v99 = vld [vmem:[%s0 + $0x28] sm:$0xff]
    %v100 = vld [vmem:[%s0 + $0x30] sm:$0xff]
    %v101 = vld [vmem:[%s0 + $0x38] sm:$0xff]
    %103 = vset.pattern.permute.xlu0 0
    %104 = vperm.xlu0 %103, %v94
    %v105 = vpop.permute.xlu0 %104
    %108 = vset.pattern.permute.xlu0 0
    %109 = vperm.xlu0 %108, %v95
    %v110 = vpop.permute.xlu0 %109
    %113 = vset.pattern.permute.xlu0 0
    %114 = vperm.xlu0 %113, %v96
    %v115 = vpop.permute.xlu0 %114
    %118 = vset.pattern.permute.xlu0 0
    %119 = vperm.xlu0 %118, %v97
    %v120 = vpop.permute.xlu0 %119
    %123 = vset.pattern.permute.xlu0 0
    %124 = vperm.xlu0 %123, %v98
    %v125 = vpop.permute.xlu0 %124
    %128 = vset.pattern.permute.xlu0 0
    %129 = vperm.xlu0 %128, %v99
    %v130 = vpop.permute.xlu0 %129
    %133 = vset.pattern.permute.xlu0 0
    %134 = vperm.xlu0 %133, %v100
    %v135 = vpop.permute.xlu0 %134
    %138 = vset.pattern.permute.xlu0 0
    %139 = vperm.xlu0 %138, %v101
    %v140 = vpop.permute.xlu0 %139
    %v143 = vlaneseq
    %v144 = vshrl.u32 %v143, 7
    %v145 = vsub.s32 0, %v144
    %v146 = vrot.slane %v89, %v145
    %v148 = vmul.f32 %v105, %v146
    %v149 = vmul.f32 %v110, %v146
    %v150 = vmul.f32 %v115, %v146
    %v151 = vmul.f32 %v120, %v146
    %v152 = vmul.f32 %v125, %v146
    %v153 = vmul.f32 %v130, %v146
    %v154 = vmul.f32 %v135, %v146
    %v155 = vmul.f32 %v140, %v146
    %v156 = vld [vmem:[%s1] sm:$0xff]
    %v157 = vld [vmem:[%s1 + $0x8] sm:$0xff]
    %v158 = vld [vmem:[%s1 + $0x10] sm:$0xff]
    %v159 = vld [vmem:[%s1 + $0x18] sm:$0xff]
    %v160 = vld [vmem:[%s1 + $0x20] sm:$0xff]
    %v161 = vld [vmem:[%s1 + $0x28] sm:$0xff]
    %v162 = vld [vmem:[%s1 + $0x30] sm:$0xff]
    %v163 = vld [vmem:[%s1 + $0x38] sm:$0xff]
    %165 = vset.pattern.permute.xlu0 0
    %166 = vperm.xlu0 %165, %v156
    %v167 = vpop.permute.xlu0 %166
    %170 = vset.pattern.permute.xlu0 0
    %171 = vperm.xlu0 %170, %v157
    %v172 = vpop.permute.xlu0 %171
    %175 = vset.pattern.permute.xlu0 0
    %176 = vperm.xlu0 %175, %v158
    %v177 = vpop.permute.xlu0 %176
    %180 = vset.pattern.permute.xlu0 0
    %181 = vperm.xlu0 %180, %v159
    %v182 = vpop.permute.xlu0 %181
    %185 = vset.pattern.permute.xlu0 0
    %186 = vperm.xlu0 %185, %v160
    %v187 = vpop.permute.xlu0 %186
    %190 = vset.pattern.permute.xlu0 0
    %191 = vperm.xlu0 %190, %v161
    %v192 = vpop.permute.xlu0 %191
    %195 = vset.pattern.permute.xlu0 0
    %196 = vperm.xlu0 %195, %v162
    %v197 = vpop.permute.xlu0 %196
    %200 = vset.pattern.permute.xlu0 0
    %201 = vperm.xlu0 %200, %v163
    %v202 = vpop.permute.xlu0 %201
    %v205 = vlaneseq
    %v206 = vshrl.u32 %v205, 7
    %v207 = vsub.s32 0, %v206
    %v208 = vrot.slane %v90, %v207
    %v210 = vmul.f32 %v167, %v208
    %v211 = vmul.f32 %v172, %v208
    %v212 = vmul.f32 %v177, %v208
    %v213 = vmul.f32 %v182, %v208
    %v214 = vmul.f32 %v187, %v208
    %v215 = vmul.f32 %v192, %v208
    %v216 = vmul.f32 %v197, %v208
    %v217 = vmul.f32 %v202, %v208
    %v218 = vadd.f32 %v148, %v210
    %v219 = vadd.f32 %v149, %v211
    %v220 = vadd.f32 %v150, %v212
    %v221 = vadd.f32 %v151, %v213
    %v222 = vadd.f32 %v152, %v214
    %v223 = vadd.f32 %v153, %v215
    %v224 = vadd.f32 %v154, %v216
    %v225 = vadd.f32 %v155, %v217
    %s226 = scalar_lea.vmem %s0, 8
    %v227 = vld [vmem:[%s226] sm:$0xff]
    %v228 = vld [vmem:[%s226 + $0x8] sm:$0xff]
    %v229 = vld [vmem:[%s226 + $0x10] sm:$0xff]
    %v230 = vld [vmem:[%s226 + $0x18] sm:$0xff]
    %v231 = vld [vmem:[%s226 + $0x20] sm:$0xff]
    %v232 = vld [vmem:[%s226 + $0x28] sm:$0xff]
    %v233 = vld [vmem:[%s226 + $0x30] sm:$0xff]
    %v234 = vld [vmem:[%s226 + $0x38] sm:$0xff]
    %236 = vset.pattern.permute.xlu0 0
    %237 = vperm.xlu0 %236, %v227
    %v238 = vpop.permute.xlu0 %237
    %241 = vset.pattern.permute.xlu0 0
    %242 = vperm.xlu0 %241, %v228
    %v243 = vpop.permute.xlu0 %242
    %246 = vset.pattern.permute.xlu0 0
    %247 = vperm.xlu0 %246, %v229
    %v248 = vpop.permute.xlu0 %247
    %251 = vset.pattern.permute.xlu0 0
    %252 = vperm.xlu0 %251, %v230
    %v253 = vpop.permute.xlu0 %252
    %256 = vset.pattern.permute.xlu0 0
    %257 = vperm.xlu0 %256, %v231
    %v258 = vpop.permute.xlu0 %257
    %261 = vset.pattern.permute.xlu0 0
    %262 = vperm.xlu0 %261, %v232
    %v263 = vpop.permute.xlu0 %262
    %266 = vset.pattern.permute.xlu0 0
    %267 = vperm.xlu0 %266, %v233
    %v268 = vpop.permute.xlu0 %267
    %271 = vset.pattern.permute.xlu0 0
    %272 = vperm.xlu0 %271, %v234
    %v273 = vpop.permute.xlu0 %272
    %v276 = vlaneseq
    %v277 = vshrl.u32 %v276, 7
    %v278 = vsub.s32 0, %v277
    %v279 = vrot.slane %v91, %v278
    %v281 = vmul.f32 %v238, %v279
    %v282 = vmul.f32 %v243, %v279
    %v283 = vmul.f32 %v248, %v279
    %v284 = vmul.f32 %v253, %v279
    %v285 = vmul.f32 %v258, %v279
    %v286 = vmul.f32 %v263, %v279
    %v287 = vmul.f32 %v268, %v279
    %v288 = vmul.f32 %v273, %v279
    %v289 = vadd.f32 %v218, %v281
    %v290 = vadd.f32 %v219, %v282
    %v291 = vadd.f32 %v220, %v283
    %v292 = vadd.f32 %v221, %v284
    %v293 = vadd.f32 %v222, %v285
    %v294 = vadd.f32 %v223, %v286
    %v295 = vadd.f32 %v224, %v287
    %v296 = vadd.f32 %v225, %v288
    %s297 = scalar_lea.vmem %s1, 8
    %v298 = vld [vmem:[%s297] sm:$0xff]
    %v299 = vld [vmem:[%s297 + $0x8] sm:$0xff]
    %v300 = vld [vmem:[%s297 + $0x10] sm:$0xff]
    %v301 = vld [vmem:[%s297 + $0x18] sm:$0xff]
    %v302 = vld [vmem:[%s297 + $0x20] sm:$0xff]
    %v303 = vld [vmem:[%s297 + $0x28] sm:$0xff]
    %v304 = vld [vmem:[%s297 + $0x30] sm:$0xff]
    %v305 = vld [vmem:[%s297 + $0x38] sm:$0xff]
    %307 = vset.pattern.permute.xlu0 0
    %308 = vperm.xlu0 %307, %v298
    %v309 = vpop.permute.xlu0 %308
    %312 = vset.pattern.permute.xlu0 0
    %313 = vperm.xlu0 %312, %v299
    %v314 = vpop.permute.xlu0 %313
    %317 = vset.pattern.permute.xlu0 0
    %318 = vperm.xlu0 %317, %v300
    %v319 = vpop.permute.xlu0 %318
    %322 = vset.pattern.permute.xlu0 0
    %323 = vperm.xlu0 %322, %v301
    %v324 = vpop.permute.xlu0 %323
    %327 = vset.pattern.permute.xlu0 0
    %328 = vperm.xlu0 %327, %v302
    %v329 = vpop.permute.xlu0 %328
    %332 = vset.pattern.permute.xlu0 0
    %333 = vperm.xlu0 %332, %v303
    %v334 = vpop.permute.xlu0 %333
    %337 = vset.pattern.permute.xlu0 0
    %338 = vperm.xlu0 %337, %v304
    %v339 = vpop.permute.xlu0 %338
    %342 = vset.pattern.permute.xlu0 0
    %343 = vperm.xlu0 %342, %v305
    %v344 = vpop.permute.xlu0 %343
    %v347 = vlaneseq
    %v348 = vshrl.u32 %v347, 7
    %v349 = vsub.s32 0, %v348
    %v350 = vrot.slane %v92, %v349
    %v352 = vmul.f32 %v309, %v350
    %v353 = vmul.f32 %v314, %v350
    %v354 = vmul.f32 %v319, %v350
    %v355 = vmul.f32 %v324, %v350
    %v356 = vmul.f32 %v329, %v350
    %v357 = vmul.f32 %v334, %v350
    %v358 = vmul.f32 %v339, %v350
    %v359 = vmul.f32 %v344, %v350
    %v360 = vadd.f32 %v289, %v352
    %v361 = vadd.f32 %v290, %v353
    %v362 = vadd.f32 %v291, %v354
    %v363 = vadd.f32 %v292, %v355
    %v364 = vadd.f32 %v293, %v356
    %v365 = vadd.f32 %v294, %v357
    %v366 = vadd.f32 %v295, %v358
    %v367 = vadd.f32 %v296, %v359
    %s368 = scalar_lea.vmem %s0, 16
    %v369 = vld [vmem:[%s368] sm:$0xff]
    %v370 = vld [vmem:[%s368 + $0x8] sm:$0xff]
    %v371 = vld [vmem:[%s368 + $0x10] sm:$0xff]
    %v372 = vld [vmem:[%s368 + $0x18] sm:$0xff]
    %v373 = vld [vmem:[%s368 + $0x20] sm:$0xff]
    %v374 = vld [vmem:[%s368 + $0x28] sm:$0xff]
    %v375 = vld [vmem:[%s368 + $0x30] sm:$0xff]
    %v376 = vld [vmem:[%s368 + $0x38] sm:$0xff]
    %378 = vset.pattern.permute.xlu0 0
    %379 = vperm.xlu0 %378, %v369
    %v380 = vpop.permute.xlu0 %379
    %383 = vset.pattern.permute.xlu0 0
    %384 = vperm.xlu0 %383, %v370
    %v385 = vpop.permute.xlu0 %384
    %388 = vset.pattern.permute.xlu0 0
    %389 = vperm.xlu0 %388, %v371
    %v390 = vpop.permute.xlu0 %389
    %393 = vset.pattern.permute.xlu0 0
    %394 = vperm.xlu0 %393, %v372
    %v395 = vpop.permute.xlu0 %394
    %398 = vset.pattern.permute.xlu0 0
    %399 = vperm.xlu0 %398, %v373
    %v400 = vpop.permute.xlu0 %399
    %403 = vset.pattern.permute.xlu0 0
    %404 = vperm.xlu0 %403, %v374
    %v405 = vpop.permute.xlu0 %404
    %408 = vset.pattern.permute.xlu0 0
    %409 = vperm.xlu0 %408, %v375
    %v410 = vpop.permute.xlu0 %409
    %413 = vset.pattern.permute.xlu0 0
    %414 = vperm.xlu0 %413, %v376
    %v415 = vpop.permute.xlu0 %414
    %v418 = vlaneseq
    %v419 = vshrl.u32 %v418, 7
    %v420 = vsub.s32 0, %v419
    %v421 = vrot.slane %v93, %v420
    %v423 = vmul.f32 %v380, %v421
    %v424 = vmul.f32 %v385, %v421
    %v425 = vmul.f32 %v390, %v421
    %v426 = vmul.f32 %v395, %v421
    %v427 = vmul.f32 %v400, %v421
    %v428 = vmul.f32 %v405, %v421
    %v429 = vmul.f32 %v410, %v421
    %v430 = vmul.f32 %v415, %v421
    %v431 = vadd.f32 %v360, %v423
    %v432 = vadd.f32 %v361, %v424
    %v433 = vadd.f32 %v362, %v425
    %v434 = vadd.f32 %v363, %v426
    %v435 = vadd.f32 %v364, %v427
    %v436 = vadd.f32 %v365, %v428
    %v437 = vadd.f32 %v366, %v429
    %v438 = vadd.f32 %v367, %v430
    %v439 = vmul.f32 %v167, %v146
    %v440 = vmul.f32 %v172, %v146
    %v441 = vmul.f32 %v177, %v146
    %v442 = vmul.f32 %v182, %v146
    %v443 = vmul.f32 %v187, %v146
    %v444 = vmul.f32 %v192, %v146
    %v445 = vmul.f32 %v197, %v146
    %v446 = vmul.f32 %v202, %v146
    %v447 = vmul.f32 %v238, %v208
    %v448 = vmul.f32 %v243, %v208
    %v449 = vmul.f32 %v248, %v208
    %v450 = vmul.f32 %v253, %v208
    %v451 = vmul.f32 %v258, %v208
    %v452 = vmul.f32 %v263, %v208
    %v453 = vmul.f32 %v268, %v208
    %v454 = vmul.f32 %v273, %v208
    %v455 = vadd.f32 %v439, %v447
    %v456 = vadd.f32 %v440, %v448
    %v457 = vadd.f32 %v441, %v449
    %v458 = vadd.f32 %v442, %v450
    %v459 = vadd.f32 %v443, %v451
    %v460 = vadd.f32 %v444, %v452
    %v461 = vadd.f32 %v445, %v453
    %v462 = vadd.f32 %v446, %v454
    %v463 = vmul.f32 %v309, %v279
    %v464 = vmul.f32 %v314, %v279
    %v465 = vmul.f32 %v319, %v279
    %v466 = vmul.f32 %v324, %v279
    %v467 = vmul.f32 %v329, %v279
    %v468 = vmul.f32 %v334, %v279
    %v469 = vmul.f32 %v339, %v279
    %v470 = vmul.f32 %v344, %v279
    %v471 = vadd.f32 %v455, %v463
    %v472 = vadd.f32 %v456, %v464
    %v473 = vadd.f32 %v457, %v465
    %v474 = vadd.f32 %v458, %v466
    %v475 = vadd.f32 %v459, %v467
    %v476 = vadd.f32 %v460, %v468
    %v477 = vadd.f32 %v461, %v469
    %v478 = vadd.f32 %v462, %v470
    %v479 = vmul.f32 %v380, %v350
    %v480 = vmul.f32 %v385, %v350
    %v481 = vmul.f32 %v390, %v350
    %v482 = vmul.f32 %v395, %v350
    %v483 = vmul.f32 %v400, %v350
    %v484 = vmul.f32 %v405, %v350
    %v485 = vmul.f32 %v410, %v350
    %v486 = vmul.f32 %v415, %v350
    %v487 = vadd.f32 %v471, %v479
    %v488 = vadd.f32 %v472, %v480
    %v489 = vadd.f32 %v473, %v481
    %v490 = vadd.f32 %v474, %v482
    %v491 = vadd.f32 %v475, %v483
    %v492 = vadd.f32 %v476, %v484
    %v493 = vadd.f32 %v477, %v485
    %v494 = vadd.f32 %v478, %v486
    %s495 = scalar_lea.vmem %s1, 16
    %v496 = vld [vmem:[%s495] sm:$0xff]
    %v497 = vld [vmem:[%s495 + $0x8] sm:$0xff]
    %v498 = vld [vmem:[%s495 + $0x10] sm:$0xff]
    %v499 = vld [vmem:[%s495 + $0x18] sm:$0xff]
    %v500 = vld [vmem:[%s495 + $0x20] sm:$0xff]
    %v501 = vld [vmem:[%s495 + $0x28] sm:$0xff]
    %v502 = vld [vmem:[%s495 + $0x30] sm:$0xff]
    %v503 = vld [vmem:[%s495 + $0x38] sm:$0xff]
    %505 = vset.pattern.permute.xlu0 0
    %506 = vperm.xlu0 %505, %v496
    %v507 = vpop.permute.xlu0 %506
    %510 = vset.pattern.permute.xlu0 0
    %511 = vperm.xlu0 %510, %v497
    %v512 = vpop.permute.xlu0 %511
    %515 = vset.pattern.permute.xlu0 0
    %516 = vperm.xlu0 %515, %v498
    %v517 = vpop.permute.xlu0 %516
    %520 = vset.pattern.permute.xlu0 0
    %521 = vperm.xlu0 %520, %v499
    %v522 = vpop.permute.xlu0 %521
    %525 = vset.pattern.permute.xlu0 0
    %526 = vperm.xlu0 %525, %v500
    %v527 = vpop.permute.xlu0 %526
    %530 = vset.pattern.permute.xlu0 0
    %531 = vperm.xlu0 %530, %v501
    %v532 = vpop.permute.xlu0 %531
    %535 = vset.pattern.permute.xlu0 0
    %536 = vperm.xlu0 %535, %v502
    %v537 = vpop.permute.xlu0 %536
    %540 = vset.pattern.permute.xlu0 0
    %541 = vperm.xlu0 %540, %v503
    %v542 = vpop.permute.xlu0 %541
    %v544 = vmul.f32 %v507, %v421
    %v545 = vmul.f32 %v512, %v421
    %v546 = vmul.f32 %v517, %v421
    %v547 = vmul.f32 %v522, %v421
    %v548 = vmul.f32 %v527, %v421
    %v549 = vmul.f32 %v532, %v421
    %v550 = vmul.f32 %v537, %v421
    %v551 = vmul.f32 %v542, %v421
    %v552 = vadd.f32 %v487, %v544
    %v553 = vadd.f32 %v488, %v545
    %v554 = vadd.f32 %v489, %v546
    %v555 = vadd.f32 %v490, %v547
    %v556 = vadd.f32 %v491, %v548
    %v557 = vadd.f32 %v492, %v549
    %v558 = vadd.f32 %v493, %v550
    %v559 = vadd.f32 %v494, %v551
    %v560 = vld [vmem:[%s3] sm:$0x1]
    %v562 = vlaneseq
    %v563 = vshrl.u32 %v562, 7
    %v564 = vsub.s32 0, %v563
    %v565 = vrot.slane %v560, %v564
    %v567 = vadd.f32 %v431, %v565
    %v568 = vadd.f32 %v432, %v565
    %v569 = vadd.f32 %v433, %v565
    %v570 = vadd.f32 %v434, %v565
    %v571 = vadd.f32 %v435, %v565
    %v572 = vadd.f32 %v436, %v565
    %v573 = vadd.f32 %v437, %v565
    %v574 = vadd.f32 %v438, %v565
    %v575 = vmax.f32 %v567, 0.0
    %v576 = vmax.f32 %v568, 0.0
    %v577 = vmax.f32 %v569, 0.0
    %v578 = vmax.f32 %v570, 0.0
    %v579 = vmax.f32 %v571, 0.0
    %v580 = vmax.f32 %v572, 0.0
    %v581 = vmax.f32 %v573, 0.0
    %v582 = vmax.f32 %v574, 0.0
    %v583 = vadd.f32 %v552, %v565
    %v584 = vadd.f32 %v553, %v565
    %v585 = vadd.f32 %v554, %v565
    %v586 = vadd.f32 %v555, %v565
    %v587 = vadd.f32 %v556, %v565
    %v588 = vadd.f32 %v557, %v565
    %v589 = vadd.f32 %v558, %v565
    %v590 = vadd.f32 %v559, %v565
    %v591 = vmax.f32 %v583, 0.0
    %v592 = vmax.f32 %v584, 0.0
    %v593 = vmax.f32 %v585, 0.0
    %v594 = vmax.f32 %v586, 0.0
    %v595 = vmax.f32 %v587, 0.0
    %v596 = vmax.f32 %v588, 0.0
    %v597 = vmax.f32 %v589, 0.0
    %v598 = vmax.f32 %v590, 0.0
    %v599 = vmax.f32 %v575, %v591
    %v600 = vmax.f32 %v576, %v592
    %v601 = vmax.f32 %v577, %v593
    %v602 = vmax.f32 %v578, %v594
    %v603 = vmax.f32 %v579, %v595
    %v604 = vmax.f32 %v580, %v596
    %v605 = vmax.f32 %v581, %v597
    %v606 = vmax.f32 %v582, %v598
    %vm607 = vcmask 523264
    %608 = vst.msk [vmem:[#allocation2] sm:$0xff] %vm607, %v599
    %609 = vst.msk [vmem:[#allocation2 + $0x8] sm:$0xff] %vm607, %v600
    %610 = vst.msk [vmem:[#allocation2 + $0x10] sm:$0xff] %vm607, %v601
    %611 = vst.msk [vmem:[#allocation2 + $0x18] sm:$0xff] %vm607, %v602
    %612 = vst.msk [vmem:[#allocation2 + $0x20] sm:$0xff] %vm607, %v603
    %613 = vst.msk [vmem:[#allocation2 + $0x28] sm:$0xff] %vm607, %v604
    %614 = vst.msk [vmem:[#allocation2 + $0x30] sm:$0xff] %vm607, %v605
    %615 = vst.msk [vmem:[#allocation2 + $0x38] sm:$0xff] %vm607, %v606
    %v616 = vld [vmem:[#allocation2] sm:$0xff]
    %v617 = vld [vmem:[#allocation2 + $0x8] sm:$0xff]
    %v618 = vld [vmem:[#allocation2 + $0x10] sm:$0xff]
    %v619 = vld [vmem:[#allocation2 + $0x18] sm:$0xff]
    %v620 = vld [vmem:[#allocation2 + $0x20] sm:$0xff]
    %v621 = vld [vmem:[#allocation2 + $0x28] sm:$0xff]
    %v622 = vld [vmem:[#allocation2 + $0x30] sm:$0xff]
    %v623 = vld [vmem:[#allocation2 + $0x38] sm:$0xff]
    %v624 = vpack.c.bf16 %v617, %v616
    %v625 = vpack.c.bf16 %v619, %v618
    %v626 = vpack.c.bf16 %v621, %v620
    %v627 = vpack.c.bf16 %v623, %v622
    %v628 = vld [vmem:[%s4] sm:$0xff]
    %v629 = vld [vmem:[%s4 + $0x8] sm:$0xff]
    %v630 = vld [vmem:[%s4 + $0x10] sm:$0xff]
    %v631 = vld [vmem:[%s4 + $0x18] sm:$0xff]
    %v632 = vld [vmem:[%s4 + $0x20] sm:$0xff]
    %v633 = vld [vmem:[%s4 + $0x28] sm:$0xff]
    %v634 = vld [vmem:[%s4 + $0x30] sm:$0xff]
    %v635 = vld [vmem:[%s4 + $0x38] sm:$0xff]
    %v636 = vld [vmem:[%s4 + $0x40] sm:$0xff]
    %v637 = vld [vmem:[%s4 + $0x48] sm:$0xff]
    %v638 = vld [vmem:[%s4 + $0x50] sm:$0xff]
    %v639 = vld [vmem:[%s4 + $0x58] sm:$0xff]
    %v640 = vld [vmem:[%s4 + $0x60] sm:$0xff]
    %v641 = vld [vmem:[%s4 + $0x68] sm:$0xff]
    %v642 = vld [vmem:[%s4 + $0x70] sm:$0xff]
    %v643 = vld [vmem:[%s4 + $0x78] sm:$0xff]
    %v644 = vld [vmem:[%s4 + $0x80] sm:$0xff]
    %v645 = vld [vmem:[%s4 + $0x88] sm:$0xff]
    %v646 = vld [vmem:[%s4 + $0x90] sm:$0xff]
    %v647 = vld [vmem:[%s4 + $0x98] sm:$0xff]
    %v648 = vld [vmem:[%s4 + $0xa0] sm:$0xff]
    %v649 = vld [vmem:[%s4 + $0xa8] sm:$0xff]
    %v650 = vld [vmem:[%s4 + $0xb0] sm:$0xff]
    %v651 = vld [vmem:[%s4 + $0xb8] sm:$0xff]
    %v652 = vld [vmem:[%s4 + $0xc0] sm:$0xff]
    %v653 = vld [vmem:[%s4 + $0xc8] sm:$0xff]
    %v654 = vld [vmem:[%s4 + $0xd0] sm:$0xff]
    %v655 = vld [vmem:[%s4 + $0xd8] sm:$0xff]
    %v656 = vld [vmem:[%s4 + $0xe0] sm:$0xff]
    %v657 = vld [vmem:[%s4 + $0xe8] sm:$0xff]
    %v658 = vld [vmem:[%s4 + $0xf0] sm:$0xff]
    %v659 = vld [vmem:[%s4 + $0xf8] sm:$0xff]
    %v660 = vld [vmem:[%s6] sm:$0xff]
    %v662 = vlaneseq
    %v663 = vshrl.u32 %v662, 7
    %v664 = vsub.s32 0, %v663
    %v665 = vrot.slane %v660, %v664
    %v666 = vlaneseq
    %v667 = vshrl.u32 %v666, 7
    %v668 = vsub.s32 1, %v667
    %v669 = vrot.slane %v660, %v668
    %v670 = vlaneseq
    %v671 = vshrl.u32 %v670, 7
    %v672 = vsub.s32 2, %v671
    %v673 = vrot.slane %v660, %v672
    %v674 = vlaneseq
    %v675 = vshrl.u32 %v674, 7
    %v676 = vsub.s32 3, %v675
    %v677 = vrot.slane %v660, %v676
    %v678 = vlaneseq
    %v679 = vshrl.u32 %v678, 7
    %v680 = vsub.s32 4, %v679
    %v681 = vrot.slane %v660, %v680
    %v682 = vlaneseq
    %v683 = vshrl.u32 %v682, 7
    %v684 = vsub.s32 5, %v683
    %v685 = vrot.slane %v660, %v684
    %v686 = vlaneseq
    %v687 = vshrl.u32 %v686, 7
    %v688 = vsub.s32 6, %v687
    %v689 = vrot.slane %v660, %v688
    %v690 = vlaneseq
    %v691 = vshrl.u32 %v690, 7
    %v692 = vsub.s32 7, %v691
    %v693 = vrot.slane %v660, %v692
    %v734 = vunpack.c.l.b16 %v628
    %v735 = vunpack.c.h.b16 %v628
    %v736 = vunpack.c.l.b16 %v629
    %v737 = vunpack.c.h.b16 %v629
    %v738 = vunpack.c.l.b16 %v630
    %v739 = vunpack.c.h.b16 %v630
    %v740 = vunpack.c.l.b16 %v631
    %v741 = vunpack.c.h.b16 %v631
    %v742 = vunpack.c.l.b16 %v632
    %v743 = vunpack.c.h.b16 %v632
    %v744 = vunpack.c.l.b16 %v633
    %v745 = vunpack.c.h.b16 %v633
    %v746 = vunpack.c.l.b16 %v634
    %v747 = vunpack.c.h.b16 %v634
    %v748 = vunpack.c.l.b16 %v635
    %v749 = vunpack.c.h.b16 %v635
    %v750 = vunpack.c.l.b16 %v636
    %v751 = vunpack.c.h.b16 %v636
    %v752 = vunpack.c.l.b16 %v637
    %v753 = vunpack.c.h.b16 %v637
    %v754 = vunpack.c.l.b16 %v638
    %v755 = vunpack.c.h.b16 %v638
    %v756 = vunpack.c.l.b16 %v639
    %v757 = vunpack.c.h.b16 %v639
    %v758 = vunpack.c.l.b16 %v640
    %v759 = vunpack.c.h.b16 %v640
    %v760 = vunpack.c.l.b16 %v641
    %v761 = vunpack.c.h.b16 %v641
    %v762 = vunpack.c.l.b16 %v642
    %v763 = vunpack.c.h.b16 %v642
    %v764 = vunpack.c.l.b16 %v643
    %v765 = vunpack.c.h.b16 %v643
    %v766 = vunpack.c.l.b16 %v644
    %v767 = vunpack.c.h.b16 %v644
    %v768 = vunpack.c.l.b16 %v645
    %v769 = vunpack.c.h.b16 %v645
    %v770 = vunpack.c.l.b16 %v646
    %v771 = vunpack.c.h.b16 %v646
    %v772 = vunpack.c.l.b16 %v647
    %v773 = vunpack.c.h.b16 %v647
    %v774 = vunpack.c.l.b16 %v648
    %v775 = vunpack.c.h.b16 %v648
    %v776 = vunpack.c.l.b16 %v649
    %v777 = vunpack.c.h.b16 %v649
    %v778 = vunpack.c.l.b16 %v650
    %v779 = vunpack.c.h.b16 %v650
    %v780 = vunpack.c.l.b16 %v651
    %v781 = vunpack.c.h.b16 %v651
    %v782 = vunpack.c.l.b16 %v652
    %v783 = vunpack.c.h.b16 %v652
    %v784 = vunpack.c.l.b16 %v653
    %v785 = vunpack.c.h.b16 %v653
    %v786 = vunpack.c.l.b16 %v654
    %v787 = vunpack.c.h.b16 %v654
    %v788 = vunpack.c.l.b16 %v655
    %v789 = vunpack.c.h.b16 %v655
    %v790 = vunpack.c.l.b16 %v656
    %v791 = vunpack.c.h.b16 %v656
    %v792 = vunpack.c.l.b16 %v657
    %v793 = vunpack.c.h.b16 %v657
    %v794 = vunpack.c.l.b16 %v658
    %v795 = vunpack.c.h.b16 %v658
    %v796 = vunpack.c.l.b16 %v659
    %v797 = vunpack.c.h.b16 %v659
    %v798 = vpack.c.b16 %v742, %v734
    %v799 = vpack.c.b16 %v743, %v735
    %v800 = vpack.c.b16 %v744, %v736
    %v801 = vpack.c.b16 %v745, %v737
    %v802 = vpack.c.b16 %v746, %v738
    %v803 = vpack.c.b16 %v747, %v739
    %v804 = vpack.c.b16 %v748, %v740
    %v805 = vpack.c.b16 %v749, %v741
    %v806 = vpack.c.b16 %v758, %v750
    %v807 = vpack.c.b16 %v759, %v751
    %v808 = vpack.c.b16 %v760, %v752
    %v809 = vpack.c.b16 %v761, %v753
    %v810 = vpack.c.b16 %v762, %v754
    %v811 = vpack.c.b16 %v763, %v755
    %v812 = vpack.c.b16 %v764, %v756
    %v813 = vpack.c.b16 %v765, %v757
    %v814 = vpack.c.b16 %v774, %v766
    %v815 = vpack.c.b16 %v775, %v767
    %v816 = vpack.c.b16 %v776, %v768
    %v817 = vpack.c.b16 %v777, %v769
    %v818 = vpack.c.b16 %v778, %v770
    %v819 = vpack.c.b16 %v779, %v771
    %v820 = vpack.c.b16 %v780, %v772
    %v821 = vpack.c.b16 %v781, %v773
    %v822 = vpack.c.b16 %v790, %v782
    %v823 = vpack.c.b16 %v791, %v783
    %v824 = vpack.c.b16 %v792, %v784
    %v825 = vpack.c.b16 %v793, %v785
    %v826 = vpack.c.b16 %v794, %v786
    %v827 = vpack.c.b16 %v795, %v787
    %v828 = vpack.c.b16 %v796, %v788
    %v829 = vpack.c.b16 %v797, %v789
    %v863 = vsel %vm607, %v624, 0
    %v866 = vsel %vm607, %v625, 0
    %v869 = vsel %vm607, %v626, 0
    %v872 = vsel %vm607, %v627, 0
    %874 = vmatprep.subr.bf16.mxu0 0
    %875 = vmatpush1.bf16.msra.mxu0 0
    %876 = vmatprep.subr.bf16.mxu0 0
    %877 = vmatpush1.bf16.msra.mxu0 0
    %878 = vmatprep.subr.bf16.mxu0 0
    %879 = vmatpush1.bf16.msra.mxu0 0
    %880 = vmatprep.subr.bf16.mxu0 0
    %881 = vmatpush1.bf16.msra.mxu0 0
    %882 = vmatprep.subr.bf16.mxu0 %v823
    %883 = vmatpush1.bf16.msra.mxu0 %v822
    %884 = vmatprep.subr.bf16.mxu0 %v815
    %885 = vmatpush1.bf16.msra.mxu0 %v814
    %886 = vmatprep.subr.bf16.mxu0 %v807
    %887 = vmatpush1.bf16.msra.mxu0 %v806
    %888 = vmatprep.subr.bf16.mxu0 %v799
    %889 = vmatpush1.bf16.msra.mxu0 %v798
    %890 = vmatprep.subr.bf16.mxu0 0
    %891 = vmatpush2.bf16.msra.mxu0 0
    %892 = vmatprep.subr.bf16.mxu0 0
    %893 = vmatpush2.bf16.msra.mxu0 0
    %894 = vmatprep.subr.bf16.mxu0 0
    %895 = vmatpush2.bf16.msra.mxu0 0
    %896 = vmatprep.subr.bf16.mxu0 0
    %897 = vmatpush2.bf16.msra.mxu0 0
    %898 = vmatprep.subr.bf16.mxu0 0
    %899 = vmatpush2.bf16.msra.mxu0 0
    %900 = vmatprep.subr.bf16.mxu0 0
    %901 = vmatpush2.bf16.msra.mxu0 0
    %902 = vmatprep.subr.bf16.mxu0 0
    %903 = vmatpush2.bf16.msra.mxu0 0
    %904 = vmatprep.subr.bf16.mxu0 0
    %905 = vmatpush2.bf16.msra.mxu0 0
    %906 = vmatprep.mubr.bf16.mxu0 0
    %907 = vmatmul.mubr.bf16.gmra.mxu0 %v863
    %v908 = vpop.f32.mrf.mxu0
    %v909 = vadd.f32 %v665, %v908
    %v910 = vpop.f32.mrf.mxu0
    %v911 = vadd.f32 %v669, %v910
    %v912 = vpop.f32.mrf.mxu0
    %v913 = vadd.f32 %v665, %v912
    %v914 = vpop.f32.mrf.mxu0
    %v915 = vadd.f32 %v669, %v914
    %916 = vmatprep.mubr.bf16.mxu0 0
    %917 = vmatmul.mubr.bf16.gmra.mxu0 %v866
    %v918 = vpop.f32.mrf.mxu0
    %v919 = vadd.f32 %v665, %v918
    %v920 = vpop.f32.mrf.mxu0
    %v921 = vadd.f32 %v669, %v920
    %v922 = vpop.f32.mrf.mxu0
    %v923 = vadd.f32 %v665, %v922
    %v924 = vpop.f32.mrf.mxu0
    %v925 = vadd.f32 %v669, %v924
    %926 = vmatprep.mubr.bf16.mxu0 0
    %927 = vmatmul.mubr.bf16.gmra.mxu0 %v869
    %v928 = vpop.f32.mrf.mxu0
    %v929 = vadd.f32 %v665, %v928
    %v930 = vpop.f32.mrf.mxu0
    %v931 = vadd.f32 %v669, %v930
    %v932 = vpop.f32.mrf.mxu0
    %v933 = vadd.f32 %v665, %v932
    %v934 = vpop.f32.mrf.mxu0
    %v935 = vadd.f32 %v669, %v934
    %936 = vmatprep.mubr.bf16.mxu0 0
    %937 = vmatmul.mubr.bf16.gmra.mxu0 %v872
    %v938 = vpop.f32.mrf.mxu0
    %v939 = vadd.f32 %v665, %v938
    %v940 = vpop.f32.mrf.mxu0
    %v941 = vadd.f32 %v669, %v940
    %v942 = vpop.f32.mrf.mxu0
    %v943 = vadd.f32 %v665, %v942
    %v944 = vpop.f32.mrf.mxu0
    %v945 = vadd.f32 %v669, %v944
    %946 = vdwg.mxu0
    %947 = vmatprep.subr.bf16.mxu0 0
    %948 = vmatpush1.bf16.msra.mxu0 0
    %949 = vmatprep.subr.bf16.mxu0 0
    %950 = vmatpush1.bf16.msra.mxu0 0
    %951 = vmatprep.subr.bf16.mxu0 0
    %952 = vmatpush1.bf16.msra.mxu0 0
    %953 = vmatprep.subr.bf16.mxu0 0
    %954 = vmatpush1.bf16.msra.mxu0 0
    %955 = vmatprep.subr.bf16.mxu0 %v825
    %956 = vmatpush1.bf16.msra.mxu0 %v824
    %957 = vmatprep.subr.bf16.mxu0 %v817
    %958 = vmatpush1.bf16.msra.mxu0 %v816
    %959 = vmatprep.subr.bf16.mxu0 %v809
    %960 = vmatpush1.bf16.msra.mxu0 %v808
    %961 = vmatprep.subr.bf16.mxu0 %v801
    %962 = vmatpush1.bf16.msra.mxu0 %v800
    %963 = vmatprep.subr.bf16.mxu0 0
    %964 = vmatpush2.bf16.msra.mxu0 0
    %965 = vmatprep.subr.bf16.mxu0 0
    %966 = vmatpush2.bf16.msra.mxu0 0
    %967 = vmatprep.subr.bf16.mxu0 0
    %968 = vmatpush2.bf16.msra.mxu0 0
    %969 = vmatprep.subr.bf16.mxu0 0
    %970 = vmatpush2.bf16.msra.mxu0 0
    %971 = vmatprep.subr.bf16.mxu0 0
    %972 = vmatpush2.bf16.msra.mxu0 0
    %973 = vmatprep.subr.bf16.mxu0 0
    %974 = vmatpush2.bf16.msra.mxu0 0
    %975 = vmatprep.subr.bf16.mxu0 0
    %976 = vmatpush2.bf16.msra.mxu0 0
    %977 = vmatprep.subr.bf16.mxu0 0
    %978 = vmatpush2.bf16.msra.mxu0 0
    %979 = vmatprep.mubr.bf16.mxu0 0
    %980 = vmatmul.mubr.bf16.gmra.mxu0 %v863
    %v981 = vpop.f32.mrf.mxu0
    %v982 = vadd.f32 %v673, %v981
    %v983 = vpop.f32.mrf.mxu0
    %v984 = vadd.f32 %v677, %v983
    %v985 = vpop.f32.mrf.mxu0
    %v986 = vadd.f32 %v673, %v985
    %v987 = vpop.f32.mrf.mxu0
    %v988 = vadd.f32 %v677, %v987
    %989 = vmatprep.mubr.bf16.mxu0 0
    %990 = vmatmul.mubr.bf16.gmra.mxu0 %v866
    %v991 = vpop.f32.mrf.mxu0
    %v992 = vadd.f32 %v673, %v991
    %v993 = vpop.f32.mrf.mxu0
    %v994 = vadd.f32 %v677, %v993
    %v995 = vpop.f32.mrf.mxu0
    %v996 = vadd.f32 %v673, %v995
    %v997 = vpop.f32.mrf.mxu0
    %v998 = vadd.f32 %v677, %v997
    %999 = vmatprep.mubr.bf16.mxu0 0
    %1000 = vmatmul.mubr.bf16.gmra.mxu0 %v869
    %v1001 = vpop.f32.mrf.mxu0
    %v1002 = vadd.f32 %v673, %v1001
    %v1003 = vpop.f32.mrf.mxu0
    %v1004 = vadd.f32 %v677, %v1003
    %v1005 = vpop.f32.mrf.mxu0
    %v1006 = vadd.f32 %v673, %v1005
    %v1007 = vpop.f32.mrf.mxu0
    %v1008 = vadd.f32 %v677, %v1007
    %1009 = vmatprep.mubr.bf16.mxu0 0
    %1010 = vmatmul.mubr.bf16.gmra.mxu0 %v872
    %v1011 = vpop.f32.mrf.mxu0
    %v1012 = vadd.f32 %v673, %v1011
    %v1013 = vpop.f32.mrf.mxu0
    %v1014 = vadd.f32 %v677, %v1013
    %v1015 = vpop.f32.mrf.mxu0
    %v1016 = vadd.f32 %v673, %v1015
    %v1017 = vpop.f32.mrf.mxu0
    %v1018 = vadd.f32 %v677, %v1017
    %1019 = vdwg.mxu0
    %1020 = vmatprep.subr.bf16.mxu0 0
    %1021 = vmatpush1.bf16.msra.mxu0 0
    %1022 = vmatprep.subr.bf16.mxu0 0
    %1023 = vmatpush1.bf16.msra.mxu0 0
    %1024 = vmatprep.subr.bf16.mxu0 0
    %1025 = vmatpush1.bf16.msra.mxu0 0
    %1026 = vmatprep.subr.bf16.mxu0 0
    %1027 = vmatpush1.bf16.msra.mxu0 0
    %1028 = vmatprep.subr.bf16.mxu0 %v827
    %1029 = vmatpush1.bf16.msra.mxu0 %v826
    %1030 = vmatprep.subr.bf16.mxu0 %v819
    %1031 = vmatpush1.bf16.msra.mxu0 %v818
    %1032 = vmatprep.subr.bf16.mxu0 %v811
    %1033 = vmatpush1.bf16.msra.mxu0 %v810
    %1034 = vmatprep.subr.bf16.mxu0 %v803
    %1035 = vmatpush1.bf16.msra.mxu0 %v802
    %1036 = vmatprep.subr.bf16.mxu0 0
    %1037 = vmatpush2.bf16.msra.mxu0 0
    %1038 = vmatprep.subr.bf16.mxu0 0
    %1039 = vmatpush2.bf16.msra.mxu0 0
    %1040 = vmatprep.subr.bf16.mxu0 0
    %1041 = vmatpush2.bf16.msra.mxu0 0
    %1042 = vmatprep.subr.bf16.mxu0 0
    %1043 = vmatpush2.bf16.msra.mxu0 0
    %1044 = vmatprep.subr.bf16.mxu0 0
    %1045 = vmatpush2.bf16.msra.mxu0 0
    %1046 = vmatprep.subr.bf16.mxu0 0
    %1047 = vmatpush2.bf16.msra.mxu0 0
    %1048 = vmatprep.subr.bf16.mxu0 0
    %1049 = vmatpush2.bf16.msra.mxu0 0
    %1050 = vmatprep.subr.bf16.mxu0 0
    %1051 = vmatpush2.bf16.msra.mxu0 0
    %1052 = vmatprep.mubr.bf16.mxu0 0
    %1053 = vmatmul.mubr.bf16.gmra.mxu0 %v863
    %v1054 = vpop.f32.mrf.mxu0
    %v1055 = vadd.f32 %v681, %v1054
    %v1056 = vpop.f32.mrf.mxu0
    %v1057 = vadd.f32 %v685, %v1056
    %v1058 = vpop.f32.mrf.mxu0
    %v1059 = vadd.f32 %v681, %v1058
    %v1060 = vpop.f32.mrf.mxu0
    %v1061 = vadd.f32 %v685, %v1060
    %1062 = vmatprep.mubr.bf16.mxu0 0
    %1063 = vmatmul.mubr.bf16.gmra.mxu0 %v866
    %v1064 = vpop.f32.mrf.mxu0
    %v1065 = vadd.f32 %v681, %v1064
    %v1066 = vpop.f32.mrf.mxu0
    %v1067 = vadd.f32 %v685, %v1066
    %v1068 = vpop.f32.mrf.mxu0
    %v1069 = vadd.f32 %v681, %v1068
    %v1070 = vpop.f32.mrf.mxu0
    %v1071 = vadd.f32 %v685, %v1070
    %1072 = vmatprep.mubr.bf16.mxu0 0
    %1073 = vmatmul.mubr.bf16.gmra.mxu0 %v869
    %v1074 = vpop.f32.mrf.mxu0
    %v1075 = vadd.f32 %v681, %v1074
    %v1076 = vpop.f32.mrf.mxu0
    %v1077 = vadd.f32 %v685, %v1076
    %v1078 = vpop.f32.mrf.mxu0
    %v1079 = vadd.f32 %v681, %v1078
    %v1080 = vpop.f32.mrf.mxu0
    %v1081 = vadd.f32 %v685, %v1080
    %1082 = vmatprep.mubr.bf16.mxu0 0
    %1083 = vmatmul.mubr.bf16.gmra.mxu0 %v872
    %v1084 = vpop.f32.mrf.mxu0
    %v1085 = vadd.f32 %v681, %v1084
    %v1086 = vpop.f32.mrf.mxu0
    %v1087 = vadd.f32 %v685, %v1086
    %v1088 = vpop.f32.mrf.mxu0
    %v1089 = vadd.f32 %v681, %v1088
    %v1090 = vpop.f32.mrf.mxu0
    %v1091 = vadd.f32 %v685, %v1090
    %1092 = vdwg.mxu0
    %1093 = vmatprep.subr.bf16.mxu0 0
    %1094 = vmatpush1.bf16.msra.mxu0 0
    %1095 = vmatprep.subr.bf16.mxu0 0
    %1096 = vmatpush1.bf16.msra.mxu0 0
    %1097 = vmatprep.subr.bf16.mxu0 0
    %1098 = vmatpush1.bf16.msra.mxu0 0
    %1099 = vmatprep.subr.bf16.mxu0 0
    %1100 = vmatpush1.bf16.msra.mxu0 0
    %1101 = vmatprep.subr.bf16.mxu0 %v829
    %1102 = vmatpush1.bf16.msra.mxu0 %v828
    %1103 = vmatprep.subr.bf16.mxu0 %v821
    %1104 = vmatpush1.bf16.msra.mxu0 %v820
    %1105 = vmatprep.subr.bf16.mxu0 %v813
    %1106 = vmatpush1.bf16.msra.mxu0 %v812
    %1107 = vmatprep.subr.bf16.mxu0 %v805
    %1108 = vmatpush1.bf16.msra.mxu0 %v804
    %1109 = vmatprep.subr.bf16.mxu0 0
    %1110 = vmatpush2.bf16.msra.mxu0 0
    %1111 = vmatprep.subr.bf16.mxu0 0
    %1112 = vmatpush2.bf16.msra.mxu0 0
    %1113 = vmatprep.subr.bf16.mxu0 0
    %1114 = vmatpush2.bf16.msra.mxu0 0
    %1115 = vmatprep.subr.bf16.mxu0 0
    %1116 = vmatpush2.bf16.msra.mxu0 0
    %1117 = vmatprep.subr.bf16.mxu0 0
    %1118 = vmatpush2.bf16.msra.mxu0 0
    %1119 = vmatprep.subr.bf16.mxu0 0
    %1120 = vmatpush2.bf16.msra.mxu0 0
    %1121 = vmatprep.subr.bf16.mxu0 0
    %1122 = vmatpush2.bf16.msra.mxu0 0
    %1123 = vmatprep.subr.bf16.mxu0 0
    %1124 = vmatpush2.bf16.msra.mxu0 0
    %1125 = vmatprep.mubr.bf16.mxu0 0
    %1126 = vmatmul.mubr.bf16.gmra.mxu0 %v863
    %v1127 = vpop.f32.mrf.mxu0
    %v1128 = vadd.f32 %v689, %v1127
    %v1129 = vpop.f32.mrf.mxu0
    %v1130 = vadd.f32 %v693, %v1129
    %v1131 = vpop.f32.mrf.mxu0
    %v1132 = vadd.f32 %v689, %v1131
    %v1133 = vpop.f32.mrf.mxu0
    %v1134 = vadd.f32 %v693, %v1133
    %1135 = vmatprep.mubr.bf16.mxu0 0
    %1136 = vmatmul.mubr.bf16.gmra.mxu0 %v866
    %v1137 = vpop.f32.mrf.mxu0
    %v1138 = vadd.f32 %v689, %v1137
    %v1139 = vpop.f32.mrf.mxu0
    %v1140 = vadd.f32 %v693, %v1139
    %v1141 = vpop.f32.mrf.mxu0
    %v1142 = vadd.f32 %v689, %v1141
    %v1143 = vpop.f32.mrf.mxu0
    %v1144 = vadd.f32 %v693, %v1143
    %1145 = vmatprep.mubr.bf16.mxu0 0
    %1146 = vmatmul.mubr.bf16.gmra.mxu0 %v869
    %v1147 = vpop.f32.mrf.mxu0
    %v1148 = vadd.f32 %v689, %v1147
    %v1149 = vpop.f32.mrf.mxu0
    %v1150 = vadd.f32 %v693, %v1149
    %v1151 = vpop.f32.mrf.mxu0
    %v1152 = vadd.f32 %v689, %v1151
    %v1153 = vpop.f32.mrf.mxu0
    %v1154 = vadd.f32 %v693, %v1153
    %1155 = vmatprep.mubr.bf16.mxu0 0
    %1156 = vmatmul.mubr.bf16.gmra.mxu0 %v872
    %v1157 = vpop.f32.mrf.mxu0
    %v1158 = vadd.f32 %v689, %v1157
    %v1159 = vpop.f32.mrf.mxu0
    %v1160 = vadd.f32 %v693, %v1159
    %v1161 = vpop.f32.mrf.mxu0
    %v1162 = vadd.f32 %v689, %v1161
    %v1163 = vpop.f32.mrf.mxu0
    %v1164 = vadd.f32 %v693, %v1163
    %1165 = vdwg.mxu0
    %v1166 = vpack.c.bf16 %v909, %v909
    %v1167 = vpack.c.bf16 %v911, %v911
    %v1168 = vpack.c.bf16 %v982, %v982
    %v1169 = vpack.c.bf16 %v984, %v984
    %v1170 = vpack.c.bf16 %v1055, %v1055
    %v1171 = vpack.c.bf16 %v1057, %v1057
    %v1172 = vpack.c.bf16 %v1128, %v1128
    %v1173 = vpack.c.bf16 %v1130, %v1130
    %v1174 = vpack.c.bf16 %v913, %v913
    %v1175 = vpack.c.bf16 %v915, %v915
    %v1176 = vpack.c.bf16 %v986, %v986
    %v1177 = vpack.c.bf16 %v988, %v988
    %v1178 = vpack.c.bf16 %v1059, %v1059
    %v1179 = vpack.c.bf16 %v1061, %v1061
    %v1180 = vpack.c.bf16 %v1132, %v1132
    %v1181 = vpack.c.bf16 %v1134, %v1134
    %v1182 = vpack.c.bf16 %v919, %v919
    %v1183 = vpack.c.bf16 %v921, %v921
    %v1184 = vpack.c.bf16 %v992, %v992
    %v1185 = vpack.c.bf16 %v994, %v994
    %v1186 = vpack.c.bf16 %v1065, %v1065
    %v1187 = vpack.c.bf16 %v1067, %v1067
    %v1188 = vpack.c.bf16 %v1138, %v1138
    %v1189 = vpack.c.bf16 %v1140, %v1140
    %v1190 = vpack.c.bf16 %v923, %v923
    %v1191 = vpack.c.bf16 %v925, %v925
    %v1192 = vpack.c.bf16 %v996, %v996
    %v1193 = vpack.c.bf16 %v998, %v998
    %v1194 = vpack.c.bf16 %v1069, %v1069
    %v1195 = vpack.c.bf16 %v1071, %v1071
    %v1196 = vpack.c.bf16 %v1142, %v1142
    %v1197 = vpack.c.bf16 %v1144, %v1144
    %v1198 = vpack.c.bf16 %v929, %v929
    %v1199 = vpack.c.bf16 %v931, %v931
    %v1200 = vpack.c.bf16 %v1002, %v1002
    %v1201 = vpack.c.bf16 %v1004, %v1004
    %v1202 = vpack.c.bf16 %v1075, %v1075
    %v1203 = vpack.c.bf16 %v1077, %v1077
    %v1204 = vpack.c.bf16 %v1148, %v1148
    %v1205 = vpack.c.bf16 %v1150, %v1150
    %v1206 = vpack.c.bf16 %v933, %v933
    %v1207 = vpack.c.bf16 %v935, %v935
    %v1208 = vpack.c.bf16 %v1006, %v1006
    %v1209 = vpack.c.bf16 %v1008, %v1008
    %v1210 = vpack.c.bf16 %v1079, %v1079
    %v1211 = vpack.c.bf16 %v1081, %v1081
    %v1212 = vpack.c.bf16 %v1152, %v1152
    %v1213 = vpack.c.bf16 %v1154, %v1154
    %v1214 = vpack.c.bf16 %v939, %v939
    %v1215 = vpack.c.bf16 %v941, %v941
    %v1216 = vpack.c.bf16 %v1012, %v1012
    %v1217 = vpack.c.bf16 %v1014, %v1014
    %v1218 = vpack.c.bf16 %v1085, %v1085
    %v1219 = vpack.c.bf16 %v1087, %v1087
    %v1220 = vpack.c.bf16 %v1158, %v1158
    %v1221 = vpack.c.bf16 %v1160, %v1160
    %v1222 = vpack.c.bf16 %v943, %v943
    %v1223 = vpack.c.bf16 %v945, %v945
    %v1224 = vpack.c.bf16 %v1016, %v1016
    %v1225 = vpack.c.bf16 %v1018, %v1018
    %v1226 = vpack.c.bf16 %v1089, %v1089
    %v1227 = vpack.c.bf16 %v1091, %v1091
    %v1228 = vpack.c.bf16 %v1162, %v1162
    %v1229 = vpack.c.bf16 %v1164, %v1164
    %v1294 = vunpack.c.l.b16 %v1166
    %v1295 = vunpack.c.l.b16 %v1167
    %v1296 = vunpack.c.l.b16 %v1168
    %v1297 = vunpack.c.l.b16 %v1169
    %v1298 = vunpack.c.l.b16 %v1170
    %v1299 = vunpack.c.l.b16 %v1171
    %v1300 = vunpack.c.l.b16 %v1172
    %v1301 = vunpack.c.l.b16 %v1173
    %v1302 = vunpack.c.l.b16 %v1174
    %v1303 = vunpack.c.l.b16 %v1175
    %v1304 = vunpack.c.l.b16 %v1176
    %v1305 = vunpack.c.l.b16 %v1177
    %v1306 = vunpack.c.l.b16 %v1178
    %v1307 = vunpack.c.l.b16 %v1179
    %v1308 = vunpack.c.l.b16 %v1180
    %v1309 = vunpack.c.l.b16 %v1181
    %v1310 = vunpack.c.l.b16 %v1182
    %v1311 = vunpack.c.l.b16 %v1183
    %v1312 = vunpack.c.l.b16 %v1184
    %v1313 = vunpack.c.l.b16 %v1185
    %v1314 = vunpack.c.l.b16 %v1186
    %v1315 = vunpack.c.l.b16 %v1187
    %v1316 = vunpack.c.l.b16 %v1188
    %v1317 = vunpack.c.l.b16 %v1189
    %v1318 = vunpack.c.l.b16 %v1190
    %v1319 = vunpack.c.l.b16 %v1191
    %v1320 = vunpack.c.l.b16 %v1192
    %v1321 = vunpack.c.l.b16 %v1193
    %v1322 = vunpack.c.l.b16 %v1194
    %v1323 = vunpack.c.l.b16 %v1195
    %v1324 = vunpack.c.l.b16 %v1196
    %v1325 = vunpack.c.l.b16 %v1197
    %v1326 = vunpack.c.l.b16 %v1198
    %v1327 = vunpack.c.l.b16 %v1199
    %v1328 = vunpack.c.l.b16 %v1200
    %v1329 = vunpack.c.l.b16 %v1201
    %v1330 = vunpack.c.l.b16 %v1202
    %v1331 = vunpack.c.l.b16 %v1203
    %v1332 = vunpack.c.l.b16 %v1204
    %v1333 = vunpack.c.l.b16 %v1205
    %v1334 = vunpack.c.l.b16 %v1206
    %v1335 = vunpack.c.l.b16 %v1207
    %v1336 = vunpack.c.l.b16 %v1208
    %v1337 = vunpack.c.l.b16 %v1209
    %v1338 = vunpack.c.l.b16 %v1210
    %v1339 = vunpack.c.l.b16 %v1211
    %v1340 = vunpack.c.l.b16 %v1212
    %v1341 = vunpack.c.l.b16 %v1213
    %v1342 = vunpack.c.l.b16 %v1214
    %v1343 = vunpack.c.l.b16 %v1215
    %v1344 = vunpack.c.l.b16 %v1216
    %v1345 = vunpack.c.l.b16 %v1217
    %v1346 = vunpack.c.l.b16 %v1218
    %v1347 = vunpack.c.l.b16 %v1219
    %v1348 = vunpack.c.l.b16 %v1220
    %v1349 = vunpack.c.l.b16 %v1221
    %v1350 = vunpack.c.l.b16 %v1222
    %v1351 = vunpack.c.l.b16 %v1223
    %v1352 = vunpack.c.l.b16 %v1224
    %v1353 = vunpack.c.l.b16 %v1225
    %v1354 = vunpack.c.l.b16 %v1226
    %v1355 = vunpack.c.l.b16 %v1227
    %v1356 = vunpack.c.l.b16 %v1228
    %v1357 = vunpack.c.l.b16 %v1229
    %v1358 = vpack.c.b16 %v1295, %v1294
    %v1359 = vpack.c.b16 %v1297, %v1296
    %v1360 = vpack.c.b16 %v1299, %v1298
    %v1361 = vpack.c.b16 %v1301, %v1300
    %v1362 = vpack.c.b16 %v1303, %v1302
    %v1363 = vpack.c.b16 %v1305, %v1304
    %v1364 = vpack.c.b16 %v1307, %v1306
    %v1365 = vpack.c.b16 %v1309, %v1308
    %v1366 = vpack.c.b16 %v1311, %v1310
    %v1367 = vpack.c.b16 %v1313, %v1312
    %v1368 = vpack.c.b16 %v1315, %v1314
    %v1369 = vpack.c.b16 %v1317, %v1316
    %v1370 = vpack.c.b16 %v1319, %v1318
    %v1371 = vpack.c.b16 %v1321, %v1320
    %v1372 = vpack.c.b16 %v1323, %v1322
    %v1373 = vpack.c.b16 %v1325, %v1324
    %v1374 = vpack.c.b16 %v1327, %v1326
    %v1375 = vpack.c.b16 %v1329, %v1328
    %v1376 = vpack.c.b16 %v1331, %v1330
    %v1377 = vpack.c.b16 %v1333, %v1332
    %v1378 = vpack.c.b16 %v1335, %v1334
    %v1379 = vpack.c.b16 %v1337, %v1336
    %v1380 = vpack.c.b16 %v1339, %v1338
    %v1381 = vpack.c.b16 %v1341, %v1340
    %v1382 = vpack.c.b16 %v1343, %v1342
    %v1383 = vpack.c.b16 %v1345, %v1344
    %v1384 = vpack.c.b16 %v1347, %v1346
    %v1385 = vpack.c.b16 %v1349, %v1348
    %v1386 = vpack.c.b16 %v1351, %v1350
    %v1387 = vpack.c.b16 %v1353, %v1352
    %v1388 = vpack.c.b16 %v1355, %v1354
    %v1389 = vpack.c.b16 %v1357, %v1356
    %1422 = vst [vmem:[#allocation5] sm:$0xff] %v1358
    %1423 = vst [vmem:[#allocation5 + $0x8] sm:$0xff] %v1359
    %1424 = vst [vmem:[#allocation5 + $0x10] sm:$0xff] %v1360
    %1425 = vst [vmem:[#allocation5 + $0x18] sm:$0xff] %v1361
    %1426 = vst [vmem:[#allocation5 + $0x20] sm:$0xff] %v1362
    %1427 = vst [vmem:[#allocation5 + $0x28] sm:$0xff] %v1363
    %1428 = vst [vmem:[#allocation5 + $0x30] sm:$0xff] %v1364
    %1429 = vst [vmem:[#allocation5 + $0x38] sm:$0xff] %v1365
    %1430 = vst [vmem:[#allocation5 + $0x40] sm:$0xff] %v1366
    %1431 = vst [vmem:[#allocation5 + $0x48] sm:$0xff] %v1367
    %1432 = vst [vmem:[#allocation5 + $0x50] sm:$0xff] %v1368
    %1433 = vst [vmem:[#allocation5 + $0x58] sm:$0xff] %v1369
    %1434 = vst [vmem:[#allocation5 + $0x60] sm:$0xff] %v1370
    %1435 = vst [vmem:[#allocation5 + $0x68] sm:$0xff] %v1371
    %1436 = vst [vmem:[#allocation5 + $0x70] sm:$0xff] %v1372
    %1437 = vst [vmem:[#allocation5 + $0x78] sm:$0xff] %v1373
    %1438 = vst [vmem:[#allocation5 + $0x80] sm:$0xff] %v1374
    %1439 = vst [vmem:[#allocation5 + $0x88] sm:$0xff] %v1375
    %1440 = vst [vmem:[#allocation5 + $0x90] sm:$0xff] %v1376
    %1441 = vst [vmem:[#allocation5 + $0x98] sm:$0xff] %v1377
    %1442 = vst [vmem:[#allocation5 + $0xa0] sm:$0xff] %v1378
    %1443 = vst [vmem:[#allocation5 + $0xa8] sm:$0xff] %v1379
    %1444 = vst [vmem:[#allocation5 + $0xb0] sm:$0xff] %v1380
    %1445 = vst [vmem:[#allocation5 + $0xb8] sm:$0xff] %v1381
    %1446 = vst [vmem:[#allocation5 + $0xc0] sm:$0xff] %v1382
    %1447 = vst [vmem:[#allocation5 + $0xc8] sm:$0xff] %v1383
    %1448 = vst [vmem:[#allocation5 + $0xd0] sm:$0xff] %v1384
    %1449 = vst [vmem:[#allocation5 + $0xd8] sm:$0xff] %v1385
    %1450 = vst [vmem:[#allocation5 + $0xe0] sm:$0xff] %v1386
    %1451 = vst [vmem:[#allocation5 + $0xe8] sm:$0xff] %v1387
    %1452 = vst [vmem:[#allocation5 + $0xf0] sm:$0xff] %v1388
    %1453 = vst [vmem:[#allocation5 + $0xf8] sm:$0xff] %v1389
    %v1454 = vld [vmem:[#allocation6] sm:$0xff]
    %v1455 = vld [vmem:[#allocation6 + $0x8] sm:$0xff]
    %v1456 = vld [vmem:[#allocation6 + $0x10] sm:$0xff]
    %v1457 = vld [vmem:[#allocation6 + $0x18] sm:$0xff]
    %v1458 = vld [vmem:[#allocation6 + $0x20] sm:$0xff]
    %v1459 = vld [vmem:[#allocation6 + $0x28] sm:$0xff]
    %v1460 = vld [vmem:[#allocation6 + $0x30] sm:$0xff]
    %v1461 = vld [vmem:[#allocation6 + $0x38] sm:$0xff]
    %v1462 = vld [vmem:[#allocation6 + $0x40] sm:$0xff]
    %v1463 = vld [vmem:[#allocation6 + $0x48] sm:$0xff]
    %v1464 = vld [vmem:[#allocation6 + $0x50] sm:$0xff]
    %v1465 = vld [vmem:[#allocation6 + $0x58] sm:$0xff]
    %v1466 = vld [vmem:[#allocation6 + $0x60] sm:$0xff]
    %v1467 = vld [vmem:[#allocation6 + $0x68] sm:$0xff]
    %v1468 = vld [vmem:[#allocation6 + $0x70] sm:$0xff]
    %v1469 = vld [vmem:[#allocation6 + $0x78] sm:$0xff]
    %v1470 = vld [vmem:[#allocation6 + $0x80] sm:$0xff]
    %v1471 = vld [vmem:[#allocation6 + $0x88] sm:$0xff]
    %v1472 = vld [vmem:[#allocation6 + $0x90] sm:$0xff]
    %v1473 = vld [vmem:[#allocation6 + $0x98] sm:$0xff]
    %v1474 = vld [vmem:[#allocation6 + $0xa0] sm:$0xff]
    %v1475 = vld [vmem:[#allocation6 + $0xa8] sm:$0xff]
    %v1476 = vld [vmem:[#allocation6 + $0xb0] sm:$0xff]
    %v1477 = vld [vmem:[#allocation6 + $0xb8] sm:$0xff]
    %v1478 = vld [vmem:[#allocation6 + $0xc0] sm:$0xff]
    %v1479 = vld [vmem:[#allocation6 + $0xc8] sm:$0xff]
    %v1480 = vld [vmem:[#allocation6 + $0xd0] sm:$0xff]
    %v1481 = vld [vmem:[#allocation6 + $0xd8] sm:$0xff]
    %v1482 = vld [vmem:[#allocation6 + $0xe0] sm:$0xff]
    %v1483 = vld [vmem:[#allocation6 + $0xe8] sm:$0xff]
    %v1484 = vld [vmem:[#allocation6 + $0xf0] sm:$0xff]
    %v1485 = vld [vmem:[#allocation6 + $0xf8] sm:$0xff]
    %v1486 = vld [vmem:[#allocation6 + $0x100] sm:$0xff]
    %v1487 = vld [vmem:[#allocation6 + $0x108] sm:$0xff]
    %v1488 = vld [vmem:[#allocation6 + $0x110] sm:$0xff]
    %v1489 = vld [vmem:[#allocation6 + $0x118] sm:$0xff]
    %v1490 = vld [vmem:[#allocation6 + $0x120] sm:$0xff]
    %v1491 = vld [vmem:[#allocation6 + $0x128] sm:$0xff]
    %v1492 = vld [vmem:[#allocation6 + $0x130] sm:$0xff]
    %v1493 = vld [vmem:[#allocation6 + $0x138] sm:$0xff]
    %v1494 = vld [vmem:[#allocation6 + $0x140] sm:$0xff]
    %v1495 = vld [vmem:[#allocation6 + $0x148] sm:$0xff]
    %v1496 = vld [vmem:[#allocation6 + $0x150] sm:$0xff]
    %v1497 = vld [vmem:[#allocation6 + $0x158] sm:$0xff]
    %v1498 = vld [vmem:[#allocation6 + $0x160] sm:$0xff]
    %v1499 = vld [vmem:[#allocation6 + $0x168] sm:$0xff]
    %v1500 = vld [vmem:[#allocation6 + $0x170] sm:$0xff]
    %v1501 = vld [vmem:[#allocation6 + $0x178] sm:$0xff]
    %v1502 = vld [vmem:[#allocation6 + $0x180] sm:$0xff]
    %v1503 = vld [vmem:[#allocation6 + $0x188] sm:$0xff]
    %v1504 = vld [vmem:[#allocation6 + $0x190] sm:$0xff]
    %v1505 = vld [vmem:[#allocation6 + $0x198] sm:$0xff]
    %v1506 = vld [vmem:[#allocation6 + $0x1a0] sm:$0xff]
    %v1507 = vld [vmem:[#allocation6 + $0x1a8] sm:$0xff]
    %v1508 = vld [vmem:[#allocation6 + $0x1b0] sm:$0xff]
    %v1509 = vld [vmem:[#allocation6 + $0x1b8] sm:$0xff]
    %v1510 = vld [vmem:[#allocation6 + $0x1c0] sm:$0xff]
    %v1511 = vld [vmem:[#allocation6 + $0x1c8] sm:$0xff]
    %v1512 = vld [vmem:[#allocation6 + $0x1d0] sm:$0xff]
    %v1513 = vld [vmem:[#allocation6 + $0x1d8] sm:$0xff]
    %v1514 = vld [vmem:[#allocation6 + $0x1e0] sm:$0xff]
    %v1515 = vld [vmem:[#allocation6 + $0x1e8] sm:$0xff]
    %v1516 = vld [vmem:[#allocation6 + $0x1f0] sm:$0xff]
    %v1517 = vld [vmem:[#allocation6 + $0x1f8] sm:$0xff]
    %v1518 = vld [vmem:[#allocation6 + $0x200] sm:$0xff]
    %v1519 = vld [vmem:[#allocation6 + $0x208] sm:$0xff]
    %v1520 = vld [vmem:[#allocation6 + $0x210] sm:$0xff]
    %v1521 = vld [vmem:[#allocation6 + $0x218] sm:$0xff]
    %v1522 = vld [vmem:[#allocation6 + $0x220] sm:$0xff]
    %v1523 = vld [vmem:[#allocation6 + $0x228] sm:$0xff]
    %v1524 = vld [vmem:[#allocation6 + $0x230] sm:$0xff]
    %v1525 = vld [vmem:[#allocation6 + $0x238] sm:$0xff]
    %v1526 = vld [vmem:[#allocation6 + $0x240] sm:$0xff]
    %v1527 = vld [vmem:[#allocation6 + $0x248] sm:$0xff]
    %v1528 = vld [vmem:[#allocation6 + $0x250] sm:$0xff]
    %v1529 = vld [vmem:[#allocation6 + $0x258] sm:$0xff]
    %v1530 = vld [vmem:[#allocation6 + $0x260] sm:$0xff]
    %v1531 = vld [vmem:[#allocation6 + $0x268] sm:$0xff]
    %v1532 = vld [vmem:[#allocation6 + $0x270] sm:$0xff]
    %v1533 = vld [vmem:[#allocation6 + $0x278] sm:$0xff]
    %v1534 = vld [vmem:[#allocation6 + $0x280] sm:$0xff]
    %v1535 = vld [vmem:[#allocation6 + $0x288] sm:$0xff]
    %v1536 = vld [vmem:[#allocation6 + $0x290] sm:$0xff]
    %v1537 = vld [vmem:[#allocation6 + $0x298] sm:$0xff]
    %v1538 = vld [vmem:[#allocation6 + $0x2a0] sm:$0xff]
    %v1539 = vld [vmem:[#allocation6 + $0x2a8] sm:$0xff]
    %v1540 = vld [vmem:[#allocation6 + $0x2b0] sm:$0xff]
    %v1541 = vld [vmem:[#allocation6 + $0x2b8] sm:$0xff]
    %v1542 = vld [vmem:[#allocation6 + $0x2c0] sm:$0xff]
    %v1543 = vld [vmem:[#allocation6 + $0x2c8] sm:$0xff]
    %v1544 = vld [vmem:[#allocation6 + $0x2d0] sm:$0xff]
    %v1545 = vld [vmem:[#allocation6 + $0x2d8] sm:$0xff]
    %v1546 = vld [vmem:[#allocation6 + $0x2e0] sm:$0xff]
    %v1547 = vld [vmem:[#allocation6 + $0x2e8] sm:$0xff]
    %v1548 = vld [vmem:[#allocation6 + $0x2f0] sm:$0xff]
    %v1549 = vld [vmem:[#allocation6 + $0x2f8] sm:$0xff]
    %v1550 = vld [vmem:[#allocation6 + $0x300] sm:$0xff]
    %v1551 = vld [vmem:[#allocation6 + $0x308] sm:$0xff]
    %v1552 = vld [vmem:[#allocation6 + $0x310] sm:$0xff]
    %v1553 = vld [vmem:[#allocation6 + $0x318] sm:$0xff]
    %v1554 = vld [vmem:[#allocation6 + $0x320] sm:$0xff]
    %v1555 = vld [vmem:[#allocation6 + $0x328] sm:$0xff]
    %v1556 = vld [vmem:[#allocation6 + $0x330] sm:$0xff]
    %v1557 = vld [vmem:[#allocation6 + $0x338] sm:$0xff]
    %v1558 = vld [vmem:[#allocation6 + $0x340] sm:$0xff]
    %v1559 = vld [vmem:[#allocation6 + $0x348] sm:$0xff]
    %v1560 = vld [vmem:[#allocation6 + $0x350] sm:$0xff]
    %v1561 = vld [vmem:[#allocation6 + $0x358] sm:$0xff]
    %v1562 = vld [vmem:[#allocation6 + $0x360] sm:$0xff]
    %v1563 = vld [vmem:[#allocation6 + $0x368] sm:$0xff]
    %v1564 = vld [vmem:[#allocation6 + $0x370] sm:$0xff]
    %v1565 = vld [vmem:[#allocation6 + $0x378] sm:$0xff]
    %v1566 = vld [vmem:[#allocation6 + $0x380] sm:$0xff]
    %v1567 = vld [vmem:[#allocation6 + $0x388] sm:$0xff]
    %v1568 = vld [vmem:[#allocation6 + $0x390] sm:$0xff]
    %v1569 = vld [vmem:[#allocation6 + $0x398] sm:$0xff]
    %v1570 = vld [vmem:[#allocation6 + $0x3a0] sm:$0xff]
    %v1571 = vld [vmem:[#allocation6 + $0x3a8] sm:$0xff]
    %v1572 = vld [vmem:[#allocation6 + $0x3b0] sm:$0xff]
    %v1573 = vld [vmem:[#allocation6 + $0x3b8] sm:$0xff]
    %v1574 = vld [vmem:[#allocation6 + $0x3c0] sm:$0xff]
    %v1575 = vld [vmem:[#allocation6 + $0x3c8] sm:$0xff]
    %v1576 = vld [vmem:[#allocation6 + $0x3d0] sm:$0xff]
    %v1577 = vld [vmem:[#allocation6 + $0x3d8] sm:$0xff]
    %v1578 = vld [vmem:[#allocation6 + $0x3e0] sm:$0xff]
    %v1579 = vld [vmem:[#allocation6 + $0x3e8] sm:$0xff]
    %v1580 = vld [vmem:[#allocation6 + $0x3f0] sm:$0xff]
    %v1581 = vld [vmem:[#allocation6 + $0x3f8] sm:$0xff]
    %v1582 = vpack.c.bf16 0.0, 0.0
    %v1711 = vunpack.c.l.b16 %v1454
    %v1712 = vunpack.c.h.b16 %v1454
    %v1713 = vunpack.c.l.b16 %v1455
    %v1714 = vunpack.c.h.b16 %v1455
    %v1715 = vunpack.c.l.b16 %v1456
    %v1716 = vunpack.c.h.b16 %v1456
    %v1717 = vunpack.c.l.b16 %v1457
    %v1718 = vunpack.c.h.b16 %v1457
    %v1719 = vunpack.c.l.b16 %v1458
    %v1720 = vunpack.c.h.b16 %v1458
    %v1721 = vunpack.c.l.b16 %v1459
    %v1722 = vunpack.c.h.b16 %v1459
    %v1723 = vunpack.c.l.b16 %v1460
    %v1724 = vunpack.c.h.b16 %v1460
    %v1725 = vunpack.c.l.b16 %v1461
    %v1726 = vunpack.c.h.b16 %v1461
    %v1727 = vunpack.c.l.b16 %v1462
    %v1728 = vunpack.c.h.b16 %v1462
    %v1729 = vunpack.c.l.b16 %v1463
    %v1730 = vunpack.c.h.b16 %v1463
    %v1731 = vunpack.c.l.b16 %v1464
    %v1732 = vunpack.c.h.b16 %v1464
    %v1733 = vunpack.c.l.b16 %v1465
    %v1734 = vunpack.c.h.b16 %v1465
    %v1735 = vunpack.c.l.b16 %v1466
    %v1736 = vunpack.c.h.b16 %v1466
    %v1737 = vunpack.c.l.b16 %v1467
    %v1738 = vunpack.c.h.b16 %v1467
    %v1739 = vunpack.c.l.b16 %v1468
    %v1740 = vunpack.c.h.b16 %v1468
    %v1741 = vunpack.c.l.b16 %v1469
    %v1742 = vunpack.c.h.b16 %v1469
    %v1743 = vunpack.c.l.b16 %v1470
    %v1744 = vunpack.c.h.b16 %v1470
    %v1745 = vunpack.c.l.b16 %v1471
    %v1746 = vunpack.c.h.b16 %v1471
    %v1747 = vunpack.c.l.b16 %v1472
    %v1748 = vunpack.c.h.b16 %v1472
    %v1749 = vunpack.c.l.b16 %v1473
    %v1750 = vunpack.c.h.b16 %v1473
    %v1751 = vunpack.c.l.b16 %v1474
    %v1752 = vunpack.c.h.b16 %v1474
    %v1753 = vunpack.c.l.b16 %v1475
    %v1754 = vunpack.c.h.b16 %v1475
    %v1755 = vunpack.c.l.b16 %v1476
    %v1756 = vunpack.c.h.b16 %v1476
    %v1757 = vunpack.c.l.b16 %v1477
    %v1758 = vunpack.c.h.b16 %v1477
    %v1759 = vunpack.c.l.b16 %v1478
    %v1760 = vunpack.c.h.b16 %v1478
    %v1761 = vunpack.c.l.b16 %v1479
    %v1762 = vunpack.c.h.b16 %v1479
    %v1763 = vunpack.c.l.b16 %v1480
    %v1764 = vunpack.c.h.b16 %v1480
    %v1765 = vunpack.c.l.b16 %v1481
    %v1766 = vunpack.c.h.b16 %v1481
    %v1767 = vunpack.c.l.b16 %v1482
    %v1768 = vunpack.c.h.b16 %v1482
    %v1769 = vunpack.c.l.b16 %v1483
    %v1770 = vunpack.c.h.b16 %v1483
    %v1771 = vunpack.c.l.b16 %v1484
    %v1772 = vunpack.c.h.b16 %v1484
    %v1773 = vunpack.c.l.b16 %v1485
    %v1774 = vunpack.c.h.b16 %v1485
    %v1775 = vunpack.c.l.b16 %v1486
    %v1776 = vunpack.c.h.b16 %v1486
    %v1777 = vunpack.c.l.b16 %v1487
    %v1778 = vunpack.c.h.b16 %v1487
    %v1779 = vunpack.c.l.b16 %v1488
    %v1780 = vunpack.c.h.b16 %v1488
    %v1781 = vunpack.c.l.b16 %v1489
    %v1782 = vunpack.c.h.b16 %v1489
    %v1783 = vunpack.c.l.b16 %v1490
    %v1784 = vunpack.c.h.b16 %v1490
    %v1785 = vunpack.c.l.b16 %v1491
    %v1786 = vunpack.c.h.b16 %v1491
    %v1787 = vunpack.c.l.b16 %v1492
    %v1788 = vunpack.c.h.b16 %v1492
    %v1789 = vunpack.c.l.b16 %v1493
    %v1790 = vunpack.c.h.b16 %v1493
    %v1791 = vunpack.c.l.b16 %v1494
    %v1792 = vunpack.c.h.b16 %v1494
    %v1793 = vunpack.c.l.b16 %v1495
    %v1794 = vunpack.c.h.b16 %v1495
    %v1795 = vunpack.c.l.b16 %v1496
    %v1796 = vunpack.c.h.b16 %v1496
    %v1797 = vunpack.c.l.b16 %v1497
    %v1798 = vunpack.c.h.b16 %v1497
    %v1799 = vunpack.c.l.b16 %v1498
    %v1800 = vunpack.c.h.b16 %v1498
    %v1801 = vunpack.c.l.b16 %v1499
    %v1802 = vunpack.c.h.b16 %v1499
    %v1803 = vunpack.c.l.b16 %v1500
    %v1804 = vunpack.c.h.b16 %v1500
    %v1805 = vunpack.c.l.b16 %v1501
    %v1806 = vunpack.c.h.b16 %v1501
    %v1807 = vunpack.c.l.b16 %v1502
    %v1808 = vunpack.c.h.b16 %v1502
    %v1809 = vunpack.c.l.b16 %v1503
    %v1810 = vunpack.c.h.b16 %v1503
    %v1811 = vunpack.c.l.b16 %v1504
    %v1812 = vunpack.c.h.b16 %v1504
    %v1813 = vunpack.c.l.b16 %v1505
    %v1814 = vunpack.c.h.b16 %v1505
    %v1815 = vunpack.c.l.b16 %v1506
    %v1816 = vunpack.c.h.b16 %v1506
    %v1817 = vunpack.c.l.b16 %v1507
    %v1818 = vunpack.c.h.b16 %v1507
    %v1819 = vunpack.c.l.b16 %v1508
    %v1820 = vunpack.c.h.b16 %v1508
    %v1821 = vunpack.c.l.b16 %v1509
    %v1822 = vunpack.c.h.b16 %v1509
    %v1823 = vunpack.c.l.b16 %v1510
    %v1824 = vunpack.c.h.b16 %v1510
    %v1825 = vunpack.c.l.b16 %v1511
    %v1826 = vunpack.c.h.b16 %v1511
    %v1827 = vunpack.c.l.b16 %v1512
    %v1828 = vunpack.c.h.b16 %v1512
    %v1829 = vunpack.c.l.b16 %v1513
    %v1830 = vunpack.c.h.b16 %v1513
    %v1831 = vunpack.c.l.b16 %v1514
    %v1832 = vunpack.c.h.b16 %v1514
    %v1833 = vunpack.c.l.b16 %v1515
    %v1834 = vunpack.c.h.b16 %v1515
    %v1835 = vunpack.c.l.b16 %v1516
    %v1836 = vunpack.c.h.b16 %v1516
    %v1837 = vunpack.c.l.b16 %v1517
    %v1838 = vunpack.c.h.b16 %v1517
    %v1839 = vunpack.c.l.b16 %v1518
    %v1840 = vunpack.c.h.b16 %v1518
    %v1841 = vunpack.c.l.b16 %v1519
    %v1842 = vunpack.c.h.b16 %v1519
    %v1843 = vunpack.c.l.b16 %v1520
    %v1844 = vunpack.c.h.b16 %v1520
    %v1845 = vunpack.c.l.b16 %v1521
    %v1846 = vunpack.c.h.b16 %v1521
    %v1847 = vunpack.c.l.b16 %v1522
    %v1848 = vunpack.c.h.b16 %v1522
    %v1849 = vunpack.c.l.b16 %v1523
    %v1850 = vunpack.c.h.b16 %v1523
    %v1851 = vunpack.c.l.b16 %v1524
    %v1852 = vunpack.c.h.b16 %v1524
    %v1853 = vunpack.c.l.b16 %v1525
    %v1854 = vunpack.c.h.b16 %v1525
    %v1855 = vunpack.c.l.b16 %v1526
    %v1856 = vunpack.c.h.b16 %v1526
    %v1857 = vunpack.c.l.b16 %v1527
    %v1858 = vunpack.c.h.b16 %v1527
    %v1859 = vunpack.c.l.b16 %v1528
    %v1860 = vunpack.c.h.b16 %v1528
    %v1861 = vunpack.c.l.b16 %v1529
    %v1862 = vunpack.c.h.b16 %v1529
    %v1863 = vunpack.c.l.b16 %v1530
    %v1864 = vunpack.c.h.b16 %v1530
    %v1865 = vunpack.c.l.b16 %v1531
    %v1866 = vunpack.c.h.b16 %v1531
    %v1867 = vunpack.c.l.b16 %v1532
    %v1868 = vunpack.c.h.b16 %v1532
    %v1869 = vunpack.c.l.b16 %v1533
    %v1870 = vunpack.c.h.b16 %v1533
    %v1871 = vunpack.c.l.b16 %v1534
    %v1872 = vunpack.c.h.b16 %v1534
    %v1873 = vunpack.c.l.b16 %v1535
    %v1874 = vunpack.c.h.b16 %v1535
    %v1875 = vunpack.c.l.b16 %v1536
    %v1876 = vunpack.c.h.b16 %v1536
    %v1877 = vunpack.c.l.b16 %v1537
    %v1878 = vunpack.c.h.b16 %v1537
    %v1879 = vunpack.c.l.b16 %v1538
    %v1880 = vunpack.c.h.b16 %v1538
    %v1881 = vunpack.c.l.b16 %v1539
    %v1882 = vunpack.c.h.b16 %v1539
    %v1883 = vunpack.c.l.b16 %v1540
    %v1884 = vunpack.c.h.b16 %v1540
    %v1885 = vunpack.c.l.b16 %v1541
    %v1886 = vunpack.c.h.b16 %v1541
    %v1887 = vunpack.c.l.b16 %v1542
    %v1888 = vunpack.c.h.b16 %v1542
    %v1889 = vunpack.c.l.b16 %v1543
    %v1890 = vunpack.c.h.b16 %v1543
    %v1891 = vunpack.c.l.b16 %v1544
    %v1892 = vunpack.c.h.b16 %v1544
    %v1893 = vunpack.c.l.b16 %v1545
    %v1894 = vunpack.c.h.b16 %v1545
    %v1895 = vunpack.c.l.b16 %v1546
    %v1896 = vunpack.c.h.b16 %v1546
    %v1897 = vunpack.c.l.b16 %v1547
    %v1898 = vunpack.c.h.b16 %v1547
    %v1899 = vunpack.c.l.b16 %v1548
    %v1900 = vunpack.c.h.b16 %v1548
    %v1901 = vunpack.c.l.b16 %v1549
    %v1902 = vunpack.c.h.b16 %v1549
    %v1903 = vunpack.c.l.b16 %v1550
    %v1904 = vunpack.c.h.b16 %v1550
    %v1905 = vunpack.c.l.b16 %v1551
    %v1906 = vunpack.c.h.b16 %v1551
    %v1907 = vunpack.c.l.b16 %v1552
    %v1908 = vunpack.c.h.b16 %v1552
    %v1909 = vunpack.c.l.b16 %v1553
    %v1910 = vunpack.c.h.b16 %v1553
    %v1911 = vunpack.c.l.b16 %v1554
    %v1912 = vunpack.c.h.b16 %v1554
    %v1913 = vunpack.c.l.b16 %v1555
    %v1914 = vunpack.c.h.b16 %v1555
    %v1915 = vunpack.c.l.b16 %v1556
    %v1916 = vunpack.c.h.b16 %v1556
    %v1917 = vunpack.c.l.b16 %v1557
    %v1918 = vunpack.c.h.b16 %v1557
    %v1919 = vunpack.c.l.b16 %v1558
    %v1920 = vunpack.c.h.b16 %v1558
    %v1921 = vunpack.c.l.b16 %v1559
    %v1922 = vunpack.c.h.b16 %v1559
    %v1923 = vunpack.c.l.b16 %v1560
    %v1924 = vunpack.c.h.b16 %v1560
    %v1925 = vunpack.c.l.b16 %v1561
    %v1926 = vunpack.c.h.b16 %v1561
    %v1927 = vunpack.c.l.b16 %v1562
    %v1928 = vunpack.c.h.b16 %v1562
    %v1929 = vunpack.c.l.b16 %v1563
    %v1930 = vunpack.c.h.b16 %v1563
    %v1931 = vunpack.c.l.b16 %v1564
    %v1932 = vunpack.c.h.b16 %v1564
    %v1933 = vunpack.c.l.b16 %v1565
    %v1934 = vunpack.c.h.b16 %v1565
    %v1935 = vunpack.c.l.b16 %v1566
    %v1936 = vunpack.c.h.b16 %v1566
    %v1937 = vunpack.c.l.b16 %v1567
    %v1938 = vunpack.c.h.b16 %v1567
    %v1939 = vunpack.c.l.b16 %v1568
    %v1940 = vunpack.c.h.b16 %v1568
    %v1941 = vunpack.c.l.b16 %v1569
    %v1942 = vunpack.c.h.b16 %v1569
    %v1943 = vunpack.c.l.b16 %v1570
    %v1944 = vunpack.c.h.b16 %v1570
    %v1945 = vunpack.c.l.b16 %v1571
    %v1946 = vunpack.c.h.b16 %v1571
    %v1947 = vunpack.c.l.b16 %v1572
    %v1948 = vunpack.c.h.b16 %v1572
    %v1949 = vunpack.c.l.b16 %v1573
    %v1950 = vunpack.c.h.b16 %v1573
    %v1951 = vunpack.c.l.b16 %v1574
    %v1952 = vunpack.c.h.b16 %v1574
    %v1953 = vunpack.c.l.b16 %v1575
    %v1954 = vunpack.c.h.b16 %v1575
    %v1955 = vunpack.c.l.b16 %v1576
    %v1956 = vunpack.c.h.b16 %v1576
    %v1957 = vunpack.c.l.b16 %v1577
    %v1958 = vunpack.c.h.b16 %v1577
    %v1959 = vunpack.c.l.b16 %v1578
    %v1960 = vunpack.c.h.b16 %v1578
    %v1961 = vunpack.c.l.b16 %v1579
    %v1962 = vunpack.c.h.b16 %v1579
    %v1963 = vunpack.c.l.b16 %v1580
    %v1964 = vunpack.c.h.b16 %v1580
    %v1965 = vunpack.c.l.b16 %v1581
    %v1966 = vunpack.c.h.b16 %v1581
    %v1967 = vpack.c.b16 %v1719, %v1711
    %v1968 = vpack.c.b16 %v1720, %v1712
    %v1969 = vpack.c.b16 %v1721, %v1713
    %v1970 = vpack.c.b16 %v1722, %v1714
    %v1971 = vpack.c.b16 %v1723, %v1715
    %v1972 = vpack.c.b16 %v1724, %v1716
    %v1973 = vpack.c.b16 %v1725, %v1717
    %v1974 = vpack.c.b16 %v1726, %v1718
    %v1975 = vpack.c.b16 %v1735, %v1727
    %v1976 = vpack.c.b16 %v1736, %v1728
    %v1977 = vpack.c.b16 %v1737, %v1729
    %v1978 = vpack.c.b16 %v1738, %v1730
    %v1979 = vpack.c.b16 %v1739, %v1731
    %v1980 = vpack.c.b16 %v1740, %v1732
    %v1981 = vpack.c.b16 %v1741, %v1733
    %v1982 = vpack.c.b16 %v1742, %v1734
    %v1983 = vpack.c.b16 %v1751, %v1743
    %v1984 = vpack.c.b16 %v1752, %v1744
    %v1985 = vpack.c.b16 %v1753, %v1745
    %v1986 = vpack.c.b16 %v1754, %v1746
    %v1987 = vpack.c.b16 %v1755, %v1747
    %v1988 = vpack.c.b16 %v1756, %v1748
    %v1989 = vpack.c.b16 %v1757, %v1749
    %v1990 = vpack.c.b16 %v1758, %v1750
    %v1991 = vpack.c.b16 %v1767, %v1759
    %v1992 = vpack.c.b16 %v1768, %v1760
    %v1993 = vpack.c.b16 %v1769, %v1761
    %v1994 = vpack.c.b16 %v1770, %v1762
    %v1995 = vpack.c.b16 %v1771, %v1763
    %v1996 = vpack.c.b16 %v1772, %v1764
    %v1997 = vpack.c.b16 %v1773, %v1765
    %v1998 = vpack.c.b16 %v1774, %v1766
    %v1999 = vpack.c.b16 %v1783, %v1775
    %v2000 = vpack.c.b16 %v1784, %v1776
    %v2001 = vpack.c.b16 %v1785, %v1777
    %v2002 = vpack.c.b16 %v1786, %v1778
    %v2003 = vpack.c.b16 %v1787, %v1779
    %v2004 = vpack.c.b16 %v1788, %v1780
    %v2005 = vpack.c.b16 %v1789, %v1781
    %v2006 = vpack.c.b16 %v1790, %v1782
    %v2007 = vpack.c.b16 %v1799, %v1791
    %v2008 = vpack.c.b16 %v1800, %v1792
    %v2009 = vpack.c.b16 %v1801, %v1793
    %v2010 = vpack.c.b16 %v1802, %v1794
    %v2011 = vpack.c.b16 %v1803, %v1795
    %v2012 = vpack.c.b16 %v1804, %v1796
    %v2013 = vpack.c.b16 %v1805, %v1797
    %v2014 = vpack.c.b16 %v1806, %v1798
    %v2015 = vpack.c.b16 %v1815, %v1807
    %v2016 = vpack.c.b16 %v1816, %v1808
    %v2017 = vpack.c.b16 %v1817, %v1809
    %v2018 = vpack.c.b16 %v1818, %v1810
    %v2019 = vpack.c.b16 %v1819, %v1811
    %v2020 = vpack.c.b16 %v1820, %v1812
    %v2021 = vpack.c.b16 %v1821, %v1813
    %v2022 = vpack.c.b16 %v1822, %v1814
    %v2023 = vpack.c.b16 %v1831, %v1823
    %v2024 = vpack.c.b16 %v1832, %v1824
    %v2025 = vpack.c.b16 %v1833, %v1825
    %v2026 = vpack.c.b16 %v1834, %v1826
    %v2027 = vpack.c.b16 %v1835, %v1827
    %v2028 = vpack.c.b16 %v1836, %v1828
    %v2029 = vpack.c.b16 %v1837, %v1829
    %v2030 = vpack.c.b16 %v1838, %v1830
    %v2031 = vpack.c.b16 %v1847, %v1839
    %v2032 = vpack.c.b16 %v1848, %v1840
    %v2033 = vpack.c.b16 %v1849, %v1841
    %v2034 = vpack.c.b16 %v1850, %v1842
    %v2035 = vpack.c.b16 %v1851, %v1843
    %v2036 = vpack.c.b16 %v1852, %v1844
    %v2037 = vpack.c.b16 %v1853, %v1845
    %v2038 = vpack.c.b16 %v1854, %v1846
    %v2039 = vpack.c.b16 %v1863, %v1855
    %v2040 = vpack.c.b16 %v1864, %v1856
    %v2041 = vpack.c.b16 %v1865, %v1857
    %v2042 = vpack.c.b16 %v1866, %v1858
    %v2043 = vpack.c.b16 %v1867, %v1859
    %v2044 = vpack.c.b16 %v1868, %v1860
    %v2045 = vpack.c.b16 %v1869, %v1861
    %v2046 = vpack.c.b16 %v1870, %v1862
    %v2047 = vpack.c.b16 %v1879, %v1871
    %v2048 = vpack.c.b16 %v1880, %v1872
    %v2049 = vpack.c.b16 %v1881, %v1873
    %v2050 = vpack.c.b16 %v1882, %v1874
    %v2051 = vpack.c.b16 %v1883, %v1875
    %v2052 = vpack.c.b16 %v1884, %v1876
    %v2053 = vpack.c.b16 %v1885, %v1877
    %v2054 = vpack.c.b16 %v1886, %v1878
    %v2055 = vpack.c.b16 %v1895, %v1887
    %v2056 = vpack.c.b16 %v1896, %v1888
    %v2057 = vpack.c.b16 %v1897, %v1889
    %v2058 = vpack.c.b16 %v1898, %v1890
    %v2059 = vpack.c.b16 %v1899, %v1891
    %v2060 = vpack.c.b16 %v1900, %v1892
    %v2061 = vpack.c.b16 %v1901, %v1893
    %v2062 = vpack.c.b16 %v1902, %v1894
    %v2063 = vpack.c.b16 %v1911, %v1903
    %v2064 = vpack.c.b16 %v1912, %v1904
    %v2065 = vpack.c.b16 %v1913, %v1905
    %v2066 = vpack.c.b16 %v1914, %v1906
    %v2067 = vpack.c.b16 %v1915, %v1907
    %v2068 = vpack.c.b16 %v1916, %v1908
    %v2069 = vpack.c.b16 %v1917, %v1909
    %v2070 = vpack.c.b16 %v1918, %v1910
    %v2071 = vpack.c.b16 %v1927, %v1919
    %v2072 = vpack.c.b16 %v1928, %v1920
    %v2073 = vpack.c.b16 %v1929, %v1921
    %v2074 = vpack.c.b16 %v1930, %v1922
    %v2075 = vpack.c.b16 %v1931, %v1923
    %v2076 = vpack.c.b16 %v1932, %v1924
    %v2077 = vpack.c.b16 %v1933, %v1925
    %v2078 = vpack.c.b16 %v1934, %v1926
    %v2079 = vpack.c.b16 %v1943, %v1935
    %v2080 = vpack.c.b16 %v1944, %v1936
    %v2081 = vpack.c.b16 %v1945, %v1937
    %v2082 = vpack.c.b16 %v1946, %v1938
    %v2083 = vpack.c.b16 %v1947, %v1939
    %v2084 = vpack.c.b16 %v1948, %v1940
    %v2085 = vpack.c.b16 %v1949, %v1941
    %v2086 = vpack.c.b16 %v1950, %v1942
    %v2087 = vpack.c.b16 %v1959, %v1951
    %v2088 = vpack.c.b16 %v1960, %v1952
    %v2089 = vpack.c.b16 %v1961, %v1953
    %v2090 = vpack.c.b16 %v1962, %v1954
    %v2091 = vpack.c.b16 %v1963, %v1955
    %v2092 = vpack.c.b16 %v1964, %v1956
    %v2093 = vpack.c.b16 %v1965, %v1957
    %v2094 = vpack.c.b16 %v1966, %v1958
    %2223 = vmatprep.subr.bf16.mxu0 %v2024
    %2224 = vmatpush1.bf16.msra.mxu0 %v2023
    %2225 = vmatprep.subr.bf16.mxu0 %v2016
    %2226 = vmatpush1.bf16.msra.mxu0 %v2015
    %2227 = vmatprep.subr.bf16.mxu0 %v2008
    %2228 = vmatpush1.bf16.msra.mxu0 %v2007
    %2229 = vmatprep.subr.bf16.mxu0 %v2000
    %2230 = vmatpush1.bf16.msra.mxu0 %v1999
    %2231 = vmatprep.subr.bf16.mxu0 %v1992
    %2232 = vmatpush1.bf16.msra.mxu0 %v1991
    %2233 = vmatprep.subr.bf16.mxu0 %v1984
    %2234 = vmatpush1.bf16.msra.mxu0 %v1983
    %2235 = vmatprep.subr.bf16.mxu0 %v1976
    %2236 = vmatpush1.bf16.msra.mxu0 %v1975
    %2237 = vmatprep.subr.bf16.mxu0 %v1968
    %2238 = vmatpush1.bf16.msra.mxu0 %v1967
    %2239 = vmatprep.subr.bf16.mxu0 %v2088
    %2240 = vmatpush2.bf16.msra.mxu0 %v2087
    %2241 = vmatprep.subr.bf16.mxu0 %v2080
    %2242 = vmatpush2.bf16.msra.mxu0 %v2079
    %2243 = vmatprep.subr.bf16.mxu0 %v2072
    %2244 = vmatpush2.bf16.msra.mxu0 %v2071
    %2245 = vmatprep.subr.bf16.mxu0 %v2064
    %2246 = vmatpush2.bf16.msra.mxu0 %v2063
    %2247 = vmatprep.subr.bf16.mxu0 %v2056
    %2248 = vmatpush2.bf16.msra.mxu0 %v2055
    %2249 = vmatprep.subr.bf16.mxu0 %v2048
    %2250 = vmatpush2.bf16.msra.mxu0 %v2047
    %2251 = vmatprep.subr.bf16.mxu0 %v2040
    %2252 = vmatpush2.bf16.msra.mxu0 %v2039
    %2253 = vmatprep.subr.bf16.mxu0 %v2032
    %2254 = vmatpush2.bf16.msra.mxu0 %v2031
    %2255 = vmatprep.mubr.bf16.mxu0 %v1582
    %2256 = vmatmul.mubr.bf16.gmra.mxu0 %v1582
    %v2257 = vpop.f32.mrf.mxu0
    %v2258 = vadd.f32 0.0, %v2257
    %v2259 = vpop.f32.mrf.mxu0
    %v2260 = vadd.f32 0.0, %v2259
    %v2261 = vpop.f32.mrf.mxu0
    %v2262 = vpop.f32.mrf.mxu0
    %2263 = vdwg.mxu0
    %2264 = vmatprep.subr.bf16.mxu0 %v2026
    %2265 = vmatpush1.bf16.msra.mxu0 %v2025
    %2266 = vmatprep.subr.bf16.mxu0 %v2018
    %2267 = vmatpush1.bf16.msra.mxu0 %v2017
    %2268 = vmatprep.subr.bf16.mxu0 %v2010
    %2269 = vmatpush1.bf16.msra.mxu0 %v2009
    %2270 = vmatprep.subr.bf16.mxu0 %v2002
    %2271 = vmatpush1.bf16.msra.mxu0 %v2001
    %2272 = vmatprep.subr.bf16.mxu0 %v1994
    %2273 = vmatpush1.bf16.msra.mxu0 %v1993
    %2274 = vmatprep.subr.bf16.mxu0 %v1986
    %2275 = vmatpush1.bf16.msra.mxu0 %v1985
    %2276 = vmatprep.subr.bf16.mxu0 %v1978
    %2277 = vmatpush1.bf16.msra.mxu0 %v1977
    %2278 = vmatprep.subr.bf16.mxu0 %v1970
    %2279 = vmatpush1.bf16.msra.mxu0 %v1969
    %2280 = vmatprep.subr.bf16.mxu0 %v2090
    %2281 = vmatpush2.bf16.msra.mxu0 %v2089
    %2282 = vmatprep.subr.bf16.mxu0 %v2082
    %2283 = vmatpush2.bf16.msra.mxu0 %v2081
    %2284 = vmatprep.subr.bf16.mxu0 %v2074
    %2285 = vmatpush2.bf16.msra.mxu0 %v2073
    %2286 = vmatprep.subr.bf16.mxu0 %v2066
    %2287 = vmatpush2.bf16.msra.mxu0 %v2065
    %2288 = vmatprep.subr.bf16.mxu0 %v2058
    %2289 = vmatpush2.bf16.msra.mxu0 %v2057
    %2290 = vmatprep.subr.bf16.mxu0 %v2050
    %2291 = vmatpush2.bf16.msra.mxu0 %v2049
    %2292 = vmatprep.subr.bf16.mxu0 %v2042
    %2293 = vmatpush2.bf16.msra.mxu0 %v2041
    %2294 = vmatprep.subr.bf16.mxu0 %v2034
    %2295 = vmatpush2.bf16.msra.mxu0 %v2033
    %2296 = vmatprep.mubr.bf16.mxu0 %v1582
    %2297 = vmatmul.mubr.bf16.gmra.mxu0 %v1582
    %v2298 = vpop.f32.mrf.mxu0
    %v2299 = vadd.f32 0.0, %v2298
    %v2300 = vpop.f32.mrf.mxu0
    %v2301 = vadd.f32 0.0, %v2300
    %v2302 = vpop.f32.mrf.mxu0
    %v2303 = vpop.f32.mrf.mxu0
    %2304 = vdwg.mxu0
    %2305 = vmatprep.subr.bf16.mxu0 %v2028
    %2306 = vmatpush1.bf16.msra.mxu0 %v2027
    %2307 = vmatprep.subr.bf16.mxu0 %v2020
    %2308 = vmatpush1.bf16.msra.mxu0 %v2019
    %2309 = vmatprep.subr.bf16.mxu0 %v2012
    %2310 = vmatpush1.bf16.msra.mxu0 %v2011
    %2311 = vmatprep.subr.bf16.mxu0 %v2004
    %2312 = vmatpush1.bf16.msra.mxu0 %v2003
    %2313 = vmatprep.subr.bf16.mxu0 %v1996
    %2314 = vmatpush1.bf16.msra.mxu0 %v1995
    %2315 = vmatprep.subr.bf16.mxu0 %v1988
    %2316 = vmatpush1.bf16.msra.mxu0 %v1987
    %2317 = vmatprep.subr.bf16.mxu0 %v1980
    %2318 = vmatpush1.bf16.msra.mxu0 %v1979
    %2319 = vmatprep.subr.bf16.mxu0 %v1972
    %2320 = vmatpush1.bf16.msra.mxu0 %v1971
    %2321 = vmatprep.subr.bf16.mxu0 %v2092
    %2322 = vmatpush2.bf16.msra.mxu0 %v2091
    %2323 = vmatprep.subr.bf16.mxu0 %v2084
    %2324 = vmatpush2.bf16.msra.mxu0 %v2083
    %2325 = vmatprep.subr.bf16.mxu0 %v2076
    %2326 = vmatpush2.bf16.msra.mxu0 %v2075
    %2327 = vmatprep.subr.bf16.mxu0 %v2068
    %2328 = vmatpush2.bf16.msra.mxu0 %v2067
    %2329 = vmatprep.subr.bf16.mxu0 %v2060
    %2330 = vmatpush2.bf16.msra.mxu0 %v2059
    %2331 = vmatprep.subr.bf16.mxu0 %v2052
    %2332 = vmatpush2.bf16.msra.mxu0 %v2051
    %2333 = vmatprep.subr.bf16.mxu0 %v2044
    %2334 = vmatpush2.bf16.msra.mxu0 %v2043
    %2335 = vmatprep.subr.bf16.mxu0 %v2036
    %2336 = vmatpush2.bf16.msra.mxu0 %v2035
    %2337 = vmatprep.mubr.bf16.mxu0 %v1582
    %2338 = vmatmul.mubr.bf16.gmra.mxu0 %v1582
    %v2339 = vpop.f32.mrf.mxu0
    %v2340 = vadd.f32 0.0, %v2339
    %v2341 = vpop.f32.mrf.mxu0
    %v2342 = vadd.f32 0.0, %v2341
    %v2343 = vpop.f32.mrf.mxu0
    %v2344 = vpop.f32.mrf.mxu0
    %2345 = vdwg.mxu0
    %2346 = vmatprep.subr.bf16.mxu0 %v2030
    %2347 = vmatpush1.bf16.msra.mxu0 %v2029
    %2348 = vmatprep.subr.bf16.mxu0 %v2022
    %2349 = vmatpush1.bf16.msra.mxu0 %v2021
    %2350 = vmatprep.subr.bf16.mxu0 %v2014
    %2351 = vmatpush1.bf16.msra.mxu0 %v2013
    %2352 = vmatprep.subr.bf16.mxu0 %v2006
    %2353 = vmatpush1.bf16.msra.mxu0 %v2005
    %2354 = vmatprep.subr.bf16.mxu0 %v1998
    %2355 = vmatpush1.bf16.msra.mxu0 %v1997
    %2356 = vmatprep.subr.bf16.mxu0 %v1990
    %2357 = vmatpush1.bf16.msra.mxu0 %v1989
    %2358 = vmatprep.subr.bf16.mxu0 %v1982
    %2359 = vmatpush1.bf16.msra.mxu0 %v1981
    %2360 = vmatprep.subr.bf16.mxu0 %v1974
    %2361 = vmatpush1.bf16.msra.mxu0 %v1973
    %2362 = vmatprep.subr.bf16.mxu0 %v2094
    %2363 = vmatpush2.bf16.msra.mxu0 %v2093
    %2364 = vmatprep.subr.bf16.mxu0 %v2086
    %2365 = vmatpush2.bf16.msra.mxu0 %v2085
    %2366 = vmatprep.subr.bf16.mxu0 %v2078
    %2367 = vmatpush2.bf16.msra.mxu0 %v2077
    %2368 = vmatprep.subr.bf16.mxu0 %v2070
    %2369 = vmatpush2.bf16.msra.mxu0 %v2069
    %2370 = vmatprep.subr.bf16.mxu0 %v2062
    %2371 = vmatpush2.bf16.msra.mxu0 %v2061
    %2372 = vmatprep.subr.bf16.mxu0 %v2054
    %2373 = vmatpush2.bf16.msra.mxu0 %v2053
    %2374 = vmatprep.subr.bf16.mxu0 %v2046
    %2375 = vmatpush2.bf16.msra.mxu0 %v2045
    %2376 = vmatprep.subr.bf16.mxu0 %v2038
    %2377 = vmatpush2.bf16.msra.mxu0 %v2037
    %2378 = vmatprep.mubr.bf16.mxu0 %v1582
    %2379 = vmatmul.mubr.bf16.gmra.mxu0 %v1582
    %v2380 = vpop.f32.mrf.mxu0
    %v2381 = vadd.f32 0.0, %v2380
    %v2382 = vpop.f32.mrf.mxu0
    %v2383 = vadd.f32 0.0, %v2382
    %v2384 = vpop.f32.mrf.mxu0
    %v2385 = vpop.f32.mrf.mxu0
    %2386 = vdwg.mxu0
    %v2387 = vld [vmem:[#allocation5] sm:$0xff]
    %v2388 = vld [vmem:[#allocation5 + $0x8] sm:$0xff]
    %v2389 = vunpack.c.l.bf16 %v2387
    %v2390 = vunpack.c.h.bf16 %v2387
    %v2391 = vunpack.c.l.bf16 %v2388
    %v2392 = vunpack.c.h.bf16 %v2388
    %v2393 = vadd.f32 %v2389, %v2258
    %v2394 = vadd.f32 %v2390, %v2260
    %v2395 = vadd.f32 %v2391, %v2299
    %v2396 = vadd.f32 %v2392, %v2301
    %s2397 = scalar_lea.vmem [#allocation5], 224
    %v2398 = vld [vmem:[%s2397 + $0x10] sm:$0xff]
    %v2399 = vld [vmem:[%s2397 + $0x18] sm:$0xff]
    %v2400 = vunpack.c.l.bf16 %v2398
    %v2401 = vunpack.c.h.bf16 %v2398
    %v2402 = vunpack.c.l.bf16 %v2399
    %v2403 = vunpack.c.h.bf16 %v2399
    %v2404 = vadd.f32 %v2400, %v2340
    %v2405 = vadd.f32 %v2401, %v2342
    %v2406 = vadd.f32 %v2402, %v2381
    %v2407 = vadd.f32 %v2403, %v2383
    %v2408 = vmul.f32 %v2393, 0.5
    %v2409 = vtanh.pop %v2408
    %v2410 = vmul.f32 %v2409, 0.5
    %v2411 = vadd.f32 %v2410, 0.5
    %v2412 = vmul.f32 %v2394, 0.5
    %v2413 = vtanh.pop %v2412
    %v2414 = vmul.f32 %v2413, 0.5
    %v2415 = vadd.f32 %v2414, 0.5
    %v2416 = vtanh.pop %v2395
    %v2417 = vmul.f32 %v2396, 0.5
    %v2418 = vtanh.pop %v2417
    %v2419 = vmul.f32 %v2418, 0.5
    %v2420 = vadd.f32 %v2419, 0.5
    %v2421 = vmul.f32 %v2415, 0.0
    %v2422 = vmul.f32 %v2411, %v2416
    %v2423 = vadd.f32 %v2421, %v2422
    %v2424 = vtanh.pop %v2423
    %v2425 = vmul.f32 %v2420, %v2424
    %v2426 = vmul.f32 %v2404, 0.5
    %v2427 = vtanh.pop %v2426
    %v2428 = vmul.f32 %v2427, 0.5
    %v2429 = vadd.f32 %v2428, 0.5
    %v2430 = vmul.f32 %v2405, 0.5
    %v2431 = vtanh.pop %v2430
    %v2432 = vmul.f32 %v2431, 0.5
    %v2433 = vadd.f32 %v2432, 0.5
    %v2434 = vtanh.pop %v2406
    %v2435 = vmul.f32 %v2407, 0.5
    %v2436 = vtanh.pop %v2435
    %v2437 = vmul.f32 %v2436, 0.5
    %v2438 = vadd.f32 %v2437, 0.5
    %v2439 = vmul.f32 %v2433, 0.0
    %v2440 = vmul.f32 %v2429, %v2434
    %v2441 = vadd.f32 %v2439, %v2440
    %v2442 = vtanh.pop %v2441
    %v2443 = vmul.f32 %v2438, %v2442
    %2444 = vst [vmem:[#allocation3] sm:$0xff] %v2425
    %s2445 = scalar_lea.vmem [#allocation3], 112
    %2446 = vst [vmem:[%s2445 + $0x8] sm:$0xff] %v2443
    %v2447 = vpack.c.bf16 %v2425, %v2425
    %v2448 = vpack.c.bf16 %v2443, %v2443
    %2449 = vmatprep.subr.bf16.mxu0 %v2024
    %2450 = vmatpush1.bf16.msra.mxu0 %v2023
    %2451 = vmatprep.subr.bf16.mxu0 %v2016
    %2452 = vmatpush1.bf16.msra.mxu0 %v2015
    %2453 = vmatprep.subr.bf16.mxu0 %v2008
    %2454 = vmatpush1.bf16.msra.mxu0 %v2007
    %2455 = vmatprep.subr.bf16.mxu0 %v2000
    %2456 = vmatpush1.bf16.msra.mxu0 %v1999
    %2457 = vmatprep.subr.bf16.mxu0 %v1992
    %2458 = vmatpush1.bf16.msra.mxu0 %v1991
    %2459 = vmatprep.subr.bf16.mxu0 %v1984
    %2460 = vmatpush1.bf16.msra.mxu0 %v1983
    %2461 = vmatprep.subr.bf16.mxu0 %v1976
    %2462 = vmatpush1.bf16.msra.mxu0 %v1975
    %2463 = vmatprep.subr.bf16.mxu0 %v1968
    %2464 = vmatpush1.bf16.msra.mxu0 %v1967
    %2465 = vmatprep.subr.bf16.mxu0 %v2088
    %2466 = vmatpush2.bf16.msra.mxu0 %v2087
    %2467 = vmatprep.subr.bf16.mxu0 %v2080
    %2468 = vmatpush2.bf16.msra.mxu0 %v2079
    %2469 = vmatprep.subr.bf16.mxu0 %v2072
    %2470 = vmatpush2.bf16.msra.mxu0 %v2071
    %2471 = vmatprep.subr.bf16.mxu0 %v2064
    %2472 = vmatpush2.bf16.msra.mxu0 %v2063
    %2473 = vmatprep.subr.bf16.mxu0 %v2056
    %2474 = vmatpush2.bf16.msra.mxu0 %v2055
    %2475 = vmatprep.subr.bf16.mxu0 %v2048
    %2476 = vmatpush2.bf16.msra.mxu0 %v2047
    %2477 = vmatprep.subr.bf16.mxu0 %v2040
    %2478 = vmatpush2.bf16.msra.mxu0 %v2039
    %2479 = vmatprep.subr.bf16.mxu0 %v2032
    %2480 = vmatpush2.bf16.msra.mxu0 %v2031
    %2481 = vmatprep.mubr.bf16.mxu0 %v2448
    %2482 = vmatmul.mubr.bf16.gmra.mxu0 %v2447
    %v2483 = vpop.f32.mrf.mxu0
    %v2484 = vadd.f32 0.0, %v2483
    %v2485 = vpop.f32.mrf.mxu0
    %v2486 = vadd.f32 0.0, %v2485
    %v2487 = vpop.f32.mrf.mxu0
    %v2488 = vpop.f32.mrf.mxu0
    %2489 = vdwg.mxu0
    %2490 = vmatprep.subr.bf16.mxu0 %v2026
    %2491 = vmatpush1.bf16.msra.mxu0 %v2025
    %2492 = vmatprep.subr.bf16.mxu0 %v2018
    %2493 = vmatpush1.bf16.msra.mxu0 %v2017
    %2494 = vmatprep.subr.bf16.mxu0 %v2010
    %2495 = vmatpush1.bf16.msra.mxu0 %v2009
    %2496 = vmatprep.subr.bf16.mxu0 %v2002
    %2497 = vmatpush1.bf16.msra.mxu0 %v2001
    %2498 = vmatprep.subr.bf16.mxu0 %v1994
    %2499 = vmatpush1.bf16.msra.mxu0 %v1993
    %2500 = vmatprep.subr.bf16.mxu0 %v1986
    %2501 = vmatpush1.bf16.msra.mxu0 %v1985
    %2502 = vmatprep.subr.bf16.mxu0 %v1978
    %2503 = vmatpush1.bf16.msra.mxu0 %v1977
    %2504 = vmatprep.subr.bf16.mxu0 %v1970
    %2505 = vmatpush1.bf16.msra.mxu0 %v1969
    %2506 = vmatprep.subr.bf16.mxu0 %v2090
    %2507 = vmatpush2.bf16.msra.mxu0 %v2089
    %2508 = vmatprep.subr.bf16.mxu0 %v2082
    %2509 = vmatpush2.bf16.msra.mxu0 %v2081
    %2510 = vmatprep.subr.bf16.mxu0 %v2074
    %2511 = vmatpush2.bf16.msra.mxu0 %v2073
    %2512 = vmatprep.subr.bf16.mxu0 %v2066
    %2513 = vmatpush2.bf16.msra.mxu0 %v2065
    %2514 = vmatprep.subr.bf16.mxu0 %v2058
    %2515 = vmatpush2.bf16.msra.mxu0 %v2057
    %2516 = vmatprep.subr.bf16.mxu0 %v2050
    %2517 = vmatpush2.bf16.msra.mxu0 %v2049
    %2518 = vmatprep.subr.bf16.mxu0 %v2042
    %2519 = vmatpush2.bf16.msra.mxu0 %v2041
    %2520 = vmatprep.subr.bf16.mxu0 %v2034
    %2521 = vmatpush2.bf16.msra.mxu0 %v2033
    %2522 = vmatprep.mubr.bf16.mxu0 %v2448
    %2523 = vmatmul.mubr.bf16.gmra.mxu0 %v2447
    %v2524 = vpop.f32.mrf.mxu0
    %v2525 = vadd.f32 0.0, %v2524
    %v2526 = vpop.f32.mrf.mxu0
    %v2527 = vadd.f32 0.0, %v2526
    %v2528 = vpop.f32.mrf.mxu0
    %v2529 = vpop.f32.mrf.mxu0
    %2530 = vdwg.mxu0
    %2531 = vmatprep.subr.bf16.mxu0 %v2028
    %2532 = vmatpush1.bf16.msra.mxu0 %v2027
    %2533 = vmatprep.subr.bf16.mxu0 %v2020
    %2534 = vmatpush1.bf16.msra.mxu0 %v2019
    %2535 = vmatprep.subr.bf16.mxu0 %v2012
    %2536 = vmatpush1.bf16.msra.mxu0 %v2011
    %2537 = vmatprep.subr.bf16.mxu0 %v2004
    %2538 = vmatpush1.bf16.msra.mxu0 %v2003
    %2539 = vmatprep.subr.bf16.mxu0 %v1996
    %2540 = vmatpush1.bf16.msra.mxu0 %v1995
    %2541 = vmatprep.subr.bf16.mxu0 %v1988
    %2542 = vmatpush1.bf16.msra.mxu0 %v1987
    %2543 = vmatprep.subr.bf16.mxu0 %v1980
    %2544 = vmatpush1.bf16.msra.mxu0 %v1979
    %2545 = vmatprep.subr.bf16.mxu0 %v1972
    %2546 = vmatpush1.bf16.msra.mxu0 %v1971
    %2547 = vmatprep.subr.bf16.mxu0 %v2092
    %2548 = vmatpush2.bf16.msra.mxu0 %v2091
    %2549 = vmatprep.subr.bf16.mxu0 %v2084
    %2550 = vmatpush2.bf16.msra.mxu0 %v2083
    %2551 = vmatprep.subr.bf16.mxu0 %v2076
    %2552 = vmatpush2.bf16.msra.mxu0 %v2075
    %2553 = vmatprep.subr.bf16.mxu0 %v2068
    %2554 = vmatpush2.bf16.msra.mxu0 %v2067
    %2555 = vmatprep.subr.bf16.mxu0 %v2060
    %2556 = vmatpush2.bf16.msra.mxu0 %v2059
    %2557 = vmatprep.subr.bf16.mxu0 %v2052
    %2558 = vmatpush2.bf16.msra.mxu0 %v2051
    %2559 = vmatprep.subr.bf16.mxu0 %v2044
    %2560 = vmatpush2.bf16.msra.mxu0 %v2043
    %2561 = vmatprep.subr.bf16.mxu0 %v2036
    %2562 = vmatpush2.bf16.msra.mxu0 %v2035
    %2563 = vmatprep.mubr.bf16.mxu0 %v2448
    %2564 = vmatmul.mubr.bf16.gmra.mxu0 %v2447
    %v2565 = vpop.f32.mrf.mxu0
    %v2566 = vadd.f32 0.0, %v2565
    %v2567 = vpop.f32.mrf.mxu0
    %v2568 = vadd.f32 0.0, %v2567
    %v2569 = vpop.f32.mrf.mxu0
    %v2570 = vpop.f32.mrf.mxu0
    %2571 = vdwg.mxu0
    %2572 = vmatprep.subr.bf16.mxu0 %v2030
    %2573 = vmatpush1.bf16.msra.mxu0 %v2029
    %2574 = vmatprep.subr.bf16.mxu0 %v2022
    %2575 = vmatpush1.bf16.msra.mxu0 %v2021
    %2576 = vmatprep.subr.bf16.mxu0 %v2014
    %2577 = vmatpush1.bf16.msra.mxu0 %v2013
    %2578 = vmatprep.subr.bf16.mxu0 %v2006
    %2579 = vmatpush1.bf16.msra.mxu0 %v2005
    %2580 = vmatprep.subr.bf16.mxu0 %v1998
    %2581 = vmatpush1.bf16.msra.mxu0 %v1997
    %2582 = vmatprep.subr.bf16.mxu0 %v1990
    %2583 = vmatpush1.bf16.msra.mxu0 %v1989
    %2584 = vmatprep.subr.bf16.mxu0 %v1982
    %2585 = vmatpush1.bf16.msra.mxu0 %v1981
    %2586 = vmatprep.subr.bf16.mxu0 %v1974
    %2587 = vmatpush1.bf16.msra.mxu0 %v1973
    %2588 = vmatprep.subr.bf16.mxu0 %v2094
    %2589 = vmatpush2.bf16.msra.mxu0 %v2093
    %2590 = vmatprep.subr.bf16.mxu0 %v2086
    %2591 = vmatpush2.bf16.msra.mxu0 %v2085
    %2592 = vmatprep.subr.bf16.mxu0 %v2078
    %2593 = vmatpush2.bf16.msra.mxu0 %v2077
    %2594 = vmatprep.subr.bf16.mxu0 %v2070
    %2595 = vmatpush2.bf16.msra.mxu0 %v2069
    %2596 = vmatprep.subr.bf16.mxu0 %v2062
    %2597 = vmatpush2.bf16.msra.mxu0 %v2061
    %2598 = vmatprep.subr.bf16.mxu0 %v2054
    %2599 = vmatpush2.bf16.msra.mxu0 %v2053
    %2600 = vmatprep.subr.bf16.mxu0 %v2046
    %2601 = vmatpush2.bf16.msra.mxu0 %v2045
    %2602 = vmatprep.subr.bf16.mxu0 %v2038
    %2603 = vmatpush2.bf16.msra.mxu0 %v2037
    %2604 = vmatprep.mubr.bf16.mxu0 %v2448
    %2605 = vmatmul.mubr.bf16.gmra.mxu0 %v2447
    %v2606 = vpop.f32.mrf.mxu0
    %v2607 = vadd.f32 0.0, %v2606
    %v2608 = vpop.f32.mrf.mxu0
    %v2609 = vadd.f32 0.0, %v2608
    %v2610 = vpop.f32.mrf.mxu0
    %v2611 = vpop.f32.mrf.mxu0
    %2612 = vdwg.mxu0
    %s2613 = scalar_lea.vmem [#allocation5], 32
    %v2614 = vld [vmem:[%s2613] sm:$0xff]
    %v2615 = vld [vmem:[%s2613 + $0x8] sm:$0xff]
    %v2616 = vunpack.c.l.bf16 %v2614
    %v2617 = vunpack.c.h.bf16 %v2614
    %v2618 = vunpack.c.l.bf16 %v2615
    %v2619 = vunpack.c.h.bf16 %v2615
    %v2620 = vadd.f32 %v2616, %v2484
    %v2621 = vadd.f32 %v2617, %v2486
    %v2622 = vadd.f32 %v2618, %v2525
    %v2623 = vadd.f32 %v2619, %v2527
    %s2624 = scalar_lea.vmem [#allocation5], 192
    %v2625 = vld [vmem:[%s2624 + $0x10] sm:$0xff]
    %v2626 = vld [vmem:[%s2624 + $0x18] sm:$0xff]
    %v2627 = vunpack.c.l.bf16 %v2625
    %v2628 = vunpack.c.h.bf16 %v2625
    %v2629 = vunpack.c.l.bf16 %v2626
    %v2630 = vunpack.c.h.bf16 %v2626
    %v2631 = vadd.f32 %v2627, %v2566
    %v2632 = vadd.f32 %v2628, %v2568
    %v2633 = vadd.f32 %v2629, %v2607
    %v2634 = vadd.f32 %v2630, %v2609
    %v2635 = vmul.f32 %v2620, 0.5
    %v2636 = vtanh.pop %v2635
    %v2637 = vmul.f32 %v2636, 0.5
    %v2638 = vadd.f32 %v2637, 0.5
    %v2639 = vmul.f32 %v2621, 0.5
    %v2640 = vtanh.pop %v2639
    %v2641 = vmul.f32 %v2640, 0.5
    %v2642 = vadd.f32 %v2641, 0.5
    %v2643 = vtanh.pop %v2622
    %v2644 = vmul.f32 %v2623, 0.5
    %v2645 = vtanh.pop %v2644
    %v2646 = vmul.f32 %v2645, 0.5
    %v2647 = vadd.f32 %v2646, 0.5
    %v2648 = vmul.f32 %v2642, %v2423
    %v2649 = vmul.f32 %v2638, %v2643
    %v2650 = vadd.f32 %v2648, %v2649
    %v2651 = vtanh.pop %v2650
    %v2652 = vmul.f32 %v2647, %v2651
    %v2653 = vmul.f32 %v2631, 0.5
    %v2654 = vtanh.pop %v2653
    %v2655 = vmul.f32 %v2654, 0.5
    %v2656 = vadd.f32 %v2655, 0.5
    %v2657 = vmul.f32 %v2632, 0.5
    %v2658 = vtanh.pop %v2657
    %v2659 = vmul.f32 %v2658, 0.5
    %v2660 = vadd.f32 %v2659, 0.5
    %v2661 = vtanh.pop %v2633
    %v2662 = vmul.f32 %v2634, 0.5
    %v2663 = vtanh.pop %v2662
    %v2664 = vmul.f32 %v2663, 0.5
    %v2665 = vadd.f32 %v2664, 0.5
    %v2666 = vmul.f32 %v2660, %v2441
    %v2667 = vmul.f32 %v2656, %v2661
    %v2668 = vadd.f32 %v2666, %v2667
    %v2669 = vtanh.pop %v2668
    %v2670 = vmul.f32 %v2665, %v2669
    %s2671 = scalar_lea.vmem [#allocation3], 16
    %2672 = vst [vmem:[%s2671] sm:$0xff] %v2652
    %s2673 = scalar_lea.vmem [#allocation3], 96
    %2674 = vst [vmem:[%s2673 + $0x8] sm:$0xff] %v2670
    %v2675 = vpack.c.bf16 %v2652, %v2652
    %v2676 = vpack.c.bf16 %v2670, %v2670
    %2677 = vmatprep.subr.bf16.mxu0 %v2024
    %2678 = vmatpush1.bf16.msra.mxu0 %v2023
    %2679 = vmatprep.subr.bf16.mxu0 %v2016
    %2680 = vmatpush1.bf16.msra.mxu0 %v2015
    %2681 = vmatprep.subr.bf16.mxu0 %v2008
    %2682 = vmatpush1.bf16.msra.mxu0 %v2007
    %2683 = vmatprep.subr.bf16.mxu0 %v2000
    %2684 = vmatpush1.bf16.msra.mxu0 %v1999
    %2685 = vmatprep.subr.bf16.mxu0 %v1992
    %2686 = vmatpush1.bf16.msra.mxu0 %v1991
    %2687 = vmatprep.subr.bf16.mxu0 %v1984
    %2688 = vmatpush1.bf16.msra.mxu0 %v1983
    %2689 = vmatprep.subr.bf16.mxu0 %v1976
    %2690 = vmatpush1.bf16.msra.mxu0 %v1975
    %2691 = vmatprep.subr.bf16.mxu0 %v1968
    %2692 = vmatpush1.bf16.msra.mxu0 %v1967
    %2693 = vmatprep.subr.bf16.mxu0 %v2088
    %2694 = vmatpush2.bf16.msra.mxu0 %v2087
    %2695 = vmatprep.subr.bf16.mxu0 %v2080
    %2696 = vmatpush2.bf16.msra.mxu0 %v2079
    %2697 = vmatprep.subr.bf16.mxu0 %v2072
    %2698 = vmatpush2.bf16.msra.mxu0 %v2071
    %2699 = vmatprep.subr.bf16.mxu0 %v2064
    %2700 = vmatpush2.bf16.msra.mxu0 %v2063
    %2701 = vmatprep.subr.bf16.mxu0 %v2056
    %2702 = vmatpush2.bf16.msra.mxu0 %v2055
    %2703 = vmatprep.subr.bf16.mxu0 %v2048
    %2704 = vmatpush2.bf16.msra.mxu0 %v2047
    %2705 = vmatprep.subr.bf16.mxu0 %v2040
    %2706 = vmatpush2.bf16.msra.mxu0 %v2039
    %2707 = vmatprep.subr.bf16.mxu0 %v2032
    %2708 = vmatpush2.bf16.msra.mxu0 %v2031
    %2709 = vmatprep.mubr.bf16.mxu0 %v2676
    %2710 = vmatmul.mubr.bf16.gmra.mxu0 %v2675
    %v2711 = vpop.f32.mrf.mxu0
    %v2712 = vadd.f32 0.0, %v2711
    %v2713 = vpop.f32.mrf.mxu0
    %v2714 = vadd.f32 0.0, %v2713
    %v2715 = vpop.f32.mrf.mxu0
    %v2716 = vpop.f32.mrf.mxu0
    %2717 = vdwg.mxu0
    %2718 = vmatprep.subr.bf16.mxu0 %v2026
    %2719 = vmatpush1.bf16.msra.mxu0 %v2025
    %2720 = vmatprep.subr.bf16.mxu0 %v2018
    %2721 = vmatpush1.bf16.msra.mxu0 %v2017
    %2722 = vmatprep.subr.bf16.mxu0 %v2010
    %2723 = vmatpush1.bf16.msra.mxu0 %v2009
    %2724 = vmatprep.subr.bf16.mxu0 %v2002
    %2725 = vmatpush1.bf16.msra.mxu0 %v2001
    %2726 = vmatprep.subr.bf16.mxu0 %v1994
    %2727 = vmatpush1.bf16.msra.mxu0 %v1993
    %2728 = vmatprep.subr.bf16.mxu0 %v1986
    %2729 = vmatpush1.bf16.msra.mxu0 %v1985
    %2730 = vmatprep.subr.bf16.mxu0 %v1978
    %2731 = vmatpush1.bf16.msra.mxu0 %v1977
    %2732 = vmatprep.subr.bf16.mxu0 %v1970
    %2733 = vmatpush1.bf16.msra.mxu0 %v1969
    %2734 = vmatprep.subr.bf16.mxu0 %v2090
    %2735 = vmatpush2.bf16.msra.mxu0 %v2089
    %2736 = vmatprep.subr.bf16.mxu0 %v2082
    %2737 = vmatpush2.bf16.msra.mxu0 %v2081
    %2738 = vmatprep.subr.bf16.mxu0 %v2074
    %2739 = vmatpush2.bf16.msra.mxu0 %v2073
    %2740 = vmatprep.subr.bf16.mxu0 %v2066
    %2741 = vmatpush2.bf16.msra.mxu0 %v2065
    %2742 = vmatprep.subr.bf16.mxu0 %v2058
    %2743 = vmatpush2.bf16.msra.mxu0 %v2057
    %2744 = vmatprep.subr.bf16.mxu0 %v2050
    %2745 = vmatpush2.bf16.msra.mxu0 %v2049
    %2746 = vmatprep.subr.bf16.mxu0 %v2042
    %2747 = vmatpush2.bf16.msra.mxu0 %v2041
    %2748 = vmatprep.subr.bf16.mxu0 %v2034
    %2749 = vmatpush2.bf16.msra.mxu0 %v2033
    %2750 = vmatprep.mubr.bf16.mxu0 %v2676
    %2751 = vmatmul.mubr.bf16.gmra.mxu0 %v2675
    %v2752 = vpop.f32.mrf.mxu0
    %v2753 = vadd.f32 0.0, %v2752
    %v2754 = vpop.f32.mrf.mxu0
    %v2755 = vadd.f32 0.0, %v2754
    %v2756 = vpop.f32.mrf.mxu0
    %v2757 = vpop.f32.mrf.mxu0
    %2758 = vdwg.mxu0
    %2759 = vmatprep.subr.bf16.mxu0 %v2028
    %2760 = vmatpush1.bf16.msra.mxu0 %v2027
    %2761 = vmatprep.subr.bf16.mxu0 %v2020
    %2762 = vmatpush1.bf16.msra.mxu0 %v2019
    %2763 = vmatprep.subr.bf16.mxu0 %v2012
    %2764 = vmatpush1.bf16.msra.mxu0 %v2011
    %2765 = vmatprep.subr.bf16.mxu0 %v2004
    %2766 = vmatpush1.bf16.msra.mxu0 %v2003
    %2767 = vmatprep.subr.bf16.mxu0 %v1996
    %2768 = vmatpush1.bf16.msra.mxu0 %v1995
    %2769 = vmatprep.subr.bf16.mxu0 %v1988
    %2770 = vmatpush1.bf16.msra.mxu0 %v1987
    %2771 = vmatprep.subr.bf16.mxu0 %v1980
    %2772 = vmatpush1.bf16.msra.mxu0 %v1979
    %2773 = vmatprep.subr.bf16.mxu0 %v1972
    %2774 = vmatpush1.bf16.msra.mxu0 %v1971
    %2775 = vmatprep.subr.bf16.mxu0 %v2092
    %2776 = vmatpush2.bf16.msra.mxu0 %v2091
    %2777 = vmatprep.subr.bf16.mxu0 %v2084
    %2778 = vmatpush2.bf16.msra.mxu0 %v2083
    %2779 = vmatprep.subr.bf16.mxu0 %v2076
    %2780 = vmatpush2.bf16.msra.mxu0 %v2075
    %2781 = vmatprep.subr.bf16.mxu0 %v2068
    %2782 = vmatpush2.bf16.msra.mxu0 %v2067
    %2783 = vmatprep.subr.bf16.mxu0 %v2060
    %2784 = vmatpush2.bf16.msra.mxu0 %v2059
    %2785 = vmatprep.subr.bf16.mxu0 %v2052
    %2786 = vmatpush2.bf16.msra.mxu0 %v2051
    %2787 = vmatprep.subr.bf16.mxu0 %v2044
    %2788 = vmatpush2.bf16.msra.mxu0 %v2043
    %2789 = vmatprep.subr.bf16.mxu0 %v2036
    %2790 = vmatpush2.bf16.msra.mxu0 %v2035
    %2791 = vmatprep.mubr.bf16.mxu0 %v2676
    %2792 = vmatmul.mubr.bf16.gmra.mxu0 %v2675
    %v2793 = vpop.f32.mrf.mxu0
    %v2794 = vadd.f32 0.0, %v2793
    %v2795 = vpop.f32.mrf.mxu0
    %v2796 = vadd.f32 0.0, %v2795
    %v2797 = vpop.f32.mrf.mxu0
    %v2798 = vpop.f32.mrf.mxu0
    %2799 = vdwg.mxu0
    %2800 = vmatprep.subr.bf16.mxu0 %v2030
    %2801 = vmatpush1.bf16.msra.mxu0 %v2029
    %2802 = vmatprep.subr.bf16.mxu0 %v2022
    %2803 = vmatpush1.bf16.msra.mxu0 %v2021
    %2804 = vmatprep.subr.bf16.mxu0 %v2014
    %2805 = vmatpush1.bf16.msra.mxu0 %v2013
    %2806 = vmatprep.subr.bf16.mxu0 %v2006
    %2807 = vmatpush1.bf16.msra.mxu0 %v2005
    %2808 = vmatprep.subr.bf16.mxu0 %v1998
    %2809 = vmatpush1.bf16.msra.mxu0 %v1997
    %2810 = vmatprep.subr.bf16.mxu0 %v1990
    %2811 = vmatpush1.bf16.msra.mxu0 %v1989
    %2812 = vmatprep.subr.bf16.mxu0 %v1982
    %2813 = vmatpush1.bf16.msra.mxu0 %v1981
    %2814 = vmatprep.subr.bf16.mxu0 %v1974
    %2815 = vmatpush1.bf16.msra.mxu0 %v1973
    %2816 = vmatprep.subr.bf16.mxu0 %v2094
    %2817 = vmatpush2.bf16.msra.mxu0 %v2093
    %2818 = vmatprep.subr.bf16.mxu0 %v2086
    %2819 = vmatpush2.bf16.msra.mxu0 %v2085
    %2820 = vmatprep.subr.bf16.mxu0 %v2078
    %2821 = vmatpush2.bf16.msra.mxu0 %v2077
    %2822 = vmatprep.subr.bf16.mxu0 %v2070
    %2823 = vmatpush2.bf16.msra.mxu0 %v2069
    %2824 = vmatprep.subr.bf16.mxu0 %v2062
    %2825 = vmatpush2.bf16.msra.mxu0 %v2061
    %2826 = vmatprep.subr.bf16.mxu0 %v2054
    %2827 = vmatpush2.bf16.msra.mxu0 %v2053
    %2828 = vmatprep.subr.bf16.mxu0 %v2046
    %2829 = vmatpush2.bf16.msra.mxu0 %v2045
    %2830 = vmatprep.subr.bf16.mxu0 %v2038
    %2831 = vmatpush2.bf16.msra.mxu0 %v2037
    %2832 = vmatprep.mubr.bf16.mxu0 %v2676
    %2833 = vmatmul.mubr.bf16.gmra.mxu0 %v2675
    %v2834 = vpop.f32.mrf.mxu0
    %v2835 = vadd.f32 0.0, %v2834
    %v2836 = vpop.f32.mrf.mxu0
    %v2837 = vadd.f32 0.0, %v2836
    %v2838 = vpop.f32.mrf.mxu0
    %v2839 = vpop.f32.mrf.mxu0
    %2840 = vdwg.mxu0
    %s2841 = scalar_lea.vmem [#allocation5], 64
    %v2842 = vld [vmem:[%s2841] sm:$0xff]
    %v2843 = vld [vmem:[%s2841 + $0x8] sm:$0xff]
    %v2844 = vunpack.c.l.bf16 %v2842
    %v2845 = vunpack.c.h.bf16 %v2842
    %v2846 = vunpack.c.l.bf16 %v2843
    %v2847 = vunpack.c.h.bf16 %v2843
    %v2848 = vadd.f32 %v2844, %v2712
    %v2849 = vadd.f32 %v2845, %v2714
    %v2850 = vadd.f32 %v2846, %v2753
    %v2851 = vadd.f32 %v2847, %v2755
    %s2852 = scalar_lea.vmem [#allocation5], 160
    %v2853 = vld [vmem:[%s2852 + $0x10] sm:$0xff]
    %v2854 = vld [vmem:[%s2852 + $0x18] sm:$0xff]
    %v2855 = vunpack.c.l.bf16 %v2853
    %v2856 = vunpack.c.h.bf16 %v2853
    %v2857 = vunpack.c.l.bf16 %v2854
    %v2858 = vunpack.c.h.bf16 %v2854
    %v2859 = vadd.f32 %v2855, %v2794
    %v2860 = vadd.f32 %v2856, %v2796
    %v2861 = vadd.f32 %v2857, %v2835
    %v2862 = vadd.f32 %v2858, %v2837
    %v2863 = vmul.f32 %v2848, 0.5
    %v2864 = vtanh.pop %v2863
    %v2865 = vmul.f32 %v2864, 0.5
    %v2866 = vadd.f32 %v2865, 0.5
    %v2867 = vmul.f32 %v2849, 0.5
    %v2868 = vtanh.pop %v2867
    %v2869 = vmul.f32 %v2868, 0.5
    %v2870 = vadd.f32 %v2869, 0.5
    %v2871 = vtanh.pop %v2850
    %v2872 = vmul.f32 %v2851, 0.5
    %v2873 = vtanh.pop %v2872
    %v2874 = vmul.f32 %v2873, 0.5
    %v2875 = vadd.f32 %v2874, 0.5
    %v2876 = vmul.f32 %v2870, %v2650
    %v2877 = vmul.f32 %v2866, %v2871
    %v2878 = vadd.f32 %v2876, %v2877
    %v2879 = vtanh.pop %v2878
    %v2880 = vmul.f32 %v2875, %v2879
    %v2881 = vmul.f32 %v2859, 0.5
    %v2882 = vtanh.pop %v2881
    %v2883 = vmul.f32 %v2882, 0.5
    %v2884 = vadd.f32 %v2883, 0.5
    %v2885 = vmul.f32 %v2860, 0.5
    %v2886 = vtanh.pop %v2885
    %v2887 = vmul.f32 %v2886, 0.5
    %v2888 = vadd.f32 %v2887, 0.5
    %v2889 = vtanh.pop %v2861
    %v2890 = vmul.f32 %v2862, 0.5
    %v2891 = vtanh.pop %v2890
    %v2892 = vmul.f32 %v2891, 0.5
    %v2893 = vadd.f32 %v2892, 0.5
    %v2894 = vmul.f32 %v2888, %v2668
    %v2895 = vmul.f32 %v2884, %v2889
    %v2896 = vadd.f32 %v2894, %v2895
    %v2897 = vtanh.pop %v2896
    %v2898 = vmul.f32 %v2893, %v2897
    %s2899 = scalar_lea.vmem [#allocation3], 32
    %2900 = vst [vmem:[%s2899] sm:$0xff] %v2880
    %s2901 = scalar_lea.vmem [#allocation3], 80
    %2902 = vst [vmem:[%s2901 + $0x8] sm:$0xff] %v2898
    %v2903 = vpack.c.bf16 %v2880, %v2880
    %v2904 = vpack.c.bf16 %v2898, %v2898
    %2905 = vmatprep.subr.bf16.mxu0 %v2024
    %2906 = vmatpush1.bf16.msra.mxu0 %v2023
    %2907 = vmatprep.subr.bf16.mxu0 %v2016
    %2908 = vmatpush1.bf16.msra.mxu0 %v2015
    %2909 = vmatprep.subr.bf16.mxu0 %v2008
    %2910 = vmatpush1.bf16.msra.mxu0 %v2007
    %2911 = vmatprep.subr.bf16.mxu0 %v2000
    %2912 = vmatpush1.bf16.msra.mxu0 %v1999
    %2913 = vmatprep.subr.bf16.mxu0 %v1992
    %2914 = vmatpush1.bf16.msra.mxu0 %v1991
    %2915 = vmatprep.subr.bf16.mxu0 %v1984
    %2916 = vmatpush1.bf16.msra.mxu0 %v1983
    %2917 = vmatprep.subr.bf16.mxu0 %v1976
    %2918 = vmatpush1.bf16.msra.mxu0 %v1975
    %2919 = vmatprep.subr.bf16.mxu0 %v1968
    %2920 = vmatpush1.bf16.msra.mxu0 %v1967
    %2921 = vmatprep.subr.bf16.mxu0 %v2088
    %2922 = vmatpush2.bf16.msra.mxu0 %v2087
    %2923 = vmatprep.subr.bf16.mxu0 %v2080
    %2924 = vmatpush2.bf16.msra.mxu0 %v2079
    %2925 = vmatprep.subr.bf16.mxu0 %v2072
    %2926 = vmatpush2.bf16.msra.mxu0 %v2071
    %2927 = vmatprep.subr.bf16.mxu0 %v2064
    %2928 = vmatpush2.bf16.msra.mxu0 %v2063
    %2929 = vmatprep.subr.bf16.mxu0 %v2056
    %2930 = vmatpush2.bf16.msra.mxu0 %v2055
    %2931 = vmatprep.subr.bf16.mxu0 %v2048
    %2932 = vmatpush2.bf16.msra.mxu0 %v2047
    %2933 = vmatprep.subr.bf16.mxu0 %v2040
    %2934 = vmatpush2.bf16.msra.mxu0 %v2039
    %2935 = vmatprep.subr.bf16.mxu0 %v2032
    %2936 = vmatpush2.bf16.msra.mxu0 %v2031
    %2937 = vmatprep.mubr.bf16.mxu0 %v2904
    %2938 = vmatmul.mubr.bf16.gmra.mxu0 %v2903
    %v2939 = vpop.f32.mrf.mxu0
    %v2940 = vadd.f32 0.0, %v2939
    %v2941 = vpop.f32.mrf.mxu0
    %v2942 = vadd.f32 0.0, %v2941
    %v2943 = vpop.f32.mrf.mxu0
    %v2944 = vpop.f32.mrf.mxu0
    %2945 = vdwg.mxu0
    %2946 = vmatprep.subr.bf16.mxu0 %v2026
    %2947 = vmatpush1.bf16.msra.mxu0 %v2025
    %2948 = vmatprep.subr.bf16.mxu0 %v2018
    %2949 = vmatpush1.bf16.msra.mxu0 %v2017
    %2950 = vmatprep.subr.bf16.mxu0 %v2010
    %2951 = vmatpush1.bf16.msra.mxu0 %v2009
    %2952 = vmatprep.subr.bf16.mxu0 %v2002
    %2953 = vmatpush1.bf16.msra.mxu0 %v2001
    %2954 = vmatprep.subr.bf16.mxu0 %v1994
    %2955 = vmatpush1.bf16.msra.mxu0 %v1993
    %2956 = vmatprep.subr.bf16.mxu0 %v1986
    %2957 = vmatpush1.bf16.msra.mxu0 %v1985
    %2958 = vmatprep.subr.bf16.mxu0 %v1978
    %2959 = vmatpush1.bf16.msra.mxu0 %v1977
    %2960 = vmatprep.subr.bf16.mxu0 %v1970
    %2961 = vmatpush1.bf16.msra.mxu0 %v1969
    %2962 = vmatprep.subr.bf16.mxu0 %v2090
    %2963 = vmatpush2.bf16.msra.mxu0 %v2089
    %2964 = vmatprep.subr.bf16.mxu0 %v2082
    %2965 = vmatpush2.bf16.msra.mxu0 %v2081
    %2966 = vmatprep.subr.bf16.mxu0 %v2074
    %2967 = vmatpush2.bf16.msra.mxu0 %v2073
    %2968 = vmatprep.subr.bf16.mxu0 %v2066
    %2969 = vmatpush2.bf16.msra.mxu0 %v2065
    %2970 = vmatprep.subr.bf16.mxu0 %v2058
    %2971 = vmatpush2.bf16.msra.mxu0 %v2057
    %2972 = vmatprep.subr.bf16.mxu0 %v2050
    %2973 = vmatpush2.bf16.msra.mxu0 %v2049
    %2974 = vmatprep.subr.bf16.mxu0 %v2042
    %2975 = vmatpush2.bf16.msra.mxu0 %v2041
    %2976 = vmatprep.subr.bf16.mxu0 %v2034
    %2977 = vmatpush2.bf16.msra.mxu0 %v2033
    %2978 = vmatprep.mubr.bf16.mxu0 %v2904
    %2979 = vmatmul.mubr.bf16.gmra.mxu0 %v2903
    %v2980 = vpop.f32.mrf.mxu0
    %v2981 = vadd.f32 0.0, %v2980
    %v2982 = vpop.f32.mrf.mxu0
    %v2983 = vadd.f32 0.0, %v2982
    %v2984 = vpop.f32.mrf.mxu0
    %v2985 = vpop.f32.mrf.mxu0
    %2986 = vdwg.mxu0
    %2987 = vmatprep.subr.bf16.mxu0 %v2028
    %2988 = vmatpush1.bf16.msra.mxu0 %v2027
    %2989 = vmatprep.subr.bf16.mxu0 %v2020
    %2990 = vmatpush1.bf16.msra.mxu0 %v2019
    %2991 = vmatprep.subr.bf16.mxu0 %v2012
    %2992 = vmatpush1.bf16.msra.mxu0 %v2011
    %2993 = vmatprep.subr.bf16.mxu0 %v2004
    %2994 = vmatpush1.bf16.msra.mxu0 %v2003
    %2995 = vmatprep.subr.bf16.mxu0 %v1996
    %2996 = vmatpush1.bf16.msra.mxu0 %v1995
    %2997 = vmatprep.subr.bf16.mxu0 %v1988
    %2998 = vmatpush1.bf16.msra.mxu0 %v1987
    %2999 = vmatprep.subr.bf16.mxu0 %v1980
    %3000 = vmatpush1.bf16.msra.mxu0 %v1979
    %3001 = vmatprep.subr.bf16.mxu0 %v1972
    %3002 = vmatpush1.bf16.msra.mxu0 %v1971
    %3003 = vmatprep.subr.bf16.mxu0 %v2092
    %3004 = vmatpush2.bf16.msra.mxu0 %v2091
    %3005 = vmatprep.subr.bf16.mxu0 %v2084
    %3006 = vmatpush2.bf16.msra.mxu0 %v2083
    %3007 = vmatprep.subr.bf16.mxu0 %v2076
    %3008 = vmatpush2.bf16.msra.mxu0 %v2075
    %3009 = vmatprep.subr.bf16.mxu0 %v2068
    %3010 = vmatpush2.bf16.msra.mxu0 %v2067
    %3011 = vmatprep.subr.bf16.mxu0 %v2060
    %3012 = vmatpush2.bf16.msra.mxu0 %v2059
    %3013 = vmatprep.subr.bf16.mxu0 %v2052
    %3014 = vmatpush2.bf16.msra.mxu0 %v2051
    %3015 = vmatprep.subr.bf16.mxu0 %v2044
    %3016 = vmatpush2.bf16.msra.mxu0 %v2043
    %3017 = vmatprep.subr.bf16.mxu0 %v2036
    %3018 = vmatpush2.bf16.msra.mxu0 %v2035
    %3019 = vmatprep.mubr.bf16.mxu0 %v2904
    %3020 = vmatmul.mubr.bf16.gmra.mxu0 %v2903
    %v3021 = vpop.f32.mrf.mxu0
    %v3022 = vadd.f32 0.0, %v3021
    %v3023 = vpop.f32.mrf.mxu0
    %v3024 = vadd.f32 0.0, %v3023
    %v3025 = vpop.f32.mrf.mxu0
    %v3026 = vpop.f32.mrf.mxu0
    %3027 = vdwg.mxu0
    %3028 = vmatprep.subr.bf16.mxu0 %v2030
    %3029 = vmatpush1.bf16.msra.mxu0 %v2029
    %3030 = vmatprep.subr.bf16.mxu0 %v2022
    %3031 = vmatpush1.bf16.msra.mxu0 %v2021
    %3032 = vmatprep.subr.bf16.mxu0 %v2014
    %3033 = vmatpush1.bf16.msra.mxu0 %v2013
    %3034 = vmatprep.subr.bf16.mxu0 %v2006
    %3035 = vmatpush1.bf16.msra.mxu0 %v2005
    %3036 = vmatprep.subr.bf16.mxu0 %v1998
    %3037 = vmatpush1.bf16.msra.mxu0 %v1997
    %3038 = vmatprep.subr.bf16.mxu0 %v1990
    %3039 = vmatpush1.bf16.msra.mxu0 %v1989
    %3040 = vmatprep.subr.bf16.mxu0 %v1982
    %3041 = vmatpush1.bf16.msra.mxu0 %v1981
    %3042 = vmatprep.subr.bf16.mxu0 %v1974
    %3043 = vmatpush1.bf16.msra.mxu0 %v1973
    %3044 = vmatprep.subr.bf16.mxu0 %v2094
    %3045 = vmatpush2.bf16.msra.mxu0 %v2093
    %3046 = vmatprep.subr.bf16.mxu0 %v2086
    %3047 = vmatpush2.bf16.msra.mxu0 %v2085
    %3048 = vmatprep.subr.bf16.mxu0 %v2078
    %3049 = vmatpush2.bf16.msra.mxu0 %v2077
    %3050 = vmatprep.subr.bf16.mxu0 %v2070
    %3051 = vmatpush2.bf16.msra.mxu0 %v2069
    %3052 = vmatprep.subr.bf16.mxu0 %v2062
    %3053 = vmatpush2.bf16.msra.mxu0 %v2061
    %3054 = vmatprep.subr.bf16.mxu0 %v2054
    %3055 = vmatpush2.bf16.msra.mxu0 %v2053
    %3056 = vmatprep.subr.bf16.mxu0 %v2046
    %3057 = vmatpush2.bf16.msra.mxu0 %v2045
    %3058 = vmatprep.subr.bf16.mxu0 %v2038
    %3059 = vmatpush2.bf16.msra.mxu0 %v2037
    %3060 = vmatprep.mubr.bf16.mxu0 %v2904
    %3061 = vmatmul.mubr.bf16.gmra.mxu0 %v2903
    %v3062 = vpop.f32.mrf.mxu0
    %v3063 = vadd.f32 0.0, %v3062
    %v3064 = vpop.f32.mrf.mxu0
    %v3065 = vadd.f32 0.0, %v3064
    %v3066 = vpop.f32.mrf.mxu0
    %v3067 = vpop.f32.mrf.mxu0
    %3068 = vdwg.mxu0
    %s3069 = scalar_lea.vmem [#allocation5], 96
    %v3070 = vld [vmem:[%s3069] sm:$0xff]
    %v3071 = vld [vmem:[%s3069 + $0x8] sm:$0xff]
    %v3072 = vunpack.c.l.bf16 %v3070
    %v3073 = vunpack.c.h.bf16 %v3070
    %v3074 = vunpack.c.l.bf16 %v3071
    %v3075 = vunpack.c.h.bf16 %v3071
    %v3076 = vadd.f32 %v3072, %v2940
    %v3077 = vadd.f32 %v3073, %v2942
    %v3078 = vadd.f32 %v3074, %v2981
    %v3079 = vadd.f32 %v3075, %v2983
    %s3080 = scalar_lea.vmem [#allocation5], 128
    %v3081 = vld [vmem:[%s3080 + $0x10] sm:$0xff]
    %v3082 = vld [vmem:[%s3080 + $0x18] sm:$0xff]
    %v3083 = vunpack.c.l.bf16 %v3081
    %v3084 = vunpack.c.h.bf16 %v3081
    %v3085 = vunpack.c.l.bf16 %v3082
    %v3086 = vunpack.c.h.bf16 %v3082
    %v3087 = vadd.f32 %v3083, %v3022
    %v3088 = vadd.f32 %v3084, %v3024
    %v3089 = vadd.f32 %v3085, %v3063
    %v3090 = vadd.f32 %v3086, %v3065
    %v3091 = vmul.f32 %v3076, 0.5
    %v3092 = vtanh.pop %v3091
    %v3093 = vmul.f32 %v3092, 0.5
    %v3094 = vadd.f32 %v3093, 0.5
    %v3095 = vmul.f32 %v3077, 0.5
    %v3096 = vtanh.pop %v3095
    %v3097 = vmul.f32 %v3096, 0.5
    %v3098 = vadd.f32 %v3097, 0.5
    %v3099 = vtanh.pop %v3078
    %v3100 = vmul.f32 %v3079, 0.5
    %v3101 = vtanh.pop %v3100
    %v3102 = vmul.f32 %v3101, 0.5
    %v3103 = vadd.f32 %v3102, 0.5
    %v3104 = vmul.f32 %v3098, %v2878
    %v3105 = vmul.f32 %v3094, %v3099
    %v3106 = vadd.f32 %v3104, %v3105
    %v3107 = vtanh.pop %v3106
    %v3108 = vmul.f32 %v3103, %v3107
    %v3109 = vmul.f32 %v3087, 0.5
    %v3110 = vtanh.pop %v3109
    %v3111 = vmul.f32 %v3110, 0.5
    %v3112 = vadd.f32 %v3111, 0.5
    %v3113 = vmul.f32 %v3088, 0.5
    %v3114 = vtanh.pop %v3113
    %v3115 = vmul.f32 %v3114, 0.5
    %v3116 = vadd.f32 %v3115, 0.5
    %v3117 = vtanh.pop %v3089
    %v3118 = vmul.f32 %v3090, 0.5
    %v3119 = vtanh.pop %v3118
    %v3120 = vmul.f32 %v3119, 0.5
    %v3121 = vadd.f32 %v3120, 0.5
    %v3122 = vmul.f32 %v3116, %v2896
    %v3123 = vmul.f32 %v3112, %v3117
    %v3124 = vadd.f32 %v3122, %v3123
    %v3125 = vtanh.pop %v3124
    %v3126 = vmul.f32 %v3121, %v3125
    %s3127 = scalar_lea.vmem [#allocation3], 48
    %3128 = vst [vmem:[%s3127] sm:$0xff] %v3108
    %s3129 = scalar_lea.vmem [#allocation3], 64
    %3130 = vst [vmem:[%s3129 + $0x8] sm:$0xff] %v3126
    %v3131 = vpack.c.bf16 %v3108, %v3108
    %v3132 = vpack.c.bf16 %v3126, %v3126
    %3133 = vmatprep.subr.bf16.mxu0 %v2024
    %3134 = vmatpush1.bf16.msra.mxu0 %v2023
    %3135 = vmatprep.subr.bf16.mxu0 %v2016
    %3136 = vmatpush1.bf16.msra.mxu0 %v2015
    %3137 = vmatprep.subr.bf16.mxu0 %v2008
    %3138 = vmatpush1.bf16.msra.mxu0 %v2007
    %3139 = vmatprep.subr.bf16.mxu0 %v2000
    %3140 = vmatpush1.bf16.msra.mxu0 %v1999
    %3141 = vmatprep.subr.bf16.mxu0 %v1992
    %3142 = vmatpush1.bf16.msra.mxu0 %v1991
    %3143 = vmatprep.subr.bf16.mxu0 %v1984
    %3144 = vmatpush1.bf16.msra.mxu0 %v1983
    %3145 = vmatprep.subr.bf16.mxu0 %v1976
    %3146 = vmatpush1.bf16.msra.mxu0 %v1975
    %3147 = vmatprep.subr.bf16.mxu0 %v1968
    %3148 = vmatpush1.bf16.msra.mxu0 %v1967
    %3149 = vmatprep.subr.bf16.mxu0 %v2088
    %3150 = vmatpush2.bf16.msra.mxu0 %v2087
    %3151 = vmatprep.subr.bf16.mxu0 %v2080
    %3152 = vmatpush2.bf16.msra.mxu0 %v2079
    %3153 = vmatprep.subr.bf16.mxu0 %v2072
    %3154 = vmatpush2.bf16.msra.mxu0 %v2071
    %3155 = vmatprep.subr.bf16.mxu0 %v2064
    %3156 = vmatpush2.bf16.msra.mxu0 %v2063
    %3157 = vmatprep.subr.bf16.mxu0 %v2056
    %3158 = vmatpush2.bf16.msra.mxu0 %v2055
    %3159 = vmatprep.subr.bf16.mxu0 %v2048
    %3160 = vmatpush2.bf16.msra.mxu0 %v2047
    %3161 = vmatprep.subr.bf16.mxu0 %v2040
    %3162 = vmatpush2.bf16.msra.mxu0 %v2039
    %3163 = vmatprep.subr.bf16.mxu0 %v2032
    %3164 = vmatpush2.bf16.msra.mxu0 %v2031
    %3165 = vmatprep.mubr.bf16.mxu0 %v3132
    %3166 = vmatmul.mubr.bf16.gmra.mxu0 %v3131
    %v3167 = vpop.f32.mrf.mxu0
    %v3168 = vadd.f32 0.0, %v3167
    %v3169 = vpop.f32.mrf.mxu0
    %v3170 = vadd.f32 0.0, %v3169
    %v3171 = vpop.f32.mrf.mxu0
    %v3172 = vpop.f32.mrf.mxu0
    %3173 = vdwg.mxu0
    %3174 = vmatprep.subr.bf16.mxu0 %v2026
    %3175 = vmatpush1.bf16.msra.mxu0 %v2025
    %3176 = vmatprep.subr.bf16.mxu0 %v2018
    %3177 = vmatpush1.bf16.msra.mxu0 %v2017
    %3178 = vmatprep.subr.bf16.mxu0 %v2010
    %3179 = vmatpush1.bf16.msra.mxu0 %v2009
    %3180 = vmatprep.subr.bf16.mxu0 %v2002
    %3181 = vmatpush1.bf16.msra.mxu0 %v2001
    %3182 = vmatprep.subr.bf16.mxu0 %v1994
    %3183 = vmatpush1.bf16.msra.mxu0 %v1993
    %3184 = vmatprep.subr.bf16.mxu0 %v1986
    %3185 = vmatpush1.bf16.msra.mxu0 %v1985
    %3186 = vmatprep.subr.bf16.mxu0 %v1978
    %3187 = vmatpush1.bf16.msra.mxu0 %v1977
    %3188 = vmatprep.subr.bf16.mxu0 %v1970
    %3189 = vmatpush1.bf16.msra.mxu0 %v1969
    %3190 = vmatprep.subr.bf16.mxu0 %v2090
    %3191 = vmatpush2.bf16.msra.mxu0 %v2089
    %3192 = vmatprep.subr.bf16.mxu0 %v2082
    %3193 = vmatpush2.bf16.msra.mxu0 %v2081
    %3194 = vmatprep.subr.bf16.mxu0 %v2074
    %3195 = vmatpush2.bf16.msra.mxu0 %v2073
    %3196 = vmatprep.subr.bf16.mxu0 %v2066
    %3197 = vmatpush2.bf16.msra.mxu0 %v2065
    %3198 = vmatprep.subr.bf16.mxu0 %v2058
    %3199 = vmatpush2.bf16.msra.mxu0 %v2057
    %3200 = vmatprep.subr.bf16.mxu0 %v2050
    %3201 = vmatpush2.bf16.msra.mxu0 %v2049
    %3202 = vmatprep.subr.bf16.mxu0 %v2042
    %3203 = vmatpush2.bf16.msra.mxu0 %v2041
    %3204 = vmatprep.subr.bf16.mxu0 %v2034
    %3205 = vmatpush2.bf16.msra.mxu0 %v2033
    %3206 = vmatprep.mubr.bf16.mxu0 %v3132
    %3207 = vmatmul.mubr.bf16.gmra.mxu0 %v3131
    %v3208 = vpop.f32.mrf.mxu0
    %v3209 = vadd.f32 0.0, %v3208
    %v3210 = vpop.f32.mrf.mxu0
    %v3211 = vadd.f32 0.0, %v3210
    %v3212 = vpop.f32.mrf.mxu0
    %v3213 = vpop.f32.mrf.mxu0
    %3214 = vdwg.mxu0
    %3215 = vmatprep.subr.bf16.mxu0 %v2028
    %3216 = vmatpush1.bf16.msra.mxu0 %v2027
    %3217 = vmatprep.subr.bf16.mxu0 %v2020
    %3218 = vmatpush1.bf16.msra.mxu0 %v2019
    %3219 = vmatprep.subr.bf16.mxu0 %v2012
    %3220 = vmatpush1.bf16.msra.mxu0 %v2011
    %3221 = vmatprep.subr.bf16.mxu0 %v2004
    %3222 = vmatpush1.bf16.msra.mxu0 %v2003
    %3223 = vmatprep.subr.bf16.mxu0 %v1996
    %3224 = vmatpush1.bf16.msra.mxu0 %v1995
    %3225 = vmatprep.subr.bf16.mxu0 %v1988
    %3226 = vmatpush1.bf16.msra.mxu0 %v1987
    %3227 = vmatprep.subr.bf16.mxu0 %v1980
    %3228 = vmatpush1.bf16.msra.mxu0 %v1979
    %3229 = vmatprep.subr.bf16.mxu0 %v1972
    %3230 = vmatpush1.bf16.msra.mxu0 %v1971
    %3231 = vmatprep.subr.bf16.mxu0 %v2092
    %3232 = vmatpush2.bf16.msra.mxu0 %v2091
    %3233 = vmatprep.subr.bf16.mxu0 %v2084
    %3234 = vmatpush2.bf16.msra.mxu0 %v2083
    %3235 = vmatprep.subr.bf16.mxu0 %v2076
    %3236 = vmatpush2.bf16.msra.mxu0 %v2075
    %3237 = vmatprep.subr.bf16.mxu0 %v2068
    %3238 = vmatpush2.bf16.msra.mxu0 %v2067
    %3239 = vmatprep.subr.bf16.mxu0 %v2060
    %3240 = vmatpush2.bf16.msra.mxu0 %v2059
    %3241 = vmatprep.subr.bf16.mxu0 %v2052
    %3242 = vmatpush2.bf16.msra.mxu0 %v2051
    %3243 = vmatprep.subr.bf16.mxu0 %v2044
    %3244 = vmatpush2.bf16.msra.mxu0 %v2043
    %3245 = vmatprep.subr.bf16.mxu0 %v2036
    %3246 = vmatpush2.bf16.msra.mxu0 %v2035
    %3247 = vmatprep.mubr.bf16.mxu0 %v3132
    %3248 = vmatmul.mubr.bf16.gmra.mxu0 %v3131
    %v3249 = vpop.f32.mrf.mxu0
    %v3250 = vadd.f32 0.0, %v3249
    %v3251 = vpop.f32.mrf.mxu0
    %v3252 = vadd.f32 0.0, %v3251
    %v3253 = vpop.f32.mrf.mxu0
    %v3254 = vpop.f32.mrf.mxu0
    %3255 = vdwg.mxu0
    %3256 = vmatprep.subr.bf16.mxu0 %v2030
    %3257 = vmatpush1.bf16.msra.mxu0 %v2029
    %3258 = vmatprep.subr.bf16.mxu0 %v2022
    %3259 = vmatpush1.bf16.msra.mxu0 %v2021
    %3260 = vmatprep.subr.bf16.mxu0 %v2014
    %3261 = vmatpush1.bf16.msra.mxu0 %v2013
    %3262 = vmatprep.subr.bf16.mxu0 %v2006
    %3263 = vmatpush1.bf16.msra.mxu0 %v2005
    %3264 = vmatprep.subr.bf16.mxu0 %v1998
    %3265 = vmatpush1.bf16.msra.mxu0 %v1997
    %3266 = vmatprep.subr.bf16.mxu0 %v1990
    %3267 = vmatpush1.bf16.msra.mxu0 %v1989
    %3268 = vmatprep.subr.bf16.mxu0 %v1982
    %3269 = vmatpush1.bf16.msra.mxu0 %v1981
    %3270 = vmatprep.subr.bf16.mxu0 %v1974
    %3271 = vmatpush1.bf16.msra.mxu0 %v1973
    %3272 = vmatprep.subr.bf16.mxu0 %v2094
    %3273 = vmatpush2.bf16.msra.mxu0 %v2093
    %3274 = vmatprep.subr.bf16.mxu0 %v2086
    %3275 = vmatpush2.bf16.msra.mxu0 %v2085
    %3276 = vmatprep.subr.bf16.mxu0 %v2078
    %3277 = vmatpush2.bf16.msra.mxu0 %v2077
    %3278 = vmatprep.subr.bf16.mxu0 %v2070
    %3279 = vmatpush2.bf16.msra.mxu0 %v2069
    %3280 = vmatprep.subr.bf16.mxu0 %v2062
    %3281 = vmatpush2.bf16.msra.mxu0 %v2061
    %3282 = vmatprep.subr.bf16.mxu0 %v2054
    %3283 = vmatpush2.bf16.msra.mxu0 %v2053
    %3284 = vmatprep.subr.bf16.mxu0 %v2046
    %3285 = vmatpush2.bf16.msra.mxu0 %v2045
    %3286 = vmatprep.subr.bf16.mxu0 %v2038
    %3287 = vmatpush2.bf16.msra.mxu0 %v2037
    %3288 = vmatprep.mubr.bf16.mxu0 %v3132
    %3289 = vmatmul.mubr.bf16.gmra.mxu0 %v3131
    %v3290 = vpop.f32.mrf.mxu0
    %v3291 = vadd.f32 0.0, %v3290
    %v3292 = vpop.f32.mrf.mxu0
    %v3293 = vadd.f32 0.0, %v3292
    %v3294 = vpop.f32.mrf.mxu0
    %v3295 = vpop.f32.mrf.mxu0
    %3296 = vdwg.mxu0
    %v3297 = vld [vmem:[%s3080] sm:$0xff]
    %v3298 = vld [vmem:[%s3080 + $0x8] sm:$0xff]
    %v3299 = vunpack.c.l.bf16 %v3297
    %v3300 = vunpack.c.h.bf16 %v3297
    %v3301 = vunpack.c.l.bf16 %v3298
    %v3302 = vunpack.c.h.bf16 %v3298
    %v3303 = vadd.f32 %v3299, %v3168
    %v3304 = vadd.f32 %v3300, %v3170
    %v3305 = vadd.f32 %v3301, %v3209
    %v3306 = vadd.f32 %v3302, %v3211
    %v3307 = vld [vmem:[%s3069 + $0x10] sm:$0xff]
    %v3308 = vld [vmem:[%s3069 + $0x18] sm:$0xff]
    %v3309 = vunpack.c.l.bf16 %v3307
    %v3310 = vunpack.c.h.bf16 %v3307
    %v3311 = vunpack.c.l.bf16 %v3308
    %v3312 = vunpack.c.h.bf16 %v3308
    %v3313 = vadd.f32 %v3309, %v3250
    %v3314 = vadd.f32 %v3310, %v3252
    %v3315 = vadd.f32 %v3311, %v3291
    %v3316 = vadd.f32 %v3312, %v3293
    %v3317 = vmul.f32 %v3303, 0.5
    %v3318 = vtanh.pop %v3317
    %v3319 = vmul.f32 %v3318, 0.5
    %v3320 = vadd.f32 %v3319, 0.5
    %v3321 = vmul.f32 %v3304, 0.5
    %v3322 = vtanh.pop %v3321
    %v3323 = vmul.f32 %v3322, 0.5
    %v3324 = vadd.f32 %v3323, 0.5
    %v3325 = vtanh.pop %v3305
    %v3326 = vmul.f32 %v3306, 0.5
    %v3327 = vtanh.pop %v3326
    %v3328 = vmul.f32 %v3327, 0.5
    %v3329 = vadd.f32 %v3328, 0.5
    %v3330 = vmul.f32 %v3324, %v3106
    %v3331 = vmul.f32 %v3320, %v3325
    %v3332 = vadd.f32 %v3330, %v3331
    %v3333 = vtanh.pop %v3332
    %v3334 = vmul.f32 %v3329, %v3333
    %v3335 = vmul.f32 %v3313, 0.5
    %v3336 = vtanh.pop %v3335
    %v3337 = vmul.f32 %v3336, 0.5
    %v3338 = vadd.f32 %v3337, 0.5
    %v3339 = vmul.f32 %v3314, 0.5
    %v3340 = vtanh.pop %v3339
    %v3341 = vmul.f32 %v3340, 0.5
    %v3342 = vadd.f32 %v3341, 0.5
    %v3343 = vtanh.pop %v3315
    %v3344 = vmul.f32 %v3316, 0.5
    %v3345 = vtanh.pop %v3344
    %v3346 = vmul.f32 %v3345, 0.5
    %v3347 = vadd.f32 %v3346, 0.5
    %v3348 = vmul.f32 %v3342, %v3124
    %v3349 = vmul.f32 %v3338, %v3343
    %v3350 = vadd.f32 %v3348, %v3349
    %v3351 = vtanh.pop %v3350
    %v3352 = vmul.f32 %v3347, %v3351
    %3353 = vst [vmem:[%s3129] sm:$0xff] %v3334
    %3354 = vst [vmem:[%s3127 + $0x8] sm:$0xff] %v3352
    %v3355 = vpack.c.bf16 %v3334, %v3334
    %v3356 = vpack.c.bf16 %v3352, %v3352
    %3357 = vmatprep.subr.bf16.mxu0 %v2024
    %3358 = vmatpush1.bf16.msra.mxu0 %v2023
    %3359 = vmatprep.subr.bf16.mxu0 %v2016
    %3360 = vmatpush1.bf16.msra.mxu0 %v2015
    %3361 = vmatprep.subr.bf16.mxu0 %v2008
    %3362 = vmatpush1.bf16.msra.mxu0 %v2007
    %3363 = vmatprep.subr.bf16.mxu0 %v2000
    %3364 = vmatpush1.bf16.msra.mxu0 %v1999
    %3365 = vmatprep.subr.bf16.mxu0 %v1992
    %3366 = vmatpush1.bf16.msra.mxu0 %v1991
    %3367 = vmatprep.subr.bf16.mxu0 %v1984
    %3368 = vmatpush1.bf16.msra.mxu0 %v1983
    %3369 = vmatprep.subr.bf16.mxu0 %v1976
    %3370 = vmatpush1.bf16.msra.mxu0 %v1975
    %3371 = vmatprep.subr.bf16.mxu0 %v1968
    %3372 = vmatpush1.bf16.msra.mxu0 %v1967
    %3373 = vmatprep.subr.bf16.mxu0 %v2088
    %3374 = vmatpush2.bf16.msra.mxu0 %v2087
    %3375 = vmatprep.subr.bf16.mxu0 %v2080
    %3376 = vmatpush2.bf16.msra.mxu0 %v2079
    %3377 = vmatprep.subr.bf16.mxu0 %v2072
    %3378 = vmatpush2.bf16.msra.mxu0 %v2071
    %3379 = vmatprep.subr.bf16.mxu0 %v2064
    %3380 = vmatpush2.bf16.msra.mxu0 %v2063
    %3381 = vmatprep.subr.bf16.mxu0 %v2056
    %3382 = vmatpush2.bf16.msra.mxu0 %v2055
    %3383 = vmatprep.subr.bf16.mxu0 %v2048
    %3384 = vmatpush2.bf16.msra.mxu0 %v2047
    %3385 = vmatprep.subr.bf16.mxu0 %v2040
    %3386 = vmatpush2.bf16.msra.mxu0 %v2039
    %3387 = vmatprep.subr.bf16.mxu0 %v2032
    %3388 = vmatpush2.bf16.msra.mxu0 %v2031
    %3389 = vmatprep.mubr.bf16.mxu0 %v3356
    %3390 = vmatmul.mubr.bf16.gmra.mxu0 %v3355
    %v3391 = vpop.f32.mrf.mxu0
    %v3392 = vadd.f32 0.0, %v3391
    %v3393 = vpop.f32.mrf.mxu0
    %v3394 = vadd.f32 0.0, %v3393
    %v3395 = vpop.f32.mrf.mxu0
    %v3396 = vpop.f32.mrf.mxu0
    %3397 = vdwg.mxu0
    %3398 = vmatprep.subr.bf16.mxu0 %v2026
    %3399 = vmatpush1.bf16.msra.mxu0 %v2025
    %3400 = vmatprep.subr.bf16.mxu0 %v2018
    %3401 = vmatpush1.bf16.msra.mxu0 %v2017
    %3402 = vmatprep.subr.bf16.mxu0 %v2010
    %3403 = vmatpush1.bf16.msra.mxu0 %v2009
    %3404 = vmatprep.subr.bf16.mxu0 %v2002
    %3405 = vmatpush1.bf16.msra.mxu0 %v2001
    %3406 = vmatprep.subr.bf16.mxu0 %v1994
    %3407 = vmatpush1.bf16.msra.mxu0 %v1993
    %3408 = vmatprep.subr.bf16.mxu0 %v1986
    %3409 = vmatpush1.bf16.msra.mxu0 %v1985
    %3410 = vmatprep.subr.bf16.mxu0 %v1978
    %3411 = vmatpush1.bf16.msra.mxu0 %v1977
    %3412 = vmatprep.subr.bf16.mxu0 %v1970
    %3413 = vmatpush1.bf16.msra.mxu0 %v1969
    %3414 = vmatprep.subr.bf16.mxu0 %v2090
    %3415 = vmatpush2.bf16.msra.mxu0 %v2089
    %3416 = vmatprep.subr.bf16.mxu0 %v2082
    %3417 = vmatpush2.bf16.msra.mxu0 %v2081
    %3418 = vmatprep.subr.bf16.mxu0 %v2074
    %3419 = vmatpush2.bf16.msra.mxu0 %v2073
    %3420 = vmatprep.subr.bf16.mxu0 %v2066
    %3421 = vmatpush2.bf16.msra.mxu0 %v2065
    %3422 = vmatprep.subr.bf16.mxu0 %v2058
    %3423 = vmatpush2.bf16.msra.mxu0 %v2057
    %3424 = vmatprep.subr.bf16.mxu0 %v2050
    %3425 = vmatpush2.bf16.msra.mxu0 %v2049
    %3426 = vmatprep.subr.bf16.mxu0 %v2042
    %3427 = vmatpush2.bf16.msra.mxu0 %v2041
    %3428 = vmatprep.subr.bf16.mxu0 %v2034
    %3429 = vmatpush2.bf16.msra.mxu0 %v2033
    %3430 = vmatprep.mubr.bf16.mxu0 %v3356
    %3431 = vmatmul.mubr.bf16.gmra.mxu0 %v3355
    %v3432 = vpop.f32.mrf.mxu0
    %v3433 = vadd.f32 0.0, %v3432
    %v3434 = vpop.f32.mrf.mxu0
    %v3435 = vadd.f32 0.0, %v3434
    %v3436 = vpop.f32.mrf.mxu0
    %v3437 = vpop.f32.mrf.mxu0
    %3438 = vdwg.mxu0
    %3439 = vmatprep.subr.bf16.mxu0 %v2028
    %3440 = vmatpush1.bf16.msra.mxu0 %v2027
    %3441 = vmatprep.subr.bf16.mxu0 %v2020
    %3442 = vmatpush1.bf16.msra.mxu0 %v2019
    %3443 = vmatprep.subr.bf16.mxu0 %v2012
    %3444 = vmatpush1.bf16.msra.mxu0 %v2011
    %3445 = vmatprep.subr.bf16.mxu0 %v2004
    %3446 = vmatpush1.bf16.msra.mxu0 %v2003
    %3447 = vmatprep.subr.bf16.mxu0 %v1996
    %3448 = vmatpush1.bf16.msra.mxu0 %v1995
    %3449 = vmatprep.subr.bf16.mxu0 %v1988
    %3450 = vmatpush1.bf16.msra.mxu0 %v1987
    %3451 = vmatprep.subr.bf16.mxu0 %v1980
    %3452 = vmatpush1.bf16.msra.mxu0 %v1979
    %3453 = vmatprep.subr.bf16.mxu0 %v1972
    %3454 = vmatpush1.bf16.msra.mxu0 %v1971
    %3455 = vmatprep.subr.bf16.mxu0 %v2092
    %3456 = vmatpush2.bf16.msra.mxu0 %v2091
    %3457 = vmatprep.subr.bf16.mxu0 %v2084
    %3458 = vmatpush2.bf16.msra.mxu0 %v2083
    %3459 = vmatprep.subr.bf16.mxu0 %v2076
    %3460 = vmatpush2.bf16.msra.mxu0 %v2075
    %3461 = vmatprep.subr.bf16.mxu0 %v2068
    %3462 = vmatpush2.bf16.msra.mxu0 %v2067
    %3463 = vmatprep.subr.bf16.mxu0 %v2060
    %3464 = vmatpush2.bf16.msra.mxu0 %v2059
    %3465 = vmatprep.subr.bf16.mxu0 %v2052
    %3466 = vmatpush2.bf16.msra.mxu0 %v2051
    %3467 = vmatprep.subr.bf16.mxu0 %v2044
    %3468 = vmatpush2.bf16.msra.mxu0 %v2043
    %3469 = vmatprep.subr.bf16.mxu0 %v2036
    %3470 = vmatpush2.bf16.msra.mxu0 %v2035
    %3471 = vmatprep.mubr.bf16.mxu0 %v3356
    %3472 = vmatmul.mubr.bf16.gmra.mxu0 %v3355
    %v3473 = vpop.f32.mrf.mxu0
    %v3474 = vadd.f32 0.0, %v3473
    %v3475 = vpop.f32.mrf.mxu0
    %v3476 = vadd.f32 0.0, %v3475
    %v3477 = vpop.f32.mrf.mxu0
    %v3478 = vpop.f32.mrf.mxu0
    %3479 = vdwg.mxu0
    %3480 = vmatprep.subr.bf16.mxu0 %v2030
    %3481 = vmatpush1.bf16.msra.mxu0 %v2029
    %3482 = vmatprep.subr.bf16.mxu0 %v2022
    %3483 = vmatpush1.bf16.msra.mxu0 %v2021
    %3484 = vmatprep.subr.bf16.mxu0 %v2014
    %3485 = vmatpush1.bf16.msra.mxu0 %v2013
    %3486 = vmatprep.subr.bf16.mxu0 %v2006
    %3487 = vmatpush1.bf16.msra.mxu0 %v2005
    %3488 = vmatprep.subr.bf16.mxu0 %v1998
    %3489 = vmatpush1.bf16.msra.mxu0 %v1997
    %3490 = vmatprep.subr.bf16.mxu0 %v1990
    %3491 = vmatpush1.bf16.msra.mxu0 %v1989
    %3492 = vmatprep.subr.bf16.mxu0 %v1982
    %3493 = vmatpush1.bf16.msra.mxu0 %v1981
    %3494 = vmatprep.subr.bf16.mxu0 %v1974
    %3495 = vmatpush1.bf16.msra.mxu0 %v1973
    %3496 = vmatprep.subr.bf16.mxu0 %v2094
    %3497 = vmatpush2.bf16.msra.mxu0 %v2093
    %3498 = vmatprep.subr.bf16.mxu0 %v2086
    %3499 = vmatpush2.bf16.msra.mxu0 %v2085
    %3500 = vmatprep.subr.bf16.mxu0 %v2078
    %3501 = vmatpush2.bf16.msra.mxu0 %v2077
    %3502 = vmatprep.subr.bf16.mxu0 %v2070
    %3503 = vmatpush2.bf16.msra.mxu0 %v2069
    %3504 = vmatprep.subr.bf16.mxu0 %v2062
    %3505 = vmatpush2.bf16.msra.mxu0 %v2061
    %3506 = vmatprep.subr.bf16.mxu0 %v2054
    %3507 = vmatpush2.bf16.msra.mxu0 %v2053
    %3508 = vmatprep.subr.bf16.mxu0 %v2046
    %3509 = vmatpush2.bf16.msra.mxu0 %v2045
    %3510 = vmatprep.subr.bf16.mxu0 %v2038
    %3511 = vmatpush2.bf16.msra.mxu0 %v2037
    %3512 = vmatprep.mubr.bf16.mxu0 %v3356
    %3513 = vmatmul.mubr.bf16.gmra.mxu0 %v3355
    %v3514 = vpop.f32.mrf.mxu0
    %v3515 = vadd.f32 0.0, %v3514
    %v3516 = vpop.f32.mrf.mxu0
    %v3517 = vadd.f32 0.0, %v3516
    %v3518 = vpop.f32.mrf.mxu0
    %v3519 = vpop.f32.mrf.mxu0
    %3520 = vdwg.mxu0
    %v3521 = vld [vmem:[%s2852] sm:$0xff]
    %v3522 = vld [vmem:[%s2852 + $0x8] sm:$0xff]
    %v3523 = vunpack.c.l.bf16 %v3521
    %v3524 = vunpack.c.h.bf16 %v3521
    %v3525 = vunpack.c.l.bf16 %v3522
    %v3526 = vunpack.c.h.bf16 %v3522
    %v3527 = vadd.f32 %v3523, %v3392
    %v3528 = vadd.f32 %v3524, %v3394
    %v3529 = vadd.f32 %v3525, %v3433
    %v3530 = vadd.f32 %v3526, %v3435
    %v3531 = vld [vmem:[%s2841 + $0x10] sm:$0xff]
    %v3532 = vld [vmem:[%s2841 + $0x18] sm:$0xff]
    %v3533 = vunpack.c.l.bf16 %v3531
    %v3534 = vunpack.c.h.bf16 %v3531
    %v3535 = vunpack.c.l.bf16 %v3532
    %v3536 = vunpack.c.h.bf16 %v3532
    %v3537 = vadd.f32 %v3533, %v3474
    %v3538 = vadd.f32 %v3534, %v3476
    %v3539 = vadd.f32 %v3535, %v3515
    %v3540 = vadd.f32 %v3536, %v3517
    %v3541 = vmul.f32 %v3527, 0.5
    %v3542 = vtanh.pop %v3541
    %v3543 = vmul.f32 %v3542, 0.5
    %v3544 = vadd.f32 %v3543, 0.5
    %v3545 = vmul.f32 %v3528, 0.5
    %v3546 = vtanh.pop %v3545
    %v3547 = vmul.f32 %v3546, 0.5
    %v3548 = vadd.f32 %v3547, 0.5
    %v3549 = vtanh.pop %v3529
    %v3550 = vmul.f32 %v3530, 0.5
    %v3551 = vtanh.pop %v3550
    %v3552 = vmul.f32 %v3551, 0.5
    %v3553 = vadd.f32 %v3552, 0.5
    %v3554 = vmul.f32 %v3548, %v3332
    %v3555 = vmul.f32 %v3544, %v3549
    %v3556 = vadd.f32 %v3554, %v3555
    %v3557 = vtanh.pop %v3556
    %v3558 = vmul.f32 %v3553, %v3557
    %v3559 = vmul.f32 %v3537, 0.5
    %v3560 = vtanh.pop %v3559
    %v3561 = vmul.f32 %v3560, 0.5
    %v3562 = vadd.f32 %v3561, 0.5
    %v3563 = vmul.f32 %v3538, 0.5
    %v3564 = vtanh.pop %v3563
    %v3565 = vmul.f32 %v3564, 0.5
    %v3566 = vadd.f32 %v3565, 0.5
    %v3567 = vtanh.pop %v3539
    %v3568 = vmul.f32 %v3540, 0.5
    %v3569 = vtanh.pop %v3568
    %v3570 = vmul.f32 %v3569, 0.5
    %v3571 = vadd.f32 %v3570, 0.5
    %v3572 = vmul.f32 %v3566, %v3350
    %v3573 = vmul.f32 %v3562, %v3567
    %v3574 = vadd.f32 %v3572, %v3573
    %v3575 = vtanh.pop %v3574
    %v3576 = vmul.f32 %v3571, %v3575
    %3577 = vst [vmem:[%s2901] sm:$0xff] %v3558
    %3578 = vst [vmem:[%s2899 + $0x8] sm:$0xff] %v3576
    %v3579 = vpack.c.bf16 %v3558, %v3558
    %v3580 = vpack.c.bf16 %v3576, %v3576
    %3581 = vmatprep.subr.bf16.mxu0 %v2024
    %3582 = vmatpush1.bf16.msra.mxu0 %v2023
    %3583 = vmatprep.subr.bf16.mxu0 %v2016
    %3584 = vmatpush1.bf16.msra.mxu0 %v2015
    %3585 = vmatprep.subr.bf16.mxu0 %v2008
    %3586 = vmatpush1.bf16.msra.mxu0 %v2007
    %3587 = vmatprep.subr.bf16.mxu0 %v2000
    %3588 = vmatpush1.bf16.msra.mxu0 %v1999
    %3589 = vmatprep.subr.bf16.mxu0 %v1992
    %3590 = vmatpush1.bf16.msra.mxu0 %v1991
    %3591 = vmatprep.subr.bf16.mxu0 %v1984
    %3592 = vmatpush1.bf16.msra.mxu0 %v1983
    %3593 = vmatprep.subr.bf16.mxu0 %v1976
    %3594 = vmatpush1.bf16.msra.mxu0 %v1975
    %3595 = vmatprep.subr.bf16.mxu0 %v1968
    %3596 = vmatpush1.bf16.msra.mxu0 %v1967
    %3597 = vmatprep.subr.bf16.mxu0 %v2088
    %3598 = vmatpush2.bf16.msra.mxu0 %v2087
    %3599 = vmatprep.subr.bf16.mxu0 %v2080
    %3600 = vmatpush2.bf16.msra.mxu0 %v2079
    %3601 = vmatprep.subr.bf16.mxu0 %v2072
    %3602 = vmatpush2.bf16.msra.mxu0 %v2071
    %3603 = vmatprep.subr.bf16.mxu0 %v2064
    %3604 = vmatpush2.bf16.msra.mxu0 %v2063
    %3605 = vmatprep.subr.bf16.mxu0 %v2056
    %3606 = vmatpush2.bf16.msra.mxu0 %v2055
    %3607 = vmatprep.subr.bf16.mxu0 %v2048
    %3608 = vmatpush2.bf16.msra.mxu0 %v2047
    %3609 = vmatprep.subr.bf16.mxu0 %v2040
    %3610 = vmatpush2.bf16.msra.mxu0 %v2039
    %3611 = vmatprep.subr.bf16.mxu0 %v2032
    %3612 = vmatpush2.bf16.msra.mxu0 %v2031
    %3613 = vmatprep.mubr.bf16.mxu0 %v3580
    %3614 = vmatmul.mubr.bf16.gmra.mxu0 %v3579
    %v3615 = vpop.f32.mrf.mxu0
    %v3616 = vadd.f32 0.0, %v3615
    %v3617 = vpop.f32.mrf.mxu0
    %v3618 = vadd.f32 0.0, %v3617
    %v3619 = vpop.f32.mrf.mxu0
    %v3620 = vpop.f32.mrf.mxu0
    %3621 = vdwg.mxu0
    %3622 = vmatprep.subr.bf16.mxu0 %v2026
    %3623 = vmatpush1.bf16.msra.mxu0 %v2025
    %3624 = vmatprep.subr.bf16.mxu0 %v2018
    %3625 = vmatpush1.bf16.msra.mxu0 %v2017
    %3626 = vmatprep.subr.bf16.mxu0 %v2010
    %3627 = vmatpush1.bf16.msra.mxu0 %v2009
    %3628 = vmatprep.subr.bf16.mxu0 %v2002
    %3629 = vmatpush1.bf16.msra.mxu0 %v2001
    %3630 = vmatprep.subr.bf16.mxu0 %v1994
    %3631 = vmatpush1.bf16.msra.mxu0 %v1993
    %3632 = vmatprep.subr.bf16.mxu0 %v1986
    %3633 = vmatpush1.bf16.msra.mxu0 %v1985
    %3634 = vmatprep.subr.bf16.mxu0 %v1978
    %3635 = vmatpush1.bf16.msra.mxu0 %v1977
    %3636 = vmatprep.subr.bf16.mxu0 %v1970
    %3637 = vmatpush1.bf16.msra.mxu0 %v1969
    %3638 = vmatprep.subr.bf16.mxu0 %v2090
    %3639 = vmatpush2.bf16.msra.mxu0 %v2089
    %3640 = vmatprep.subr.bf16.mxu0 %v2082
    %3641 = vmatpush2.bf16.msra.mxu0 %v2081
    %3642 = vmatprep.subr.bf16.mxu0 %v2074
    %3643 = vmatpush2.bf16.msra.mxu0 %v2073
    %3644 = vmatprep.subr.bf16.mxu0 %v2066
    %3645 = vmatpush2.bf16.msra.mxu0 %v2065
    %3646 = vmatprep.subr.bf16.mxu0 %v2058
    %3647 = vmatpush2.bf16.msra.mxu0 %v2057
    %3648 = vmatprep.subr.bf16.mxu0 %v2050
    %3649 = vmatpush2.bf16.msra.mxu0 %v2049
    %3650 = vmatprep.subr.bf16.mxu0 %v2042
    %3651 = vmatpush2.bf16.msra.mxu0 %v2041
    %3652 = vmatprep.subr.bf16.mxu0 %v2034
    %3653 = vmatpush2.bf16.msra.mxu0 %v2033
    %3654 = vmatprep.mubr.bf16.mxu0 %v3580
    %3655 = vmatmul.mubr.bf16.gmra.mxu0 %v3579
    %v3656 = vpop.f32.mrf.mxu0
    %v3657 = vadd.f32 0.0, %v3656
    %v3658 = vpop.f32.mrf.mxu0
    %v3659 = vadd.f32 0.0, %v3658
    %v3660 = vpop.f32.mrf.mxu0
    %v3661 = vpop.f32.mrf.mxu0
    %3662 = vdwg.mxu0
    %3663 = vmatprep.subr.bf16.mxu0 %v2028
    %3664 = vmatpush1.bf16.msra.mxu0 %v2027
    %3665 = vmatprep.subr.bf16.mxu0 %v2020
    %3666 = vmatpush1.bf16.msra.mxu0 %v2019
    %3667 = vmatprep.subr.bf16.mxu0 %v2012
    %3668 = vmatpush1.bf16.msra.mxu0 %v2011
    %3669 = vmatprep.subr.bf16.mxu0 %v2004
    %3670 = vmatpush1.bf16.msra.mxu0 %v2003
    %3671 = vmatprep.subr.bf16.mxu0 %v1996
    %3672 = vmatpush1.bf16.msra.mxu0 %v1995
    %3673 = vmatprep.subr.bf16.mxu0 %v1988
    %3674 = vmatpush1.bf16.msra.mxu0 %v1987
    %3675 = vmatprep.subr.bf16.mxu0 %v1980
    %3676 = vmatpush1.bf16.msra.mxu0 %v1979
    %3677 = vmatprep.subr.bf16.mxu0 %v1972
    %3678 = vmatpush1.bf16.msra.mxu0 %v1971
    %3679 = vmatprep.subr.bf16.mxu0 %v2092
    %3680 = vmatpush2.bf16.msra.mxu0 %v2091
    %3681 = vmatprep.subr.bf16.mxu0 %v2084
    %3682 = vmatpush2.bf16.msra.mxu0 %v2083
    %3683 = vmatprep.subr.bf16.mxu0 %v2076
    %3684 = vmatpush2.bf16.msra.mxu0 %v2075
    %3685 = vmatprep.subr.bf16.mxu0 %v2068
    %3686 = vmatpush2.bf16.msra.mxu0 %v2067
    %3687 = vmatprep.subr.bf16.mxu0 %v2060
    %3688 = vmatpush2.bf16.msra.mxu0 %v2059
    %3689 = vmatprep.subr.bf16.mxu0 %v2052
    %3690 = vmatpush2.bf16.msra.mxu0 %v2051
    %3691 = vmatprep.subr.bf16.mxu0 %v2044
    %3692 = vmatpush2.bf16.msra.mxu0 %v2043
    %3693 = vmatprep.subr.bf16.mxu0 %v2036
    %3694 = vmatpush2.bf16.msra.mxu0 %v2035
    %3695 = vmatprep.mubr.bf16.mxu0 %v3580
    %3696 = vmatmul.mubr.bf16.gmra.mxu0 %v3579
    %v3697 = vpop.f32.mrf.mxu0
    %v3698 = vadd.f32 0.0, %v3697
    %v3699 = vpop.f32.mrf.mxu0
    %v3700 = vadd.f32 0.0, %v3699
    %v3701 = vpop.f32.mrf.mxu0
    %v3702 = vpop.f32.mrf.mxu0
    %3703 = vdwg.mxu0
    %3704 = vmatprep.subr.bf16.mxu0 %v2030
    %3705 = vmatpush1.bf16.msra.mxu0 %v2029
    %3706 = vmatprep.subr.bf16.mxu0 %v2022
    %3707 = vmatpush1.bf16.msra.mxu0 %v2021
    %3708 = vmatprep.subr.bf16.mxu0 %v2014
    %3709 = vmatpush1.bf16.msra.mxu0 %v2013
    %3710 = vmatprep.subr.bf16.mxu0 %v2006
    %3711 = vmatpush1.bf16.msra.mxu0 %v2005
    %3712 = vmatprep.subr.bf16.mxu0 %v1998
    %3713 = vmatpush1.bf16.msra.mxu0 %v1997
    %3714 = vmatprep.subr.bf16.mxu0 %v1990
    %3715 = vmatpush1.bf16.msra.mxu0 %v1989
    %3716 = vmatprep.subr.bf16.mxu0 %v1982
    %3717 = vmatpush1.bf16.msra.mxu0 %v1981
    %3718 = vmatprep.subr.bf16.mxu0 %v1974
    %3719 = vmatpush1.bf16.msra.mxu0 %v1973
    %3720 = vmatprep.subr.bf16.mxu0 %v2094
    %3721 = vmatpush2.bf16.msra.mxu0 %v2093
    %3722 = vmatprep.subr.bf16.mxu0 %v2086
    %3723 = vmatpush2.bf16.msra.mxu0 %v2085
    %3724 = vmatprep.subr.bf16.mxu0 %v2078
    %3725 = vmatpush2.bf16.msra.mxu0 %v2077
    %3726 = vmatprep.subr.bf16.mxu0 %v2070
    %3727 = vmatpush2.bf16.msra.mxu0 %v2069
    %3728 = vmatprep.subr.bf16.mxu0 %v2062
    %3729 = vmatpush2.bf16.msra.mxu0 %v2061
    %3730 = vmatprep.subr.bf16.mxu0 %v2054
    %3731 = vmatpush2.bf16.msra.mxu0 %v2053
    %3732 = vmatprep.subr.bf16.mxu0 %v2046
    %3733 = vmatpush2.bf16.msra.mxu0 %v2045
    %3734 = vmatprep.subr.bf16.mxu0 %v2038
    %3735 = vmatpush2.bf16.msra.mxu0 %v2037
    %3736 = vmatprep.mubr.bf16.mxu0 %v3580
    %3737 = vmatmul.mubr.bf16.gmra.mxu0 %v3579
    %v3738 = vpop.f32.mrf.mxu0
    %v3739 = vadd.f32 0.0, %v3738
    %v3740 = vpop.f32.mrf.mxu0
    %v3741 = vadd.f32 0.0, %v3740
    %v3742 = vpop.f32.mrf.mxu0
    %v3743 = vpop.f32.mrf.mxu0
    %3744 = vdwg.mxu0
    %v3745 = vld [vmem:[%s2624] sm:$0xff]
    %v3746 = vld [vmem:[%s2624 + $0x8] sm:$0xff]
    %v3747 = vunpack.c.l.bf16 %v3745
    %v3748 = vunpack.c.h.bf16 %v3745
    %v3749 = vunpack.c.l.bf16 %v3746
    %v3750 = vunpack.c.h.bf16 %v3746
    %v3751 = vadd.f32 %v3747, %v3616
    %v3752 = vadd.f32 %v3748, %v3618
    %v3753 = vadd.f32 %v3749, %v3657
    %v3754 = vadd.f32 %v3750, %v3659
    %v3755 = vld [vmem:[%s2613 + $0x10] sm:$0xff]
    %v3756 = vld [vmem:[%s2613 + $0x18] sm:$0xff]
    %v3757 = vunpack.c.l.bf16 %v3755
    %v3758 = vunpack.c.h.bf16 %v3755
    %v3759 = vunpack.c.l.bf16 %v3756
    %v3760 = vunpack.c.h.bf16 %v3756
    %v3761 = vadd.f32 %v3757, %v3698
    %v3762 = vadd.f32 %v3758, %v3700
    %v3763 = vadd.f32 %v3759, %v3739
    %v3764 = vadd.f32 %v3760, %v3741
    %v3765 = vmul.f32 %v3751, 0.5
    %v3766 = vtanh.pop %v3765
    %v3767 = vmul.f32 %v3766, 0.5
    %v3768 = vadd.f32 %v3767, 0.5
    %v3769 = vmul.f32 %v3752, 0.5
    %v3770 = vtanh.pop %v3769
    %v3771 = vmul.f32 %v3770, 0.5
    %v3772 = vadd.f32 %v3771, 0.5
    %v3773 = vtanh.pop %v3753
    %v3774 = vmul.f32 %v3754, 0.5
    %v3775 = vtanh.pop %v3774
    %v3776 = vmul.f32 %v3775, 0.5
    %v3777 = vadd.f32 %v3776, 0.5
    %v3778 = vmul.f32 %v3772, %v3556
    %v3779 = vmul.f32 %v3768, %v3773
    %v3780 = vadd.f32 %v3778, %v3779
    %v3781 = vtanh.pop %v3780
    %v3782 = vmul.f32 %v3777, %v3781
    %v3783 = vmul.f32 %v3761, 0.5
    %v3784 = vtanh.pop %v3783
    %v3785 = vmul.f32 %v3784, 0.5
    %v3786 = vadd.f32 %v3785, 0.5
    %v3787 = vmul.f32 %v3762, 0.5
    %v3788 = vtanh.pop %v3787
    %v3789 = vmul.f32 %v3788, 0.5
    %v3790 = vadd.f32 %v3789, 0.5
    %v3791 = vtanh.pop %v3763
    %v3792 = vmul.f32 %v3764, 0.5
    %v3793 = vtanh.pop %v3792
    %v3794 = vmul.f32 %v3793, 0.5
    %v3795 = vadd.f32 %v3794, 0.5
    %v3796 = vmul.f32 %v3790, %v3574
    %v3797 = vmul.f32 %v3786, %v3791
    %v3798 = vadd.f32 %v3796, %v3797
    %v3799 = vtanh.pop %v3798
    %v3800 = vmul.f32 %v3795, %v3799
    %3801 = vst [vmem:[%s2673] sm:$0xff] %v3782
    %3802 = vst [vmem:[%s2671 + $0x8] sm:$0xff] %v3800
    %v3803 = vpack.c.bf16 %v3782, %v3782
    %v3804 = vpack.c.bf16 %v3800, %v3800
    %3805 = vmatprep.subr.bf16.mxu0 %v2024
    %3806 = vmatpush1.bf16.msra.mxu0 %v2023
    %3807 = vmatprep.subr.bf16.mxu0 %v2016
    %3808 = vmatpush1.bf16.msra.mxu0 %v2015
    %3809 = vmatprep.subr.bf16.mxu0 %v2008
    %3810 = vmatpush1.bf16.msra.mxu0 %v2007
    %3811 = vmatprep.subr.bf16.mxu0 %v2000
    %3812 = vmatpush1.bf16.msra.mxu0 %v1999
    %3813 = vmatprep.subr.bf16.mxu0 %v1992
    %3814 = vmatpush1.bf16.msra.mxu0 %v1991
    %3815 = vmatprep.subr.bf16.mxu0 %v1984
    %3816 = vmatpush1.bf16.msra.mxu0 %v1983
    %3817 = vmatprep.subr.bf16.mxu0 %v1976
    %3818 = vmatpush1.bf16.msra.mxu0 %v1975
    %3819 = vmatprep.subr.bf16.mxu0 %v1968
    %3820 = vmatpush1.bf16.msra.mxu0 %v1967
    %3821 = vmatprep.subr.bf16.mxu0 %v2088
    %3822 = vmatpush2.bf16.msra.mxu0 %v2087
    %3823 = vmatprep.subr.bf16.mxu0 %v2080
    %3824 = vmatpush2.bf16.msra.mxu0 %v2079
    %3825 = vmatprep.subr.bf16.mxu0 %v2072
    %3826 = vmatpush2.bf16.msra.mxu0 %v2071
    %3827 = vmatprep.subr.bf16.mxu0 %v2064
    %3828 = vmatpush2.bf16.msra.mxu0 %v2063
    %3829 = vmatprep.subr.bf16.mxu0 %v2056
    %3830 = vmatpush2.bf16.msra.mxu0 %v2055
    %3831 = vmatprep.subr.bf16.mxu0 %v2048
    %3832 = vmatpush2.bf16.msra.mxu0 %v2047
    %3833 = vmatprep.subr.bf16.mxu0 %v2040
    %3834 = vmatpush2.bf16.msra.mxu0 %v2039
    %3835 = vmatprep.subr.bf16.mxu0 %v2032
    %3836 = vmatpush2.bf16.msra.mxu0 %v2031
    %3837 = vmatprep.mubr.bf16.mxu0 %v3804
    %3838 = vmatmul.mubr.bf16.gmra.mxu0 %v3803
    %v3839 = vpop.f32.mrf.mxu0
    %v3840 = vadd.f32 0.0, %v3839
    %v3841 = vpop.f32.mrf.mxu0
    %v3842 = vadd.f32 0.0, %v3841
    %v3843 = vpop.f32.mrf.mxu0
    %v3844 = vpop.f32.mrf.mxu0
    %3845 = vdwg.mxu0
    %3846 = vmatprep.subr.bf16.mxu0 %v2026
    %3847 = vmatpush1.bf16.msra.mxu0 %v2025
    %3848 = vmatprep.subr.bf16.mxu0 %v2018
    %3849 = vmatpush1.bf16.msra.mxu0 %v2017
    %3850 = vmatprep.subr.bf16.mxu0 %v2010
    %3851 = vmatpush1.bf16.msra.mxu0 %v2009
    %3852 = vmatprep.subr.bf16.mxu0 %v2002
    %3853 = vmatpush1.bf16.msra.mxu0 %v2001
    %3854 = vmatprep.subr.bf16.mxu0 %v1994
    %3855 = vmatpush1.bf16.msra.mxu0 %v1993
    %3856 = vmatprep.subr.bf16.mxu0 %v1986
    %3857 = vmatpush1.bf16.msra.mxu0 %v1985
    %3858 = vmatprep.subr.bf16.mxu0 %v1978
    %3859 = vmatpush1.bf16.msra.mxu0 %v1977
    %3860 = vmatprep.subr.bf16.mxu0 %v1970
    %3861 = vmatpush1.bf16.msra.mxu0 %v1969
    %3862 = vmatprep.subr.bf16.mxu0 %v2090
    %3863 = vmatpush2.bf16.msra.mxu0 %v2089
    %3864 = vmatprep.subr.bf16.mxu0 %v2082
    %3865 = vmatpush2.bf16.msra.mxu0 %v2081
    %3866 = vmatprep.subr.bf16.mxu0 %v2074
    %3867 = vmatpush2.bf16.msra.mxu0 %v2073
    %3868 = vmatprep.subr.bf16.mxu0 %v2066
    %3869 = vmatpush2.bf16.msra.mxu0 %v2065
    %3870 = vmatprep.subr.bf16.mxu0 %v2058
    %3871 = vmatpush2.bf16.msra.mxu0 %v2057
    %3872 = vmatprep.subr.bf16.mxu0 %v2050
    %3873 = vmatpush2.bf16.msra.mxu0 %v2049
    %3874 = vmatprep.subr.bf16.mxu0 %v2042
    %3875 = vmatpush2.bf16.msra.mxu0 %v2041
    %3876 = vmatprep.subr.bf16.mxu0 %v2034
    %3877 = vmatpush2.bf16.msra.mxu0 %v2033
    %3878 = vmatprep.mubr.bf16.mxu0 %v3804
    %3879 = vmatmul.mubr.bf16.gmra.mxu0 %v3803
    %v3880 = vpop.f32.mrf.mxu0
    %v3881 = vadd.f32 0.0, %v3880
    %v3882 = vpop.f32.mrf.mxu0
    %v3883 = vadd.f32 0.0, %v3882
    %v3884 = vpop.f32.mrf.mxu0
    %v3885 = vpop.f32.mrf.mxu0
    %3886 = vdwg.mxu0
    %3887 = vmatprep.subr.bf16.mxu0 %v2028
    %3888 = vmatpush1.bf16.msra.mxu0 %v2027
    %3889 = vmatprep.subr.bf16.mxu0 %v2020
    %3890 = vmatpush1.bf16.msra.mxu0 %v2019
    %3891 = vmatprep.subr.bf16.mxu0 %v2012
    %3892 = vmatpush1.bf16.msra.mxu0 %v2011
    %3893 = vmatprep.subr.bf16.mxu0 %v2004
    %3894 = vmatpush1.bf16.msra.mxu0 %v2003
    %3895 = vmatprep.subr.bf16.mxu0 %v1996
    %3896 = vmatpush1.bf16.msra.mxu0 %v1995
    %3897 = vmatprep.subr.bf16.mxu0 %v1988
    %3898 = vmatpush1.bf16.msra.mxu0 %v1987
    %3899 = vmatprep.subr.bf16.mxu0 %v1980
    %3900 = vmatpush1.bf16.msra.mxu0 %v1979
    %3901 = vmatprep.subr.bf16.mxu0 %v1972
    %3902 = vmatpush1.bf16.msra.mxu0 %v1971
    %3903 = vmatprep.subr.bf16.mxu0 %v2092
    %3904 = vmatpush2.bf16.msra.mxu0 %v2091
    %3905 = vmatprep.subr.bf16.mxu0 %v2084
    %3906 = vmatpush2.bf16.msra.mxu0 %v2083
    %3907 = vmatprep.subr.bf16.mxu0 %v2076
    %3908 = vmatpush2.bf16.msra.mxu0 %v2075
    %3909 = vmatprep.subr.bf16.mxu0 %v2068
    %3910 = vmatpush2.bf16.msra.mxu0 %v2067
    %3911 = vmatprep.subr.bf16.mxu0 %v2060
    %3912 = vmatpush2.bf16.msra.mxu0 %v2059
    %3913 = vmatprep.subr.bf16.mxu0 %v2052
    %3914 = vmatpush2.bf16.msra.mxu0 %v2051
    %3915 = vmatprep.subr.bf16.mxu0 %v2044
    %3916 = vmatpush2.bf16.msra.mxu0 %v2043
    %3917 = vmatprep.subr.bf16.mxu0 %v2036
    %3918 = vmatpush2.bf16.msra.mxu0 %v2035
    %3919 = vmatprep.mubr.bf16.mxu0 %v3804
    %3920 = vmatmul.mubr.bf16.gmra.mxu0 %v3803
    %v3921 = vpop.f32.mrf.mxu0
    %v3922 = vadd.f32 0.0, %v3921
    %v3923 = vpop.f32.mrf.mxu0
    %v3924 = vadd.f32 0.0, %v3923
    %v3925 = vpop.f32.mrf.mxu0
    %v3926 = vpop.f32.mrf.mxu0
    %3927 = vdwg.mxu0
    %3928 = vmatprep.subr.bf16.mxu0 %v2030
    %3929 = vmatpush1.bf16.msra.mxu0 %v2029
    %3930 = vmatprep.subr.bf16.mxu0 %v2022
    %3931 = vmatpush1.bf16.msra.mxu0 %v2021
    %3932 = vmatprep.subr.bf16.mxu0 %v2014
    %3933 = vmatpush1.bf16.msra.mxu0 %v2013
    %3934 = vmatprep.subr.bf16.mxu0 %v2006
    %3935 = vmatpush1.bf16.msra.mxu0 %v2005
    %3936 = vmatprep.subr.bf16.mxu0 %v1998
    %3937 = vmatpush1.bf16.msra.mxu0 %v1997
    %3938 = vmatprep.subr.bf16.mxu0 %v1990
    %3939 = vmatpush1.bf16.msra.mxu0 %v1989
    %3940 = vmatprep.subr.bf16.mxu0 %v1982
    %3941 = vmatpush1.bf16.msra.mxu0 %v1981
    %3942 = vmatprep.subr.bf16.mxu0 %v1974
    %3943 = vmatpush1.bf16.msra.mxu0 %v1973
    %3944 = vmatprep.subr.bf16.mxu0 %v2094
    %3945 = vmatpush2.bf16.msra.mxu0 %v2093
    %3946 = vmatprep.subr.bf16.mxu0 %v2086
    %3947 = vmatpush2.bf16.msra.mxu0 %v2085
    %3948 = vmatprep.subr.bf16.mxu0 %v2078
    %3949 = vmatpush2.bf16.msra.mxu0 %v2077
    %3950 = vmatprep.subr.bf16.mxu0 %v2070
    %3951 = vmatpush2.bf16.msra.mxu0 %v2069
    %3952 = vmatprep.subr.bf16.mxu0 %v2062
    %3953 = vmatpush2.bf16.msra.mxu0 %v2061
    %3954 = vmatprep.subr.bf16.mxu0 %v2054
    %3955 = vmatpush2.bf16.msra.mxu0 %v2053
    %3956 = vmatprep.subr.bf16.mxu0 %v2046
    %3957 = vmatpush2.bf16.msra.mxu0 %v2045
    %3958 = vmatprep.subr.bf16.mxu0 %v2038
    %3959 = vmatpush2.bf16.msra.mxu0 %v2037
    %3960 = vmatprep.mubr.bf16.mxu0 %v3804
    %3961 = vmatmul.mubr.bf16.gmra.mxu0 %v3803
    %v3962 = vpop.f32.mrf.mxu0
    %v3963 = vadd.f32 0.0, %v3962
    %v3964 = vpop.f32.mrf.mxu0
    %v3965 = vadd.f32 0.0, %v3964
    %v3966 = vpop.f32.mrf.mxu0
    %v3967 = vpop.f32.mrf.mxu0
    %3968 = vdwg.mxu0
    %v3969 = vld [vmem:[%s2397] sm:$0xff]
    %v3970 = vld [vmem:[%s2397 + $0x8] sm:$0xff]
    %v3971 = vunpack.c.l.bf16 %v3969
    %v3972 = vunpack.c.h.bf16 %v3969
    %v3973 = vunpack.c.l.bf16 %v3970
    %v3974 = vunpack.c.h.bf16 %v3970
    %v3975 = vadd.f32 %v3971, %v3840
    %v3976 = vadd.f32 %v3972, %v3842
    %v3977 = vadd.f32 %v3973, %v3881
    %v3978 = vadd.f32 %v3974, %v3883
    %v3979 = vld [vmem:[#allocation5 + $0x10] sm:$0xff]
    %v3980 = vld [vmem:[#allocation5 + $0x18] sm:$0xff]
    %v3981 = vunpack.c.l.bf16 %v3979
    %v3982 = vunpack.c.h.bf16 %v3979
    %v3983 = vunpack.c.l.bf16 %v3980
    %v3984 = vunpack.c.h.bf16 %v3980
    %v3985 = vadd.f32 %v3981, %v3922
    %v3986 = vadd.f32 %v3982, %v3924
    %v3987 = vadd.f32 %v3983, %v3963
    %v3988 = vadd.f32 %v3984, %v3965
    %v3989 = vmul.f32 %v3975, 0.5
    %v3990 = vtanh.pop %v3989
    %v3991 = vmul.f32 %v3990, 0.5
    %v3992 = vadd.f32 %v3991, 0.5
    %v3993 = vmul.f32 %v3976, 0.5
    %v3994 = vtanh.pop %v3993
    %v3995 = vmul.f32 %v3994, 0.5
    %v3996 = vadd.f32 %v3995, 0.5
    %v3997 = vtanh.pop %v3977
    %v3998 = vmul.f32 %v3978, 0.5
    %v3999 = vtanh.pop %v3998
    %v4000 = vmul.f32 %v3999, 0.5
    %v4001 = vadd.f32 %v4000, 0.5
    %v4002 = vmul.f32 %v3996, %v3780
    %v4003 = vmul.f32 %v3992, %v3997
    %v4004 = vadd.f32 %v4002, %v4003
    %v4005 = vtanh.pop %v4004
    %v4006 = vmul.f32 %v4001, %v4005
    %v4007 = vmul.f32 %v3985, 0.5
    %v4008 = vtanh.pop %v4007
    %v4009 = vmul.f32 %v4008, 0.5
    %v4010 = vadd.f32 %v4009, 0.5
    %v4011 = vmul.f32 %v3986, 0.5
    %v4012 = vtanh.pop %v4011
    %v4013 = vmul.f32 %v4012, 0.5
    %v4014 = vadd.f32 %v4013, 0.5
    %v4015 = vtanh.pop %v3987
    %v4016 = vmul.f32 %v3988, 0.5
    %v4017 = vtanh.pop %v4016
    %v4018 = vmul.f32 %v4017, 0.5
    %v4019 = vadd.f32 %v4018, 0.5
    %v4020 = vmul.f32 %v4014, %v3798
    %v4021 = vmul.f32 %v4010, %v4015
    %v4022 = vadd.f32 %v4020, %v4021
    %v4023 = vtanh.pop %v4022
    %v4024 = vmul.f32 %v4019, %v4023
    %4025 = vst [vmem:[%s2445] sm:$0xff] %v4006
    %4026 = vst [vmem:[#allocation3 + $0x8] sm:$0xff] %v4024
    %v4027 = vld [vmem:[#allocation3] sm:$0xff]
    %v4028 = vld [vmem:[#allocation3 + $0x8] sm:$0xff]
    %v4029 = vld [vmem:[#allocation3 + $0x10] sm:$0xff]
    %v4030 = vld [vmem:[#allocation3 + $0x18] sm:$0xff]
    %v4031 = vld [vmem:[#allocation3 + $0x20] sm:$0xff]
    %v4032 = vld [vmem:[#allocation3 + $0x28] sm:$0xff]
    %v4033 = vld [vmem:[#allocation3 + $0x30] sm:$0xff]
    %v4034 = vld [vmem:[#allocation3 + $0x38] sm:$0xff]
    %v4035 = vld [vmem:[#allocation3 + $0x40] sm:$0xff]
    %v4036 = vld [vmem:[#allocation3 + $0x48] sm:$0xff]
    %v4037 = vld [vmem:[#allocation3 + $0x50] sm:$0xff]
    %v4038 = vld [vmem:[#allocation3 + $0x58] sm:$0xff]
    %v4039 = vld [vmem:[#allocation3 + $0x60] sm:$0xff]
    %v4040 = vld [vmem:[#allocation3 + $0x68] sm:$0xff]
    %v4041 = vld [vmem:[#allocation3 + $0x70] sm:$0xff]
    %v4042 = vld [vmem:[#allocation3 + $0x78] sm:$0xff]
    %v4043 = vpack.c.bf16 %v4029, %v4027
    %v4044 = vpack.c.bf16 %v4030, %v4028
    %v4045 = vpack.c.bf16 %v4033, %v4031
    %v4046 = vpack.c.bf16 %v4034, %v4032
    %v4047 = vpack.c.bf16 %v4037, %v4035
    %v4048 = vpack.c.bf16 %v4038, %v4036
    %v4049 = vpack.c.bf16 %v4041, %v4039
    %v4050 = vpack.c.bf16 %v4042, %v4040
    %v4051 = vld [vmem:[#allocation8] sm:$0xff]
    %v4052 = vld [vmem:[#allocation8 + $0x8] sm:$0xff]
    %v4053 = vld [vmem:[#allocation8 + $0x10] sm:$0xff]
    %v4054 = vld [vmem:[#allocation8 + $0x18] sm:$0xff]
    %v4055 = vld [vmem:[#allocation8 + $0x20] sm:$0xff]
    %v4056 = vld [vmem:[#allocation8 + $0x28] sm:$0xff]
    %v4057 = vld [vmem:[#allocation8 + $0x30] sm:$0xff]
    %v4058 = vld [vmem:[#allocation8 + $0x38] sm:$0xff]
    %v4059 = vld [vmem:[#allocation8 + $0x40] sm:$0xff]
    %v4060 = vld [vmem:[#allocation8 + $0x48] sm:$0xff]
    %v4061 = vld [vmem:[#allocation8 + $0x50] sm:$0xff]
    %v4062 = vld [vmem:[#allocation8 + $0x58] sm:$0xff]
    %v4063 = vld [vmem:[#allocation8 + $0x60] sm:$0xff]
    %v4064 = vld [vmem:[#allocation8 + $0x68] sm:$0xff]
    %v4065 = vld [vmem:[#allocation8 + $0x70] sm:$0xff]
    %v4066 = vld [vmem:[#allocation8 + $0x78] sm:$0xff]
    %v4067 = vld [vmem:[#allocation8 + $0x80] sm:$0xff]
    %v4068 = vld [vmem:[#allocation8 + $0x88] sm:$0xff]
    %v4069 = vld [vmem:[#allocation8 + $0x90] sm:$0xff]
    %v4070 = vld [vmem:[#allocation8 + $0x98] sm:$0xff]
    %v4071 = vld [vmem:[#allocation8 + $0xa0] sm:$0xff]
    %v4072 = vld [vmem:[#allocation8 + $0xa8] sm:$0xff]
    %v4073 = vld [vmem:[#allocation8 + $0xb0] sm:$0xff]
    %v4074 = vld [vmem:[#allocation8 + $0xb8] sm:$0xff]
    %v4075 = vld [vmem:[#allocation8 + $0xc0] sm:$0xff]
    %v4076 = vld [vmem:[#allocation8 + $0xc8] sm:$0xff]
    %v4077 = vld [vmem:[#allocation8 + $0xd0] sm:$0xff]
    %v4078 = vld [vmem:[#allocation8 + $0xd8] sm:$0xff]
    %v4079 = vld [vmem:[#allocation8 + $0xe0] sm:$0xff]
    %v4080 = vld [vmem:[#allocation8 + $0xe8] sm:$0xff]
    %v4081 = vld [vmem:[#allocation8 + $0xf0] sm:$0xff]
    %v4082 = vld [vmem:[#allocation8 + $0xf8] sm:$0xff]
    %v4083 = vld [vmem:[#allocation8 + $0x100] sm:$0xff]
    %v4084 = vld [vmem:[#allocation8 + $0x108] sm:$0xff]
    %v4085 = vld [vmem:[#allocation8 + $0x110] sm:$0xff]
    %v4086 = vld [vmem:[#allocation8 + $0x118] sm:$0xff]
    %v4087 = vld [vmem:[#allocation8 + $0x120] sm:$0xff]
    %v4088 = vld [vmem:[#allocation8 + $0x128] sm:$0xff]
    %v4089 = vld [vmem:[#allocation8 + $0x130] sm:$0xff]
    %v4090 = vld [vmem:[#allocation8 + $0x138] sm:$0xff]
    %v4091 = vld [vmem:[#allocation8 + $0x140] sm:$0xff]
    %v4092 = vld [vmem:[#allocation8 + $0x148] sm:$0xff]
    %v4093 = vld [vmem:[#allocation8 + $0x150] sm:$0xff]
    %v4094 = vld [vmem:[#allocation8 + $0x158] sm:$0xff]
    %v4095 = vld [vmem:[#allocation8 + $0x160] sm:$0xff]
    %v4096 = vld [vmem:[#allocation8 + $0x168] sm:$0xff]
    %v4097 = vld [vmem:[#allocation8 + $0x170] sm:$0xff]
    %v4098 = vld [vmem:[#allocation8 + $0x178] sm:$0xff]
    %v4099 = vld [vmem:[#allocation8 + $0x180] sm:$0xff]
    %v4100 = vld [vmem:[#allocation8 + $0x188] sm:$0xff]
    %v4101 = vld [vmem:[#allocation8 + $0x190] sm:$0xff]
    %v4102 = vld [vmem:[#allocation8 + $0x198] sm:$0xff]
    %v4103 = vld [vmem:[#allocation8 + $0x1a0] sm:$0xff]
    %v4104 = vld [vmem:[#allocation8 + $0x1a8] sm:$0xff]
    %v4105 = vld [vmem:[#allocation8 + $0x1b0] sm:$0xff]
    %v4106 = vld [vmem:[#allocation8 + $0x1b8] sm:$0xff]
    %v4107 = vld [vmem:[#allocation8 + $0x1c0] sm:$0xff]
    %v4108 = vld [vmem:[#allocation8 + $0x1c8] sm:$0xff]
    %v4109 = vld [vmem:[#allocation8 + $0x1d0] sm:$0xff]
    %v4110 = vld [vmem:[#allocation8 + $0x1d8] sm:$0xff]
    %v4111 = vld [vmem:[#allocation8 + $0x1e0] sm:$0xff]
    %v4112 = vld [vmem:[#allocation8 + $0x1e8] sm:$0xff]
    %v4113 = vld [vmem:[#allocation8 + $0x1f0] sm:$0xff]
    %v4114 = vld [vmem:[#allocation8 + $0x1f8] sm:$0xff]
    %v4115 = vld [vmem:[#allocation8 + $0x200] sm:$0xff]
    %v4116 = vld [vmem:[#allocation8 + $0x208] sm:$0xff]
    %v4117 = vld [vmem:[#allocation8 + $0x210] sm:$0xff]
    %v4118 = vld [vmem:[#allocation8 + $0x218] sm:$0xff]
    %v4119 = vld [vmem:[#allocation8 + $0x220] sm:$0xff]
    %v4120 = vld [vmem:[#allocation8 + $0x228] sm:$0xff]
    %v4121 = vld [vmem:[#allocation8 + $0x230] sm:$0xff]
    %v4122 = vld [vmem:[#allocation8 + $0x238] sm:$0xff]
    %v4123 = vld [vmem:[#allocation8 + $0x240] sm:$0xff]
    %v4124 = vld [vmem:[#allocation8 + $0x248] sm:$0xff]
    %v4125 = vld [vmem:[#allocation8 + $0x250] sm:$0xff]
    %v4126 = vld [vmem:[#allocation8 + $0x258] sm:$0xff]
    %v4127 = vld [vmem:[#allocation8 + $0x260] sm:$0xff]
    %v4128 = vld [vmem:[#allocation8 + $0x268] sm:$0xff]
    %v4129 = vld [vmem:[#allocation8 + $0x270] sm:$0xff]
    %v4130 = vld [vmem:[#allocation8 + $0x278] sm:$0xff]
    %v4131 = vld [vmem:[#allocation8 + $0x280] sm:$0xff]
    %v4132 = vld [vmem:[#allocation8 + $0x288] sm:$0xff]
    %v4133 = vld [vmem:[#allocation8 + $0x290] sm:$0xff]
    %v4134 = vld [vmem:[#allocation8 + $0x298] sm:$0xff]
    %v4135 = vld [vmem:[#allocation8 + $0x2a0] sm:$0xff]
    %v4136 = vld [vmem:[#allocation8 + $0x2a8] sm:$0xff]
    %v4137 = vld [vmem:[#allocation8 + $0x2b0] sm:$0xff]
    %v4138 = vld [vmem:[#allocation8 + $0x2b8] sm:$0xff]
    %v4139 = vld [vmem:[#allocation8 + $0x2c0] sm:$0xff]
    %v4140 = vld [vmem:[#allocation8 + $0x2c8] sm:$0xff]
    %v4141 = vld [vmem:[#allocation8 + $0x2d0] sm:$0xff]
    %v4142 = vld [vmem:[#allocation8 + $0x2d8] sm:$0xff]
    %v4143 = vld [vmem:[#allocation8 + $0x2e0] sm:$0xff]
    %v4144 = vld [vmem:[#allocation8 + $0x2e8] sm:$0xff]
    %v4145 = vld [vmem:[#allocation8 + $0x2f0] sm:$0xff]
    %v4146 = vld [vmem:[#allocation8 + $0x2f8] sm:$0xff]
    %v4147 = vld [vmem:[#allocation8 + $0x300] sm:$0xff]
    %v4148 = vld [vmem:[#allocation8 + $0x308] sm:$0xff]
    %v4149 = vld [vmem:[#allocation8 + $0x310] sm:$0xff]
    %v4150 = vld [vmem:[#allocation8 + $0x318] sm:$0xff]
    %v4151 = vld [vmem:[#allocation8 + $0x320] sm:$0xff]
    %v4152 = vld [vmem:[#allocation8 + $0x328] sm:$0xff]
    %v4153 = vld [vmem:[#allocation8 + $0x330] sm:$0xff]
    %v4154 = vld [vmem:[#allocation8 + $0x338] sm:$0xff]
    %v4155 = vld [vmem:[#allocation8 + $0x340] sm:$0xff]
    %v4156 = vld [vmem:[#allocation8 + $0x348] sm:$0xff]
    %v4157 = vld [vmem:[#allocation8 + $0x350] sm:$0xff]
    %v4158 = vld [vmem:[#allocation8 + $0x358] sm:$0xff]
    %v4159 = vld [vmem:[#allocation8 + $0x360] sm:$0xff]
    %v4160 = vld [vmem:[#allocation8 + $0x368] sm:$0xff]
    %v4161 = vld [vmem:[#allocation8 + $0x370] sm:$0xff]
    %v4162 = vld [vmem:[#allocation8 + $0x378] sm:$0xff]
    %v4163 = vld [vmem:[#allocation8 + $0x380] sm:$0xff]
    %v4164 = vld [vmem:[#allocation8 + $0x388] sm:$0xff]
    %v4165 = vld [vmem:[#allocation8 + $0x390] sm:$0xff]
    %v4166 = vld [vmem:[#allocation8 + $0x398] sm:$0xff]
    %v4167 = vld [vmem:[#allocation8 + $0x3a0] sm:$0xff]
    %v4168 = vld [vmem:[#allocation8 + $0x3a8] sm:$0xff]
    %v4169 = vld [vmem:[#allocation8 + $0x3b0] sm:$0xff]
    %v4170 = vld [vmem:[#allocation8 + $0x3b8] sm:$0xff]
    %v4171 = vld [vmem:[#allocation8 + $0x3c0] sm:$0xff]
    %v4172 = vld [vmem:[#allocation8 + $0x3c8] sm:$0xff]
    %v4173 = vld [vmem:[#allocation8 + $0x3d0] sm:$0xff]
    %v4174 = vld [vmem:[#allocation8 + $0x3d8] sm:$0xff]
    %v4175 = vld [vmem:[#allocation8 + $0x3e0] sm:$0xff]
    %v4176 = vld [vmem:[#allocation8 + $0x3e8] sm:$0xff]
    %v4177 = vld [vmem:[#allocation8 + $0x3f0] sm:$0xff]
    %v4178 = vld [vmem:[#allocation8 + $0x3f8] sm:$0xff]
    %v4179 = vld [vmem:[%s9] sm:$0xff]
    %v4181 = vlaneseq
    %v4182 = vshrl.u32 %v4181, 7
    %v4183 = vsub.s32 0, %v4182
    %v4184 = vrot.slane %v4179, %v4183
    %v4185 = vlaneseq
    %v4186 = vshrl.u32 %v4185, 7
    %v4187 = vsub.s32 1, %v4186
    %v4188 = vrot.slane %v4179, %v4187
    %v4189 = vlaneseq
    %v4190 = vshrl.u32 %v4189, 7
    %v4191 = vsub.s32 2, %v4190
    %v4192 = vrot.slane %v4179, %v4191
    %v4193 = vlaneseq
    %v4194 = vshrl.u32 %v4193, 7
    %v4195 = vsub.s32 3, %v4194
    %v4196 = vrot.slane %v4179, %v4195
    %v4197 = vlaneseq
    %v4198 = vshrl.u32 %v4197, 7
    %v4199 = vsub.s32 4, %v4198
    %v4200 = vrot.slane %v4179, %v4199
    %v4201 = vlaneseq
    %v4202 = vshrl.u32 %v4201, 7
    %v4203 = vsub.s32 5, %v4202
    %v4204 = vrot.slane %v4179, %v4203
    %v4205 = vlaneseq
    %v4206 = vshrl.u32 %v4205, 7
    %v4207 = vsub.s32 6, %v4206
    %v4208 = vrot.slane %v4179, %v4207
    %v4209 = vlaneseq
    %v4210 = vshrl.u32 %v4209, 7
    %v4211 = vsub.s32 7, %v4210
    %v4212 = vrot.slane %v4179, %v4211
    %v4349 = vunpack.c.l.b16 %v4051
    %v4350 = vunpack.c.h.b16 %v4051
    %v4351 = vunpack.c.l.b16 %v4052
    %v4352 = vunpack.c.h.b16 %v4052
    %v4353 = vunpack.c.l.b16 %v4053
    %v4354 = vunpack.c.h.b16 %v4053
    %v4355 = vunpack.c.l.b16 %v4054
    %v4356 = vunpack.c.h.b16 %v4054
    %v4357 = vunpack.c.l.b16 %v4055
    %v4358 = vunpack.c.h.b16 %v4055
    %v4359 = vunpack.c.l.b16 %v4056
    %v4360 = vunpack.c.h.b16 %v4056
    %v4361 = vunpack.c.l.b16 %v4057
    %v4362 = vunpack.c.h.b16 %v4057
    %v4363 = vunpack.c.l.b16 %v4058
    %v4364 = vunpack.c.h.b16 %v4058
    %v4365 = vunpack.c.l.b16 %v4059
    %v4366 = vunpack.c.h.b16 %v4059
    %v4367 = vunpack.c.l.b16 %v4060
    %v4368 = vunpack.c.h.b16 %v4060
    %v4369 = vunpack.c.l.b16 %v4061
    %v4370 = vunpack.c.h.b16 %v4061
    %v4371 = vunpack.c.l.b16 %v4062
    %v4372 = vunpack.c.h.b16 %v4062
    %v4373 = vunpack.c.l.b16 %v4063
    %v4374 = vunpack.c.h.b16 %v4063
    %v4375 = vunpack.c.l.b16 %v4064
    %v4376 = vunpack.c.h.b16 %v4064
    %v4377 = vunpack.c.l.b16 %v4065
    %v4378 = vunpack.c.h.b16 %v4065
    %v4379 = vunpack.c.l.b16 %v4066
    %v4380 = vunpack.c.h.b16 %v4066
    %v4381 = vunpack.c.l.b16 %v4067
    %v4382 = vunpack.c.h.b16 %v4067
    %v4383 = vunpack.c.l.b16 %v4068
    %v4384 = vunpack.c.h.b16 %v4068
    %v4385 = vunpack.c.l.b16 %v4069
    %v4386 = vunpack.c.h.b16 %v4069
    %v4387 = vunpack.c.l.b16 %v4070
    %v4388 = vunpack.c.h.b16 %v4070
    %v4389 = vunpack.c.l.b16 %v4071
    %v4390 = vunpack.c.h.b16 %v4071
    %v4391 = vunpack.c.l.b16 %v4072
    %v4392 = vunpack.c.h.b16 %v4072
    %v4393 = vunpack.c.l.b16 %v4073
    %v4394 = vunpack.c.h.b16 %v4073
    %v4395 = vunpack.c.l.b16 %v4074
    %v4396 = vunpack.c.h.b16 %v4074
    %v4397 = vunpack.c.l.b16 %v4075
    %v4398 = vunpack.c.h.b16 %v4075
    %v4399 = vunpack.c.l.b16 %v4076
    %v4400 = vunpack.c.h.b16 %v4076
    %v4401 = vunpack.c.l.b16 %v4077
    %v4402 = vunpack.c.h.b16 %v4077
    %v4403 = vunpack.c.l.b16 %v4078
    %v4404 = vunpack.c.h.b16 %v4078
    %v4405 = vunpack.c.l.b16 %v4079
    %v4406 = vunpack.c.h.b16 %v4079
    %v4407 = vunpack.c.l.b16 %v4080
    %v4408 = vunpack.c.h.b16 %v4080
    %v4409 = vunpack.c.l.b16 %v4081
    %v4410 = vunpack.c.h.b16 %v4081
    %v4411 = vunpack.c.l.b16 %v4082
    %v4412 = vunpack.c.h.b16 %v4082
    %v4413 = vunpack.c.l.b16 %v4083
    %v4414 = vunpack.c.h.b16 %v4083
    %v4415 = vunpack.c.l.b16 %v4084
    %v4416 = vunpack.c.h.b16 %v4084
    %v4417 = vunpack.c.l.b16 %v4085
    %v4418 = vunpack.c.h.b16 %v4085
    %v4419 = vunpack.c.l.b16 %v4086
    %v4420 = vunpack.c.h.b16 %v4086
    %v4421 = vunpack.c.l.b16 %v4087
    %v4422 = vunpack.c.h.b16 %v4087
    %v4423 = vunpack.c.l.b16 %v4088
    %v4424 = vunpack.c.h.b16 %v4088
    %v4425 = vunpack.c.l.b16 %v4089
    %v4426 = vunpack.c.h.b16 %v4089
    %v4427 = vunpack.c.l.b16 %v4090
    %v4428 = vunpack.c.h.b16 %v4090
    %v4429 = vunpack.c.l.b16 %v4091
    %v4430 = vunpack.c.h.b16 %v4091
    %v4431 = vunpack.c.l.b16 %v4092
    %v4432 = vunpack.c.h.b16 %v4092
    %v4433 = vunpack.c.l.b16 %v4093
    %v4434 = vunpack.c.h.b16 %v4093
    %v4435 = vunpack.c.l.b16 %v4094
    %v4436 = vunpack.c.h.b16 %v4094
    %v4437 = vunpack.c.l.b16 %v4095
    %v4438 = vunpack.c.h.b16 %v4095
    %v4439 = vunpack.c.l.b16 %v4096
    %v4440 = vunpack.c.h.b16 %v4096
    %v4441 = vunpack.c.l.b16 %v4097
    %v4442 = vunpack.c.h.b16 %v4097
    %v4443 = vunpack.c.l.b16 %v4098
    %v4444 = vunpack.c.h.b16 %v4098
    %v4445 = vunpack.c.l.b16 %v4099
    %v4446 = vunpack.c.h.b16 %v4099
    %v4447 = vunpack.c.l.b16 %v4100
    %v4448 = vunpack.c.h.b16 %v4100
    %v4449 = vunpack.c.l.b16 %v4101
    %v4450 = vunpack.c.h.b16 %v4101
    %v4451 = vunpack.c.l.b16 %v4102
    %v4452 = vunpack.c.h.b16 %v4102
    %v4453 = vunpack.c.l.b16 %v4103
    %v4454 = vunpack.c.h.b16 %v4103
    %v4455 = vunpack.c.l.b16 %v4104
    %v4456 = vunpack.c.h.b16 %v4104
    %v4457 = vunpack.c.l.b16 %v4105
    %v4458 = vunpack.c.h.b16 %v4105
    %v4459 = vunpack.c.l.b16 %v4106
    %v4460 = vunpack.c.h.b16 %v4106
    %v4461 = vunpack.c.l.b16 %v4107
    %v4462 = vunpack.c.h.b16 %v4107
    %v4463 = vunpack.c.l.b16 %v4108
    %v4464 = vunpack.c.h.b16 %v4108
    %v4465 = vunpack.c.l.b16 %v4109
    %v4466 = vunpack.c.h.b16 %v4109
    %v4467 = vunpack.c.l.b16 %v4110
    %v4468 = vunpack.c.h.b16 %v4110
    %v4469 = vunpack.c.l.b16 %v4111
    %v4470 = vunpack.c.h.b16 %v4111
    %v4471 = vunpack.c.l.b16 %v4112
    %v4472 = vunpack.c.h.b16 %v4112
    %v4473 = vunpack.c.l.b16 %v4113
    %v4474 = vunpack.c.h.b16 %v4113
    %v4475 = vunpack.c.l.b16 %v4114
    %v4476 = vunpack.c.h.b16 %v4114
    %v4477 = vunpack.c.l.b16 %v4115
    %v4478 = vunpack.c.h.b16 %v4115
    %v4479 = vunpack.c.l.b16 %v4116
    %v4480 = vunpack.c.h.b16 %v4116
    %v4481 = vunpack.c.l.b16 %v4117
    %v4482 = vunpack.c.h.b16 %v4117
    %v4483 = vunpack.c.l.b16 %v4118
    %v4484 = vunpack.c.h.b16 %v4118
    %v4485 = vunpack.c.l.b16 %v4119
    %v4486 = vunpack.c.h.b16 %v4119
    %v4487 = vunpack.c.l.b16 %v4120
    %v4488 = vunpack.c.h.b16 %v4120
    %v4489 = vunpack.c.l.b16 %v4121
    %v4490 = vunpack.c.h.b16 %v4121
    %v4491 = vunpack.c.l.b16 %v4122
    %v4492 = vunpack.c.h.b16 %v4122
    %v4493 = vunpack.c.l.b16 %v4123
    %v4494 = vunpack.c.h.b16 %v4123
    %v4495 = vunpack.c.l.b16 %v4124
    %v4496 = vunpack.c.h.b16 %v4124
    %v4497 = vunpack.c.l.b16 %v4125
    %v4498 = vunpack.c.h.b16 %v4125
    %v4499 = vunpack.c.l.b16 %v4126
    %v4500 = vunpack.c.h.b16 %v4126
    %v4501 = vunpack.c.l.b16 %v4127
    %v4502 = vunpack.c.h.b16 %v4127
    %v4503 = vunpack.c.l.b16 %v4128
    %v4504 = vunpack.c.h.b16 %v4128
    %v4505 = vunpack.c.l.b16 %v4129
    %v4506 = vunpack.c.h.b16 %v4129
    %v4507 = vunpack.c.l.b16 %v4130
    %v4508 = vunpack.c.h.b16 %v4130
    %v4509 = vunpack.c.l.b16 %v4131
    %v4510 = vunpack.c.h.b16 %v4131
    %v4511 = vunpack.c.l.b16 %v4132
    %v4512 = vunpack.c.h.b16 %v4132
    %v4513 = vunpack.c.l.b16 %v4133
    %v4514 = vunpack.c.h.b16 %v4133
    %v4515 = vunpack.c.l.b16 %v4134
    %v4516 = vunpack.c.h.b16 %v4134
    %v4517 = vunpack.c.l.b16 %v4135
    %v4518 = vunpack.c.h.b16 %v4135
    %v4519 = vunpack.c.l.b16 %v4136
    %v4520 = vunpack.c.h.b16 %v4136
    %v4521 = vunpack.c.l.b16 %v4137
    %v4522 = vunpack.c.h.b16 %v4137
    %v4523 = vunpack.c.l.b16 %v4138
    %v4524 = vunpack.c.h.b16 %v4138
    %v4525 = vunpack.c.l.b16 %v4139
    %v4526 = vunpack.c.h.b16 %v4139
    %v4527 = vunpack.c.l.b16 %v4140
    %v4528 = vunpack.c.h.b16 %v4140
    %v4529 = vunpack.c.l.b16 %v4141
    %v4530 = vunpack.c.h.b16 %v4141
    %v4531 = vunpack.c.l.b16 %v4142
    %v4532 = vunpack.c.h.b16 %v4142
    %v4533 = vunpack.c.l.b16 %v4143
    %v4534 = vunpack.c.h.b16 %v4143
    %v4535 = vunpack.c.l.b16 %v4144
    %v4536 = vunpack.c.h.b16 %v4144
    %v4537 = vunpack.c.l.b16 %v4145
    %v4538 = vunpack.c.h.b16 %v4145
    %v4539 = vunpack.c.l.b16 %v4146
    %v4540 = vunpack.c.h.b16 %v4146
    %v4541 = vunpack.c.l.b16 %v4147
    %v4542 = vunpack.c.h.b16 %v4147
    %v4543 = vunpack.c.l.b16 %v4148
    %v4544 = vunpack.c.h.b16 %v4148
    %v4545 = vunpack.c.l.b16 %v4149
    %v4546 = vunpack.c.h.b16 %v4149
    %v4547 = vunpack.c.l.b16 %v4150
    %v4548 = vunpack.c.h.b16 %v4150
    %v4549 = vunpack.c.l.b16 %v4151
    %v4550 = vunpack.c.h.b16 %v4151
    %v4551 = vunpack.c.l.b16 %v4152
    %v4552 = vunpack.c.h.b16 %v4152
    %v4553 = vunpack.c.l.b16 %v4153
    %v4554 = vunpack.c.h.b16 %v4153
    %v4555 = vunpack.c.l.b16 %v4154
    %v4556 = vunpack.c.h.b16 %v4154
    %v4557 = vunpack.c.l.b16 %v4155
    %v4558 = vunpack.c.h.b16 %v4155
    %v4559 = vunpack.c.l.b16 %v4156
    %v4560 = vunpack.c.h.b16 %v4156
    %v4561 = vunpack.c.l.b16 %v4157
    %v4562 = vunpack.c.h.b16 %v4157
    %v4563 = vunpack.c.l.b16 %v4158
    %v4564 = vunpack.c.h.b16 %v4158
    %v4565 = vunpack.c.l.b16 %v4159
    %v4566 = vunpack.c.h.b16 %v4159
    %v4567 = vunpack.c.l.b16 %v4160
    %v4568 = vunpack.c.h.b16 %v4160
    %v4569 = vunpack.c.l.b16 %v4161
    %v4570 = vunpack.c.h.b16 %v4161
    %v4571 = vunpack.c.l.b16 %v4162
    %v4572 = vunpack.c.h.b16 %v4162
    %v4573 = vunpack.c.l.b16 %v4163
    %v4574 = vunpack.c.h.b16 %v4163
    %v4575 = vunpack.c.l.b16 %v4164
    %v4576 = vunpack.c.h.b16 %v4164
    %v4577 = vunpack.c.l.b16 %v4165
    %v4578 = vunpack.c.h.b16 %v4165
    %v4579 = vunpack.c.l.b16 %v4166
    %v4580 = vunpack.c.h.b16 %v4166
    %v4581 = vunpack.c.l.b16 %v4167
    %v4582 = vunpack.c.h.b16 %v4167
    %v4583 = vunpack.c.l.b16 %v4168
    %v4584 = vunpack.c.h.b16 %v4168
    %v4585 = vunpack.c.l.b16 %v4169
    %v4586 = vunpack.c.h.b16 %v4169
    %v4587 = vunpack.c.l.b16 %v4170
    %v4588 = vunpack.c.h.b16 %v4170
    %v4589 = vunpack.c.l.b16 %v4171
    %v4590 = vunpack.c.h.b16 %v4171
    %v4591 = vunpack.c.l.b16 %v4172
    %v4592 = vunpack.c.h.b16 %v4172
    %v4593 = vunpack.c.l.b16 %v4173
    %v4594 = vunpack.c.h.b16 %v4173
    %v4595 = vunpack.c.l.b16 %v4174
    %v4596 = vunpack.c.h.b16 %v4174
    %v4597 = vunpack.c.l.b16 %v4175
    %v4598 = vunpack.c.h.b16 %v4175
    %v4599 = vunpack.c.l.b16 %v4176
    %v4600 = vunpack.c.h.b16 %v4176
    %v4601 = vunpack.c.l.b16 %v4177
    %v4602 = vunpack.c.h.b16 %v4177
    %v4603 = vunpack.c.l.b16 %v4178
    %v4604 = vunpack.c.h.b16 %v4178
    %v4605 = vpack.c.b16 %v4357, %v4349
    %v4606 = vpack.c.b16 %v4358, %v4350
    %v4607 = vpack.c.b16 %v4359, %v4351
    %v4608 = vpack.c.b16 %v4360, %v4352
    %v4609 = vpack.c.b16 %v4361, %v4353
    %v4610 = vpack.c.b16 %v4362, %v4354
    %v4611 = vpack.c.b16 %v4363, %v4355
    %v4612 = vpack.c.b16 %v4364, %v4356
    %v4613 = vpack.c.b16 %v4373, %v4365
    %v4614 = vpack.c.b16 %v4374, %v4366
    %v4615 = vpack.c.b16 %v4375, %v4367
    %v4616 = vpack.c.b16 %v4376, %v4368
    %v4617 = vpack.c.b16 %v4377, %v4369
    %v4618 = vpack.c.b16 %v4378, %v4370
    %v4619 = vpack.c.b16 %v4379, %v4371
    %v4620 = vpack.c.b16 %v4380, %v4372
    %v4621 = vpack.c.b16 %v4389, %v4381
    %v4622 = vpack.c.b16 %v4390, %v4382
    %v4623 = vpack.c.b16 %v4391, %v4383
    %v4624 = vpack.c.b16 %v4392, %v4384
    %v4625 = vpack.c.b16 %v4393, %v4385
    %v4626 = vpack.c.b16 %v4394, %v4386
    %v4627 = vpack.c.b16 %v4395, %v4387
    %v4628 = vpack.c.b16 %v4396, %v4388
    %v4629 = vpack.c.b16 %v4405, %v4397
    %v4630 = vpack.c.b16 %v4406, %v4398
    %v4631 = vpack.c.b16 %v4407, %v4399
    %v4632 = vpack.c.b16 %v4408, %v4400
    %v4633 = vpack.c.b16 %v4409, %v4401
    %v4634 = vpack.c.b16 %v4410, %v4402
    %v4635 = vpack.c.b16 %v4411, %v4403
    %v4636 = vpack.c.b16 %v4412, %v4404
    %v4637 = vpack.c.b16 %v4421, %v4413
    %v4638 = vpack.c.b16 %v4422, %v4414
    %v4639 = vpack.c.b16 %v4423, %v4415
    %v4640 = vpack.c.b16 %v4424, %v4416
    %v4641 = vpack.c.b16 %v4425, %v4417
    %v4642 = vpack.c.b16 %v4426, %v4418
    %v4643 = vpack.c.b16 %v4427, %v4419
    %v4644 = vpack.c.b16 %v4428, %v4420
    %v4645 = vpack.c.b16 %v4437, %v4429
    %v4646 = vpack.c.b16 %v4438, %v4430
    %v4647 = vpack.c.b16 %v4439, %v4431
    %v4648 = vpack.c.b16 %v4440, %v4432
    %v4649 = vpack.c.b16 %v4441, %v4433
    %v4650 = vpack.c.b16 %v4442, %v4434
    %v4651 = vpack.c.b16 %v4443, %v4435
    %v4652 = vpack.c.b16 %v4444, %v4436
    %v4653 = vpack.c.b16 %v4453, %v4445
    %v4654 = vpack.c.b16 %v4454, %v4446
    %v4655 = vpack.c.b16 %v4455, %v4447
    %v4656 = vpack.c.b16 %v4456, %v4448
    %v4657 = vpack.c.b16 %v4457, %v4449
    %v4658 = vpack.c.b16 %v4458, %v4450
    %v4659 = vpack.c.b16 %v4459, %v4451
    %v4660 = vpack.c.b16 %v4460, %v4452
    %v4661 = vpack.c.b16 %v4469, %v4461
    %v4662 = vpack.c.b16 %v4470, %v4462
    %v4663 = vpack.c.b16 %v4471, %v4463
    %v4664 = vpack.c.b16 %v4472, %v4464
    %v4665 = vpack.c.b16 %v4473, %v4465
    %v4666 = vpack.c.b16 %v4474, %v4466
    %v4667 = vpack.c.b16 %v4475, %v4467
    %v4668 = vpack.c.b16 %v4476, %v4468
    %v4669 = vpack.c.b16 %v4485, %v4477
    %v4670 = vpack.c.b16 %v4486, %v4478
    %v4671 = vpack.c.b16 %v4487, %v4479
    %v4672 = vpack.c.b16 %v4488, %v4480
    %v4673 = vpack.c.b16 %v4489, %v4481
    %v4674 = vpack.c.b16 %v4490, %v4482
    %v4675 = vpack.c.b16 %v4491, %v4483
    %v4676 = vpack.c.b16 %v4492, %v4484
    %v4677 = vpack.c.b16 %v4501, %v4493
    %v4678 = vpack.c.b16 %v4502, %v4494
    %v4679 = vpack.c.b16 %v4503, %v4495
    %v4680 = vpack.c.b16 %v4504, %v4496
    %v4681 = vpack.c.b16 %v4505, %v4497
    %v4682 = vpack.c.b16 %v4506, %v4498
    %v4683 = vpack.c.b16 %v4507, %v4499
    %v4684 = vpack.c.b16 %v4508, %v4500
    %v4685 = vpack.c.b16 %v4517, %v4509
    %v4686 = vpack.c.b16 %v4518, %v4510
    %v4687 = vpack.c.b16 %v4519, %v4511
    %v4688 = vpack.c.b16 %v4520, %v4512
    %v4689 = vpack.c.b16 %v4521, %v4513
    %v4690 = vpack.c.b16 %v4522, %v4514
    %v4691 = vpack.c.b16 %v4523, %v4515
    %v4692 = vpack.c.b16 %v4524, %v4516
    %v4693 = vpack.c.b16 %v4533, %v4525
    %v4694 = vpack.c.b16 %v4534, %v4526
    %v4695 = vpack.c.b16 %v4535, %v4527
    %v4696 = vpack.c.b16 %v4536, %v4528
    %v4697 = vpack.c.b16 %v4537, %v4529
    %v4698 = vpack.c.b16 %v4538, %v4530
    %v4699 = vpack.c.b16 %v4539, %v4531
    %v4700 = vpack.c.b16 %v4540, %v4532
    %v4701 = vpack.c.b16 %v4549, %v4541
    %v4702 = vpack.c.b16 %v4550, %v4542
    %v4703 = vpack.c.b16 %v4551, %v4543
    %v4704 = vpack.c.b16 %v4552, %v4544
    %v4705 = vpack.c.b16 %v4553, %v4545
    %v4706 = vpack.c.b16 %v4554, %v4546
    %v4707 = vpack.c.b16 %v4555, %v4547
    %v4708 = vpack.c.b16 %v4556, %v4548
    %v4709 = vpack.c.b16 %v4565, %v4557
    %v4710 = vpack.c.b16 %v4566, %v4558
    %v4711 = vpack.c.b16 %v4567, %v4559
    %v4712 = vpack.c.b16 %v4568, %v4560
    %v4713 = vpack.c.b16 %v4569, %v4561
    %v4714 = vpack.c.b16 %v4570, %v4562
    %v4715 = vpack.c.b16 %v4571, %v4563
    %v4716 = vpack.c.b16 %v4572, %v4564
    %v4717 = vpack.c.b16 %v4581, %v4573
    %v4718 = vpack.c.b16 %v4582, %v4574
    %v4719 = vpack.c.b16 %v4583, %v4575
    %v4720 = vpack.c.b16 %v4584, %v4576
    %v4721 = vpack.c.b16 %v4585, %v4577
    %v4722 = vpack.c.b16 %v4586, %v4578
    %v4723 = vpack.c.b16 %v4587, %v4579
    %v4724 = vpack.c.b16 %v4588, %v4580
    %v4725 = vpack.c.b16 %v4597, %v4589
    %v4726 = vpack.c.b16 %v4598, %v4590
    %v4727 = vpack.c.b16 %v4599, %v4591
    %v4728 = vpack.c.b16 %v4600, %v4592
    %v4729 = vpack.c.b16 %v4601, %v4593
    %v4730 = vpack.c.b16 %v4602, %v4594
    %v4731 = vpack.c.b16 %v4603, %v4595
    %v4732 = vpack.c.b16 %v4604, %v4596
    %4861 = vmatprep.subr.bf16.mxu0 %v4662
    %4862 = vmatpush1.bf16.msra.mxu0 %v4661
    %4863 = vmatprep.subr.bf16.mxu0 %v4654
    %4864 = vmatpush1.bf16.msra.mxu0 %v4653
    %4865 = vmatprep.subr.bf16.mxu0 %v4646
    %4866 = vmatpush1.bf16.msra.mxu0 %v4645
    %4867 = vmatprep.subr.bf16.mxu0 %v4638
    %4868 = vmatpush1.bf16.msra.mxu0 %v4637
    %4869 = vmatprep.subr.bf16.mxu0 %v4630
    %4870 = vmatpush1.bf16.msra.mxu0 %v4629
    %4871 = vmatprep.subr.bf16.mxu0 %v4622
    %4872 = vmatpush1.bf16.msra.mxu0 %v4621
    %4873 = vmatprep.subr.bf16.mxu0 %v4614
    %4874 = vmatpush1.bf16.msra.mxu0 %v4613
    %4875 = vmatprep.subr.bf16.mxu0 %v4606
    %4876 = vmatpush1.bf16.msra.mxu0 %v4605
    %4877 = vmatprep.subr.bf16.mxu0 %v4726
    %4878 = vmatpush2.bf16.msra.mxu0 %v4725
    %4879 = vmatprep.subr.bf16.mxu0 %v4718
    %4880 = vmatpush2.bf16.msra.mxu0 %v4717
    %4881 = vmatprep.subr.bf16.mxu0 %v4710
    %4882 = vmatpush2.bf16.msra.mxu0 %v4709
    %4883 = vmatprep.subr.bf16.mxu0 %v4702
    %4884 = vmatpush2.bf16.msra.mxu0 %v4701
    %4885 = vmatprep.subr.bf16.mxu0 %v4694
    %4886 = vmatpush2.bf16.msra.mxu0 %v4693
    %4887 = vmatprep.subr.bf16.mxu0 %v4686
    %4888 = vmatpush2.bf16.msra.mxu0 %v4685
    %4889 = vmatprep.subr.bf16.mxu0 %v4678
    %4890 = vmatpush2.bf16.msra.mxu0 %v4677
    %4891 = vmatprep.subr.bf16.mxu0 %v4670
    %4892 = vmatpush2.bf16.msra.mxu0 %v4669
    %4893 = vmatprep.mubr.bf16.mxu0 %v4044
    %4894 = vmatmul.mubr.bf16.gmra.mxu0 %v4043
    %v4895 = vpop.f32.mrf.mxu0
    %v4896 = vadd.f32 %v4184, %v4895
    %v4897 = vpop.f32.mrf.mxu0
    %v4898 = vadd.f32 %v4188, %v4897
    %v4899 = vpop.f32.mrf.mxu0
    %v4900 = vadd.f32 %v4184, %v4899
    %v4901 = vpop.f32.mrf.mxu0
    %v4902 = vadd.f32 %v4188, %v4901
    %4903 = vmatprep.mubr.bf16.mxu0 %v4046
    %4904 = vmatmul.mubr.bf16.gmra.mxu0 %v4045
    %v4905 = vpop.f32.mrf.mxu0
    %v4906 = vadd.f32 %v4184, %v4905
    %v4907 = vpop.f32.mrf.mxu0
    %v4908 = vadd.f32 %v4188, %v4907
    %v4909 = vpop.f32.mrf.mxu0
    %v4910 = vadd.f32 %v4184, %v4909
    %v4911 = vpop.f32.mrf.mxu0
    %v4912 = vadd.f32 %v4188, %v4911
    %4913 = vmatprep.mubr.bf16.mxu0 %v4048
    %4914 = vmatmul.mubr.bf16.gmra.mxu0 %v4047
    %v4915 = vpop.f32.mrf.mxu0
    %v4916 = vadd.f32 %v4184, %v4915
    %v4917 = vpop.f32.mrf.mxu0
    %v4918 = vadd.f32 %v4188, %v4917
    %v4919 = vpop.f32.mrf.mxu0
    %v4920 = vadd.f32 %v4184, %v4919
    %v4921 = vpop.f32.mrf.mxu0
    %v4922 = vadd.f32 %v4188, %v4921
    %4923 = vmatprep.mubr.bf16.mxu0 %v4050
    %4924 = vmatmul.mubr.bf16.gmra.mxu0 %v4049
    %v4925 = vpop.f32.mrf.mxu0
    %v4926 = vadd.f32 %v4184, %v4925
    %v4927 = vpop.f32.mrf.mxu0
    %v4928 = vadd.f32 %v4188, %v4927
    %v4929 = vpop.f32.mrf.mxu0
    %v4930 = vadd.f32 %v4184, %v4929
    %v4931 = vpop.f32.mrf.mxu0
    %v4932 = vadd.f32 %v4188, %v4931
    %4933 = vdwg.mxu0
    %4934 = vmatprep.subr.bf16.mxu0 %v4664
    %4935 = vmatpush1.bf16.msra.mxu0 %v4663
    %4936 = vmatprep.subr.bf16.mxu0 %v4656
    %4937 = vmatpush1.bf16.msra.mxu0 %v4655
    %4938 = vmatprep.subr.bf16.mxu0 %v4648
    %4939 = vmatpush1.bf16.msra.mxu0 %v4647
    %4940 = vmatprep.subr.bf16.mxu0 %v4640
    %4941 = vmatpush1.bf16.msra.mxu0 %v4639
    %4942 = vmatprep.subr.bf16.mxu0 %v4632
    %4943 = vmatpush1.bf16.msra.mxu0 %v4631
    %4944 = vmatprep.subr.bf16.mxu0 %v4624
    %4945 = vmatpush1.bf16.msra.mxu0 %v4623
    %4946 = vmatprep.subr.bf16.mxu0 %v4616
    %4947 = vmatpush1.bf16.msra.mxu0 %v4615
    %4948 = vmatprep.subr.bf16.mxu0 %v4608
    %4949 = vmatpush1.bf16.msra.mxu0 %v4607
    %4950 = vmatprep.subr.bf16.mxu0 %v4728
    %4951 = vmatpush2.bf16.msra.mxu0 %v4727
    %4952 = vmatprep.subr.bf16.mxu0 %v4720
    %4953 = vmatpush2.bf16.msra.mxu0 %v4719
    %4954 = vmatprep.subr.bf16.mxu0 %v4712
    %4955 = vmatpush2.bf16.msra.mxu0 %v4711
    %4956 = vmatprep.subr.bf16.mxu0 %v4704
    %4957 = vmatpush2.bf16.msra.mxu0 %v4703
    %4958 = vmatprep.subr.bf16.mxu0 %v4696
    %4959 = vmatpush2.bf16.msra.mxu0 %v4695
    %4960 = vmatprep.subr.bf16.mxu0 %v4688
    %4961 = vmatpush2.bf16.msra.mxu0 %v4687
    %4962 = vmatprep.subr.bf16.mxu0 %v4680
    %4963 = vmatpush2.bf16.msra.mxu0 %v4679
    %4964 = vmatprep.subr.bf16.mxu0 %v4672
    %4965 = vmatpush2.bf16.msra.mxu0 %v4671
    %4966 = vmatprep.mubr.bf16.mxu0 %v4044
    %4967 = vmatmul.mubr.bf16.gmra.mxu0 %v4043
    %v4968 = vpop.f32.mrf.mxu0
    %v4969 = vadd.f32 %v4192, %v4968
    %v4970 = vpop.f32.mrf.mxu0
    %v4971 = vadd.f32 %v4196, %v4970
    %v4972 = vpop.f32.mrf.mxu0
    %v4973 = vadd.f32 %v4192, %v4972
    %v4974 = vpop.f32.mrf.mxu0
    %v4975 = vadd.f32 %v4196, %v4974
    %4976 = vmatprep.mubr.bf16.mxu0 %v4046
    %4977 = vmatmul.mubr.bf16.gmra.mxu0 %v4045
    %v4978 = vpop.f32.mrf.mxu0
    %v4979 = vadd.f32 %v4192, %v4978
    %v4980 = vpop.f32.mrf.mxu0
    %v4981 = vadd.f32 %v4196, %v4980
    %v4982 = vpop.f32.mrf.mxu0
    %v4983 = vadd.f32 %v4192, %v4982
    %v4984 = vpop.f32.mrf.mxu0
    %v4985 = vadd.f32 %v4196, %v4984
    %4986 = vmatprep.mubr.bf16.mxu0 %v4048
    %4987 = vmatmul.mubr.bf16.gmra.mxu0 %v4047
    %v4988 = vpop.f32.mrf.mxu0
    %v4989 = vadd.f32 %v4192, %v4988
    %v4990 = vpop.f32.mrf.mxu0
    %v4991 = vadd.f32 %v4196, %v4990
    %v4992 = vpop.f32.mrf.mxu0
    %v4993 = vadd.f32 %v4192, %v4992
    %v4994 = vpop.f32.mrf.mxu0
    %v4995 = vadd.f32 %v4196, %v4994
    %4996 = vmatprep.mubr.bf16.mxu0 %v4050
    %4997 = vmatmul.mubr.bf16.gmra.mxu0 %v4049
    %v4998 = vpop.f32.mrf.mxu0
    %v4999 = vadd.f32 %v4192, %v4998
    %v5000 = vpop.f32.mrf.mxu0
    %v5001 = vadd.f32 %v4196, %v5000
    %v5002 = vpop.f32.mrf.mxu0
    %v5003 = vadd.f32 %v4192, %v5002
    %v5004 = vpop.f32.mrf.mxu0
    %v5005 = vadd.f32 %v4196, %v5004
    %5006 = vdwg.mxu0
    %5007 = vmatprep.subr.bf16.mxu0 %v4666
    %5008 = vmatpush1.bf16.msra.mxu0 %v4665
    %5009 = vmatprep.subr.bf16.mxu0 %v4658
    %5010 = vmatpush1.bf16.msra.mxu0 %v4657
    %5011 = vmatprep.subr.bf16.mxu0 %v4650
    %5012 = vmatpush1.bf16.msra.mxu0 %v4649
    %5013 = vmatprep.subr.bf16.mxu0 %v4642
    %5014 = vmatpush1.bf16.msra.mxu0 %v4641
    %5015 = vmatprep.subr.bf16.mxu0 %v4634
    %5016 = vmatpush1.bf16.msra.mxu0 %v4633
    %5017 = vmatprep.subr.bf16.mxu0 %v4626
    %5018 = vmatpush1.bf16.msra.mxu0 %v4625
    %5019 = vmatprep.subr.bf16.mxu0 %v4618
    %5020 = vmatpush1.bf16.msra.mxu0 %v4617
    %5021 = vmatprep.subr.bf16.mxu0 %v4610
    %5022 = vmatpush1.bf16.msra.mxu0 %v4609
    %5023 = vmatprep.subr.bf16.mxu0 %v4730
    %5024 = vmatpush2.bf16.msra.mxu0 %v4729
    %5025 = vmatprep.subr.bf16.mxu0 %v4722
    %5026 = vmatpush2.bf16.msra.mxu0 %v4721
    %5027 = vmatprep.subr.bf16.mxu0 %v4714
    %5028 = vmatpush2.bf16.msra.mxu0 %v4713
    %5029 = vmatprep.subr.bf16.mxu0 %v4706
    %5030 = vmatpush2.bf16.msra.mxu0 %v4705
    %5031 = vmatprep.subr.bf16.mxu0 %v4698
    %5032 = vmatpush2.bf16.msra.mxu0 %v4697
    %5033 = vmatprep.subr.bf16.mxu0 %v4690
    %5034 = vmatpush2.bf16.msra.mxu0 %v4689
    %5035 = vmatprep.subr.bf16.mxu0 %v4682
    %5036 = vmatpush2.bf16.msra.mxu0 %v4681
    %5037 = vmatprep.subr.bf16.mxu0 %v4674
    %5038 = vmatpush2.bf16.msra.mxu0 %v4673
    %5039 = vmatprep.mubr.bf16.mxu0 %v4044
    %5040 = vmatmul.mubr.bf16.gmra.mxu0 %v4043
    %v5041 = vpop.f32.mrf.mxu0
    %v5042 = vadd.f32 %v4200, %v5041
    %v5043 = vpop.f32.mrf.mxu0
    %v5044 = vadd.f32 %v4204, %v5043
    %v5045 = vpop.f32.mrf.mxu0
    %v5046 = vadd.f32 %v4200, %v5045
    %v5047 = vpop.f32.mrf.mxu0
    %v5048 = vadd.f32 %v4204, %v5047
    %5049 = vmatprep.mubr.bf16.mxu0 %v4046
    %5050 = vmatmul.mubr.bf16.gmra.mxu0 %v4045
    %v5051 = vpop.f32.mrf.mxu0
    %v5052 = vadd.f32 %v4200, %v5051
    %v5053 = vpop.f32.mrf.mxu0
    %v5054 = vadd.f32 %v4204, %v5053
    %v5055 = vpop.f32.mrf.mxu0
    %v5056 = vadd.f32 %v4200, %v5055
    %v5057 = vpop.f32.mrf.mxu0
    %v5058 = vadd.f32 %v4204, %v5057
    %5059 = vmatprep.mubr.bf16.mxu0 %v4048
    %5060 = vmatmul.mubr.bf16.gmra.mxu0 %v4047
    %v5061 = vpop.f32.mrf.mxu0
    %v5062 = vadd.f32 %v4200, %v5061
    %v5063 = vpop.f32.mrf.mxu0
    %v5064 = vadd.f32 %v4204, %v5063
    %v5065 = vpop.f32.mrf.mxu0
    %v5066 = vadd.f32 %v4200, %v5065
    %v5067 = vpop.f32.mrf.mxu0
    %v5068 = vadd.f32 %v4204, %v5067
    %5069 = vmatprep.mubr.bf16.mxu0 %v4050
    %5070 = vmatmul.mubr.bf16.gmra.mxu0 %v4049
    %v5071 = vpop.f32.mrf.mxu0
    %v5072 = vadd.f32 %v4200, %v5071
    %v5073 = vpop.f32.mrf.mxu0
    %v5074 = vadd.f32 %v4204, %v5073
    %v5075 = vpop.f32.mrf.mxu0
    %v5076 = vadd.f32 %v4200, %v5075
    %v5077 = vpop.f32.mrf.mxu0
    %v5078 = vadd.f32 %v4204, %v5077
    %5079 = vdwg.mxu0
    %5080 = vmatprep.subr.bf16.mxu0 %v4668
    %5081 = vmatpush1.bf16.msra.mxu0 %v4667
    %5082 = vmatprep.subr.bf16.mxu0 %v4660
    %5083 = vmatpush1.bf16.msra.mxu0 %v4659
    %5084 = vmatprep.subr.bf16.mxu0 %v4652
    %5085 = vmatpush1.bf16.msra.mxu0 %v4651
    %5086 = vmatprep.subr.bf16.mxu0 %v4644
    %5087 = vmatpush1.bf16.msra.mxu0 %v4643
    %5088 = vmatprep.subr.bf16.mxu0 %v4636
    %5089 = vmatpush1.bf16.msra.mxu0 %v4635
    %5090 = vmatprep.subr.bf16.mxu0 %v4628
    %5091 = vmatpush1.bf16.msra.mxu0 %v4627
    %5092 = vmatprep.subr.bf16.mxu0 %v4620
    %5093 = vmatpush1.bf16.msra.mxu0 %v4619
    %5094 = vmatprep.subr.bf16.mxu0 %v4612
    %5095 = vmatpush1.bf16.msra.mxu0 %v4611
    %5096 = vmatprep.subr.bf16.mxu0 %v4732
    %5097 = vmatpush2.bf16.msra.mxu0 %v4731
    %5098 = vmatprep.subr.bf16.mxu0 %v4724
    %5099 = vmatpush2.bf16.msra.mxu0 %v4723
    %5100 = vmatprep.subr.bf16.mxu0 %v4716
    %5101 = vmatpush2.bf16.msra.mxu0 %v4715
    %5102 = vmatprep.subr.bf16.mxu0 %v4708
    %5103 = vmatpush2.bf16.msra.mxu0 %v4707
    %5104 = vmatprep.subr.bf16.mxu0 %v4700
    %5105 = vmatpush2.bf16.msra.mxu0 %v4699
    %5106 = vmatprep.subr.bf16.mxu0 %v4692
    %5107 = vmatpush2.bf16.msra.mxu0 %v4691
    %5108 = vmatprep.subr.bf16.mxu0 %v4684
    %5109 = vmatpush2.bf16.msra.mxu0 %v4683
    %5110 = vmatprep.subr.bf16.mxu0 %v4676
    %5111 = vmatpush2.bf16.msra.mxu0 %v4675
    %5112 = vmatprep.mubr.bf16.mxu0 %v4044
    %5113 = vmatmul.mubr.bf16.gmra.mxu0 %v4043
    %v5114 = vpop.f32.mrf.mxu0
    %v5115 = vadd.f32 %v4208, %v5114
    %v5116 = vpop.f32.mrf.mxu0
    %v5117 = vadd.f32 %v4212, %v5116
    %v5118 = vpop.f32.mrf.mxu0
    %v5119 = vadd.f32 %v4208, %v5118
    %v5120 = vpop.f32.mrf.mxu0
    %v5121 = vadd.f32 %v4212, %v5120
    %5122 = vmatprep.mubr.bf16.mxu0 %v4046
    %5123 = vmatmul.mubr.bf16.gmra.mxu0 %v4045
    %v5124 = vpop.f32.mrf.mxu0
    %v5125 = vadd.f32 %v4208, %v5124
    %v5126 = vpop.f32.mrf.mxu0
    %v5127 = vadd.f32 %v4212, %v5126
    %v5128 = vpop.f32.mrf.mxu0
    %v5129 = vadd.f32 %v4208, %v5128
    %v5130 = vpop.f32.mrf.mxu0
    %v5131 = vadd.f32 %v4212, %v5130
    %5132 = vmatprep.mubr.bf16.mxu0 %v4048
    %5133 = vmatmul.mubr.bf16.gmra.mxu0 %v4047
    %v5134 = vpop.f32.mrf.mxu0
    %v5135 = vadd.f32 %v4208, %v5134
    %v5136 = vpop.f32.mrf.mxu0
    %v5137 = vadd.f32 %v4212, %v5136
    %v5138 = vpop.f32.mrf.mxu0
    %v5139 = vadd.f32 %v4208, %v5138
    %v5140 = vpop.f32.mrf.mxu0
    %v5141 = vadd.f32 %v4212, %v5140
    %5142 = vmatprep.mubr.bf16.mxu0 %v4050
    %5143 = vmatmul.mubr.bf16.gmra.mxu0 %v4049
    %v5144 = vpop.f32.mrf.mxu0
    %v5145 = vadd.f32 %v4208, %v5144
    %v5146 = vpop.f32.mrf.mxu0
    %v5147 = vadd.f32 %v4212, %v5146
    %v5148 = vpop.f32.mrf.mxu0
    %v5149 = vadd.f32 %v4208, %v5148
    %v5150 = vpop.f32.mrf.mxu0
    %v5151 = vadd.f32 %v4212, %v5150
    %5152 = vdwg.mxu0
    %v5153 = vpack.c.bf16 %v4896, %v4896
    %v5154 = vpack.c.bf16 %v4898, %v4898
    %v5155 = vpack.c.bf16 %v4969, %v4969
    %v5156 = vpack.c.bf16 %v4971, %v4971
    %v5157 = vpack.c.bf16 %v5042, %v5042
    %v5158 = vpack.c.bf16 %v5044, %v5044
    %v5159 = vpack.c.bf16 %v5115, %v5115
    %v5160 = vpack.c.bf16 %v5117, %v5117
    %v5161 = vpack.c.bf16 %v4900, %v4900
    %v5162 = vpack.c.bf16 %v4902, %v4902
    %v5163 = vpack.c.bf16 %v4973, %v4973
    %v5164 = vpack.c.bf16 %v4975, %v4975
    %v5165 = vpack.c.bf16 %v5046, %v5046
    %v5166 = vpack.c.bf16 %v5048, %v5048
    %v5167 = vpack.c.bf16 %v5119, %v5119
    %v5168 = vpack.c.bf16 %v5121, %v5121
    %v5169 = vpack.c.bf16 %v4906, %v4906
    %v5170 = vpack.c.bf16 %v4908, %v4908
    %v5171 = vpack.c.bf16 %v4979, %v4979
    %v5172 = vpack.c.bf16 %v4981, %v4981
    %v5173 = vpack.c.bf16 %v5052, %v5052
    %v5174 = vpack.c.bf16 %v5054, %v5054
    %v5175 = vpack.c.bf16 %v5125, %v5125
    %v5176 = vpack.c.bf16 %v5127, %v5127
    %v5177 = vpack.c.bf16 %v4910, %v4910
    %v5178 = vpack.c.bf16 %v4912, %v4912
    %v5179 = vpack.c.bf16 %v4983, %v4983
    %v5180 = vpack.c.bf16 %v4985, %v4985
    %v5181 = vpack.c.bf16 %v5056, %v5056
    %v5182 = vpack.c.bf16 %v5058, %v5058
    %v5183 = vpack.c.bf16 %v5129, %v5129
    %v5184 = vpack.c.bf16 %v5131, %v5131
    %v5185 = vpack.c.bf16 %v4916, %v4916
    %v5186 = vpack.c.bf16 %v4918, %v4918
    %v5187 = vpack.c.bf16 %v4989, %v4989
    %v5188 = vpack.c.bf16 %v4991, %v4991
    %v5189 = vpack.c.bf16 %v5062, %v5062
    %v5190 = vpack.c.bf16 %v5064, %v5064
    %v5191 = vpack.c.bf16 %v5135, %v5135
    %v5192 = vpack.c.bf16 %v5137, %v5137
    %v5193 = vpack.c.bf16 %v4920, %v4920
    %v5194 = vpack.c.bf16 %v4922, %v4922
    %v5195 = vpack.c.bf16 %v4993, %v4993
    %v5196 = vpack.c.bf16 %v4995, %v4995
    %v5197 = vpack.c.bf16 %v5066, %v5066
    %v5198 = vpack.c.bf16 %v5068, %v5068
    %v5199 = vpack.c.bf16 %v5139, %v5139
    %v5200 = vpack.c.bf16 %v5141, %v5141
    %v5201 = vpack.c.bf16 %v4926, %v4926
    %v5202 = vpack.c.bf16 %v4928, %v4928
    %v5203 = vpack.c.bf16 %v4999, %v4999
    %v5204 = vpack.c.bf16 %v5001, %v5001
    %v5205 = vpack.c.bf16 %v5072, %v5072
    %v5206 = vpack.c.bf16 %v5074, %v5074
    %v5207 = vpack.c.bf16 %v5145, %v5145
    %v5208 = vpack.c.bf16 %v5147, %v5147
    %v5209 = vpack.c.bf16 %v4930, %v4930
    %v5210 = vpack.c.bf16 %v4932, %v4932
    %v5211 = vpack.c.bf16 %v5003, %v5003
    %v5212 = vpack.c.bf16 %v5005, %v5005
    %v5213 = vpack.c.bf16 %v5076, %v5076
    %v5214 = vpack.c.bf16 %v5078, %v5078
    %v5215 = vpack.c.bf16 %v5149, %v5149
    %v5216 = vpack.c.bf16 %v5151, %v5151
    %v5281 = vunpack.c.l.b16 %v5153
    %v5282 = vunpack.c.l.b16 %v5154
    %v5283 = vunpack.c.l.b16 %v5155
    %v5284 = vunpack.c.l.b16 %v5156
    %v5285 = vunpack.c.l.b16 %v5157
    %v5286 = vunpack.c.l.b16 %v5158
    %v5287 = vunpack.c.l.b16 %v5159
    %v5288 = vunpack.c.l.b16 %v5160
    %v5289 = vunpack.c.l.b16 %v5161
    %v5290 = vunpack.c.l.b16 %v5162
    %v5291 = vunpack.c.l.b16 %v5163
    %v5292 = vunpack.c.l.b16 %v5164
    %v5293 = vunpack.c.l.b16 %v5165
    %v5294 = vunpack.c.l.b16 %v5166
    %v5295 = vunpack.c.l.b16 %v5167
    %v5296 = vunpack.c.l.b16 %v5168
    %v5297 = vunpack.c.l.b16 %v5169
    %v5298 = vunpack.c.l.b16 %v5170
    %v5299 = vunpack.c.l.b16 %v5171
    %v5300 = vunpack.c.l.b16 %v5172
    %v5301 = vunpack.c.l.b16 %v5173
    %v5302 = vunpack.c.l.b16 %v5174
    %v5303 = vunpack.c.l.b16 %v5175
    %v5304 = vunpack.c.l.b16 %v5176
    %v5305 = vunpack.c.l.b16 %v5177
    %v5306 = vunpack.c.l.b16 %v5178
    %v5307 = vunpack.c.l.b16 %v5179
    %v5308 = vunpack.c.l.b16 %v5180
    %v5309 = vunpack.c.l.b16 %v5181
    %v5310 = vunpack.c.l.b16 %v5182
    %v5311 = vunpack.c.l.b16 %v5183
    %v5312 = vunpack.c.l.b16 %v5184
    %v5313 = vunpack.c.l.b16 %v5185
    %v5314 = vunpack.c.l.b16 %v5186
    %v5315 = vunpack.c.l.b16 %v5187
    %v5316 = vunpack.c.l.b16 %v5188
    %v5317 = vunpack.c.l.b16 %v5189
    %v5318 = vunpack.c.l.b16 %v5190
    %v5319 = vunpack.c.l.b16 %v5191
    %v5320 = vunpack.c.l.b16 %v5192
    %v5321 = vunpack.c.l.b16 %v5193
    %v5322 = vunpack.c.l.b16 %v5194
    %v5323 = vunpack.c.l.b16 %v5195
    %v5324 = vunpack.c.l.b16 %v5196
    %v5325 = vunpack.c.l.b16 %v5197
    %v5326 = vunpack.c.l.b16 %v5198
    %v5327 = vunpack.c.l.b16 %v5199
    %v5328 = vunpack.c.l.b16 %v5200
    %v5329 = vunpack.c.l.b16 %v5201
    %v5330 = vunpack.c.l.b16 %v5202
    %v5331 = vunpack.c.l.b16 %v5203
    %v5332 = vunpack.c.l.b16 %v5204
    %v5333 = vunpack.c.l.b16 %v5205
    %v5334 = vunpack.c.l.b16 %v5206
    %v5335 = vunpack.c.l.b16 %v5207
    %v5336 = vunpack.c.l.b16 %v5208
    %v5337 = vunpack.c.l.b16 %v5209
    %v5338 = vunpack.c.l.b16 %v5210
    %v5339 = vunpack.c.l.b16 %v5211
    %v5340 = vunpack.c.l.b16 %v5212
    %v5341 = vunpack.c.l.b16 %v5213
    %v5342 = vunpack.c.l.b16 %v5214
    %v5343 = vunpack.c.l.b16 %v5215
    %v5344 = vunpack.c.l.b16 %v5216
    %v5345 = vpack.c.b16 %v5282, %v5281
    %v5346 = vpack.c.b16 %v5284, %v5283
    %v5347 = vpack.c.b16 %v5286, %v5285
    %v5348 = vpack.c.b16 %v5288, %v5287
    %v5349 = vpack.c.b16 %v5290, %v5289
    %v5350 = vpack.c.b16 %v5292, %v5291
    %v5351 = vpack.c.b16 %v5294, %v5293
    %v5352 = vpack.c.b16 %v5296, %v5295
    %v5353 = vpack.c.b16 %v5298, %v5297
    %v5354 = vpack.c.b16 %v5300, %v5299
    %v5355 = vpack.c.b16 %v5302, %v5301
    %v5356 = vpack.c.b16 %v5304, %v5303
    %v5357 = vpack.c.b16 %v5306, %v5305
    %v5358 = vpack.c.b16 %v5308, %v5307
    %v5359 = vpack.c.b16 %v5310, %v5309
    %v5360 = vpack.c.b16 %v5312, %v5311
    %v5361 = vpack.c.b16 %v5314, %v5313
    %v5362 = vpack.c.b16 %v5316, %v5315
    %v5363 = vpack.c.b16 %v5318, %v5317
    %v5364 = vpack.c.b16 %v5320, %v5319
    %v5365 = vpack.c.b16 %v5322, %v5321
    %v5366 = vpack.c.b16 %v5324, %v5323
    %v5367 = vpack.c.b16 %v5326, %v5325
    %v5368 = vpack.c.b16 %v5328, %v5327
    %v5369 = vpack.c.b16 %v5330, %v5329
    %v5370 = vpack.c.b16 %v5332, %v5331
    %v5371 = vpack.c.b16 %v5334, %v5333
    %v5372 = vpack.c.b16 %v5336, %v5335
    %v5373 = vpack.c.b16 %v5338, %v5337
    %v5374 = vpack.c.b16 %v5340, %v5339
    %v5375 = vpack.c.b16 %v5342, %v5341
    %v5376 = vpack.c.b16 %v5344, %v5343
    %5409 = vst [vmem:[#allocation5] sm:$0xff] %v5345
    %5410 = vst [vmem:[#allocation5 + $0x8] sm:$0xff] %v5346
    %5411 = vst [vmem:[#allocation5 + $0x10] sm:$0xff] %v5347
    %5412 = vst [vmem:[#allocation5 + $0x18] sm:$0xff] %v5348
    %5413 = vst [vmem:[#allocation5 + $0x20] sm:$0xff] %v5349
    %5414 = vst [vmem:[#allocation5 + $0x28] sm:$0xff] %v5350
    %5415 = vst [vmem:[#allocation5 + $0x30] sm:$0xff] %v5351
    %5416 = vst [vmem:[#allocation5 + $0x38] sm:$0xff] %v5352
    %5417 = vst [vmem:[#allocation5 + $0x40] sm:$0xff] %v5353
    %5418 = vst [vmem:[#allocation5 + $0x48] sm:$0xff] %v5354
    %5419 = vst [vmem:[#allocation5 + $0x50] sm:$0xff] %v5355
    %5420 = vst [vmem:[#allocation5 + $0x58] sm:$0xff] %v5356
    %5421 = vst [vmem:[#allocation5 + $0x60] sm:$0xff] %v5357
    %5422 = vst [vmem:[#allocation5 + $0x68] sm:$0xff] %v5358
    %5423 = vst [vmem:[#allocation5 + $0x70] sm:$0xff] %v5359
    %5424 = vst [vmem:[#allocation5 + $0x78] sm:$0xff] %v5360
    %5425 = vst [vmem:[#allocation5 + $0x80] sm:$0xff] %v5361
    %5426 = vst [vmem:[#allocation5 + $0x88] sm:$0xff] %v5362
    %5427 = vst [vmem:[#allocation5 + $0x90] sm:$0xff] %v5363
    %5428 = vst [vmem:[#allocation5 + $0x98] sm:$0xff] %v5364
    %5429 = vst [vmem:[#allocation5 + $0xa0] sm:$0xff] %v5365
    %5430 = vst [vmem:[#allocation5 + $0xa8] sm:$0xff] %v5366
    %5431 = vst [vmem:[#allocation5 + $0xb0] sm:$0xff] %v5367
    %5432 = vst [vmem:[#allocation5 + $0xb8] sm:$0xff] %v5368
    %5433 = vst [vmem:[#allocation5 + $0xc0] sm:$0xff] %v5369
    %5434 = vst [vmem:[#allocation5 + $0xc8] sm:$0xff] %v5370
    %5435 = vst [vmem:[#allocation5 + $0xd0] sm:$0xff] %v5371
    %5436 = vst [vmem:[#allocation5 + $0xd8] sm:$0xff] %v5372
    %5437 = vst [vmem:[#allocation5 + $0xe0] sm:$0xff] %v5373
    %5438 = vst [vmem:[#allocation5 + $0xe8] sm:$0xff] %v5374
    %5439 = vst [vmem:[#allocation5 + $0xf0] sm:$0xff] %v5375
    %5440 = vst [vmem:[#allocation5 + $0xf8] sm:$0xff] %v5376
    %v5441 = vld [vmem:[#allocation10] sm:$0xff]
    %v5442 = vld [vmem:[#allocation10 + $0x8] sm:$0xff]
    %v5443 = vld [vmem:[#allocation10 + $0x10] sm:$0xff]
    %v5444 = vld [vmem:[#allocation10 + $0x18] sm:$0xff]
    %v5445 = vld [vmem:[#allocation10 + $0x20] sm:$0xff]
    %v5446 = vld [vmem:[#allocation10 + $0x28] sm:$0xff]
    %v5447 = vld [vmem:[#allocation10 + $0x30] sm:$0xff]
    %v5448 = vld [vmem:[#allocation10 + $0x38] sm:$0xff]
    %v5449 = vld [vmem:[#allocation10 + $0x40] sm:$0xff]
    %v5450 = vld [vmem:[#allocation10 + $0x48] sm:$0xff]
    %v5451 = vld [vmem:[#allocation10 + $0x50] sm:$0xff]
    %v5452 = vld [vmem:[#allocation10 + $0x58] sm:$0xff]
    %v5453 = vld [vmem:[#allocation10 + $0x60] sm:$0xff]
    %v5454 = vld [vmem:[#allocation10 + $0x68] sm:$0xff]
    %v5455 = vld [vmem:[#allocation10 + $0x70] sm:$0xff]
    %v5456 = vld [vmem:[#allocation10 + $0x78] sm:$0xff]
    %v5457 = vld [vmem:[#allocation10 + $0x80] sm:$0xff]
    %v5458 = vld [vmem:[#allocation10 + $0x88] sm:$0xff]
    %v5459 = vld [vmem:[#allocation10 + $0x90] sm:$0xff]
    %v5460 = vld [vmem:[#allocation10 + $0x98] sm:$0xff]
    %v5461 = vld [vmem:[#allocation10 + $0xa0] sm:$0xff]
    %v5462 = vld [vmem:[#allocation10 + $0xa8] sm:$0xff]
    %v5463 = vld [vmem:[#allocation10 + $0xb0] sm:$0xff]
    %v5464 = vld [vmem:[#allocation10 + $0xb8] sm:$0xff]
    %v5465 = vld [vmem:[#allocation10 + $0xc0] sm:$0xff]
    %v5466 = vld [vmem:[#allocation10 + $0xc8] sm:$0xff]
    %v5467 = vld [vmem:[#allocation10 + $0xd0] sm:$0xff]
    %v5468 = vld [vmem:[#allocation10 + $0xd8] sm:$0xff]
    %v5469 = vld [vmem:[#allocation10 + $0xe0] sm:$0xff]
    %v5470 = vld [vmem:[#allocation10 + $0xe8] sm:$0xff]
    %v5471 = vld [vmem:[#allocation10 + $0xf0] sm:$0xff]
    %v5472 = vld [vmem:[#allocation10 + $0xf8] sm:$0xff]
    %v5473 = vld [vmem:[#allocation10 + $0x100] sm:$0xff]
    %v5474 = vld [vmem:[#allocation10 + $0x108] sm:$0xff]
    %v5475 = vld [vmem:[#allocation10 + $0x110] sm:$0xff]
    %v5476 = vld [vmem:[#allocation10 + $0x118] sm:$0xff]
    %v5477 = vld [vmem:[#allocation10 + $0x120] sm:$0xff]
    %v5478 = vld [vmem:[#allocation10 + $0x128] sm:$0xff]
    %v5479 = vld [vmem:[#allocation10 + $0x130] sm:$0xff]
    %v5480 = vld [vmem:[#allocation10 + $0x138] sm:$0xff]
    %v5481 = vld [vmem:[#allocation10 + $0x140] sm:$0xff]
    %v5482 = vld [vmem:[#allocation10 + $0x148] sm:$0xff]
    %v5483 = vld [vmem:[#allocation10 + $0x150] sm:$0xff]
    %v5484 = vld [vmem:[#allocation10 + $0x158] sm:$0xff]
    %v5485 = vld [vmem:[#allocation10 + $0x160] sm:$0xff]
    %v5486 = vld [vmem:[#allocation10 + $0x168] sm:$0xff]
    %v5487 = vld [vmem:[#allocation10 + $0x170] sm:$0xff]
    %v5488 = vld [vmem:[#allocation10 + $0x178] sm:$0xff]
    %v5489 = vld [vmem:[#allocation10 + $0x180] sm:$0xff]
    %v5490 = vld [vmem:[#allocation10 + $0x188] sm:$0xff]
    %v5491 = vld [vmem:[#allocation10 + $0x190] sm:$0xff]
    %v5492 = vld [vmem:[#allocation10 + $0x198] sm:$0xff]
    %v5493 = vld [vmem:[#allocation10 + $0x1a0] sm:$0xff]
    %v5494 = vld [vmem:[#allocation10 + $0x1a8] sm:$0xff]
    %v5495 = vld [vmem:[#allocation10 + $0x1b0] sm:$0xff]
    %v5496 = vld [vmem:[#allocation10 + $0x1b8] sm:$0xff]
    %v5497 = vld [vmem:[#allocation10 + $0x1c0] sm:$0xff]
    %v5498 = vld [vmem:[#allocation10 + $0x1c8] sm:$0xff]
    %v5499 = vld [vmem:[#allocation10 + $0x1d0] sm:$0xff]
    %v5500 = vld [vmem:[#allocation10 + $0x1d8] sm:$0xff]
    %v5501 = vld [vmem:[#allocation10 + $0x1e0] sm:$0xff]
    %v5502 = vld [vmem:[#allocation10 + $0x1e8] sm:$0xff]
    %v5503 = vld [vmem:[#allocation10 + $0x1f0] sm:$0xff]
    %v5504 = vld [vmem:[#allocation10 + $0x1f8] sm:$0xff]
    %v5505 = vld [vmem:[#allocation10 + $0x200] sm:$0xff]
    %v5506 = vld [vmem:[#allocation10 + $0x208] sm:$0xff]
    %v5507 = vld [vmem:[#allocation10 + $0x210] sm:$0xff]
    %v5508 = vld [vmem:[#allocation10 + $0x218] sm:$0xff]
    %v5509 = vld [vmem:[#allocation10 + $0x220] sm:$0xff]
    %v5510 = vld [vmem:[#allocation10 + $0x228] sm:$0xff]
    %v5511 = vld [vmem:[#allocation10 + $0x230] sm:$0xff]
    %v5512 = vld [vmem:[#allocation10 + $0x238] sm:$0xff]
    %v5513 = vld [vmem:[#allocation10 + $0x240] sm:$0xff]
    %v5514 = vld [vmem:[#allocation10 + $0x248] sm:$0xff]
    %v5515 = vld [vmem:[#allocation10 + $0x250] sm:$0xff]
    %v5516 = vld [vmem:[#allocation10 + $0x258] sm:$0xff]
    %v5517 = vld [vmem:[#allocation10 + $0x260] sm:$0xff]
    %v5518 = vld [vmem:[#allocation10 + $0x268] sm:$0xff]
    %v5519 = vld [vmem:[#allocation10 + $0x270] sm:$0xff]
    %v5520 = vld [vmem:[#allocation10 + $0x278] sm:$0xff]
    %v5521 = vld [vmem:[#allocation10 + $0x280] sm:$0xff]
    %v5522 = vld [vmem:[#allocation10 + $0x288] sm:$0xff]
    %v5523 = vld [vmem:[#allocation10 + $0x290] sm:$0xff]
    %v5524 = vld [vmem:[#allocation10 + $0x298] sm:$0xff]
    %v5525 = vld [vmem:[#allocation10 + $0x2a0] sm:$0xff]
    %v5526 = vld [vmem:[#allocation10 + $0x2a8] sm:$0xff]
    %v5527 = vld [vmem:[#allocation10 + $0x2b0] sm:$0xff]
    %v5528 = vld [vmem:[#allocation10 + $0x2b8] sm:$0xff]
    %v5529 = vld [vmem:[#allocation10 + $0x2c0] sm:$0xff]
    %v5530 = vld [vmem:[#allocation10 + $0x2c8] sm:$0xff]
    %v5531 = vld [vmem:[#allocation10 + $0x2d0] sm:$0xff]
    %v5532 = vld [vmem:[#allocation10 + $0x2d8] sm:$0xff]
    %v5533 = vld [vmem:[#allocation10 + $0x2e0] sm:$0xff]
    %v5534 = vld [vmem:[#allocation10 + $0x2e8] sm:$0xff]
    %v5535 = vld [vmem:[#allocation10 + $0x2f0] sm:$0xff]
    %v5536 = vld [vmem:[#allocation10 + $0x2f8] sm:$0xff]
    %v5537 = vld [vmem:[#allocation10 + $0x300] sm:$0xff]
    %v5538 = vld [vmem:[#allocation10 + $0x308] sm:$0xff]
    %v5539 = vld [vmem:[#allocation10 + $0x310] sm:$0xff]
    %v5540 = vld [vmem:[#allocation10 + $0x318] sm:$0xff]
    %v5541 = vld [vmem:[#allocation10 + $0x320] sm:$0xff]
    %v5542 = vld [vmem:[#allocation10 + $0x328] sm:$0xff]
    %v5543 = vld [vmem:[#allocation10 + $0x330] sm:$0xff]
    %v5544 = vld [vmem:[#allocation10 + $0x338] sm:$0xff]
    %v5545 = vld [vmem:[#allocation10 + $0x340] sm:$0xff]
    %v5546 = vld [vmem:[#allocation10 + $0x348] sm:$0xff]
    %v5547 = vld [vmem:[#allocation10 + $0x350] sm:$0xff]
    %v5548 = vld [vmem:[#allocation10 + $0x358] sm:$0xff]
    %v5549 = vld [vmem:[#allocation10 + $0x360] sm:$0xff]
    %v5550 = vld [vmem:[#allocation10 + $0x368] sm:$0xff]
    %v5551 = vld [vmem:[#allocation10 + $0x370] sm:$0xff]
    %v5552 = vld [vmem:[#allocation10 + $0x378] sm:$0xff]
    %v5553 = vld [vmem:[#allocation10 + $0x380] sm:$0xff]
    %v5554 = vld [vmem:[#allocation10 + $0x388] sm:$0xff]
    %v5555 = vld [vmem:[#allocation10 + $0x390] sm:$0xff]
    %v5556 = vld [vmem:[#allocation10 + $0x398] sm:$0xff]
    %v5557 = vld [vmem:[#allocation10 + $0x3a0] sm:$0xff]
    %v5558 = vld [vmem:[#allocation10 + $0x3a8] sm:$0xff]
    %v5559 = vld [vmem:[#allocation10 + $0x3b0] sm:$0xff]
    %v5560 = vld [vmem:[#allocation10 + $0x3b8] sm:$0xff]
    %v5561 = vld [vmem:[#allocation10 + $0x3c0] sm:$0xff]
    %v5562 = vld [vmem:[#allocation10 + $0x3c8] sm:$0xff]
    %v5563 = vld [vmem:[#allocation10 + $0x3d0] sm:$0xff]
    %v5564 = vld [vmem:[#allocation10 + $0x3d8] sm:$0xff]
    %v5565 = vld [vmem:[#allocation10 + $0x3e0] sm:$0xff]
    %v5566 = vld [vmem:[#allocation10 + $0x3e8] sm:$0xff]
    %v5567 = vld [vmem:[#allocation10 + $0x3f0] sm:$0xff]
    %v5568 = vld [vmem:[#allocation10 + $0x3f8] sm:$0xff]
    %v5697 = vunpack.c.l.b16 %v5441
    %v5698 = vunpack.c.h.b16 %v5441
    %v5699 = vunpack.c.l.b16 %v5442
    %v5700 = vunpack.c.h.b16 %v5442
    %v5701 = vunpack.c.l.b16 %v5443
    %v5702 = vunpack.c.h.b16 %v5443
    %v5703 = vunpack.c.l.b16 %v5444
    %v5704 = vunpack.c.h.b16 %v5444
    %v5705 = vunpack.c.l.b16 %v5445
    %v5706 = vunpack.c.h.b16 %v5445
    %v5707 = vunpack.c.l.b16 %v5446
    %v5708 = vunpack.c.h.b16 %v5446
    %v5709 = vunpack.c.l.b16 %v5447
    %v5710 = vunpack.c.h.b16 %v5447
    %v5711 = vunpack.c.l.b16 %v5448
    %v5712 = vunpack.c.h.b16 %v5448
    %v5713 = vunpack.c.l.b16 %v5449
    %v5714 = vunpack.c.h.b16 %v5449
    %v5715 = vunpack.c.l.b16 %v5450
    %v5716 = vunpack.c.h.b16 %v5450
    %v5717 = vunpack.c.l.b16 %v5451
    %v5718 = vunpack.c.h.b16 %v5451
    %v5719 = vunpack.c.l.b16 %v5452
    %v5720 = vunpack.c.h.b16 %v5452
    %v5721 = vunpack.c.l.b16 %v5453
    %v5722 = vunpack.c.h.b16 %v5453
    %v5723 = vunpack.c.l.b16 %v5454
    %v5724 = vunpack.c.h.b16 %v5454
    %v5725 = vunpack.c.l.b16 %v5455
    %v5726 = vunpack.c.h.b16 %v5455
    %v5727 = vunpack.c.l.b16 %v5456
    %v5728 = vunpack.c.h.b16 %v5456
    %v5729 = vunpack.c.l.b16 %v5457
    %v5730 = vunpack.c.h.b16 %v5457
    %v5731 = vunpack.c.l.b16 %v5458
    %v5732 = vunpack.c.h.b16 %v5458
    %v5733 = vunpack.c.l.b16 %v5459
    %v5734 = vunpack.c.h.b16 %v5459
    %v5735 = vunpack.c.l.b16 %v5460
    %v5736 = vunpack.c.h.b16 %v5460
    %v5737 = vunpack.c.l.b16 %v5461
    %v5738 = vunpack.c.h.b16 %v5461
    %v5739 = vunpack.c.l.b16 %v5462
    %v5740 = vunpack.c.h.b16 %v5462
    %v5741 = vunpack.c.l.b16 %v5463
    %v5742 = vunpack.c.h.b16 %v5463
    %v5743 = vunpack.c.l.b16 %v5464
    %v5744 = vunpack.c.h.b16 %v5464
    %v5745 = vunpack.c.l.b16 %v5465
    %v5746 = vunpack.c.h.b16 %v5465
    %v5747 = vunpack.c.l.b16 %v5466
    %v5748 = vunpack.c.h.b16 %v5466
    %v5749 = vunpack.c.l.b16 %v5467
    %v5750 = vunpack.c.h.b16 %v5467
    %v5751 = vunpack.c.l.b16 %v5468
    %v5752 = vunpack.c.h.b16 %v5468
    %v5753 = vunpack.c.l.b16 %v5469
    %v5754 = vunpack.c.h.b16 %v5469
    %v5755 = vunpack.c.l.b16 %v5470
    %v5756 = vunpack.c.h.b16 %v5470
    %v5757 = vunpack.c.l.b16 %v5471
    %v5758 = vunpack.c.h.b16 %v5471
    %v5759 = vunpack.c.l.b16 %v5472
    %v5760 = vunpack.c.h.b16 %v5472
    %v5761 = vunpack.c.l.b16 %v5473
    %v5762 = vunpack.c.h.b16 %v5473
    %v5763 = vunpack.c.l.b16 %v5474
    %v5764 = vunpack.c.h.b16 %v5474
    %v5765 = vunpack.c.l.b16 %v5475
    %v5766 = vunpack.c.h.b16 %v5475
    %v5767 = vunpack.c.l.b16 %v5476
    %v5768 = vunpack.c.h.b16 %v5476
    %v5769 = vunpack.c.l.b16 %v5477
    %v5770 = vunpack.c.h.b16 %v5477
    %v5771 = vunpack.c.l.b16 %v5478
    %v5772 = vunpack.c.h.b16 %v5478
    %v5773 = vunpack.c.l.b16 %v5479
    %v5774 = vunpack.c.h.b16 %v5479
    %v5775 = vunpack.c.l.b16 %v5480
    %v5776 = vunpack.c.h.b16 %v5480
    %v5777 = vunpack.c.l.b16 %v5481
    %v5778 = vunpack.c.h.b16 %v5481
    %v5779 = vunpack.c.l.b16 %v5482
    %v5780 = vunpack.c.h.b16 %v5482
    %v5781 = vunpack.c.l.b16 %v5483
    %v5782 = vunpack.c.h.b16 %v5483
    %v5783 = vunpack.c.l.b16 %v5484
    %v5784 = vunpack.c.h.b16 %v5484
    %v5785 = vunpack.c.l.b16 %v5485
    %v5786 = vunpack.c.h.b16 %v5485
    %v5787 = vunpack.c.l.b16 %v5486
    %v5788 = vunpack.c.h.b16 %v5486
    %v5789 = vunpack.c.l.b16 %v5487
    %v5790 = vunpack.c.h.b16 %v5487
    %v5791 = vunpack.c.l.b16 %v5488
    %v5792 = vunpack.c.h.b16 %v5488
    %v5793 = vunpack.c.l.b16 %v5489
    %v5794 = vunpack.c.h.b16 %v5489
    %v5795 = vunpack.c.l.b16 %v5490
    %v5796 = vunpack.c.h.b16 %v5490
    %v5797 = vunpack.c.l.b16 %v5491
    %v5798 = vunpack.c.h.b16 %v5491
    %v5799 = vunpack.c.l.b16 %v5492
    %v5800 = vunpack.c.h.b16 %v5492
    %v5801 = vunpack.c.l.b16 %v5493
    %v5802 = vunpack.c.h.b16 %v5493
    %v5803 = vunpack.c.l.b16 %v5494
    %v5804 = vunpack.c.h.b16 %v5494
    %v5805 = vunpack.c.l.b16 %v5495
    %v5806 = vunpack.c.h.b16 %v5495
    %v5807 = vunpack.c.l.b16 %v5496
    %v5808 = vunpack.c.h.b16 %v5496
    %v5809 = vunpack.c.l.b16 %v5497
    %v5810 = vunpack.c.h.b16 %v5497
    %v5811 = vunpack.c.l.b16 %v5498
    %v5812 = vunpack.c.h.b16 %v5498
    %v5813 = vunpack.c.l.b16 %v5499
    %v5814 = vunpack.c.h.b16 %v5499
    %v5815 = vunpack.c.l.b16 %v5500
    %v5816 = vunpack.c.h.b16 %v5500
    %v5817 = vunpack.c.l.b16 %v5501
    %v5818 = vunpack.c.h.b16 %v5501
    %v5819 = vunpack.c.l.b16 %v5502
    %v5820 = vunpack.c.h.b16 %v5502
    %v5821 = vunpack.c.l.b16 %v5503
    %v5822 = vunpack.c.h.b16 %v5503
    %v5823 = vunpack.c.l.b16 %v5504
    %v5824 = vunpack.c.h.b16 %v5504
    %v5825 = vunpack.c.l.b16 %v5505
    %v5826 = vunpack.c.h.b16 %v5505
    %v5827 = vunpack.c.l.b16 %v5506
    %v5828 = vunpack.c.h.b16 %v5506
    %v5829 = vunpack.c.l.b16 %v5507
    %v5830 = vunpack.c.h.b16 %v5507
    %v5831 = vunpack.c.l.b16 %v5508
    %v5832 = vunpack.c.h.b16 %v5508
    %v5833 = vunpack.c.l.b16 %v5509
    %v5834 = vunpack.c.h.b16 %v5509
    %v5835 = vunpack.c.l.b16 %v5510
    %v5836 = vunpack.c.h.b16 %v5510
    %v5837 = vunpack.c.l.b16 %v5511
    %v5838 = vunpack.c.h.b16 %v5511
    %v5839 = vunpack.c.l.b16 %v5512
    %v5840 = vunpack.c.h.b16 %v5512
    %v5841 = vunpack.c.l.b16 %v5513
    %v5842 = vunpack.c.h.b16 %v5513
    %v5843 = vunpack.c.l.b16 %v5514
    %v5844 = vunpack.c.h.b16 %v5514
    %v5845 = vunpack.c.l.b16 %v5515
    %v5846 = vunpack.c.h.b16 %v5515
    %v5847 = vunpack.c.l.b16 %v5516
    %v5848 = vunpack.c.h.b16 %v5516
    %v5849 = vunpack.c.l.b16 %v5517
    %v5850 = vunpack.c.h.b16 %v5517
    %v5851 = vunpack.c.l.b16 %v5518
    %v5852 = vunpack.c.h.b16 %v5518
    %v5853 = vunpack.c.l.b16 %v5519
    %v5854 = vunpack.c.h.b16 %v5519
    %v5855 = vunpack.c.l.b16 %v5520
    %v5856 = vunpack.c.h.b16 %v5520
    %v5857 = vunpack.c.l.b16 %v5521
    %v5858 = vunpack.c.h.b16 %v5521
    %v5859 = vunpack.c.l.b16 %v5522
    %v5860 = vunpack.c.h.b16 %v5522
    %v5861 = vunpack.c.l.b16 %v5523
    %v5862 = vunpack.c.h.b16 %v5523
    %v5863 = vunpack.c.l.b16 %v5524
    %v5864 = vunpack.c.h.b16 %v5524
    %v5865 = vunpack.c.l.b16 %v5525
    %v5866 = vunpack.c.h.b16 %v5525
    %v5867 = vunpack.c.l.b16 %v5526
    %v5868 = vunpack.c.h.b16 %v5526
    %v5869 = vunpack.c.l.b16 %v5527
    %v5870 = vunpack.c.h.b16 %v5527
    %v5871 = vunpack.c.l.b16 %v5528
    %v5872 = vunpack.c.h.b16 %v5528
    %v5873 = vunpack.c.l.b16 %v5529
    %v5874 = vunpack.c.h.b16 %v5529
    %v5875 = vunpack.c.l.b16 %v5530
    %v5876 = vunpack.c.h.b16 %v5530
    %v5877 = vunpack.c.l.b16 %v5531
    %v5878 = vunpack.c.h.b16 %v5531
    %v5879 = vunpack.c.l.b16 %v5532
    %v5880 = vunpack.c.h.b16 %v5532
    %v5881 = vunpack.c.l.b16 %v5533
    %v5882 = vunpack.c.h.b16 %v5533
    %v5883 = vunpack.c.l.b16 %v5534
    %v5884 = vunpack.c.h.b16 %v5534
    %v5885 = vunpack.c.l.b16 %v5535
    %v5886 = vunpack.c.h.b16 %v5535
    %v5887 = vunpack.c.l.b16 %v5536
    %v5888 = vunpack.c.h.b16 %v5536
    %v5889 = vunpack.c.l.b16 %v5537
    %v5890 = vunpack.c.h.b16 %v5537
    %v5891 = vunpack.c.l.b16 %v5538
    %v5892 = vunpack.c.h.b16 %v5538
    %v5893 = vunpack.c.l.b16 %v5539
    %v5894 = vunpack.c.h.b16 %v5539
    %v5895 = vunpack.c.l.b16 %v5540
    %v5896 = vunpack.c.h.b16 %v5540
    %v5897 = vunpack.c.l.b16 %v5541
    %v5898 = vunpack.c.h.b16 %v5541
    %v5899 = vunpack.c.l.b16 %v5542
    %v5900 = vunpack.c.h.b16 %v5542
    %v5901 = vunpack.c.l.b16 %v5543
    %v5902 = vunpack.c.h.b16 %v5543
    %v5903 = vunpack.c.l.b16 %v5544
    %v5904 = vunpack.c.h.b16 %v5544
    %v5905 = vunpack.c.l.b16 %v5545
    %v5906 = vunpack.c.h.b16 %v5545
    %v5907 = vunpack.c.l.b16 %v5546
    %v5908 = vunpack.c.h.b16 %v5546
    %v5909 = vunpack.c.l.b16 %v5547
    %v5910 = vunpack.c.h.b16 %v5547
    %v5911 = vunpack.c.l.b16 %v5548
    %v5912 = vunpack.c.h.b16 %v5548
    %v5913 = vunpack.c.l.b16 %v5549
    %v5914 = vunpack.c.h.b16 %v5549
    %v5915 = vunpack.c.l.b16 %v5550
    %v5916 = vunpack.c.h.b16 %v5550
    %v5917 = vunpack.c.l.b16 %v5551
    %v5918 = vunpack.c.h.b16 %v5551
    %v5919 = vunpack.c.l.b16 %v5552
    %v5920 = vunpack.c.h.b16 %v5552
    %v5921 = vunpack.c.l.b16 %v5553
    %v5922 = vunpack.c.h.b16 %v5553
    %v5923 = vunpack.c.l.b16 %v5554
    %v5924 = vunpack.c.h.b16 %v5554
    %v5925 = vunpack.c.l.b16 %v5555
    %v5926 = vunpack.c.h.b16 %v5555
    %v5927 = vunpack.c.l.b16 %v5556
    %v5928 = vunpack.c.h.b16 %v5556
    %v5929 = vunpack.c.l.b16 %v5557
    %v5930 = vunpack.c.h.b16 %v5557
    %v5931 = vunpack.c.l.b16 %v5558
    %v5932 = vunpack.c.h.b16 %v5558
    %v5933 = vunpack.c.l.b16 %v5559
    %v5934 = vunpack.c.h.b16 %v5559
    %v5935 = vunpack.c.l.b16 %v5560
    %v5936 = vunpack.c.h.b16 %v5560
    %v5937 = vunpack.c.l.b16 %v5561
    %v5938 = vunpack.c.h.b16 %v5561
    %v5939 = vunpack.c.l.b16 %v5562
    %v5940 = vunpack.c.h.b16 %v5562
    %v5941 = vunpack.c.l.b16 %v5563
    %v5942 = vunpack.c.h.b16 %v5563
    %v5943 = vunpack.c.l.b16 %v5564
    %v5944 = vunpack.c.h.b16 %v5564
    %v5945 = vunpack.c.l.b16 %v5565
    %v5946 = vunpack.c.h.b16 %v5565
    %v5947 = vunpack.c.l.b16 %v5566
    %v5948 = vunpack.c.h.b16 %v5566
    %v5949 = vunpack.c.l.b16 %v5567
    %v5950 = vunpack.c.h.b16 %v5567
    %v5951 = vunpack.c.l.b16 %v5568
    %v5952 = vunpack.c.h.b16 %v5568
    %v5953 = vpack.c.b16 %v5705, %v5697
    %v5954 = vpack.c.b16 %v5706, %v5698
    %v5955 = vpack.c.b16 %v5707, %v5699
    %v5956 = vpack.c.b16 %v5708, %v5700
    %v5957 = vpack.c.b16 %v5709, %v5701
    %v5958 = vpack.c.b16 %v5710, %v5702
    %v5959 = vpack.c.b16 %v5711, %v5703
    %v5960 = vpack.c.b16 %v5712, %v5704
    %v5961 = vpack.c.b16 %v5721, %v5713
    %v5962 = vpack.c.b16 %v5722, %v5714
    %v5963 = vpack.c.b16 %v5723, %v5715
    %v5964 = vpack.c.b16 %v5724, %v5716
    %v5965 = vpack.c.b16 %v5725, %v5717
    %v5966 = vpack.c.b16 %v5726, %v5718
    %v5967 = vpack.c.b16 %v5727, %v5719
    %v5968 = vpack.c.b16 %v5728, %v5720
    %v5969 = vpack.c.b16 %v5737, %v5729
    %v5970 = vpack.c.b16 %v5738, %v5730
    %v5971 = vpack.c.b16 %v5739, %v5731
    %v5972 = vpack.c.b16 %v5740, %v5732
    %v5973 = vpack.c.b16 %v5741, %v5733
    %v5974 = vpack.c.b16 %v5742, %v5734
    %v5975 = vpack.c.b16 %v5743, %v5735
    %v5976 = vpack.c.b16 %v5744, %v5736
    %v5977 = vpack.c.b16 %v5753, %v5745
    %v5978 = vpack.c.b16 %v5754, %v5746
    %v5979 = vpack.c.b16 %v5755, %v5747
    %v5980 = vpack.c.b16 %v5756, %v5748
    %v5981 = vpack.c.b16 %v5757, %v5749
    %v5982 = vpack.c.b16 %v5758, %v5750
    %v5983 = vpack.c.b16 %v5759, %v5751
    %v5984 = vpack.c.b16 %v5760, %v5752
    %v5985 = vpack.c.b16 %v5769, %v5761
    %v5986 = vpack.c.b16 %v5770, %v5762
    %v5987 = vpack.c.b16 %v5771, %v5763
    %v5988 = vpack.c.b16 %v5772, %v5764
    %v5989 = vpack.c.b16 %v5773, %v5765
    %v5990 = vpack.c.b16 %v5774, %v5766
    %v5991 = vpack.c.b16 %v5775, %v5767
    %v5992 = vpack.c.b16 %v5776, %v5768
    %v5993 = vpack.c.b16 %v5785, %v5777
    %v5994 = vpack.c.b16 %v5786, %v5778
    %v5995 = vpack.c.b16 %v5787, %v5779
    %v5996 = vpack.c.b16 %v5788, %v5780
    %v5997 = vpack.c.b16 %v5789, %v5781
    %v5998 = vpack.c.b16 %v5790, %v5782
    %v5999 = vpack.c.b16 %v5791, %v5783
    %v6000 = vpack.c.b16 %v5792, %v5784
    %v6001 = vpack.c.b16 %v5801, %v5793
    %v6002 = vpack.c.b16 %v5802, %v5794
    %v6003 = vpack.c.b16 %v5803, %v5795
    %v6004 = vpack.c.b16 %v5804, %v5796
    %v6005 = vpack.c.b16 %v5805, %v5797
    %v6006 = vpack.c.b16 %v5806, %v5798
    %v6007 = vpack.c.b16 %v5807, %v5799
    %v6008 = vpack.c.b16 %v5808, %v5800
    %v6009 = vpack.c.b16 %v5817, %v5809
    %v6010 = vpack.c.b16 %v5818, %v5810
    %v6011 = vpack.c.b16 %v5819, %v5811
    %v6012 = vpack.c.b16 %v5820, %v5812
    %v6013 = vpack.c.b16 %v5821, %v5813
    %v6014 = vpack.c.b16 %v5822, %v5814
    %v6015 = vpack.c.b16 %v5823, %v5815
    %v6016 = vpack.c.b16 %v5824, %v5816
    %v6017 = vpack.c.b16 %v5833, %v5825
    %v6018 = vpack.c.b16 %v5834, %v5826
    %v6019 = vpack.c.b16 %v5835, %v5827
    %v6020 = vpack.c.b16 %v5836, %v5828
    %v6021 = vpack.c.b16 %v5837, %v5829
    %v6022 = vpack.c.b16 %v5838, %v5830
    %v6023 = vpack.c.b16 %v5839, %v5831
    %v6024 = vpack.c.b16 %v5840, %v5832
    %v6025 = vpack.c.b16 %v5849, %v5841
    %v6026 = vpack.c.b16 %v5850, %v5842
    %v6027 = vpack.c.b16 %v5851, %v5843
    %v6028 = vpack.c.b16 %v5852, %v5844
    %v6029 = vpack.c.b16 %v5853, %v5845
    %v6030 = vpack.c.b16 %v5854, %v5846
    %v6031 = vpack.c.b16 %v5855, %v5847
    %v6032 = vpack.c.b16 %v5856, %v5848
    %v6033 = vpack.c.b16 %v5865, %v5857
    %v6034 = vpack.c.b16 %v5866, %v5858
    %v6035 = vpack.c.b16 %v5867, %v5859
    %v6036 = vpack.c.b16 %v5868, %v5860
    %v6037 = vpack.c.b16 %v5869, %v5861
    %v6038 = vpack.c.b16 %v5870, %v5862
    %v6039 = vpack.c.b16 %v5871, %v5863
    %v6040 = vpack.c.b16 %v5872, %v5864
    %v6041 = vpack.c.b16 %v5881, %v5873
    %v6042 = vpack.c.b16 %v5882, %v5874
    %v6043 = vpack.c.b16 %v5883, %v5875
    %v6044 = vpack.c.b16 %v5884, %v5876
    %v6045 = vpack.c.b16 %v5885, %v5877
    %v6046 = vpack.c.b16 %v5886, %v5878
    %v6047 = vpack.c.b16 %v5887, %v5879
    %v6048 = vpack.c.b16 %v5888, %v5880
    %v6049 = vpack.c.b16 %v5897, %v5889
    %v6050 = vpack.c.b16 %v5898, %v5890
    %v6051 = vpack.c.b16 %v5899, %v5891
    %v6052 = vpack.c.b16 %v5900, %v5892
    %v6053 = vpack.c.b16 %v5901, %v5893
    %v6054 = vpack.c.b16 %v5902, %v5894
    %v6055 = vpack.c.b16 %v5903, %v5895
    %v6056 = vpack.c.b16 %v5904, %v5896
    %v6057 = vpack.c.b16 %v5913, %v5905
    %v6058 = vpack.c.b16 %v5914, %v5906
    %v6059 = vpack.c.b16 %v5915, %v5907
    %v6060 = vpack.c.b16 %v5916, %v5908
    %v6061 = vpack.c.b16 %v5917, %v5909
    %v6062 = vpack.c.b16 %v5918, %v5910
    %v6063 = vpack.c.b16 %v5919, %v5911
    %v6064 = vpack.c.b16 %v5920, %v5912
    %v6065 = vpack.c.b16 %v5929, %v5921
    %v6066 = vpack.c.b16 %v5930, %v5922
    %v6067 = vpack.c.b16 %v5931, %v5923
    %v6068 = vpack.c.b16 %v5932, %v5924
    %v6069 = vpack.c.b16 %v5933, %v5925
    %v6070 = vpack.c.b16 %v5934, %v5926
    %v6071 = vpack.c.b16 %v5935, %v5927
    %v6072 = vpack.c.b16 %v5936, %v5928
    %v6073 = vpack.c.b16 %v5945, %v5937
    %v6074 = vpack.c.b16 %v5946, %v5938
    %v6075 = vpack.c.b16 %v5947, %v5939
    %v6076 = vpack.c.b16 %v5948, %v5940
    %v6077 = vpack.c.b16 %v5949, %v5941
    %v6078 = vpack.c.b16 %v5950, %v5942
    %v6079 = vpack.c.b16 %v5951, %v5943
    %v6080 = vpack.c.b16 %v5952, %v5944
    %6209 = vmatprep.subr.bf16.mxu0 %v6010
    %6210 = vmatpush1.bf16.msra.mxu0 %v6009
    %6211 = vmatprep.subr.bf16.mxu0 %v6002
    %6212 = vmatpush1.bf16.msra.mxu0 %v6001
    %6213 = vmatprep.subr.bf16.mxu0 %v5994
    %6214 = vmatpush1.bf16.msra.mxu0 %v5993
    %6215 = vmatprep.subr.bf16.mxu0 %v5986
    %6216 = vmatpush1.bf16.msra.mxu0 %v5985
    %6217 = vmatprep.subr.bf16.mxu0 %v5978
    %6218 = vmatpush1.bf16.msra.mxu0 %v5977
    %6219 = vmatprep.subr.bf16.mxu0 %v5970
    %6220 = vmatpush1.bf16.msra.mxu0 %v5969
    %6221 = vmatprep.subr.bf16.mxu0 %v5962
    %6222 = vmatpush1.bf16.msra.mxu0 %v5961
    %6223 = vmatprep.subr.bf16.mxu0 %v5954
    %6224 = vmatpush1.bf16.msra.mxu0 %v5953
    %6225 = vmatprep.subr.bf16.mxu0 %v6074
    %6226 = vmatpush2.bf16.msra.mxu0 %v6073
    %6227 = vmatprep.subr.bf16.mxu0 %v6066
    %6228 = vmatpush2.bf16.msra.mxu0 %v6065
    %6229 = vmatprep.subr.bf16.mxu0 %v6058
    %6230 = vmatpush2.bf16.msra.mxu0 %v6057
    %6231 = vmatprep.subr.bf16.mxu0 %v6050
    %6232 = vmatpush2.bf16.msra.mxu0 %v6049
    %6233 = vmatprep.subr.bf16.mxu0 %v6042
    %6234 = vmatpush2.bf16.msra.mxu0 %v6041
    %6235 = vmatprep.subr.bf16.mxu0 %v6034
    %6236 = vmatpush2.bf16.msra.mxu0 %v6033
    %6237 = vmatprep.subr.bf16.mxu0 %v6026
    %6238 = vmatpush2.bf16.msra.mxu0 %v6025
    %6239 = vmatprep.subr.bf16.mxu0 %v6018
    %6240 = vmatpush2.bf16.msra.mxu0 %v6017
    %6241 = vmatprep.mubr.bf16.mxu0 %v1582
    %6242 = vmatmul.mubr.bf16.gmra.mxu0 %v1582
    %v6243 = vpop.f32.mrf.mxu0
    %v6244 = vadd.f32 0.0, %v6243
    %v6245 = vpop.f32.mrf.mxu0
    %v6246 = vadd.f32 0.0, %v6245
    %v6247 = vpop.f32.mrf.mxu0
    %v6248 = vpop.f32.mrf.mxu0
    %6249 = vdwg.mxu0
    %6250 = vmatprep.subr.bf16.mxu0 %v6012
    %6251 = vmatpush1.bf16.msra.mxu0 %v6011
    %6252 = vmatprep.subr.bf16.mxu0 %v6004
    %6253 = vmatpush1.bf16.msra.mxu0 %v6003
    %6254 = vmatprep.subr.bf16.mxu0 %v5996
    %6255 = vmatpush1.bf16.msra.mxu0 %v5995
    %6256 = vmatprep.subr.bf16.mxu0 %v5988
    %6257 = vmatpush1.bf16.msra.mxu0 %v5987
    %6258 = vmatprep.subr.bf16.mxu0 %v5980
    %6259 = vmatpush1.bf16.msra.mxu0 %v5979
    %6260 = vmatprep.subr.bf16.mxu0 %v5972
    %6261 = vmatpush1.bf16.msra.mxu0 %v5971
    %6262 = vmatprep.subr.bf16.mxu0 %v5964
    %6263 = vmatpush1.bf16.msra.mxu0 %v5963
    %6264 = vmatprep.subr.bf16.mxu0 %v5956
    %6265 = vmatpush1.bf16.msra.mxu0 %v5955
    %6266 = vmatprep.subr.bf16.mxu0 %v6076
    %6267 = vmatpush2.bf16.msra.mxu0 %v6075
    %6268 = vmatprep.subr.bf16.mxu0 %v6068
    %6269 = vmatpush2.bf16.msra.mxu0 %v6067
    %6270 = vmatprep.subr.bf16.mxu0 %v6060
    %6271 = vmatpush2.bf16.msra.mxu0 %v6059
    %6272 = vmatprep.subr.bf16.mxu0 %v6052
    %6273 = vmatpush2.bf16.msra.mxu0 %v6051
    %6274 = vmatprep.subr.bf16.mxu0 %v6044
    %6275 = vmatpush2.bf16.msra.mxu0 %v6043
    %6276 = vmatprep.subr.bf16.mxu0 %v6036
    %6277 = vmatpush2.bf16.msra.mxu0 %v6035
    %6278 = vmatprep.subr.bf16.mxu0 %v6028
    %6279 = vmatpush2.bf16.msra.mxu0 %v6027
    %6280 = vmatprep.subr.bf16.mxu0 %v6020
    %6281 = vmatpush2.bf16.msra.mxu0 %v6019
    %6282 = vmatprep.mubr.bf16.mxu0 %v1582
    %6283 = vmatmul.mubr.bf16.gmra.mxu0 %v1582
    %v6284 = vpop.f32.mrf.mxu0
    %v6285 = vadd.f32 0.0, %v6284
    %v6286 = vpop.f32.mrf.mxu0
    %v6287 = vadd.f32 0.0, %v6286
    %v6288 = vpop.f32.mrf.mxu0
    %v6289 = vpop.f32.mrf.mxu0
    %6290 = vdwg.mxu0
    %6291 = vmatprep.subr.bf16.mxu0 %v6014
    %6292 = vmatpush1.bf16.msra.mxu0 %v6013
    %6293 = vmatprep.subr.bf16.mxu0 %v6006
    %6294 = vmatpush1.bf16.msra.mxu0 %v6005
    %6295 = vmatprep.subr.bf16.mxu0 %v5998
    %6296 = vmatpush1.bf16.msra.mxu0 %v5997
    %6297 = vmatprep.subr.bf16.mxu0 %v5990
    %6298 = vmatpush1.bf16.msra.mxu0 %v5989
    %6299 = vmatprep.subr.bf16.mxu0 %v5982
    %6300 = vmatpush1.bf16.msra.mxu0 %v5981
    %6301 = vmatprep.subr.bf16.mxu0 %v5974
    %6302 = vmatpush1.bf16.msra.mxu0 %v5973
    %6303 = vmatprep.subr.bf16.mxu0 %v5966
    %6304 = vmatpush1.bf16.msra.mxu0 %v5965
    %6305 = vmatprep.subr.bf16.mxu0 %v5958
    %6306 = vmatpush1.bf16.msra.mxu0 %v5957
    %6307 = vmatprep.subr.bf16.mxu0 %v6078
    %6308 = vmatpush2.bf16.msra.mxu0 %v6077
    %6309 = vmatprep.subr.bf16.mxu0 %v6070
    %6310 = vmatpush2.bf16.msra.mxu0 %v6069
    %6311 = vmatprep.subr.bf16.mxu0 %v6062
    %6312 = vmatpush2.bf16.msra.mxu0 %v6061
    %6313 = vmatprep.subr.bf16.mxu0 %v6054
    %6314 = vmatpush2.bf16.msra.mxu0 %v6053
    %6315 = vmatprep.subr.bf16.mxu0 %v6046
    %6316 = vmatpush2.bf16.msra.mxu0 %v6045
    %6317 = vmatprep.subr.bf16.mxu0 %v6038
    %6318 = vmatpush2.bf16.msra.mxu0 %v6037
    %6319 = vmatprep.subr.bf16.mxu0 %v6030
    %6320 = vmatpush2.bf16.msra.mxu0 %v6029
    %6321 = vmatprep.subr.bf16.mxu0 %v6022
    %6322 = vmatpush2.bf16.msra.mxu0 %v6021
    %6323 = vmatprep.mubr.bf16.mxu0 %v1582
    %6324 = vmatmul.mubr.bf16.gmra.mxu0 %v1582
    %v6325 = vpop.f32.mrf.mxu0
    %v6326 = vadd.f32 0.0, %v6325
    %v6327 = vpop.f32.mrf.mxu0
    %v6328 = vadd.f32 0.0, %v6327
    %v6329 = vpop.f32.mrf.mxu0
    %v6330 = vpop.f32.mrf.mxu0
    %6331 = vdwg.mxu0
    %6332 = vmatprep.subr.bf16.mxu0 %v6016
    %6333 = vmatpush1.bf16.msra.mxu0 %v6015
    %6334 = vmatprep.subr.bf16.mxu0 %v6008
    %6335 = vmatpush1.bf16.msra.mxu0 %v6007
    %6336 = vmatprep.subr.bf16.mxu0 %v6000
    %6337 = vmatpush1.bf16.msra.mxu0 %v5999
    %6338 = vmatprep.subr.bf16.mxu0 %v5992
    %6339 = vmatpush1.bf16.msra.mxu0 %v5991
    %6340 = vmatprep.subr.bf16.mxu0 %v5984
    %6341 = vmatpush1.bf16.msra.mxu0 %v5983
    %6342 = vmatprep.subr.bf16.mxu0 %v5976
    %6343 = vmatpush1.bf16.msra.mxu0 %v5975
    %6344 = vmatprep.subr.bf16.mxu0 %v5968
    %6345 = vmatpush1.bf16.msra.mxu0 %v5967
    %6346 = vmatprep.subr.bf16.mxu0 %v5960
    %6347 = vmatpush1.bf16.msra.mxu0 %v5959
    %6348 = vmatprep.subr.bf16.mxu0 %v6080
    %6349 = vmatpush2.bf16.msra.mxu0 %v6079
    %6350 = vmatprep.subr.bf16.mxu0 %v6072
    %6351 = vmatpush2.bf16.msra.mxu0 %v6071
    %6352 = vmatprep.subr.bf16.mxu0 %v6064
    %6353 = vmatpush2.bf16.msra.mxu0 %v6063
    %6354 = vmatprep.subr.bf16.mxu0 %v6056
    %6355 = vmatpush2.bf16.msra.mxu0 %v6055
    %6356 = vmatprep.subr.bf16.mxu0 %v6048
    %6357 = vmatpush2.bf16.msra.mxu0 %v6047
    %6358 = vmatprep.subr.bf16.mxu0 %v6040
    %6359 = vmatpush2.bf16.msra.mxu0 %v6039
    %6360 = vmatprep.subr.bf16.mxu0 %v6032
    %6361 = vmatpush2.bf16.msra.mxu0 %v6031
    %6362 = vmatprep.subr.bf16.mxu0 %v6024
    %6363 = vmatpush2.bf16.msra.mxu0 %v6023
    %6364 = vmatprep.mubr.bf16.mxu0 %v1582
    %6365 = vmatmul.mubr.bf16.gmra.mxu0 %v1582
    %v6366 = vpop.f32.mrf.mxu0
    %v6367 = vadd.f32 0.0, %v6366
    %v6368 = vpop.f32.mrf.mxu0
    %v6369 = vadd.f32 0.0, %v6368
    %v6370 = vpop.f32.mrf.mxu0
    %v6371 = vpop.f32.mrf.mxu0
    %6372 = vdwg.mxu0
    %v6373 = vld [vmem:[#allocation5] sm:$0xff]
    %v6374 = vld [vmem:[#allocation5 + $0x8] sm:$0xff]
    %v6375 = vunpack.c.l.bf16 %v6373
    %v6376 = vunpack.c.h.bf16 %v6373
    %v6377 = vunpack.c.l.bf16 %v6374
    %v6378 = vunpack.c.h.bf16 %v6374
    %v6379 = vadd.f32 %v6375, %v6244
    %v6380 = vadd.f32 %v6376, %v6246
    %v6381 = vadd.f32 %v6377, %v6285
    %v6382 = vadd.f32 %v6378, %v6287
    %v6383 = vld [vmem:[%s2397 + $0x10] sm:$0xff]
    %v6384 = vld [vmem:[%s2397 + $0x18] sm:$0xff]
    %v6385 = vunpack.c.l.bf16 %v6383
    %v6386 = vunpack.c.h.bf16 %v6383
    %v6387 = vunpack.c.l.bf16 %v6384
    %v6388 = vunpack.c.h.bf16 %v6384
    %v6389 = vadd.f32 %v6385, %v6326
    %v6390 = vadd.f32 %v6386, %v6328
    %v6391 = vadd.f32 %v6387, %v6367
    %v6392 = vadd.f32 %v6388, %v6369
    %v6393 = vmul.f32 %v6379, 0.5
    %v6394 = vtanh.pop %v6393
    %v6395 = vmul.f32 %v6394, 0.5
    %v6396 = vadd.f32 %v6395, 0.5
    %v6397 = vmul.f32 %v6380, 0.5
    %v6398 = vtanh.pop %v6397
    %v6399 = vmul.f32 %v6398, 0.5
    %v6400 = vadd.f32 %v6399, 0.5
    %v6401 = vtanh.pop %v6381
    %v6402 = vmul.f32 %v6382, 0.5
    %v6403 = vtanh.pop %v6402
    %v6404 = vmul.f32 %v6403, 0.5
    %v6405 = vadd.f32 %v6404, 0.5
    %v6406 = vmul.f32 %v6400, 0.0
    %v6407 = vmul.f32 %v6396, %v6401
    %v6408 = vadd.f32 %v6406, %v6407
    %v6409 = vtanh.pop %v6408
    %v6410 = vmul.f32 %v6405, %v6409
    %v6411 = vmul.f32 %v6389, 0.5
    %v6412 = vtanh.pop %v6411
    %v6413 = vmul.f32 %v6412, 0.5
    %v6414 = vadd.f32 %v6413, 0.5
    %v6415 = vmul.f32 %v6390, 0.5
    %v6416 = vtanh.pop %v6415
    %v6417 = vmul.f32 %v6416, 0.5
    %v6418 = vadd.f32 %v6417, 0.5
    %v6419 = vtanh.pop %v6391
    %v6420 = vmul.f32 %v6392, 0.5
    %v6421 = vtanh.pop %v6420
    %v6422 = vmul.f32 %v6421, 0.5
    %v6423 = vadd.f32 %v6422, 0.5
    %v6424 = vmul.f32 %v6418, 0.0
    %v6425 = vmul.f32 %v6414, %v6419
    %v6426 = vadd.f32 %v6424, %v6425
    %v6427 = vtanh.pop %v6426
    %v6428 = vmul.f32 %v6423, %v6427
    %6429 = vst [vmem:[#allocation4] sm:$0xff] %v6410
    %s6430 = scalar_lea.vmem [#allocation4], 112
    %6431 = vst [vmem:[%s6430 + $0x8] sm:$0xff] %v6428
    %v6432 = vpack.c.bf16 %v6410, %v6410
    %v6433 = vpack.c.bf16 %v6428, %v6428
    %6434 = vmatprep.subr.bf16.mxu0 %v6010
    %6435 = vmatpush1.bf16.msra.mxu0 %v6009
    %6436 = vmatprep.subr.bf16.mxu0 %v6002
    %6437 = vmatpush1.bf16.msra.mxu0 %v6001
    %6438 = vmatprep.subr.bf16.mxu0 %v5994
    %6439 = vmatpush1.bf16.msra.mxu0 %v5993
    %6440 = vmatprep.subr.bf16.mxu0 %v5986
    %6441 = vmatpush1.bf16.msra.mxu0 %v5985
    %6442 = vmatprep.subr.bf16.mxu0 %v5978
    %6443 = vmatpush1.bf16.msra.mxu0 %v5977
    %6444 = vmatprep.subr.bf16.mxu0 %v5970
    %6445 = vmatpush1.bf16.msra.mxu0 %v5969
    %6446 = vmatprep.subr.bf16.mxu0 %v5962
    %6447 = vmatpush1.bf16.msra.mxu0 %v5961
    %6448 = vmatprep.subr.bf16.mxu0 %v5954
    %6449 = vmatpush1.bf16.msra.mxu0 %v5953
    %6450 = vmatprep.subr.bf16.mxu0 %v6074
    %6451 = vmatpush2.bf16.msra.mxu0 %v6073
    %6452 = vmatprep.subr.bf16.mxu0 %v6066
    %6453 = vmatpush2.bf16.msra.mxu0 %v6065
    %6454 = vmatprep.subr.bf16.mxu0 %v6058
    %6455 = vmatpush2.bf16.msra.mxu0 %v6057
    %6456 = vmatprep.subr.bf16.mxu0 %v6050
    %6457 = vmatpush2.bf16.msra.mxu0 %v6049
    %6458 = vmatprep.subr.bf16.mxu0 %v6042
    %6459 = vmatpush2.bf16.msra.mxu0 %v6041
    %6460 = vmatprep.subr.bf16.mxu0 %v6034
    %6461 = vmatpush2.bf16.msra.mxu0 %v6033
    %6462 = vmatprep.subr.bf16.mxu0 %v6026
    %6463 = vmatpush2.bf16.msra.mxu0 %v6025
    %6464 = vmatprep.subr.bf16.mxu0 %v6018
    %6465 = vmatpush2.bf16.msra.mxu0 %v6017
    %6466 = vmatprep.mubr.bf16.mxu0 %v6433
    %6467 = vmatmul.mubr.bf16.gmra.mxu0 %v6432
    %v6468 = vpop.f32.mrf.mxu0
    %v6469 = vadd.f32 0.0, %v6468
    %v6470 = vpop.f32.mrf.mxu0
    %v6471 = vadd.f32 0.0, %v6470
    %v6472 = vpop.f32.mrf.mxu0
    %v6473 = vpop.f32.mrf.mxu0
    %6474 = vdwg.mxu0
    %6475 = vmatprep.subr.bf16.mxu0 %v6012
    %6476 = vmatpush1.bf16.msra.mxu0 %v6011
    %6477 = vmatprep.subr.bf16.mxu0 %v6004
    %6478 = vmatpush1.bf16.msra.mxu0 %v6003
    %6479 = vmatprep.subr.bf16.mxu0 %v5996
    %6480 = vmatpush1.bf16.msra.mxu0 %v5995
    %6481 = vmatprep.subr.bf16.mxu0 %v5988
    %6482 = vmatpush1.bf16.msra.mxu0 %v5987
    %6483 = vmatprep.subr.bf16.mxu0 %v5980
    %6484 = vmatpush1.bf16.msra.mxu0 %v5979
    %6485 = vmatprep.subr.bf16.mxu0 %v5972
    %6486 = vmatpush1.bf16.msra.mxu0 %v5971
    %6487 = vmatprep.subr.bf16.mxu0 %v5964
    %6488 = vmatpush1.bf16.msra.mxu0 %v5963
    %6489 = vmatprep.subr.bf16.mxu0 %v5956
    %6490 = vmatpush1.bf16.msra.mxu0 %v5955
    %6491 = vmatprep.subr.bf16.mxu0 %v6076
    %6492 = vmatpush2.bf16.msra.mxu0 %v6075
    %6493 = vmatprep.subr.bf16.mxu0 %v6068
    %6494 = vmatpush2.bf16.msra.mxu0 %v6067
    %6495 = vmatprep.subr.bf16.mxu0 %v6060
    %6496 = vmatpush2.bf16.msra.mxu0 %v6059
    %6497 = vmatprep.subr.bf16.mxu0 %v6052
    %6498 = vmatpush2.bf16.msra.mxu0 %v6051
    %6499 = vmatprep.subr.bf16.mxu0 %v6044
    %6500 = vmatpush2.bf16.msra.mxu0 %v6043
    %6501 = vmatprep.subr.bf16.mxu0 %v6036
    %6502 = vmatpush2.bf16.msra.mxu0 %v6035
    %6503 = vmatprep.subr.bf16.mxu0 %v6028
    %6504 = vmatpush2.bf16.msra.mxu0 %v6027
    %6505 = vmatprep.subr.bf16.mxu0 %v6020
    %6506 = vmatpush2.bf16.msra.mxu0 %v6019
    %6507 = vmatprep.mubr.bf16.mxu0 %v6433
    %6508 = vmatmul.mubr.bf16.gmra.mxu0 %v6432
    %v6509 = vpop.f32.mrf.mxu0
    %v6510 = vadd.f32 0.0, %v6509
    %v6511 = vpop.f32.mrf.mxu0
    %v6512 = vadd.f32 0.0, %v6511
    %v6513 = vpop.f32.mrf.mxu0
    %v6514 = vpop.f32.mrf.mxu0
    %6515 = vdwg.mxu0
    %6516 = vmatprep.subr.bf16.mxu0 %v6014
    %6517 = vmatpush1.bf16.msra.mxu0 %v6013
    %6518 = vmatprep.subr.bf16.mxu0 %v6006
    %6519 = vmatpush1.bf16.msra.mxu0 %v6005
    %6520 = vmatprep.subr.bf16.mxu0 %v5998
    %6521 = vmatpush1.bf16.msra.mxu0 %v5997
    %6522 = vmatprep.subr.bf16.mxu0 %v5990
    %6523 = vmatpush1.bf16.msra.mxu0 %v5989
    %6524 = vmatprep.subr.bf16.mxu0 %v5982
    %6525 = vmatpush1.bf16.msra.mxu0 %v5981
    %6526 = vmatprep.subr.bf16.mxu0 %v5974
    %6527 = vmatpush1.bf16.msra.mxu0 %v5973
    %6528 = vmatprep.subr.bf16.mxu0 %v5966
    %6529 = vmatpush1.bf16.msra.mxu0 %v5965
    %6530 = vmatprep.subr.bf16.mxu0 %v5958
    %6531 = vmatpush1.bf16.msra.mxu0 %v5957
    %6532 = vmatprep.subr.bf16.mxu0 %v6078
    %6533 = vmatpush2.bf16.msra.mxu0 %v6077
    %6534 = vmatprep.subr.bf16.mxu0 %v6070
    %6535 = vmatpush2.bf16.msra.mxu0 %v6069
    %6536 = vmatprep.subr.bf16.mxu0 %v6062
    %6537 = vmatpush2.bf16.msra.mxu0 %v6061
    %6538 = vmatprep.subr.bf16.mxu0 %v6054
    %6539 = vmatpush2.bf16.msra.mxu0 %v6053
    %6540 = vmatprep.subr.bf16.mxu0 %v6046
    %6541 = vmatpush2.bf16.msra.mxu0 %v6045
    %6542 = vmatprep.subr.bf16.mxu0 %v6038
    %6543 = vmatpush2.bf16.msra.mxu0 %v6037
    %6544 = vmatprep.subr.bf16.mxu0 %v6030
    %6545 = vmatpush2.bf16.msra.mxu0 %v6029
    %6546 = vmatprep.subr.bf16.mxu0 %v6022
    %6547 = vmatpush2.bf16.msra.mxu0 %v6021
    %6548 = vmatprep.mubr.bf16.mxu0 %v6433
    %6549 = vmatmul.mubr.bf16.gmra.mxu0 %v6432
    %v6550 = vpop.f32.mrf.mxu0
    %v6551 = vadd.f32 0.0, %v6550
    %v6552 = vpop.f32.mrf.mxu0
    %v6553 = vadd.f32 0.0, %v6552
    %v6554 = vpop.f32.mrf.mxu0
    %v6555 = vpop.f32.mrf.mxu0
    %6556 = vdwg.mxu0
    %6557 = vmatprep.subr.bf16.mxu0 %v6016
    %6558 = vmatpush1.bf16.msra.mxu0 %v6015
    %6559 = vmatprep.subr.bf16.mxu0 %v6008
    %6560 = vmatpush1.bf16.msra.mxu0 %v6007
    %6561 = vmatprep.subr.bf16.mxu0 %v6000
    %6562 = vmatpush1.bf16.msra.mxu0 %v5999
    %6563 = vmatprep.subr.bf16.mxu0 %v5992
    %6564 = vmatpush1.bf16.msra.mxu0 %v5991
    %6565 = vmatprep.subr.bf16.mxu0 %v5984
    %6566 = vmatpush1.bf16.msra.mxu0 %v5983
    %6567 = vmatprep.subr.bf16.mxu0 %v5976
    %6568 = vmatpush1.bf16.msra.mxu0 %v5975
    %6569 = vmatprep.subr.bf16.mxu0 %v5968
    %6570 = vmatpush1.bf16.msra.mxu0 %v5967
    %6571 = vmatprep.subr.bf16.mxu0 %v5960
    %6572 = vmatpush1.bf16.msra.mxu0 %v5959
    %6573 = vmatprep.subr.bf16.mxu0 %v6080
    %6574 = vmatpush2.bf16.msra.mxu0 %v6079
    %6575 = vmatprep.subr.bf16.mxu0 %v6072
    %6576 = vmatpush2.bf16.msra.mxu0 %v6071
    %6577 = vmatprep.subr.bf16.mxu0 %v6064
    %6578 = vmatpush2.bf16.msra.mxu0 %v6063
    %6579 = vmatprep.subr.bf16.mxu0 %v6056
    %6580 = vmatpush2.bf16.msra.mxu0 %v6055
    %6581 = vmatprep.subr.bf16.mxu0 %v6048
    %6582 = vmatpush2.bf16.msra.mxu0 %v6047
    %6583 = vmatprep.subr.bf16.mxu0 %v6040
    %6584 = vmatpush2.bf16.msra.mxu0 %v6039
    %6585 = vmatprep.subr.bf16.mxu0 %v6032
    %6586 = vmatpush2.bf16.msra.mxu0 %v6031
    %6587 = vmatprep.subr.bf16.mxu0 %v6024
    %6588 = vmatpush2.bf16.msra.mxu0 %v6023
    %6589 = vmatprep.mubr.bf16.mxu0 %v6433
    %6590 = vmatmul.mubr.bf16.gmra.mxu0 %v6432
    %v6591 = vpop.f32.mrf.mxu0
    %v6592 = vadd.f32 0.0, %v6591
    %v6593 = vpop.f32.mrf.mxu0
    %v6594 = vadd.f32 0.0, %v6593
    %v6595 = vpop.f32.mrf.mxu0
    %v6596 = vpop.f32.mrf.mxu0
    %6597 = vdwg.mxu0
    %v6598 = vld [vmem:[%s2613] sm:$0xff]
    %v6599 = vld [vmem:[%s2613 + $0x8] sm:$0xff]
    %v6600 = vunpack.c.l.bf16 %v6598
    %v6601 = vunpack.c.h.bf16 %v6598
    %v6602 = vunpack.c.l.bf16 %v6599
    %v6603 = vunpack.c.h.bf16 %v6599
    %v6604 = vadd.f32 %v6600, %v6469
    %v6605 = vadd.f32 %v6601, %v6471
    %v6606 = vadd.f32 %v6602, %v6510
    %v6607 = vadd.f32 %v6603, %v6512
    %v6608 = vld [vmem:[%s2624 + $0x10] sm:$0xff]
    %v6609 = vld [vmem:[%s2624 + $0x18] sm:$0xff]
    %v6610 = vunpack.c.l.bf16 %v6608
    %v6611 = vunpack.c.h.bf16 %v6608
    %v6612 = vunpack.c.l.bf16 %v6609
    %v6613 = vunpack.c.h.bf16 %v6609
    %v6614 = vadd.f32 %v6610, %v6551
    %v6615 = vadd.f32 %v6611, %v6553
    %v6616 = vadd.f32 %v6612, %v6592
    %v6617 = vadd.f32 %v6613, %v6594
    %v6618 = vmul.f32 %v6604, 0.5
    %v6619 = vtanh.pop %v6618
    %v6620 = vmul.f32 %v6619, 0.5
    %v6621 = vadd.f32 %v6620, 0.5
    %v6622 = vmul.f32 %v6605, 0.5
    %v6623 = vtanh.pop %v6622
    %v6624 = vmul.f32 %v6623, 0.5
    %v6625 = vadd.f32 %v6624, 0.5
    %v6626 = vtanh.pop %v6606
    %v6627 = vmul.f32 %v6607, 0.5
    %v6628 = vtanh.pop %v6627
    %v6629 = vmul.f32 %v6628, 0.5
    %v6630 = vadd.f32 %v6629, 0.5
    %v6631 = vmul.f32 %v6625, %v6408
    %v6632 = vmul.f32 %v6621, %v6626
    %v6633 = vadd.f32 %v6631, %v6632
    %v6634 = vtanh.pop %v6633
    %v6635 = vmul.f32 %v6630, %v6634
    %v6636 = vmul.f32 %v6614, 0.5
    %v6637 = vtanh.pop %v6636
    %v6638 = vmul.f32 %v6637, 0.5
    %v6639 = vadd.f32 %v6638, 0.5
    %v6640 = vmul.f32 %v6615, 0.5
    %v6641 = vtanh.pop %v6640
    %v6642 = vmul.f32 %v6641, 0.5
    %v6643 = vadd.f32 %v6642, 0.5
    %v6644 = vtanh.pop %v6616
    %v6645 = vmul.f32 %v6617, 0.5
    %v6646 = vtanh.pop %v6645
    %v6647 = vmul.f32 %v6646, 0.5
    %v6648 = vadd.f32 %v6647, 0.5
    %v6649 = vmul.f32 %v6643, %v6426
    %v6650 = vmul.f32 %v6639, %v6644
    %v6651 = vadd.f32 %v6649, %v6650
    %v6652 = vtanh.pop %v6651
    %v6653 = vmul.f32 %v6648, %v6652
    %s6654 = scalar_lea.vmem [#allocation4], 16
    %6655 = vst [vmem:[%s6654] sm:$0xff] %v6635
    %s6656 = scalar_lea.vmem [#allocation4], 96
    %6657 = vst [vmem:[%s6656 + $0x8] sm:$0xff] %v6653
    %v6658 = vpack.c.bf16 %v6635, %v6635
    %v6659 = vpack.c.bf16 %v6653, %v6653
    %6660 = vmatprep.subr.bf16.mxu0 %v6010
    %6661 = vmatpush1.bf16.msra.mxu0 %v6009
    %6662 = vmatprep.subr.bf16.mxu0 %v6002
    %6663 = vmatpush1.bf16.msra.mxu0 %v6001
    %6664 = vmatprep.subr.bf16.mxu0 %v5994
    %6665 = vmatpush1.bf16.msra.mxu0 %v5993
    %6666 = vmatprep.subr.bf16.mxu0 %v5986
    %6667 = vmatpush1.bf16.msra.mxu0 %v5985
    %6668 = vmatprep.subr.bf16.mxu0 %v5978
    %6669 = vmatpush1.bf16.msra.mxu0 %v5977
    %6670 = vmatprep.subr.bf16.mxu0 %v5970
    %6671 = vmatpush1.bf16.msra.mxu0 %v5969
    %6672 = vmatprep.subr.bf16.mxu0 %v5962
    %6673 = vmatpush1.bf16.msra.mxu0 %v5961
    %6674 = vmatprep.subr.bf16.mxu0 %v5954
    %6675 = vmatpush1.bf16.msra.mxu0 %v5953
    %6676 = vmatprep.subr.bf16.mxu0 %v6074
    %6677 = vmatpush2.bf16.msra.mxu0 %v6073
    %6678 = vmatprep.subr.bf16.mxu0 %v6066
    %6679 = vmatpush2.bf16.msra.mxu0 %v6065
    %6680 = vmatprep.subr.bf16.mxu0 %v6058
    %6681 = vmatpush2.bf16.msra.mxu0 %v6057
    %6682 = vmatprep.subr.bf16.mxu0 %v6050
    %6683 = vmatpush2.bf16.msra.mxu0 %v6049
    %6684 = vmatprep.subr.bf16.mxu0 %v6042
    %6685 = vmatpush2.bf16.msra.mxu0 %v6041
    %6686 = vmatprep.subr.bf16.mxu0 %v6034
    %6687 = vmatpush2.bf16.msra.mxu0 %v6033
    %6688 = vmatprep.subr.bf16.mxu0 %v6026
    %6689 = vmatpush2.bf16.msra.mxu0 %v6025
    %6690 = vmatprep.subr.bf16.mxu0 %v6018
    %6691 = vmatpush2.bf16.msra.mxu0 %v6017
    %6692 = vmatprep.mubr.bf16.mxu0 %v6659
    %6693 = vmatmul.mubr.bf16.gmra.mxu0 %v6658
    %v6694 = vpop.f32.mrf.mxu0
    %v6695 = vadd.f32 0.0, %v6694
    %v6696 = vpop.f32.mrf.mxu0
    %v6697 = vadd.f32 0.0, %v6696
    %v6698 = vpop.f32.mrf.mxu0
    %v6699 = vpop.f32.mrf.mxu0
    %6700 = vdwg.mxu0
    %6701 = vmatprep.subr.bf16.mxu0 %v6012
    %6702 = vmatpush1.bf16.msra.mxu0 %v6011
    %6703 = vmatprep.subr.bf16.mxu0 %v6004
    %6704 = vmatpush1.bf16.msra.mxu0 %v6003
    %6705 = vmatprep.subr.bf16.mxu0 %v5996
    %6706 = vmatpush1.bf16.msra.mxu0 %v5995
    %6707 = vmatprep.subr.bf16.mxu0 %v5988
    %6708 = vmatpush1.bf16.msra.mxu0 %v5987
    %6709 = vmatprep.subr.bf16.mxu0 %v5980
    %6710 = vmatpush1.bf16.msra.mxu0 %v5979
    %6711 = vmatprep.subr.bf16.mxu0 %v5972
    %6712 = vmatpush1.bf16.msra.mxu0 %v5971
    %6713 = vmatprep.subr.bf16.mxu0 %v5964
    %6714 = vmatpush1.bf16.msra.mxu0 %v5963
    %6715 = vmatprep.subr.bf16.mxu0 %v5956
    %6716 = vmatpush1.bf16.msra.mxu0 %v5955
    %6717 = vmatprep.subr.bf16.mxu0 %v6076
    %6718 = vmatpush2.bf16.msra.mxu0 %v6075
    %6719 = vmatprep.subr.bf16.mxu0 %v6068
    %6720 = vmatpush2.bf16.msra.mxu0 %v6067
    %6721 = vmatprep.subr.bf16.mxu0 %v6060
    %6722 = vmatpush2.bf16.msra.mxu0 %v6059
    %6723 = vmatprep.subr.bf16.mxu0 %v6052
    %6724 = vmatpush2.bf16.msra.mxu0 %v6051
    %6725 = vmatprep.subr.bf16.mxu0 %v6044
    %6726 = vmatpush2.bf16.msra.mxu0 %v6043
    %6727 = vmatprep.subr.bf16.mxu0 %v6036
    %6728 = vmatpush2.bf16.msra.mxu0 %v6035
    %6729 = vmatprep.subr.bf16.mxu0 %v6028
    %6730 = vmatpush2.bf16.msra.mxu0 %v6027
    %6731 = vmatprep.subr.bf16.mxu0 %v6020
    %6732 = vmatpush2.bf16.msra.mxu0 %v6019
    %6733 = vmatprep.mubr.bf16.mxu0 %v6659
    %6734 = vmatmul.mubr.bf16.gmra.mxu0 %v6658
    %v6735 = vpop.f32.mrf.mxu0
    %v6736 = vadd.f32 0.0, %v6735
    %v6737 = vpop.f32.mrf.mxu0
    %v6738 = vadd.f32 0.0, %v6737
    %v6739 = vpop.f32.mrf.mxu0
    %v6740 = vpop.f32.mrf.mxu0
    %6741 = vdwg.mxu0
    %6742 = vmatprep.subr.bf16.mxu0 %v6014
    %6743 = vmatpush1.bf16.msra.mxu0 %v6013
    %6744 = vmatprep.subr.bf16.mxu0 %v6006
    %6745 = vmatpush1.bf16.msra.mxu0 %v6005
    %6746 = vmatprep.subr.bf16.mxu0 %v5998
    %6747 = vmatpush1.bf16.msra.mxu0 %v5997
    %6748 = vmatprep.subr.bf16.mxu0 %v5990
    %6749 = vmatpush1.bf16.msra.mxu0 %v5989
    %6750 = vmatprep.subr.bf16.mxu0 %v5982
    %6751 = vmatpush1.bf16.msra.mxu0 %v5981
    %6752 = vmatprep.subr.bf16.mxu0 %v5974
    %6753 = vmatpush1.bf16.msra.mxu0 %v5973
    %6754 = vmatprep.subr.bf16.mxu0 %v5966
    %6755 = vmatpush1.bf16.msra.mxu0 %v5965
    %6756 = vmatprep.subr.bf16.mxu0 %v5958
    %6757 = vmatpush1.bf16.msra.mxu0 %v5957
    %6758 = vmatprep.subr.bf16.mxu0 %v6078
    %6759 = vmatpush2.bf16.msra.mxu0 %v6077
    %6760 = vmatprep.subr.bf16.mxu0 %v6070
    %6761 = vmatpush2.bf16.msra.mxu0 %v6069
    %6762 = vmatprep.subr.bf16.mxu0 %v6062
    %6763 = vmatpush2.bf16.msra.mxu0 %v6061
    %6764 = vmatprep.subr.bf16.mxu0 %v6054
    %6765 = vmatpush2.bf16.msra.mxu0 %v6053
    %6766 = vmatprep.subr.bf16.mxu0 %v6046
    %6767 = vmatpush2.bf16.msra.mxu0 %v6045
    %6768 = vmatprep.subr.bf16.mxu0 %v6038
    %6769 = vmatpush2.bf16.msra.mxu0 %v6037
    %6770 = vmatprep.subr.bf16.mxu0 %v6030
    %6771 = vmatpush2.bf16.msra.mxu0 %v6029
    %6772 = vmatprep.subr.bf16.mxu0 %v6022
    %6773 = vmatpush2.bf16.msra.mxu0 %v6021
    %6774 = vmatprep.mubr.bf16.mxu0 %v6659
    %6775 = vmatmul.mubr.bf16.gmra.mxu0 %v6658
    %v6776 = vpop.f32.mrf.mxu0
    %v6777 = vadd.f32 0.0, %v6776
    %v6778 = vpop.f32.mrf.mxu0
    %v6779 = vadd.f32 0.0, %v6778
    %v6780 = vpop.f32.mrf.mxu0
    %v6781 = vpop.f32.mrf.mxu0
    %6782 = vdwg.mxu0
    %6783 = vmatprep.subr.bf16.mxu0 %v6016
    %6784 = vmatpush1.bf16.msra.mxu0 %v6015
    %6785 = vmatprep.subr.bf16.mxu0 %v6008
    %6786 = vmatpush1.bf16.msra.mxu0 %v6007
    %6787 = vmatprep.subr.bf16.mxu0 %v6000
    %6788 = vmatpush1.bf16.msra.mxu0 %v5999
    %6789 = vmatprep.subr.bf16.mxu0 %v5992
    %6790 = vmatpush1.bf16.msra.mxu0 %v5991
    %6791 = vmatprep.subr.bf16.mxu0 %v5984
    %6792 = vmatpush1.bf16.msra.mxu0 %v5983
    %6793 = vmatprep.subr.bf16.mxu0 %v5976
    %6794 = vmatpush1.bf16.msra.mxu0 %v5975
    %6795 = vmatprep.subr.bf16.mxu0 %v5968
    %6796 = vmatpush1.bf16.msra.mxu0 %v5967
    %6797 = vmatprep.subr.bf16.mxu0 %v5960
    %6798 = vmatpush1.bf16.msra.mxu0 %v5959
    %6799 = vmatprep.subr.bf16.mxu0 %v6080
    %6800 = vmatpush2.bf16.msra.mxu0 %v6079
    %6801 = vmatprep.subr.bf16.mxu0 %v6072
    %6802 = vmatpush2.bf16.msra.mxu0 %v6071
    %6803 = vmatprep.subr.bf16.mxu0 %v6064
    %6804 = vmatpush2.bf16.msra.mxu0 %v6063
    %6805 = vmatprep.subr.bf16.mxu0 %v6056
    %6806 = vmatpush2.bf16.msra.mxu0 %v6055
    %6807 = vmatprep.subr.bf16.mxu0 %v6048
    %6808 = vmatpush2.bf16.msra.mxu0 %v6047
    %6809 = vmatprep.subr.bf16.mxu0 %v6040
    %6810 = vmatpush2.bf16.msra.mxu0 %v6039
    %6811 = vmatprep.subr.bf16.mxu0 %v6032
    %6812 = vmatpush2.bf16.msra.mxu0 %v6031
    %6813 = vmatprep.subr.bf16.mxu0 %v6024
    %6814 = vmatpush2.bf16.msra.mxu0 %v6023
    %6815 = vmatprep.mubr.bf16.mxu0 %v6659
    %6816 = vmatmul.mubr.bf16.gmra.mxu0 %v6658
    %v6817 = vpop.f32.mrf.mxu0
    %v6818 = vadd.f32 0.0, %v6817
    %v6819 = vpop.f32.mrf.mxu0
    %v6820 = vadd.f32 0.0, %v6819
    %v6821 = vpop.f32.mrf.mxu0
    %v6822 = vpop.f32.mrf.mxu0
    %6823 = vdwg.mxu0
    %v6824 = vld [vmem:[%s2841] sm:$0xff]
    %v6825 = vld [vmem:[%s2841 + $0x8] sm:$0xff]
    %v6826 = vunpack.c.l.bf16 %v6824
    %v6827 = vunpack.c.h.bf16 %v6824
    %v6828 = vunpack.c.l.bf16 %v6825
    %v6829 = vunpack.c.h.bf16 %v6825
    %v6830 = vadd.f32 %v6826, %v6695
    %v6831 = vadd.f32 %v6827, %v6697
    %v6832 = vadd.f32 %v6828, %v6736
    %v6833 = vadd.f32 %v6829, %v6738
    %v6834 = vld [vmem:[%s2852 + $0x10] sm:$0xff]
    %v6835 = vld [vmem:[%s2852 + $0x18] sm:$0xff]
    %v6836 = vunpack.c.l.bf16 %v6834
    %v6837 = vunpack.c.h.bf16 %v6834
    %v6838 = vunpack.c.l.bf16 %v6835
    %v6839 = vunpack.c.h.bf16 %v6835
    %v6840 = vadd.f32 %v6836, %v6777
    %v6841 = vadd.f32 %v6837, %v6779
    %v6842 = vadd.f32 %v6838, %v6818
    %v6843 = vadd.f32 %v6839, %v6820
    %v6844 = vmul.f32 %v6830, 0.5
    %v6845 = vtanh.pop %v6844
    %v6846 = vmul.f32 %v6845, 0.5
    %v6847 = vadd.f32 %v6846, 0.5
    %v6848 = vmul.f32 %v6831, 0.5
    %v6849 = vtanh.pop %v6848
    %v6850 = vmul.f32 %v6849, 0.5
    %v6851 = vadd.f32 %v6850, 0.5
    %v6852 = vtanh.pop %v6832
    %v6853 = vmul.f32 %v6833, 0.5
    %v6854 = vtanh.pop %v6853
    %v6855 = vmul.f32 %v6854, 0.5
    %v6856 = vadd.f32 %v6855, 0.5
    %v6857 = vmul.f32 %v6851, %v6633
    %v6858 = vmul.f32 %v6847, %v6852
    %v6859 = vadd.f32 %v6857, %v6858
    %v6860 = vtanh.pop %v6859
    %v6861 = vmul.f32 %v6856, %v6860
    %v6862 = vmul.f32 %v6840, 0.5
    %v6863 = vtanh.pop %v6862
    %v6864 = vmul.f32 %v6863, 0.5
    %v6865 = vadd.f32 %v6864, 0.5
    %v6866 = vmul.f32 %v6841, 0.5
    %v6867 = vtanh.pop %v6866
    %v6868 = vmul.f32 %v6867, 0.5
    %v6869 = vadd.f32 %v6868, 0.5
    %v6870 = vtanh.pop %v6842
    %v6871 = vmul.f32 %v6843, 0.5
    %v6872 = vtanh.pop %v6871
    %v6873 = vmul.f32 %v6872, 0.5
    %v6874 = vadd.f32 %v6873, 0.5
    %v6875 = vmul.f32 %v6869, %v6651
    %v6876 = vmul.f32 %v6865, %v6870
    %v6877 = vadd.f32 %v6875, %v6876
    %v6878 = vtanh.pop %v6877
    %v6879 = vmul.f32 %v6874, %v6878
    %s6880 = scalar_lea.vmem [#allocation4], 32
    %6881 = vst [vmem:[%s6880] sm:$0xff] %v6861
    %s6882 = scalar_lea.vmem [#allocation4], 80
    %6883 = vst [vmem:[%s6882 + $0x8] sm:$0xff] %v6879
    %v6884 = vpack.c.bf16 %v6861, %v6861
    %v6885 = vpack.c.bf16 %v6879, %v6879
    %6886 = vmatprep.subr.bf16.mxu0 %v6010
    %6887 = vmatpush1.bf16.msra.mxu0 %v6009
    %6888 = vmatprep.subr.bf16.mxu0 %v6002
    %6889 = vmatpush1.bf16.msra.mxu0 %v6001
    %6890 = vmatprep.subr.bf16.mxu0 %v5994
    %6891 = vmatpush1.bf16.msra.mxu0 %v5993
    %6892 = vmatprep.subr.bf16.mxu0 %v5986
    %6893 = vmatpush1.bf16.msra.mxu0 %v5985
    %6894 = vmatprep.subr.bf16.mxu0 %v5978
    %6895 = vmatpush1.bf16.msra.mxu0 %v5977
    %6896 = vmatprep.subr.bf16.mxu0 %v5970
    %6897 = vmatpush1.bf16.msra.mxu0 %v5969
    %6898 = vmatprep.subr.bf16.mxu0 %v5962
    %6899 = vmatpush1.bf16.msra.mxu0 %v5961
    %6900 = vmatprep.subr.bf16.mxu0 %v5954
    %6901 = vmatpush1.bf16.msra.mxu0 %v5953
    %6902 = vmatprep.subr.bf16.mxu0 %v6074
    %6903 = vmatpush2.bf16.msra.mxu0 %v6073
    %6904 = vmatprep.subr.bf16.mxu0 %v6066
    %6905 = vmatpush2.bf16.msra.mxu0 %v6065
    %6906 = vmatprep.subr.bf16.mxu0 %v6058
    %6907 = vmatpush2.bf16.msra.mxu0 %v6057
    %6908 = vmatprep.subr.bf16.mxu0 %v6050
    %6909 = vmatpush2.bf16.msra.mxu0 %v6049
    %6910 = vmatprep.subr.bf16.mxu0 %v6042
    %6911 = vmatpush2.bf16.msra.mxu0 %v6041
    %6912 = vmatprep.subr.bf16.mxu0 %v6034
    %6913 = vmatpush2.bf16.msra.mxu0 %v6033
    %6914 = vmatprep.subr.bf16.mxu0 %v6026
    %6915 = vmatpush2.bf16.msra.mxu0 %v6025
    %6916 = vmatprep.subr.bf16.mxu0 %v6018
    %6917 = vmatpush2.bf16.msra.mxu0 %v6017
    %6918 = vmatprep.mubr.bf16.mxu0 %v6885
    %6919 = vmatmul.mubr.bf16.gmra.mxu0 %v6884
    %v6920 = vpop.f32.mrf.mxu0
    %v6921 = vadd.f32 0.0, %v6920
    %v6922 = vpop.f32.mrf.mxu0
    %v6923 = vadd.f32 0.0, %v6922
    %v6924 = vpop.f32.mrf.mxu0
    %v6925 = vpop.f32.mrf.mxu0
    %6926 = vdwg.mxu0
    %6927 = vmatprep.subr.bf16.mxu0 %v6012
    %6928 = vmatpush1.bf16.msra.mxu0 %v6011
    %6929 = vmatprep.subr.bf16.mxu0 %v6004
    %6930 = vmatpush1.bf16.msra.mxu0 %v6003
    %6931 = vmatprep.subr.bf16.mxu0 %v5996
    %6932 = vmatpush1.bf16.msra.mxu0 %v5995
    %6933 = vmatprep.subr.bf16.mxu0 %v5988
    %6934 = vmatpush1.bf16.msra.mxu0 %v5987
    %6935 = vmatprep.subr.bf16.mxu0 %v5980
    %6936 = vmatpush1.bf16.msra.mxu0 %v5979
    %6937 = vmatprep.subr.bf16.mxu0 %v5972
    %6938 = vmatpush1.bf16.msra.mxu0 %v5971
    %6939 = vmatprep.subr.bf16.mxu0 %v5964
    %6940 = vmatpush1.bf16.msra.mxu0 %v5963
    %6941 = vmatprep.subr.bf16.mxu0 %v5956
    %6942 = vmatpush1.bf16.msra.mxu0 %v5955
    %6943 = vmatprep.subr.bf16.mxu0 %v6076
    %6944 = vmatpush2.bf16.msra.mxu0 %v6075
    %6945 = vmatprep.subr.bf16.mxu0 %v6068
    %6946 = vmatpush2.bf16.msra.mxu0 %v6067
    %6947 = vmatprep.subr.bf16.mxu0 %v6060
    %6948 = vmatpush2.bf16.msra.mxu0 %v6059
    %6949 = vmatprep.subr.bf16.mxu0 %v6052
    %6950 = vmatpush2.bf16.msra.mxu0 %v6051
    %6951 = vmatprep.subr.bf16.mxu0 %v6044
    %6952 = vmatpush2.bf16.msra.mxu0 %v6043
    %6953 = vmatprep.subr.bf16.mxu0 %v6036
    %6954 = vmatpush2.bf16.msra.mxu0 %v6035
    %6955 = vmatprep.subr.bf16.mxu0 %v6028
    %6956 = vmatpush2.bf16.msra.mxu0 %v6027
    %6957 = vmatprep.subr.bf16.mxu0 %v6020
    %6958 = vmatpush2.bf16.msra.mxu0 %v6019
    %6959 = vmatprep.mubr.bf16.mxu0 %v6885
    %6960 = vmatmul.mubr.bf16.gmra.mxu0 %v6884
    %v6961 = vpop.f32.mrf.mxu0
    %v6962 = vadd.f32 0.0, %v6961
    %v6963 = vpop.f32.mrf.mxu0
    %v6964 = vadd.f32 0.0, %v6963
    %v6965 = vpop.f32.mrf.mxu0
    %v6966 = vpop.f32.mrf.mxu0
    %6967 = vdwg.mxu0
    %6968 = vmatprep.subr.bf16.mxu0 %v6014
    %6969 = vmatpush1.bf16.msra.mxu0 %v6013
    %6970 = vmatprep.subr.bf16.mxu0 %v6006
    %6971 = vmatpush1.bf16.msra.mxu0 %v6005
    %6972 = vmatprep.subr.bf16.mxu0 %v5998
    %6973 = vmatpush1.bf16.msra.mxu0 %v5997
    %6974 = vmatprep.subr.bf16.mxu0 %v5990
    %6975 = vmatpush1.bf16.msra.mxu0 %v5989
    %6976 = vmatprep.subr.bf16.mxu0 %v5982
    %6977 = vmatpush1.bf16.msra.mxu0 %v5981
    %6978 = vmatprep.subr.bf16.mxu0 %v5974
    %6979 = vmatpush1.bf16.msra.mxu0 %v5973
    %6980 = vmatprep.subr.bf16.mxu0 %v5966
    %6981 = vmatpush1.bf16.msra.mxu0 %v5965
    %6982 = vmatprep.subr.bf16.mxu0 %v5958
    %6983 = vmatpush1.bf16.msra.mxu0 %v5957
    %6984 = vmatprep.subr.bf16.mxu0 %v6078
    %6985 = vmatpush2.bf16.msra.mxu0 %v6077
    %6986 = vmatprep.subr.bf16.mxu0 %v6070
    %6987 = vmatpush2.bf16.msra.mxu0 %v6069
    %6988 = vmatprep.subr.bf16.mxu0 %v6062
    %6989 = vmatpush2.bf16.msra.mxu0 %v6061
    %6990 = vmatprep.subr.bf16.mxu0 %v6054
    %6991 = vmatpush2.bf16.msra.mxu0 %v6053
    %6992 = vmatprep.subr.bf16.mxu0 %v6046
    %6993 = vmatpush2.bf16.msra.mxu0 %v6045
    %6994 = vmatprep.subr.bf16.mxu0 %v6038
    %6995 = vmatpush2.bf16.msra.mxu0 %v6037
    %6996 = vmatprep.subr.bf16.mxu0 %v6030
    %6997 = vmatpush2.bf16.msra.mxu0 %v6029
    %6998 = vmatprep.subr.bf16.mxu0 %v6022
    %6999 = vmatpush2.bf16.msra.mxu0 %v6021
    %7000 = vmatprep.mubr.bf16.mxu0 %v6885
    %7001 = vmatmul.mubr.bf16.gmra.mxu0 %v6884
    %v7002 = vpop.f32.mrf.mxu0
    %v7003 = vadd.f32 0.0, %v7002
    %v7004 = vpop.f32.mrf.mxu0
    %v7005 = vadd.f32 0.0, %v7004
    %v7006 = vpop.f32.mrf.mxu0
    %v7007 = vpop.f32.mrf.mxu0
    %7008 = vdwg.mxu0
    %7009 = vmatprep.subr.bf16.mxu0 %v6016
    %7010 = vmatpush1.bf16.msra.mxu0 %v6015
    %7011 = vmatprep.subr.bf16.mxu0 %v6008
    %7012 = vmatpush1.bf16.msra.mxu0 %v6007
    %7013 = vmatprep.subr.bf16.mxu0 %v6000
    %7014 = vmatpush1.bf16.msra.mxu0 %v5999
    %7015 = vmatprep.subr.bf16.mxu0 %v5992
    %7016 = vmatpush1.bf16.msra.mxu0 %v5991
    %7017 = vmatprep.subr.bf16.mxu0 %v5984
    %7018 = vmatpush1.bf16.msra.mxu0 %v5983
    %7019 = vmatprep.subr.bf16.mxu0 %v5976
    %7020 = vmatpush1.bf16.msra.mxu0 %v5975
    %7021 = vmatprep.subr.bf16.mxu0 %v5968
    %7022 = vmatpush1.bf16.msra.mxu0 %v5967
    %7023 = vmatprep.subr.bf16.mxu0 %v5960
    %7024 = vmatpush1.bf16.msra.mxu0 %v5959
    %7025 = vmatprep.subr.bf16.mxu0 %v6080
    %7026 = vmatpush2.bf16.msra.mxu0 %v6079
    %7027 = vmatprep.subr.bf16.mxu0 %v6072
    %7028 = vmatpush2.bf16.msra.mxu0 %v6071
    %7029 = vmatprep.subr.bf16.mxu0 %v6064
    %7030 = vmatpush2.bf16.msra.mxu0 %v6063
    %7031 = vmatprep.subr.bf16.mxu0 %v6056
    %7032 = vmatpush2.bf16.msra.mxu0 %v6055
    %7033 = vmatprep.subr.bf16.mxu0 %v6048
    %7034 = vmatpush2.bf16.msra.mxu0 %v6047
    %7035 = vmatprep.subr.bf16.mxu0 %v6040
    %7036 = vmatpush2.bf16.msra.mxu0 %v6039
    %7037 = vmatprep.subr.bf16.mxu0 %v6032
    %7038 = vmatpush2.bf16.msra.mxu0 %v6031
    %7039 = vmatprep.subr.bf16.mxu0 %v6024
    %7040 = vmatpush2.bf16.msra.mxu0 %v6023
    %7041 = vmatprep.mubr.bf16.mxu0 %v6885
    %7042 = vmatmul.mubr.bf16.gmra.mxu0 %v6884
    %v7043 = vpop.f32.mrf.mxu0
    %v7044 = vadd.f32 0.0, %v7043
    %v7045 = vpop.f32.mrf.mxu0
    %v7046 = vadd.f32 0.0, %v7045
    %v7047 = vpop.f32.mrf.mxu0
    %v7048 = vpop.f32.mrf.mxu0
    %7049 = vdwg.mxu0
    %v7050 = vld [vmem:[%s3069] sm:$0xff]
    %v7051 = vld [vmem:[%s3069 + $0x8] sm:$0xff]
    %v7052 = vunpack.c.l.bf16 %v7050
    %v7053 = vunpack.c.h.bf16 %v7050
    %v7054 = vunpack.c.l.bf16 %v7051
    %v7055 = vunpack.c.h.bf16 %v7051
    %v7056 = vadd.f32 %v7052, %v6921
    %v7057 = vadd.f32 %v7053, %v6923
    %v7058 = vadd.f32 %v7054, %v6962
    %v7059 = vadd.f32 %v7055, %v6964
    %v7060 = vld [vmem:[%s3080 + $0x10] sm:$0xff]
    %v7061 = vld [vmem:[%s3080 + $0x18] sm:$0xff]
    %v7062 = vunpack.c.l.bf16 %v7060
    %v7063 = vunpack.c.h.bf16 %v7060
    %v7064 = vunpack.c.l.bf16 %v7061
    %v7065 = vunpack.c.h.bf16 %v7061
    %v7066 = vadd.f32 %v7062, %v7003
    %v7067 = vadd.f32 %v7063, %v7005
    %v7068 = vadd.f32 %v7064, %v7044
    %v7069 = vadd.f32 %v7065, %v7046
    %v7070 = vmul.f32 %v7056, 0.5
    %v7071 = vtanh.pop %v7070
    %v7072 = vmul.f32 %v7071, 0.5
    %v7073 = vadd.f32 %v7072, 0.5
    %v7074 = vmul.f32 %v7057, 0.5
    %v7075 = vtanh.pop %v7074
    %v7076 = vmul.f32 %v7075, 0.5
    %v7077 = vadd.f32 %v7076, 0.5
    %v7078 = vtanh.pop %v7058
    %v7079 = vmul.f32 %v7059, 0.5
    %v7080 = vtanh.pop %v7079
    %v7081 = vmul.f32 %v7080, 0.5
    %v7082 = vadd.f32 %v7081, 0.5
    %v7083 = vmul.f32 %v7077, %v6859
    %v7084 = vmul.f32 %v7073, %v7078
    %v7085 = vadd.f32 %v7083, %v7084
    %v7086 = vtanh.pop %v7085
    %v7087 = vmul.f32 %v7082, %v7086
    %v7088 = vmul.f32 %v7066, 0.5
    %v7089 = vtanh.pop %v7088
    %v7090 = vmul.f32 %v7089, 0.5
    %v7091 = vadd.f32 %v7090, 0.5
    %v7092 = vmul.f32 %v7067, 0.5
    %v7093 = vtanh.pop %v7092
    %v7094 = vmul.f32 %v7093, 0.5
    %v7095 = vadd.f32 %v7094, 0.5
    %v7096 = vtanh.pop %v7068
    %v7097 = vmul.f32 %v7069, 0.5
    %v7098 = vtanh.pop %v7097
    %v7099 = vmul.f32 %v7098, 0.5
    %v7100 = vadd.f32 %v7099, 0.5
    %v7101 = vmul.f32 %v7095, %v6877
    %v7102 = vmul.f32 %v7091, %v7096
    %v7103 = vadd.f32 %v7101, %v7102
    %v7104 = vtanh.pop %v7103
    %v7105 = vmul.f32 %v7100, %v7104
    %s7106 = scalar_lea.vmem [#allocation4], 48
    %7107 = vst [vmem:[%s7106] sm:$0xff] %v7087
    %s7108 = scalar_lea.vmem [#allocation4], 64
    %7109 = vst [vmem:[%s7108 + $0x8] sm:$0xff] %v7105
    %v7110 = vpack.c.bf16 %v7087, %v7087
    %v7111 = vpack.c.bf16 %v7105, %v7105
    %7112 = vmatprep.subr.bf16.mxu0 %v6010
    %7113 = vmatpush1.bf16.msra.mxu0 %v6009
    %7114 = vmatprep.subr.bf16.mxu0 %v6002
    %7115 = vmatpush1.bf16.msra.mxu0 %v6001
    %7116 = vmatprep.subr.bf16.mxu0 %v5994
    %7117 = vmatpush1.bf16.msra.mxu0 %v5993
    %7118 = vmatprep.subr.bf16.mxu0 %v5986
    %7119 = vmatpush1.bf16.msra.mxu0 %v5985
    %7120 = vmatprep.subr.bf16.mxu0 %v5978
    %7121 = vmatpush1.bf16.msra.mxu0 %v5977
    %7122 = vmatprep.subr.bf16.mxu0 %v5970
    %7123 = vmatpush1.bf16.msra.mxu0 %v5969
    %7124 = vmatprep.subr.bf16.mxu0 %v5962
    %7125 = vmatpush1.bf16.msra.mxu0 %v5961
    %7126 = vmatprep.subr.bf16.mxu0 %v5954
    %7127 = vmatpush1.bf16.msra.mxu0 %v5953
    %7128 = vmatprep.subr.bf16.mxu0 %v6074
    %7129 = vmatpush2.bf16.msra.mxu0 %v6073
    %7130 = vmatprep.subr.bf16.mxu0 %v6066
    %7131 = vmatpush2.bf16.msra.mxu0 %v6065
    %7132 = vmatprep.subr.bf16.mxu0 %v6058
    %7133 = vmatpush2.bf16.msra.mxu0 %v6057
    %7134 = vmatprep.subr.bf16.mxu0 %v6050
    %7135 = vmatpush2.bf16.msra.mxu0 %v6049
    %7136 = vmatprep.subr.bf16.mxu0 %v6042
    %7137 = vmatpush2.bf16.msra.mxu0 %v6041
    %7138 = vmatprep.subr.bf16.mxu0 %v6034
    %7139 = vmatpush2.bf16.msra.mxu0 %v6033
    %7140 = vmatprep.subr.bf16.mxu0 %v6026
    %7141 = vmatpush2.bf16.msra.mxu0 %v6025
    %7142 = vmatprep.subr.bf16.mxu0 %v6018
    %7143 = vmatpush2.bf16.msra.mxu0 %v6017
    %7144 = vmatprep.mubr.bf16.mxu0 %v7111
    %7145 = vmatmul.mubr.bf16.gmra.mxu0 %v7110
    %v7146 = vpop.f32.mrf.mxu0
    %v7147 = vadd.f32 0.0, %v7146
    %v7148 = vpop.f32.mrf.mxu0
    %v7149 = vadd.f32 0.0, %v7148
    %v7150 = vpop.f32.mrf.mxu0
    %v7151 = vpop.f32.mrf.mxu0
    %7152 = vdwg.mxu0
    %7153 = vmatprep.subr.bf16.mxu0 %v6012
    %7154 = vmatpush1.bf16.msra.mxu0 %v6011
    %7155 = vmatprep.subr.bf16.mxu0 %v6004
    %7156 = vmatpush1.bf16.msra.mxu0 %v6003
    %7157 = vmatprep.subr.bf16.mxu0 %v5996
    %7158 = vmatpush1.bf16.msra.mxu0 %v5995
    %7159 = vmatprep.subr.bf16.mxu0 %v5988
    %7160 = vmatpush1.bf16.msra.mxu0 %v5987
    %7161 = vmatprep.subr.bf16.mxu0 %v5980
    %7162 = vmatpush1.bf16.msra.mxu0 %v5979
    %7163 = vmatprep.subr.bf16.mxu0 %v5972
    %7164 = vmatpush1.bf16.msra.mxu0 %v5971
    %7165 = vmatprep.subr.bf16.mxu0 %v5964
    %7166 = vmatpush1.bf16.msra.mxu0 %v5963
    %7167 = vmatprep.subr.bf16.mxu0 %v5956
    %7168 = vmatpush1.bf16.msra.mxu0 %v5955
    %7169 = vmatprep.subr.bf16.mxu0 %v6076
    %7170 = vmatpush2.bf16.msra.mxu0 %v6075
    %7171 = vmatprep.subr.bf16.mxu0 %v6068
    %7172 = vmatpush2.bf16.msra.mxu0 %v6067
    %7173 = vmatprep.subr.bf16.mxu0 %v6060
    %7174 = vmatpush2.bf16.msra.mxu0 %v6059
    %7175 = vmatprep.subr.bf16.mxu0 %v6052
    %7176 = vmatpush2.bf16.msra.mxu0 %v6051
    %7177 = vmatprep.subr.bf16.mxu0 %v6044
    %7178 = vmatpush2.bf16.msra.mxu0 %v6043
    %7179 = vmatprep.subr.bf16.mxu0 %v6036
    %7180 = vmatpush2.bf16.msra.mxu0 %v6035
    %7181 = vmatprep.subr.bf16.mxu0 %v6028
    %7182 = vmatpush2.bf16.msra.mxu0 %v6027
    %7183 = vmatprep.subr.bf16.mxu0 %v6020
    %7184 = vmatpush2.bf16.msra.mxu0 %v6019
    %7185 = vmatprep.mubr.bf16.mxu0 %v7111
    %7186 = vmatmul.mubr.bf16.gmra.mxu0 %v7110
    %v7187 = vpop.f32.mrf.mxu0
    %v7188 = vadd.f32 0.0, %v7187
    %v7189 = vpop.f32.mrf.mxu0
    %v7190 = vadd.f32 0.0, %v7189
    %v7191 = vpop.f32.mrf.mxu0
    %v7192 = vpop.f32.mrf.mxu0
    %7193 = vdwg.mxu0
    %7194 = vmatprep.subr.bf16.mxu0 %v6014
    %7195 = vmatpush1.bf16.msra.mxu0 %v6013
    %7196 = vmatprep.subr.bf16.mxu0 %v6006
    %7197 = vmatpush1.bf16.msra.mxu0 %v6005
    %7198 = vmatprep.subr.bf16.mxu0 %v5998
    %7199 = vmatpush1.bf16.msra.mxu0 %v5997
    %7200 = vmatprep.subr.bf16.mxu0 %v5990
    %7201 = vmatpush1.bf16.msra.mxu0 %v5989
    %7202 = vmatprep.subr.bf16.mxu0 %v5982
    %7203 = vmatpush1.bf16.msra.mxu0 %v5981
    %7204 = vmatprep.subr.bf16.mxu0 %v5974
    %7205 = vmatpush1.bf16.msra.mxu0 %v5973
    %7206 = vmatprep.subr.bf16.mxu0 %v5966
    %7207 = vmatpush1.bf16.msra.mxu0 %v5965
    %7208 = vmatprep.subr.bf16.mxu0 %v5958
    %7209 = vmatpush1.bf16.msra.mxu0 %v5957
    %7210 = vmatprep.subr.bf16.mxu0 %v6078
    %7211 = vmatpush2.bf16.msra.mxu0 %v6077
    %7212 = vmatprep.subr.bf16.mxu0 %v6070
    %7213 = vmatpush2.bf16.msra.mxu0 %v6069
    %7214 = vmatprep.subr.bf16.mxu0 %v6062
    %7215 = vmatpush2.bf16.msra.mxu0 %v6061
    %7216 = vmatprep.subr.bf16.mxu0 %v6054
    %7217 = vmatpush2.bf16.msra.mxu0 %v6053
    %7218 = vmatprep.subr.bf16.mxu0 %v6046
    %7219 = vmatpush2.bf16.msra.mxu0 %v6045
    %7220 = vmatprep.subr.bf16.mxu0 %v6038
    %7221 = vmatpush2.bf16.msra.mxu0 %v6037
    %7222 = vmatprep.subr.bf16.mxu0 %v6030
    %7223 = vmatpush2.bf16.msra.mxu0 %v6029
    %7224 = vmatprep.subr.bf16.mxu0 %v6022
    %7225 = vmatpush2.bf16.msra.mxu0 %v6021
    %7226 = vmatprep.mubr.bf16.mxu0 %v7111
    %7227 = vmatmul.mubr.bf16.gmra.mxu0 %v7110
    %v7228 = vpop.f32.mrf.mxu0
    %v7229 = vadd.f32 0.0, %v7228
    %v7230 = vpop.f32.mrf.mxu0
    %v7231 = vadd.f32 0.0, %v7230
    %v7232 = vpop.f32.mrf.mxu0
    %v7233 = vpop.f32.mrf.mxu0
    %7234 = vdwg.mxu0
    %7235 = vmatprep.subr.bf16.mxu0 %v6016
    %7236 = vmatpush1.bf16.msra.mxu0 %v6015
    %7237 = vmatprep.subr.bf16.mxu0 %v6008
    %7238 = vmatpush1.bf16.msra.mxu0 %v6007
    %7239 = vmatprep.subr.bf16.mxu0 %v6000
    %7240 = vmatpush1.bf16.msra.mxu0 %v5999
    %7241 = vmatprep.subr.bf16.mxu0 %v5992
    %7242 = vmatpush1.bf16.msra.mxu0 %v5991
    %7243 = vmatprep.subr.bf16.mxu0 %v5984
    %7244 = vmatpush1.bf16.msra.mxu0 %v5983
    %7245 = vmatprep.subr.bf16.mxu0 %v5976
    %7246 = vmatpush1.bf16.msra.mxu0 %v5975
    %7247 = vmatprep.subr.bf16.mxu0 %v5968
    %7248 = vmatpush1.bf16.msra.mxu0 %v5967
    %7249 = vmatprep.subr.bf16.mxu0 %v5960
    %7250 = vmatpush1.bf16.msra.mxu0 %v5959
    %7251 = vmatprep.subr.bf16.mxu0 %v6080
    %7252 = vmatpush2.bf16.msra.mxu0 %v6079
    %7253 = vmatprep.subr.bf16.mxu0 %v6072
    %7254 = vmatpush2.bf16.msra.mxu0 %v6071
    %7255 = vmatprep.subr.bf16.mxu0 %v6064
    %7256 = vmatpush2.bf16.msra.mxu0 %v6063
    %7257 = vmatprep.subr.bf16.mxu0 %v6056
    %7258 = vmatpush2.bf16.msra.mxu0 %v6055
    %7259 = vmatprep.subr.bf16.mxu0 %v6048
    %7260 = vmatpush2.bf16.msra.mxu0 %v6047
    %7261 = vmatprep.subr.bf16.mxu0 %v6040
    %7262 = vmatpush2.bf16.msra.mxu0 %v6039
    %7263 = vmatprep.subr.bf16.mxu0 %v6032
    %7264 = vmatpush2.bf16.msra.mxu0 %v6031
    %7265 = vmatprep.subr.bf16.mxu0 %v6024
    %7266 = vmatpush2.bf16.msra.mxu0 %v6023
    %7267 = vmatprep.mubr.bf16.mxu0 %v7111
    %7268 = vmatmul.mubr.bf16.gmra.mxu0 %v7110
    %v7269 = vpop.f32.mrf.mxu0
    %v7270 = vadd.f32 0.0, %v7269
    %v7271 = vpop.f32.mrf.mxu0
    %v7272 = vadd.f32 0.0, %v7271
    %v7273 = vpop.f32.mrf.mxu0
    %v7274 = vpop.f32.mrf.mxu0
    %7275 = vdwg.mxu0
    %v7276 = vld [vmem:[%s3080] sm:$0xff]
    %v7277 = vld [vmem:[%s3080 + $0x8] sm:$0xff]
    %v7278 = vunpack.c.l.bf16 %v7276
    %v7279 = vunpack.c.h.bf16 %v7276
    %v7280 = vunpack.c.l.bf16 %v7277
    %v7281 = vunpack.c.h.bf16 %v7277
    %v7282 = vadd.f32 %v7278, %v7147
    %v7283 = vadd.f32 %v7279, %v7149
    %v7284 = vadd.f32 %v7280, %v7188
    %v7285 = vadd.f32 %v7281, %v7190
    %v7286 = vld [vmem:[%s3069 + $0x10] sm:$0xff]
    %v7287 = vld [vmem:[%s3069 + $0x18] sm:$0xff]
    %v7288 = vunpack.c.l.bf16 %v7286
    %v7289 = vunpack.c.h.bf16 %v7286
    %v7290 = vunpack.c.l.bf16 %v7287
    %v7291 = vunpack.c.h.bf16 %v7287
    %v7292 = vadd.f32 %v7288, %v7229
    %v7293 = vadd.f32 %v7289, %v7231
    %v7294 = vadd.f32 %v7290, %v7270
    %v7295 = vadd.f32 %v7291, %v7272
    %v7296 = vmul.f32 %v7282, 0.5
    %v7297 = vtanh.pop %v7296
    %v7298 = vmul.f32 %v7297, 0.5
    %v7299 = vadd.f32 %v7298, 0.5
    %v7300 = vmul.f32 %v7283, 0.5
    %v7301 = vtanh.pop %v7300
    %v7302 = vmul.f32 %v7301, 0.5
    %v7303 = vadd.f32 %v7302, 0.5
    %v7304 = vtanh.pop %v7284
    %v7305 = vmul.f32 %v7285, 0.5
    %v7306 = vtanh.pop %v7305
    %v7307 = vmul.f32 %v7306, 0.5
    %v7308 = vadd.f32 %v7307, 0.5
    %v7309 = vmul.f32 %v7303, %v7085
    %v7310 = vmul.f32 %v7299, %v7304
    %v7311 = vadd.f32 %v7309, %v7310
    %v7312 = vtanh.pop %v7311
    %v7313 = vmul.f32 %v7308, %v7312
    %v7314 = vmul.f32 %v7292, 0.5
    %v7315 = vtanh.pop %v7314
    %v7316 = vmul.f32 %v7315, 0.5
    %v7317 = vadd.f32 %v7316, 0.5
    %v7318 = vmul.f32 %v7293, 0.5
    %v7319 = vtanh.pop %v7318
    %v7320 = vmul.f32 %v7319, 0.5
    %v7321 = vadd.f32 %v7320, 0.5
    %v7322 = vtanh.pop %v7294
    %v7323 = vmul.f32 %v7295, 0.5
    %v7324 = vtanh.pop %v7323
    %v7325 = vmul.f32 %v7324, 0.5
    %v7326 = vadd.f32 %v7325, 0.5
    %v7327 = vmul.f32 %v7321, %v7103
    %v7328 = vmul.f32 %v7317, %v7322
    %v7329 = vadd.f32 %v7327, %v7328
    %v7330 = vtanh.pop %v7329
    %v7331 = vmul.f32 %v7326, %v7330
    %7332 = vst [vmem:[%s7108] sm:$0xff] %v7313
    %7333 = vst [vmem:[%s7106 + $0x8] sm:$0xff] %v7331
    %v7334 = vpack.c.bf16 %v7313, %v7313
    %v7335 = vpack.c.bf16 %v7331, %v7331
    %7336 = vmatprep.subr.bf16.mxu0 %v6010
    %7337 = vmatpush1.bf16.msra.mxu0 %v6009
    %7338 = vmatprep.subr.bf16.mxu0 %v6002
    %7339 = vmatpush1.bf16.msra.mxu0 %v6001
    %7340 = vmatprep.subr.bf16.mxu0 %v5994
    %7341 = vmatpush1.bf16.msra.mxu0 %v5993
    %7342 = vmatprep.subr.bf16.mxu0 %v5986
    %7343 = vmatpush1.bf16.msra.mxu0 %v5985
    %7344 = vmatprep.subr.bf16.mxu0 %v5978
    %7345 = vmatpush1.bf16.msra.mxu0 %v5977
    %7346 = vmatprep.subr.bf16.mxu0 %v5970
    %7347 = vmatpush1.bf16.msra.mxu0 %v5969
    %7348 = vmatprep.subr.bf16.mxu0 %v5962
    %7349 = vmatpush1.bf16.msra.mxu0 %v5961
    %7350 = vmatprep.subr.bf16.mxu0 %v5954
    %7351 = vmatpush1.bf16.msra.mxu0 %v5953
    %7352 = vmatprep.subr.bf16.mxu0 %v6074
    %7353 = vmatpush2.bf16.msra.mxu0 %v6073
    %7354 = vmatprep.subr.bf16.mxu0 %v6066
    %7355 = vmatpush2.bf16.msra.mxu0 %v6065
    %7356 = vmatprep.subr.bf16.mxu0 %v6058
    %7357 = vmatpush2.bf16.msra.mxu0 %v6057
    %7358 = vmatprep.subr.bf16.mxu0 %v6050
    %7359 = vmatpush2.bf16.msra.mxu0 %v6049
    %7360 = vmatprep.subr.bf16.mxu0 %v6042
    %7361 = vmatpush2.bf16.msra.mxu0 %v6041
    %7362 = vmatprep.subr.bf16.mxu0 %v6034
    %7363 = vmatpush2.bf16.msra.mxu0 %v6033
    %7364 = vmatprep.subr.bf16.mxu0 %v6026
    %7365 = vmatpush2.bf16.msra.mxu0 %v6025
    %7366 = vmatprep.subr.bf16.mxu0 %v6018
    %7367 = vmatpush2.bf16.msra.mxu0 %v6017
    %7368 = vmatprep.mubr.bf16.mxu0 %v7335
    %7369 = vmatmul.mubr.bf16.gmra.mxu0 %v7334
    %v7370 = vpop.f32.mrf.mxu0
    %v7371 = vadd.f32 0.0, %v7370
    %v7372 = vpop.f32.mrf.mxu0
    %v7373 = vadd.f32 0.0, %v7372
    %v7374 = vpop.f32.mrf.mxu0
    %v7375 = vpop.f32.mrf.mxu0
    %7376 = vdwg.mxu0
    %7377 = vmatprep.subr.bf16.mxu0 %v6012
    %7378 = vmatpush1.bf16.msra.mxu0 %v6011
    %7379 = vmatprep.subr.bf16.mxu0 %v6004
    %7380 = vmatpush1.bf16.msra.mxu0 %v6003
    %7381 = vmatprep.subr.bf16.mxu0 %v5996
    %7382 = vmatpush1.bf16.msra.mxu0 %v5995
    %7383 = vmatprep.subr.bf16.mxu0 %v5988
    %7384 = vmatpush1.bf16.msra.mxu0 %v5987
    %7385 = vmatprep.subr.bf16.mxu0 %v5980
    %7386 = vmatpush1.bf16.msra.mxu0 %v5979
    %7387 = vmatprep.subr.bf16.mxu0 %v5972
    %7388 = vmatpush1.bf16.msra.mxu0 %v5971
    %7389 = vmatprep.subr.bf16.mxu0 %v5964
    %7390 = vmatpush1.bf16.msra.mxu0 %v5963
    %7391 = vmatprep.subr.bf16.mxu0 %v5956
    %7392 = vmatpush1.bf16.msra.mxu0 %v5955
    %7393 = vmatprep.subr.bf16.mxu0 %v6076
    %7394 = vmatpush2.bf16.msra.mxu0 %v6075
    %7395 = vmatprep.subr.bf16.mxu0 %v6068
    %7396 = vmatpush2.bf16.msra.mxu0 %v6067
    %7397 = vmatprep.subr.bf16.mxu0 %v6060
    %7398 = vmatpush2.bf16.msra.mxu0 %v6059
    %7399 = vmatprep.subr.bf16.mxu0 %v6052
    %7400 = vmatpush2.bf16.msra.mxu0 %v6051
    %7401 = vmatprep.subr.bf16.mxu0 %v6044
    %7402 = vmatpush2.bf16.msra.mxu0 %v6043
    %7403 = vmatprep.subr.bf16.mxu0 %v6036
    %7404 = vmatpush2.bf16.msra.mxu0 %v6035
    %7405 = vmatprep.subr.bf16.mxu0 %v6028
    %7406 = vmatpush2.bf16.msra.mxu0 %v6027
    %7407 = vmatprep.subr.bf16.mxu0 %v6020
    %7408 = vmatpush2.bf16.msra.mxu0 %v6019
    %7409 = vmatprep.mubr.bf16.mxu0 %v7335
    %7410 = vmatmul.mubr.bf16.gmra.mxu0 %v7334
    %v7411 = vpop.f32.mrf.mxu0
    %v7412 = vadd.f32 0.0, %v7411
    %v7413 = vpop.f32.mrf.mxu0
    %v7414 = vadd.f32 0.0, %v7413
    %v7415 = vpop.f32.mrf.mxu0
    %v7416 = vpop.f32.mrf.mxu0
    %7417 = vdwg.mxu0
    %7418 = vmatprep.subr.bf16.mxu0 %v6014
    %7419 = vmatpush1.bf16.msra.mxu0 %v6013
    %7420 = vmatprep.subr.bf16.mxu0 %v6006
    %7421 = vmatpush1.bf16.msra.mxu0 %v6005
    %7422 = vmatprep.subr.bf16.mxu0 %v5998
    %7423 = vmatpush1.bf16.msra.mxu0 %v5997
    %7424 = vmatprep.subr.bf16.mxu0 %v5990
    %7425 = vmatpush1.bf16.msra.mxu0 %v5989
    %7426 = vmatprep.subr.bf16.mxu0 %v5982
    %7427 = vmatpush1.bf16.msra.mxu0 %v5981
    %7428 = vmatprep.subr.bf16.mxu0 %v5974
    %7429 = vmatpush1.bf16.msra.mxu0 %v5973
    %7430 = vmatprep.subr.bf16.mxu0 %v5966
    %7431 = vmatpush1.bf16.msra.mxu0 %v5965
    %7432 = vmatprep.subr.bf16.mxu0 %v5958
    %7433 = vmatpush1.bf16.msra.mxu0 %v5957
    %7434 = vmatprep.subr.bf16.mxu0 %v6078
    %7435 = vmatpush2.bf16.msra.mxu0 %v6077
    %7436 = vmatprep.subr.bf16.mxu0 %v6070
    %7437 = vmatpush2.bf16.msra.mxu0 %v6069
    %7438 = vmatprep.subr.bf16.mxu0 %v6062
    %7439 = vmatpush2.bf16.msra.mxu0 %v6061
    %7440 = vmatprep.subr.bf16.mxu0 %v6054
    %7441 = vmatpush2.bf16.msra.mxu0 %v6053
    %7442 = vmatprep.subr.bf16.mxu0 %v6046
    %7443 = vmatpush2.bf16.msra.mxu0 %v6045
    %7444 = vmatprep.subr.bf16.mxu0 %v6038
    %7445 = vmatpush2.bf16.msra.mxu0 %v6037
    %7446 = vmatprep.subr.bf16.mxu0 %v6030
    %7447 = vmatpush2.bf16.msra.mxu0 %v6029
    %7448 = vmatprep.subr.bf16.mxu0 %v6022
    %7449 = vmatpush2.bf16.msra.mxu0 %v6021
    %7450 = vmatprep.mubr.bf16.mxu0 %v7335
    %7451 = vmatmul.mubr.bf16.gmra.mxu0 %v7334
    %v7452 = vpop.f32.mrf.mxu0
    %v7453 = vadd.f32 0.0, %v7452
    %v7454 = vpop.f32.mrf.mxu0
    %v7455 = vadd.f32 0.0, %v7454
    %v7456 = vpop.f32.mrf.mxu0
    %v7457 = vpop.f32.mrf.mxu0
    %7458 = vdwg.mxu0
    %7459 = vmatprep.subr.bf16.mxu0 %v6016
    %7460 = vmatpush1.bf16.msra.mxu0 %v6015
    %7461 = vmatprep.subr.bf16.mxu0 %v6008
    %7462 = vmatpush1.bf16.msra.mxu0 %v6007
    %7463 = vmatprep.subr.bf16.mxu0 %v6000
    %7464 = vmatpush1.bf16.msra.mxu0 %v5999
    %7465 = vmatprep.subr.bf16.mxu0 %v5992
    %7466 = vmatpush1.bf16.msra.mxu0 %v5991
    %7467 = vmatprep.subr.bf16.mxu0 %v5984
    %7468 = vmatpush1.bf16.msra.mxu0 %v5983
    %7469 = vmatprep.subr.bf16.mxu0 %v5976
    %7470 = vmatpush1.bf16.msra.mxu0 %v5975
    %7471 = vmatprep.subr.bf16.mxu0 %v5968
    %7472 = vmatpush1.bf16.msra.mxu0 %v5967
    %7473 = vmatprep.subr.bf16.mxu0 %v5960
    %7474 = vmatpush1.bf16.msra.mxu0 %v5959
    %7475 = vmatprep.subr.bf16.mxu0 %v6080
    %7476 = vmatpush2.bf16.msra.mxu0 %v6079
    %7477 = vmatprep.subr.bf16.mxu0 %v6072
    %7478 = vmatpush2.bf16.msra.mxu0 %v6071
    %7479 = vmatprep.subr.bf16.mxu0 %v6064
    %7480 = vmatpush2.bf16.msra.mxu0 %v6063
    %7481 = vmatprep.subr.bf16.mxu0 %v6056
    %7482 = vmatpush2.bf16.msra.mxu0 %v6055
    %7483 = vmatprep.subr.bf16.mxu0 %v6048
    %7484 = vmatpush2.bf16.msra.mxu0 %v6047
    %7485 = vmatprep.subr.bf16.mxu0 %v6040
    %7486 = vmatpush2.bf16.msra.mxu0 %v6039
    %7487 = vmatprep.subr.bf16.mxu0 %v6032
    %7488 = vmatpush2.bf16.msra.mxu0 %v6031
    %7489 = vmatprep.subr.bf16.mxu0 %v6024
    %7490 = vmatpush2.bf16.msra.mxu0 %v6023
    %7491 = vmatprep.mubr.bf16.mxu0 %v7335
    %7492 = vmatmul.mubr.bf16.gmra.mxu0 %v7334
    %v7493 = vpop.f32.mrf.mxu0
    %v7494 = vadd.f32 0.0, %v7493
    %v7495 = vpop.f32.mrf.mxu0
    %v7496 = vadd.f32 0.0, %v7495
    %v7497 = vpop.f32.mrf.mxu0
    %v7498 = vpop.f32.mrf.mxu0
    %7499 = vdwg.mxu0
    %v7500 = vld [vmem:[%s2852] sm:$0xff]
    %v7501 = vld [vmem:[%s2852 + $0x8] sm:$0xff]
    %v7502 = vunpack.c.l.bf16 %v7500
    %v7503 = vunpack.c.h.bf16 %v7500
    %v7504 = vunpack.c.l.bf16 %v7501
    %v7505 = vunpack.c.h.bf16 %v7501
    %v7506 = vadd.f32 %v7502, %v7371
    %v7507 = vadd.f32 %v7503, %v7373
    %v7508 = vadd.f32 %v7504, %v7412
    %v7509 = vadd.f32 %v7505, %v7414
    %v7510 = vld [vmem:[%s2841 + $0x10] sm:$0xff]
    %v7511 = vld [vmem:[%s2841 + $0x18] sm:$0xff]
    %v7512 = vunpack.c.l.bf16 %v7510
    %v7513 = vunpack.c.h.bf16 %v7510
    %v7514 = vunpack.c.l.bf16 %v7511
    %v7515 = vunpack.c.h.bf16 %v7511
    %v7516 = vadd.f32 %v7512, %v7453
    %v7517 = vadd.f32 %v7513, %v7455
    %v7518 = vadd.f32 %v7514, %v7494
    %v7519 = vadd.f32 %v7515, %v7496
    %v7520 = vmul.f32 %v7506, 0.5
    %v7521 = vtanh.pop %v7520
    %v7522 = vmul.f32 %v7521, 0.5
    %v7523 = vadd.f32 %v7522, 0.5
    %v7524 = vmul.f32 %v7507, 0.5
    %v7525 = vtanh.pop %v7524
    %v7526 = vmul.f32 %v7525, 0.5
    %v7527 = vadd.f32 %v7526, 0.5
    %v7528 = vtanh.pop %v7508
    %v7529 = vmul.f32 %v7509, 0.5
    %v7530 = vtanh.pop %v7529
    %v7531 = vmul.f32 %v7530, 0.5
    %v7532 = vadd.f32 %v7531, 0.5
    %v7533 = vmul.f32 %v7527, %v7311
    %v7534 = vmul.f32 %v7523, %v7528
    %v7535 = vadd.f32 %v7533, %v7534
    %v7536 = vtanh.pop %v7535
    %v7537 = vmul.f32 %v7532, %v7536
    %v7538 = vmul.f32 %v7516, 0.5
    %v7539 = vtanh.pop %v7538
    %v7540 = vmul.f32 %v7539, 0.5
    %v7541 = vadd.f32 %v7540, 0.5
    %v7542 = vmul.f32 %v7517, 0.5
    %v7543 = vtanh.pop %v7542
    %v7544 = vmul.f32 %v7543, 0.5
    %v7545 = vadd.f32 %v7544, 0.5
    %v7546 = vtanh.pop %v7518
    %v7547 = vmul.f32 %v7519, 0.5
    %v7548 = vtanh.pop %v7547
    %v7549 = vmul.f32 %v7548, 0.5
    %v7550 = vadd.f32 %v7549, 0.5
    %v7551 = vmul.f32 %v7545, %v7329
    %v7552 = vmul.f32 %v7541, %v7546
    %v7553 = vadd.f32 %v7551, %v7552
    %v7554 = vtanh.pop %v7553
    %v7555 = vmul.f32 %v7550, %v7554
    %7556 = vst [vmem:[%s6882] sm:$0xff] %v7537
    %7557 = vst [vmem:[%s6880 + $0x8] sm:$0xff] %v7555
    %v7558 = vpack.c.bf16 %v7537, %v7537
    %v7559 = vpack.c.bf16 %v7555, %v7555
    %7560 = vmatprep.subr.bf16.mxu0 %v6010
    %7561 = vmatpush1.bf16.msra.mxu0 %v6009
    %7562 = vmatprep.subr.bf16.mxu0 %v6002
    %7563 = vmatpush1.bf16.msra.mxu0 %v6001
    %7564 = vmatprep.subr.bf16.mxu0 %v5994
    %7565 = vmatpush1.bf16.msra.mxu0 %v5993
    %7566 = vmatprep.subr.bf16.mxu0 %v5986
    %7567 = vmatpush1.bf16.msra.mxu0 %v5985
    %7568 = vmatprep.subr.bf16.mxu0 %v5978
    %7569 = vmatpush1.bf16.msra.mxu0 %v5977
    %7570 = vmatprep.subr.bf16.mxu0 %v5970
    %7571 = vmatpush1.bf16.msra.mxu0 %v5969
    %7572 = vmatprep.subr.bf16.mxu0 %v5962
    %7573 = vmatpush1.bf16.msra.mxu0 %v5961
    %7574 = vmatprep.subr.bf16.mxu0 %v5954
    %7575 = vmatpush1.bf16.msra.mxu0 %v5953
    %7576 = vmatprep.subr.bf16.mxu0 %v6074
    %7577 = vmatpush2.bf16.msra.mxu0 %v6073
    %7578 = vmatprep.subr.bf16.mxu0 %v6066
    %7579 = vmatpush2.bf16.msra.mxu0 %v6065
    %7580 = vmatprep.subr.bf16.mxu0 %v6058
    %7581 = vmatpush2.bf16.msra.mxu0 %v6057
    %7582 = vmatprep.subr.bf16.mxu0 %v6050
    %7583 = vmatpush2.bf16.msra.mxu0 %v6049
    %7584 = vmatprep.subr.bf16.mxu0 %v6042
    %7585 = vmatpush2.bf16.msra.mxu0 %v6041
    %7586 = vmatprep.subr.bf16.mxu0 %v6034
    %7587 = vmatpush2.bf16.msra.mxu0 %v6033
    %7588 = vmatprep.subr.bf16.mxu0 %v6026
    %7589 = vmatpush2.bf16.msra.mxu0 %v6025
    %7590 = vmatprep.subr.bf16.mxu0 %v6018
    %7591 = vmatpush2.bf16.msra.mxu0 %v6017
    %7592 = vmatprep.mubr.bf16.mxu0 %v7559
    %7593 = vmatmul.mubr.bf16.gmra.mxu0 %v7558
    %v7594 = vpop.f32.mrf.mxu0
    %v7595 = vadd.f32 0.0, %v7594
    %v7596 = vpop.f32.mrf.mxu0
    %v7597 = vadd.f32 0.0, %v7596
    %v7598 = vpop.f32.mrf.mxu0
    %v7599 = vpop.f32.mrf.mxu0
    %7600 = vdwg.mxu0
    %7601 = vmatprep.subr.bf16.mxu0 %v6012
    %7602 = vmatpush1.bf16.msra.mxu0 %v6011
    %7603 = vmatprep.subr.bf16.mxu0 %v6004
    %7604 = vmatpush1.bf16.msra.mxu0 %v6003
    %7605 = vmatprep.subr.bf16.mxu0 %v5996
    %7606 = vmatpush1.bf16.msra.mxu0 %v5995
    %7607 = vmatprep.subr.bf16.mxu0 %v5988
    %7608 = vmatpush1.bf16.msra.mxu0 %v5987
    %7609 = vmatprep.subr.bf16.mxu0 %v5980
    %7610 = vmatpush1.bf16.msra.mxu0 %v5979
    %7611 = vmatprep.subr.bf16.mxu0 %v5972
    %7612 = vmatpush1.bf16.msra.mxu0 %v5971
    %7613 = vmatprep.subr.bf16.mxu0 %v5964
    %7614 = vmatpush1.bf16.msra.mxu0 %v5963
    %7615 = vmatprep.subr.bf16.mxu0 %v5956
    %7616 = vmatpush1.bf16.msra.mxu0 %v5955
    %7617 = vmatprep.subr.bf16.mxu0 %v6076
    %7618 = vmatpush2.bf16.msra.mxu0 %v6075
    %7619 = vmatprep.subr.bf16.mxu0 %v6068
    %7620 = vmatpush2.bf16.msra.mxu0 %v6067
    %7621 = vmatprep.subr.bf16.mxu0 %v6060
    %7622 = vmatpush2.bf16.msra.mxu0 %v6059
    %7623 = vmatprep.subr.bf16.mxu0 %v6052
    %7624 = vmatpush2.bf16.msra.mxu0 %v6051
    %7625 = vmatprep.subr.bf16.mxu0 %v6044
    %7626 = vmatpush2.bf16.msra.mxu0 %v6043
    %7627 = vmatprep.subr.bf16.mxu0 %v6036
    %7628 = vmatpush2.bf16.msra.mxu0 %v6035
    %7629 = vmatprep.subr.bf16.mxu0 %v6028
    %7630 = vmatpush2.bf16.msra.mxu0 %v6027
    %7631 = vmatprep.subr.bf16.mxu0 %v6020
    %7632 = vmatpush2.bf16.msra.mxu0 %v6019
    %7633 = vmatprep.mubr.bf16.mxu0 %v7559
    %7634 = vmatmul.mubr.bf16.gmra.mxu0 %v7558
    %v7635 = vpop.f32.mrf.mxu0
    %v7636 = vadd.f32 0.0, %v7635
    %v7637 = vpop.f32.mrf.mxu0
    %v7638 = vadd.f32 0.0, %v7637
    %v7639 = vpop.f32.mrf.mxu0
    %v7640 = vpop.f32.mrf.mxu0
    %7641 = vdwg.mxu0
    %7642 = vmatprep.subr.bf16.mxu0 %v6014
    %7643 = vmatpush1.bf16.msra.mxu0 %v6013
    %7644 = vmatprep.subr.bf16.mxu0 %v6006
    %7645 = vmatpush1.bf16.msra.mxu0 %v6005
    %7646 = vmatprep.subr.bf16.mxu0 %v5998
    %7647 = vmatpush1.bf16.msra.mxu0 %v5997
    %7648 = vmatprep.subr.bf16.mxu0 %v5990
    %7649 = vmatpush1.bf16.msra.mxu0 %v5989
    %7650 = vmatprep.subr.bf16.mxu0 %v5982
    %7651 = vmatpush1.bf16.msra.mxu0 %v5981
    %7652 = vmatprep.subr.bf16.mxu0 %v5974
    %7653 = vmatpush1.bf16.msra.mxu0 %v5973
    %7654 = vmatprep.subr.bf16.mxu0 %v5966
    %7655 = vmatpush1.bf16.msra.mxu0 %v5965
    %7656 = vmatprep.subr.bf16.mxu0 %v5958
    %7657 = vmatpush1.bf16.msra.mxu0 %v5957
    %7658 = vmatprep.subr.bf16.mxu0 %v6078
    %7659 = vmatpush2.bf16.msra.mxu0 %v6077
    %7660 = vmatprep.subr.bf16.mxu0 %v6070
    %7661 = vmatpush2.bf16.msra.mxu0 %v6069
    %7662 = vmatprep.subr.bf16.mxu0 %v6062
    %7663 = vmatpush2.bf16.msra.mxu0 %v6061
    %7664 = vmatprep.subr.bf16.mxu0 %v6054
    %7665 = vmatpush2.bf16.msra.mxu0 %v6053
    %7666 = vmatprep.subr.bf16.mxu0 %v6046
    %7667 = vmatpush2.bf16.msra.mxu0 %v6045
    %7668 = vmatprep.subr.bf16.mxu0 %v6038
    %7669 = vmatpush2.bf16.msra.mxu0 %v6037
    %7670 = vmatprep.subr.bf16.mxu0 %v6030
    %7671 = vmatpush2.bf16.msra.mxu0 %v6029
    %7672 = vmatprep.subr.bf16.mxu0 %v6022
    %7673 = vmatpush2.bf16.msra.mxu0 %v6021
    %7674 = vmatprep.mubr.bf16.mxu0 %v7559
    %7675 = vmatmul.mubr.bf16.gmra.mxu0 %v7558
    %v7676 = vpop.f32.mrf.mxu0
    %v7677 = vadd.f32 0.0, %v7676
    %v7678 = vpop.f32.mrf.mxu0
    %v7679 = vadd.f32 0.0, %v7678
    %v7680 = vpop.f32.mrf.mxu0
    %v7681 = vpop.f32.mrf.mxu0
    %7682 = vdwg.mxu0
    %7683 = vmatprep.subr.bf16.mxu0 %v6016
    %7684 = vmatpush1.bf16.msra.mxu0 %v6015
    %7685 = vmatprep.subr.bf16.mxu0 %v6008
    %7686 = vmatpush1.bf16.msra.mxu0 %v6007
    %7687 = vmatprep.subr.bf16.mxu0 %v6000
    %7688 = vmatpush1.bf16.msra.mxu0 %v5999
    %7689 = vmatprep.subr.bf16.mxu0 %v5992
    %7690 = vmatpush1.bf16.msra.mxu0 %v5991
    %7691 = vmatprep.subr.bf16.mxu0 %v5984
    %7692 = vmatpush1.bf16.msra.mxu0 %v5983
    %7693 = vmatprep.subr.bf16.mxu0 %v5976
    %7694 = vmatpush1.bf16.msra.mxu0 %v5975
    %7695 = vmatprep.subr.bf16.mxu0 %v5968
    %7696 = vmatpush1.bf16.msra.mxu0 %v5967
    %7697 = vmatprep.subr.bf16.mxu0 %v5960
    %7698 = vmatpush1.bf16.msra.mxu0 %v5959
    %7699 = vmatprep.subr.bf16.mxu0 %v6080
    %7700 = vmatpush2.bf16.msra.mxu0 %v6079
    %7701 = vmatprep.subr.bf16.mxu0 %v6072
    %7702 = vmatpush2.bf16.msra.mxu0 %v6071
    %7703 = vmatprep.subr.bf16.mxu0 %v6064
    %7704 = vmatpush2.bf16.msra.mxu0 %v6063
    %7705 = vmatprep.subr.bf16.mxu0 %v6056
    %7706 = vmatpush2.bf16.msra.mxu0 %v6055
    %7707 = vmatprep.subr.bf16.mxu0 %v6048
    %7708 = vmatpush2.bf16.msra.mxu0 %v6047
    %7709 = vmatprep.subr.bf16.mxu0 %v6040
    %7710 = vmatpush2.bf16.msra.mxu0 %v6039
    %7711 = vmatprep.subr.bf16.mxu0 %v6032
    %7712 = vmatpush2.bf16.msra.mxu0 %v6031
    %7713 = vmatprep.subr.bf16.mxu0 %v6024
    %7714 = vmatpush2.bf16.msra.mxu0 %v6023
    %7715 = vmatprep.mubr.bf16.mxu0 %v7559
    %7716 = vmatmul.mubr.bf16.gmra.mxu0 %v7558
    %v7717 = vpop.f32.mrf.mxu0
    %v7718 = vadd.f32 0.0, %v7717
    %v7719 = vpop.f32.mrf.mxu0
    %v7720 = vadd.f32 0.0, %v7719
    %v7721 = vpop.f32.mrf.mxu0
    %v7722 = vpop.f32.mrf.mxu0
    %7723 = vdwg.mxu0
    %v7724 = vld [vmem:[%s2624] sm:$0xff]
    %v7725 = vld [vmem:[%s2624 + $0x8] sm:$0xff]
    %v7726 = vunpack.c.l.bf16 %v7724
    %v7727 = vunpack.c.h.bf16 %v7724
    %v7728 = vunpack.c.l.bf16 %v7725
    %v7729 = vunpack.c.h.bf16 %v7725
    %v7730 = vadd.f32 %v7726, %v7595
    %v7731 = vadd.f32 %v7727, %v7597
    %v7732 = vadd.f32 %v7728, %v7636
    %v7733 = vadd.f32 %v7729, %v7638
    %v7734 = vld [vmem:[%s2613 + $0x10] sm:$0xff]
    %v7735 = vld [vmem:[%s2613 + $0x18] sm:$0xff]
    %v7736 = vunpack.c.l.bf16 %v7734
    %v7737 = vunpack.c.h.bf16 %v7734
    %v7738 = vunpack.c.l.bf16 %v7735
    %v7739 = vunpack.c.h.bf16 %v7735
    %v7740 = vadd.f32 %v7736, %v7677
    %v7741 = vadd.f32 %v7737, %v7679
    %v7742 = vadd.f32 %v7738, %v7718
    %v7743 = vadd.f32 %v7739, %v7720
    %v7744 = vmul.f32 %v7730, 0.5
    %v7745 = vtanh.pop %v7744
    %v7746 = vmul.f32 %v7745, 0.5
    %v7747 = vadd.f32 %v7746, 0.5
    %v7748 = vmul.f32 %v7731, 0.5
    %v7749 = vtanh.pop %v7748
    %v7750 = vmul.f32 %v7749, 0.5
    %v7751 = vadd.f32 %v7750, 0.5
    %v7752 = vtanh.pop %v7732
    %v7753 = vmul.f32 %v7733, 0.5
    %v7754 = vtanh.pop %v7753
    %v7755 = vmul.f32 %v7754, 0.5
    %v7756 = vadd.f32 %v7755, 0.5
    %v7757 = vmul.f32 %v7751, %v7535
    %v7758 = vmul.f32 %v7747, %v7752
    %v7759 = vadd.f32 %v7757, %v7758
    %v7760 = vtanh.pop %v7759
    %v7761 = vmul.f32 %v7756, %v7760
    %v7762 = vmul.f32 %v7740, 0.5
    %v7763 = vtanh.pop %v7762
    %v7764 = vmul.f32 %v7763, 0.5
    %v7765 = vadd.f32 %v7764, 0.5
    %v7766 = vmul.f32 %v7741, 0.5
    %v7767 = vtanh.pop %v7766
    %v7768 = vmul.f32 %v7767, 0.5
    %v7769 = vadd.f32 %v7768, 0.5
    %v7770 = vtanh.pop %v7742
    %v7771 = vmul.f32 %v7743, 0.5
    %v7772 = vtanh.pop %v7771
    %v7773 = vmul.f32 %v7772, 0.5
    %v7774 = vadd.f32 %v7773, 0.5
    %v7775 = vmul.f32 %v7769, %v7553
    %v7776 = vmul.f32 %v7765, %v7770
    %v7777 = vadd.f32 %v7775, %v7776
    %v7778 = vtanh.pop %v7777
    %v7779 = vmul.f32 %v7774, %v7778
    %7780 = vst [vmem:[%s6656] sm:$0xff] %v7761
    %7781 = vst [vmem:[%s6654 + $0x8] sm:$0xff] %v7779
    %v7782 = vpack.c.bf16 %v7761, %v7761
    %v7783 = vpack.c.bf16 %v7779, %v7779
    %7784 = vmatprep.subr.bf16.mxu0 %v6010
    %7785 = vmatpush1.bf16.msra.mxu0 %v6009
    %7786 = vmatprep.subr.bf16.mxu0 %v6002
    %7787 = vmatpush1.bf16.msra.mxu0 %v6001
    %7788 = vmatprep.subr.bf16.mxu0 %v5994
    %7789 = vmatpush1.bf16.msra.mxu0 %v5993
    %7790 = vmatprep.subr.bf16.mxu0 %v5986
    %7791 = vmatpush1.bf16.msra.mxu0 %v5985
    %7792 = vmatprep.subr.bf16.mxu0 %v5978
    %7793 = vmatpush1.bf16.msra.mxu0 %v5977
    %7794 = vmatprep.subr.bf16.mxu0 %v5970
    %7795 = vmatpush1.bf16.msra.mxu0 %v5969
    %7796 = vmatprep.subr.bf16.mxu0 %v5962
    %7797 = vmatpush1.bf16.msra.mxu0 %v5961
    %7798 = vmatprep.subr.bf16.mxu0 %v5954
    %7799 = vmatpush1.bf16.msra.mxu0 %v5953
    %7800 = vmatprep.subr.bf16.mxu0 %v6074
    %7801 = vmatpush2.bf16.msra.mxu0 %v6073
    %7802 = vmatprep.subr.bf16.mxu0 %v6066
    %7803 = vmatpush2.bf16.msra.mxu0 %v6065
    %7804 = vmatprep.subr.bf16.mxu0 %v6058
    %7805 = vmatpush2.bf16.msra.mxu0 %v6057
    %7806 = vmatprep.subr.bf16.mxu0 %v6050
    %7807 = vmatpush2.bf16.msra.mxu0 %v6049
    %7808 = vmatprep.subr.bf16.mxu0 %v6042
    %7809 = vmatpush2.bf16.msra.mxu0 %v6041
    %7810 = vmatprep.subr.bf16.mxu0 %v6034
    %7811 = vmatpush2.bf16.msra.mxu0 %v6033
    %7812 = vmatprep.subr.bf16.mxu0 %v6026
    %7813 = vmatpush2.bf16.msra.mxu0 %v6025
    %7814 = vmatprep.subr.bf16.mxu0 %v6018
    %7815 = vmatpush2.bf16.msra.mxu0 %v6017
    %7816 = vmatprep.mubr.bf16.mxu0 %v7783
    %7817 = vmatmul.mubr.bf16.gmra.mxu0 %v7782
    %v7818 = vpop.f32.mrf.mxu0
    %v7819 = vadd.f32 0.0, %v7818
    %v7820 = vpop.f32.mrf.mxu0
    %v7821 = vadd.f32 0.0, %v7820
    %v7822 = vpop.f32.mrf.mxu0
    %v7823 = vpop.f32.mrf.mxu0
    %7824 = vdwg.mxu0
    %7825 = vmatprep.subr.bf16.mxu0 %v6012
    %7826 = vmatpush1.bf16.msra.mxu0 %v6011
    %7827 = vmatprep.subr.bf16.mxu0 %v6004
    %7828 = vmatpush1.bf16.msra.mxu0 %v6003
    %7829 = vmatprep.subr.bf16.mxu0 %v5996
    %7830 = vmatpush1.bf16.msra.mxu0 %v5995
    %7831 = vmatprep.subr.bf16.mxu0 %v5988
    %7832 = vmatpush1.bf16.msra.mxu0 %v5987
    %7833 = vmatprep.subr.bf16.mxu0 %v5980
    %7834 = vmatpush1.bf16.msra.mxu0 %v5979
    %7835 = vmatprep.subr.bf16.mxu0 %v5972
    %7836 = vmatpush1.bf16.msra.mxu0 %v5971
    %7837 = vmatprep.subr.bf16.mxu0 %v5964
    %7838 = vmatpush1.bf16.msra.mxu0 %v5963
    %7839 = vmatprep.subr.bf16.mxu0 %v5956
    %7840 = vmatpush1.bf16.msra.mxu0 %v5955
    %7841 = vmatprep.subr.bf16.mxu0 %v6076
    %7842 = vmatpush2.bf16.msra.mxu0 %v6075
    %7843 = vmatprep.subr.bf16.mxu0 %v6068
    %7844 = vmatpush2.bf16.msra.mxu0 %v6067
    %7845 = vmatprep.subr.bf16.mxu0 %v6060
    %7846 = vmatpush2.bf16.msra.mxu0 %v6059
    %7847 = vmatprep.subr.bf16.mxu0 %v6052
    %7848 = vmatpush2.bf16.msra.mxu0 %v6051
    %7849 = vmatprep.subr.bf16.mxu0 %v6044
    %7850 = vmatpush2.bf16.msra.mxu0 %v6043
    %7851 = vmatprep.subr.bf16.mxu0 %v6036
    %7852 = vmatpush2.bf16.msra.mxu0 %v6035
    %7853 = vmatprep.subr.bf16.mxu0 %v6028
    %7854 = vmatpush2.bf16.msra.mxu0 %v6027
    %7855 = vmatprep.subr.bf16.mxu0 %v6020
    %7856 = vmatpush2.bf16.msra.mxu0 %v6019
    %7857 = vmatprep.mubr.bf16.mxu0 %v7783
    %7858 = vmatmul.mubr.bf16.gmra.mxu0 %v7782
    %v7859 = vpop.f32.mrf.mxu0
    %v7860 = vadd.f32 0.0, %v7859
    %v7861 = vpop.f32.mrf.mxu0
    %v7862 = vadd.f32 0.0, %v7861
    %v7863 = vpop.f32.mrf.mxu0
    %v7864 = vpop.f32.mrf.mxu0
    %7865 = vdwg.mxu0
    %7866 = vmatprep.subr.bf16.mxu0 %v6014
    %7867 = vmatpush1.bf16.msra.mxu0 %v6013
    %7868 = vmatprep.subr.bf16.mxu0 %v6006
    %7869 = vmatpush1.bf16.msra.mxu0 %v6005
    %7870 = vmatprep.subr.bf16.mxu0 %v5998
    %7871 = vmatpush1.bf16.msra.mxu0 %v5997
    %7872 = vmatprep.subr.bf16.mxu0 %v5990
    %7873 = vmatpush1.bf16.msra.mxu0 %v5989
    %7874 = vmatprep.subr.bf16.mxu0 %v5982
    %7875 = vmatpush1.bf16.msra.mxu0 %v5981
    %7876 = vmatprep.subr.bf16.mxu0 %v5974
    %7877 = vmatpush1.bf16.msra.mxu0 %v5973
    %7878 = vmatprep.subr.bf16.mxu0 %v5966
    %7879 = vmatpush1.bf16.msra.mxu0 %v5965
    %7880 = vmatprep.subr.bf16.mxu0 %v5958
    %7881 = vmatpush1.bf16.msra.mxu0 %v5957
    %7882 = vmatprep.subr.bf16.mxu0 %v6078
    %7883 = vmatpush2.bf16.msra.mxu0 %v6077
    %7884 = vmatprep.subr.bf16.mxu0 %v6070
    %7885 = vmatpush2.bf16.msra.mxu0 %v6069
    %7886 = vmatprep.subr.bf16.mxu0 %v6062
    %7887 = vmatpush2.bf16.msra.mxu0 %v6061
    %7888 = vmatprep.subr.bf16.mxu0 %v6054
    %7889 = vmatpush2.bf16.msra.mxu0 %v6053
    %7890 = vmatprep.subr.bf16.mxu0 %v6046
    %7891 = vmatpush2.bf16.msra.mxu0 %v6045
    %7892 = vmatprep.subr.bf16.mxu0 %v6038
    %7893 = vmatpush2.bf16.msra.mxu0 %v6037
    %7894 = vmatprep.subr.bf16.mxu0 %v6030
    %7895 = vmatpush2.bf16.msra.mxu0 %v6029
    %7896 = vmatprep.subr.bf16.mxu0 %v6022
    %7897 = vmatpush2.bf16.msra.mxu0 %v6021
    %7898 = vmatprep.mubr.bf16.mxu0 %v7783
    %7899 = vmatmul.mubr.bf16.gmra.mxu0 %v7782
    %v7900 = vpop.f32.mrf.mxu0
    %v7901 = vadd.f32 0.0, %v7900
    %v7902 = vpop.f32.mrf.mxu0
    %v7903 = vadd.f32 0.0, %v7902
    %v7904 = vpop.f32.mrf.mxu0
    %v7905 = vpop.f32.mrf.mxu0
    %7906 = vdwg.mxu0
    %7907 = vmatprep.subr.bf16.mxu0 %v6016
    %7908 = vmatpush1.bf16.msra.mxu0 %v6015
    %7909 = vmatprep.subr.bf16.mxu0 %v6008
    %7910 = vmatpush1.bf16.msra.mxu0 %v6007
    %7911 = vmatprep.subr.bf16.mxu0 %v6000
    %7912 = vmatpush1.bf16.msra.mxu0 %v5999
    %7913 = vmatprep.subr.bf16.mxu0 %v5992
    %7914 = vmatpush1.bf16.msra.mxu0 %v5991
    %7915 = vmatprep.subr.bf16.mxu0 %v5984
    %7916 = vmatpush1.bf16.msra.mxu0 %v5983
    %7917 = vmatprep.subr.bf16.mxu0 %v5976
    %7918 = vmatpush1.bf16.msra.mxu0 %v5975
    %7919 = vmatprep.subr.bf16.mxu0 %v5968
    %7920 = vmatpush1.bf16.msra.mxu0 %v5967
    %7921 = vmatprep.subr.bf16.mxu0 %v5960
    %7922 = vmatpush1.bf16.msra.mxu0 %v5959
    %7923 = vmatprep.subr.bf16.mxu0 %v6080
    %7924 = vmatpush2.bf16.msra.mxu0 %v6079
    %7925 = vmatprep.subr.bf16.mxu0 %v6072
    %7926 = vmatpush2.bf16.msra.mxu0 %v6071
    %7927 = vmatprep.subr.bf16.mxu0 %v6064
    %7928 = vmatpush2.bf16.msra.mxu0 %v6063
    %7929 = vmatprep.subr.bf16.mxu0 %v6056
    %7930 = vmatpush2.bf16.msra.mxu0 %v6055
    %7931 = vmatprep.subr.bf16.mxu0 %v6048
    %7932 = vmatpush2.bf16.msra.mxu0 %v6047
    %7933 = vmatprep.subr.bf16.mxu0 %v6040
    %7934 = vmatpush2.bf16.msra.mxu0 %v6039
    %7935 = vmatprep.subr.bf16.mxu0 %v6032
    %7936 = vmatpush2.bf16.msra.mxu0 %v6031
    %7937 = vmatprep.subr.bf16.mxu0 %v6024
    %7938 = vmatpush2.bf16.msra.mxu0 %v6023
    %7939 = vmatprep.mubr.bf16.mxu0 %v7783
    %7940 = vmatmul.mubr.bf16.gmra.mxu0 %v7782
    %v7941 = vpop.f32.mrf.mxu0
    %v7942 = vadd.f32 0.0, %v7941
    %v7943 = vpop.f32.mrf.mxu0
    %v7944 = vadd.f32 0.0, %v7943
    %v7945 = vpop.f32.mrf.mxu0
    %v7946 = vpop.f32.mrf.mxu0
    %7947 = vdwg.mxu0
    %v7948 = vld [vmem:[%s2397] sm:$0xff]
    %v7949 = vld [vmem:[%s2397 + $0x8] sm:$0xff]
    %v7950 = vunpack.c.l.bf16 %v7948
    %v7951 = vunpack.c.h.bf16 %v7948
    %v7952 = vunpack.c.l.bf16 %v7949
    %v7953 = vunpack.c.h.bf16 %v7949
    %v7954 = vadd.f32 %v7950, %v7819
    %v7955 = vadd.f32 %v7951, %v7821
    %v7956 = vadd.f32 %v7952, %v7860
    %v7957 = vadd.f32 %v7953, %v7862
    %v7958 = vld [vmem:[#allocation5 + $0x10] sm:$0xff]
    %v7959 = vld [vmem:[#allocation5 + $0x18] sm:$0xff]
    %v7960 = vunpack.c.l.bf16 %v7958
    %v7961 = vunpack.c.h.bf16 %v7958
    %v7962 = vunpack.c.l.bf16 %v7959
    %v7963 = vunpack.c.h.bf16 %v7959
    %v7964 = vadd.f32 %v7960, %v7901
    %v7965 = vadd.f32 %v7961, %v7903
    %v7966 = vadd.f32 %v7962, %v7942
    %v7967 = vadd.f32 %v7963, %v7944
    %v7968 = vmul.f32 %v7954, 0.5
    %v7969 = vtanh.pop %v7968
    %v7970 = vmul.f32 %v7969, 0.5
    %v7971 = vadd.f32 %v7970, 0.5
    %v7972 = vmul.f32 %v7955, 0.5
    %v7973 = vtanh.pop %v7972
    %v7974 = vmul.f32 %v7973, 0.5
    %v7975 = vadd.f32 %v7974, 0.5
    %v7976 = vtanh.pop %v7956
    %v7977 = vmul.f32 %v7957, 0.5
    %v7978 = vtanh.pop %v7977
    %v7979 = vmul.f32 %v7978, 0.5
    %v7980 = vadd.f32 %v7979, 0.5
    %v7981 = vmul.f32 %v7975, %v7759
    %v7982 = vmul.f32 %v7971, %v7976
    %v7983 = vadd.f32 %v7981, %v7982
    %v7984 = vtanh.pop %v7983
    %v7985 = vmul.f32 %v7980, %v7984
    %v7986 = vmul.f32 %v7964, 0.5
    %v7987 = vtanh.pop %v7986
    %v7988 = vmul.f32 %v7987, 0.5
    %v7989 = vadd.f32 %v7988, 0.5
    %v7990 = vmul.f32 %v7965, 0.5
    %v7991 = vtanh.pop %v7990
    %v7992 = vmul.f32 %v7991, 0.5
    %v7993 = vadd.f32 %v7992, 0.5
    %v7994 = vtanh.pop %v7966
    %v7995 = vmul.f32 %v7967, 0.5
    %v7996 = vtanh.pop %v7995
    %v7997 = vmul.f32 %v7996, 0.5
    %v7998 = vadd.f32 %v7997, 0.5
    %v7999 = vmul.f32 %v7993, %v7777
    %v8000 = vmul.f32 %v7989, %v7994
    %v8001 = vadd.f32 %v7999, %v8000
    %v8002 = vtanh.pop %v8001
    %v8003 = vmul.f32 %v7998, %v8002
    %8004 = vst [vmem:[%s6430] sm:$0xff] %v7985
    %8005 = vst [vmem:[#allocation4 + $0x8] sm:$0xff] %v8003
    %v8006 = vld [vmem:[%s6430] sm:$0xff]
    %v8007 = vld [vmem:[%s6430 + $0x8] sm:$0xff]
    %v8008 = vpack.c.bf16 %v8006, %v8006
    %v8009 = vpack.c.bf16 %v8007, %v8007
    %v8010 = vld [vmem:[%s10] sm:$0xf]
    %v8011 = vld [vmem:[%s10 + $0x4] sm:$0xf]
    %v8012 = vld [vmem:[%s10 + $0x8] sm:$0xf]
    %v8013 = vld [vmem:[%s10 + $0xc] sm:$0xf]
    %v8014 = vld [vmem:[%s10 + $0x10] sm:$0xf]
    %v8015 = vld [vmem:[%s10 + $0x14] sm:$0xf]
    %v8016 = vld [vmem:[%s10 + $0x18] sm:$0xf]
    %v8017 = vld [vmem:[%s10 + $0x1c] sm:$0xf]
    %v8018 = vld [vmem:[%s10 + $0x20] sm:$0xf]
    %v8019 = vld [vmem:[%s10 + $0x24] sm:$0xf]
    %v8020 = vld [vmem:[%s10 + $0x28] sm:$0xf]
    %v8021 = vld [vmem:[%s10 + $0x2c] sm:$0xf]
    %v8022 = vld [vmem:[%s10 + $0x30] sm:$0xf]
    %v8023 = vld [vmem:[%s10 + $0x34] sm:$0xf]
    %v8024 = vld [vmem:[%s10 + $0x38] sm:$0xf]
    %v8025 = vld [vmem:[%s10 + $0x3c] sm:$0xf]
    %v8026 = vld [vmem:[%s10 + $0x40] sm:$0xf]
    %v8027 = vld [vmem:[%s10 + $0x44] sm:$0xf]
    %v8028 = vld [vmem:[%s10 + $0x48] sm:$0xf]
    %v8029 = vld [vmem:[%s10 + $0x4c] sm:$0xf]
    %v8030 = vld [vmem:[%s10 + $0x50] sm:$0xf]
    %v8031 = vld [vmem:[%s10 + $0x54] sm:$0xf]
    %v8032 = vld [vmem:[%s10 + $0x58] sm:$0xf]
    %v8033 = vld [vmem:[%s10 + $0x5c] sm:$0xf]
    %v8034 = vld [vmem:[%s10 + $0x60] sm:$0xf]
    %v8035 = vld [vmem:[%s10 + $0x64] sm:$0xf]
    %v8036 = vld [vmem:[%s10 + $0x68] sm:$0xf]
    %v8037 = vld [vmem:[%s10 + $0x6c] sm:$0xf]
    %v8038 = vld [vmem:[%s10 + $0x70] sm:$0xf]
    %v8039 = vld [vmem:[%s10 + $0x74] sm:$0xf]
    %v8040 = vld [vmem:[%s10 + $0x78] sm:$0xf]
    %v8041 = vld [vmem:[%s10 + $0x7c] sm:$0xf]
    %v8042 = vld [vmem:[%s11] sm:$0x1]
    %v8044 = vlaneseq
    %v8045 = vshrl.u32 %v8044, 7
    %v8046 = vsub.s32 0, %v8045
    %v8047 = vrot.slane %v8042, %v8046
    %v8081 = vunpack.c.l.b16 %v8010
    %v8082 = vunpack.c.l.b16 %v8011
    %v8083 = vunpack.c.l.b16 %v8012
    %v8084 = vunpack.c.l.b16 %v8013
    %v8085 = vunpack.c.l.b16 %v8014
    %v8086 = vunpack.c.l.b16 %v8015
    %v8087 = vunpack.c.l.b16 %v8016
    %v8088 = vunpack.c.l.b16 %v8017
    %v8089 = vunpack.c.l.b16 %v8018
    %v8090 = vunpack.c.l.b16 %v8019
    %v8091 = vunpack.c.l.b16 %v8020
    %v8092 = vunpack.c.l.b16 %v8021
    %v8093 = vunpack.c.l.b16 %v8022
    %v8094 = vunpack.c.l.b16 %v8023
    %v8095 = vunpack.c.l.b16 %v8024
    %v8096 = vunpack.c.l.b16 %v8025
    %v8097 = vunpack.c.l.b16 %v8026
    %v8098 = vunpack.c.l.b16 %v8027
    %v8099 = vunpack.c.l.b16 %v8028
    %v8100 = vunpack.c.l.b16 %v8029
    %v8101 = vunpack.c.l.b16 %v8030
    %v8102 = vunpack.c.l.b16 %v8031
    %v8103 = vunpack.c.l.b16 %v8032
    %v8104 = vunpack.c.l.b16 %v8033
    %v8105 = vunpack.c.l.b16 %v8034
    %v8106 = vunpack.c.l.b16 %v8035
    %v8107 = vunpack.c.l.b16 %v8036
    %v8108 = vunpack.c.l.b16 %v8037
    %v8109 = vunpack.c.l.b16 %v8038
    %v8110 = vunpack.c.l.b16 %v8039
    %v8111 = vunpack.c.l.b16 %v8040
    %v8112 = vunpack.c.l.b16 %v8041
    %v8113 = vpack.c.b16 %v8082, %v8081
    %v8114 = vpack.c.b16 %v8084, %v8083
    %v8115 = vpack.c.b16 %v8086, %v8085
    %v8116 = vpack.c.b16 %v8088, %v8087
    %v8117 = vpack.c.b16 %v8090, %v8089
    %v8118 = vpack.c.b16 %v8092, %v8091
    %v8119 = vpack.c.b16 %v8094, %v8093
    %v8120 = vpack.c.b16 %v8096, %v8095
    %v8121 = vpack.c.b16 %v8098, %v8097
    %v8122 = vpack.c.b16 %v8100, %v8099
    %v8123 = vpack.c.b16 %v8102, %v8101
    %v8124 = vpack.c.b16 %v8104, %v8103
    %v8125 = vpack.c.b16 %v8106, %v8105
    %v8126 = vpack.c.b16 %v8108, %v8107
    %v8127 = vpack.c.b16 %v8110, %v8109
    %v8128 = vpack.c.b16 %v8112, %v8111
    %8145 = vmatprep.subr.bf16.mxu0 0
    %8146 = vmatpush1.bf16.msra.mxu0 %v8120
    %8147 = vmatprep.subr.bf16.mxu0 0
    %8148 = vmatpush1.bf16.msra.mxu0 %v8119
    %8149 = vmatprep.subr.bf16.mxu0 0
    %8150 = vmatpush1.bf16.msra.mxu0 %v8118
    %8151 = vmatprep.subr.bf16.mxu0 0
    %8152 = vmatpush1.bf16.msra.mxu0 %v8117
    %8153 = vmatprep.subr.bf16.mxu0 0
    %8154 = vmatpush1.bf16.msra.mxu0 %v8116
    %8155 = vmatprep.subr.bf16.mxu0 0
    %8156 = vmatpush1.bf16.msra.mxu0 %v8115
    %8157 = vmatprep.subr.bf16.mxu0 0
    %8158 = vmatpush1.bf16.msra.mxu0 %v8114
    %8159 = vmatprep.subr.bf16.mxu0 0
    %8160 = vmatpush1.bf16.msra.mxu0 %v8113
    %8161 = vmatprep.subr.bf16.mxu0 0
    %8162 = vmatpush2.bf16.msra.mxu0 %v8128
    %8163 = vmatprep.subr.bf16.mxu0 0
    %8164 = vmatpush2.bf16.msra.mxu0 %v8127
    %8165 = vmatprep.subr.bf16.mxu0 0
    %8166 = vmatpush2.bf16.msra.mxu0 %v8126
    %8167 = vmatprep.subr.bf16.mxu0 0
    %8168 = vmatpush2.bf16.msra.mxu0 %v8125
    %8169 = vmatprep.subr.bf16.mxu0 0
    %8170 = vmatpush2.bf16.msra.mxu0 %v8124
    %8171 = vmatprep.subr.bf16.mxu0 0
    %8172 = vmatpush2.bf16.msra.mxu0 %v8123
    %8173 = vmatprep.subr.bf16.mxu0 0
    %8174 = vmatpush2.bf16.msra.mxu0 %v8122
    %8175 = vmatprep.subr.bf16.mxu0 0
    %8176 = vmatpush2.bf16.msra.mxu0 %v8121
    %8177 = vmatprep.mubr.bf16.mxu0 %v8009
    %8178 = vmatmul.mubr.bf16.gmra.mxu0 %v8008
    %v8179 = vpop.f32.mrf.mxu0
    %v8180 = vadd.f32 %v8047, %v8179
    %v8181 = vpop.f32.mrf.mxu0
    %v8182 = vpop.f32.mrf.mxu0
    %v8183 = vpop.f32.mrf.mxu0
    %8184 = vdwg.mxu0
    %v8185 = vmax.f32 %v8180, 0.0
    %v8186 = vpack.c.bf16 %v8185, %v8185
    %v8187 = vld [vmem:[%s12] sm:$0xf]
    %v8188 = vld [vmem:[%s12 + $0x4] sm:$0xf]
    %v8189 = vld [vmem:[%s12 + $0x8] sm:$0xf]
    %v8190 = vld [vmem:[%s12 + $0xc] sm:$0xf]
    %v8191 = vld [vmem:[%s12 + $0x10] sm:$0xf]
    %v8192 = vld [vmem:[%s12 + $0x14] sm:$0xf]
    %v8193 = vld [vmem:[%s12 + $0x18] sm:$0xf]
    %v8194 = vld [vmem:[%s12 + $0x1c] sm:$0xf]
    %v8195 = vld [vmem:[%s12 + $0x20] sm:$0xf]
    %v8196 = vld [vmem:[%s12 + $0x24] sm:$0xf]
    %v8197 = vld [vmem:[%s12 + $0x28] sm:$0xf]
    %v8198 = vld [vmem:[%s12 + $0x2c] sm:$0xf]
    %v8199 = vld [vmem:[%s12 + $0x30] sm:$0xf]
    %v8200 = vld [vmem:[%s12 + $0x34] sm:$0xf]
    %v8201 = vld [vmem:[%s12 + $0x38] sm:$0xf]
    %v8202 = vld [vmem:[%s12 + $0x3c] sm:$0xf]
    %v8203 = vld [vmem:[%s13] sm:$0x1]
    %v8205 = vlaneseq
    %v8206 = vshrl.u32 %v8205, 7
    %v8207 = vsub.s32 0, %v8206
    %v8208 = vrot.slane %v8203, %v8207
    %v8226 = vunpack.c.l.b16 %v8187
    %v8227 = vunpack.c.l.b16 %v8188
    %v8228 = vunpack.c.l.b16 %v8189
    %v8229 = vunpack.c.l.b16 %v8190
    %v8230 = vunpack.c.l.b16 %v8191
    %v8231 = vunpack.c.l.b16 %v8192
    %v8232 = vunpack.c.l.b16 %v8193
    %v8233 = vunpack.c.l.b16 %v8194
    %v8234 = vunpack.c.l.b16 %v8195
    %v8235 = vunpack.c.l.b16 %v8196
    %v8236 = vunpack.c.l.b16 %v8197
    %v8237 = vunpack.c.l.b16 %v8198
    %v8238 = vunpack.c.l.b16 %v8199
    %v8239 = vunpack.c.l.b16 %v8200
    %v8240 = vunpack.c.l.b16 %v8201
    %v8241 = vunpack.c.l.b16 %v8202
    %v8242 = vpack.c.b16 %v8227, %v8226
    %v8243 = vpack.c.b16 %v8229, %v8228
    %v8244 = vpack.c.b16 %v8231, %v8230
    %v8245 = vpack.c.b16 %v8233, %v8232
    %v8246 = vpack.c.b16 %v8235, %v8234
    %v8247 = vpack.c.b16 %v8237, %v8236
    %v8248 = vpack.c.b16 %v8239, %v8238
    %v8249 = vpack.c.b16 %v8241, %v8240
    %8258 = vmatprep.subr.bf16.mxu0 0
    %8259 = vmatpush1.bf16.msra.mxu0 %v8249
    %8260 = vmatprep.subr.bf16.mxu0 0
    %8261 = vmatpush1.bf16.msra.mxu0 %v8248
    %8262 = vmatprep.subr.bf16.mxu0 0
    %8263 = vmatpush1.bf16.msra.mxu0 %v8247
    %8264 = vmatprep.subr.bf16.mxu0 0
    %8265 = vmatpush1.bf16.msra.mxu0 %v8246
    %8266 = vmatprep.subr.bf16.mxu0 0
    %8267 = vmatpush1.bf16.msra.mxu0 %v8245
    %8268 = vmatprep.subr.bf16.mxu0 0
    %8269 = vmatpush1.bf16.msra.mxu0 %v8244
    %8270 = vmatprep.subr.bf16.mxu0 0
    %8271 = vmatpush1.bf16.msra.mxu0 %v8243
    %8272 = vmatprep.subr.bf16.mxu0 0
    %8273 = vmatpush1.bf16.msra.mxu0 %v8242
    %8274 = vmatprep.subr.bf16.mxu0 0
    %8275 = vmatpush2.bf16.msra.mxu0 0
    %8276 = vmatprep.subr.bf16.mxu0 0
    %8277 = vmatpush2.bf16.msra.mxu0 0
    %8278 = vmatprep.subr.bf16.mxu0 0
    %8279 = vmatpush2.bf16.msra.mxu0 0
    %8280 = vmatprep.subr.bf16.mxu0 0
    %8281 = vmatpush2.bf16.msra.mxu0 0
    %8282 = vmatprep.subr.bf16.mxu0 0
    %8283 = vmatpush2.bf16.msra.mxu0 0
    %8284 = vmatprep.subr.bf16.mxu0 0
    %8285 = vmatpush2.bf16.msra.mxu0 0
    %8286 = vmatprep.subr.bf16.mxu0 0
    %8287 = vmatpush2.bf16.msra.mxu0 0
    %8288 = vmatprep.subr.bf16.mxu0 0
    %8289 = vmatpush2.bf16.msra.mxu0 0
    %8290 = vmatprep.mubr.bf16.mxu0 0
    %8291 = vmatmul.mubr.bf16.gmra.mxu0 %v8186
    %v8292 = vpop.f32.mrf.mxu0
    %v8293 = vadd.f32 %v8208, %v8292
    %v8294 = vpop.f32.mrf.mxu0
    %v8295 = vpop.f32.mrf.mxu0
    %v8296 = vpop.f32.mrf.mxu0
    %8297 = vdwg.mxu0
    %8298 = vst [vmem:[%s14] sm:$0xff] %v8293
    // Predicated region
    $region70: #{original_net_forward.1} parent=1 // pred_check
      _
    $region71: #{original_net_forward.1} parent=1 // pred_check_branch
      %8300 = sbr.rel (0) target = $region73
    $region72: #{original_net_forward.1} parent=1 // pred_region
      _
    $region73: #{original_net_forward.1} parent=1 // pred_fallthru
      _
    // Predicated region
    $region74: #{original_net_forward.1} parent=1 // pred_check
      _
    $region75: #{original_net_forward.1} parent=1 // pred_check_branch
      %8302 = sbr.rel (0) target = $region77
    $region76: #{original_net_forward.1} parent=1 // pred_region
      _
    $region77: #{original_net_forward.1} parent=1 // pred_fallthru
      _
    %8303 = vsyncpa [#allocation7], 1
    %8304 = vsyncpa [#allocation9], 1

</llo_original>
